<compile_context>
chip_gen: v6e
topology: v6e:2x2x1
jax: 0.10.0
libtpu: 0.0.40
codegen_flags: <defaults>
</compile_context>

<pallas_src>
import functools

import jax
import jax.numpy as jnp
from jax.experimental import pallas as pl
from jax.experimental.pallas import tpu as pltpu

# ------------------------------------------------------------------ config ---
N_VOCAB = 128
WORD_EMB_DIM = 32
RNN_HID_DIM = 32
CTX_IN_DIM = 8
CTX_EMB_DIM = 16
CTX_PAD = 32          # ctx input zero-padded to 32 cols so ctx weights stack as 32x32
BSZ = 4
B_PAD = 8             # batch padded to a full sublane group
ENC_LEN = 8
DEC_LEN = 6
NUM_GROUPS = 8        # independent batch groups streamed through the grid
BOS_IDX = 1
EOS_IDX = 2
PAD_IDX = 0
OPT_BATCH_SIZE = 4    # opt.batch_size used for the final loss scaling

# indices into the packed GRU stack (4, 32, 96) / (4, 1, 96)
_E_IH, _E_HH, _D_IH, _D_HH = 0, 1, 2, 3
# indices into the packed 32x32 stack (6, 32, 32) / (6, 1, 32)
_K, _V, _C2A_H, _C2A_2, _CTX, _C2A_C = 0, 1, 2, 3, 4, 5


# ------------------------------------------------------------ fused kernel ---
def _seq2seq_kernel(
    # per-group data (block per grid step)
    txt_ids_ref, lens_ref, dec_ids_ref, lbl_ids_ref, ctx_ref,
    # packed weights (constant block index -> VMEM-resident across the grid)
    emb_ref, gru_w_ref, gru_b_ref, w32_ref, b32_ref, w_out_ref, b_out_ref,
    # output
    loss_ref,
    # VMEM scratch
    gi_enc_sc, gi_dec_sc, enc_hs_sc, k_sc, v_sc, ha_sc,
    *, s_enc, s_dec, b8, hid, n_vocab, pad_idx, inv_batch):
    f32 = jnp.float32
    h2 = 2 * hid

    # ---- in-kernel embedding lookup: one-hot matmul against resident table ---
    emb = emb_ref[...]                                   # (n_vocab, emb_dim)

    def embed(ids_ref, n_rows):
        ids = ids_ref[...]                               # (n_rows, 1) int32
        iota = jax.lax.broadcasted_iota(jnp.int32, (n_rows, n_vocab), 1)
        onehot = (iota == ids).astype(f32)
        # padding_idx row of the table is zero -> pad tokens embed to zero.
        return jnp.dot(onehot, emb, preferred_element_type=f32)

    x_enc = embed(txt_ids_ref, s_enc * b8)               # (s_enc*b8, emb_dim)
    x_dec = embed(dec_ids_ref, s_dec * b8)               # (s_dec*b8, emb_dim)

    # ---- hoisted input projections: one MXU call each instead of S tiny ones -
    gi_enc_sc[...] = (jnp.dot(x_enc, gru_w_ref[_E_IH],
                              preferred_element_type=f32) + gru_b_ref[_E_IH])
    gi_dec_sc[...] = (jnp.dot(x_dec, gru_w_ref[_D_IH],
                              preferred_element_type=f32) + gru_b_ref[_D_IH])

    e_whh = gru_w_ref[_E_HH]
    e_bhh = gru_b_ref[_E_HH]
    d_whh = gru_w_ref[_D_HH]
    d_bhh = gru_b_ref[_D_HH]

    def gru_step(gi, gh, h_prev):
        # PyTorch GRUCell semantics, gate order (r, z, n); r/z share one sigmoid.
        rz = jax.nn.sigmoid(gi[:, :h2] + gh[:, :h2])
        r = rz[:, :hid]
        z = rz[:, hid:]
        n = jnp.tanh(gi[:, h2:] + r * gh[:, h2:])
        return (1.0 - z) * n + z * h_prev

    lens = lens_ref[...]                                  # (b8, 1) int32

    # ---- encoder recurrence (unrolled, h carried in vregs) -------------------
    h = jnp.zeros((b8, hid), f32)
    for t in range(s_enc):
        lo = t * b8
        gi_t = gi_enc_sc[lo:lo + b8, :]
        gh_t = jnp.dot(h, e_whh, preferred_element_type=f32) + e_bhh
        h_new = gru_step(gi_t, gh_t, h)
        valid_t = (lens > t).astype(f32)                  # (b8, 1) in {0, 1}
        enc_hs_sc[lo:lo + b8, :] = h_new * valid_t        # pad_packed -> zeros
        h = valid_t * h_new + (1.0 - valid_t) * h         # final h = last valid

    # ---- context encoder + ctx_to_act ----------------------------------------
    # TODO(synk): load_context_encoder(opt, domain) is external; modeled as one
    # deterministic Linear(ctx_in -> ctx_emb_dim), zero-padded to 32x32.
    ctx_emb = (jnp.dot(ctx_ref[...], w32_ref[_CTX],
                       preferred_element_type=f32) + b32_ref[_CTX])
    pre = (jnp.dot(h, w32_ref[_C2A_H], preferred_element_type=f32)
           + jnp.dot(ctx_emb, w32_ref[_C2A_C], preferred_element_type=f32)
           + b32_ref[_C2A_H])                             # split == cat([h,ctx]) @ W1
    h = jnp.maximum(pre, 0.0)                             # ReLU, dropout = id
    h = jnp.dot(h, w32_ref[_C2A_2], preferred_element_type=f32) + b32_ref[_C2A_2]

    # ---- attention K/V slabs: hoisted out of the decoder loop ----------------
    enc_hs = enc_hs_sc[...]
    k_sc[...] = jnp.dot(enc_hs, w32_ref[_K], preferred_element_type=f32) + b32_ref[_K]
    v_sc[...] = jnp.dot(enc_hs, w32_ref[_V], preferred_element_type=f32) + b32_ref[_V]
    # NOTE: padded encoder positions have enc_hs == 0, so K/V there equal the
    # kv bias and still receive softmax weight — same as the PyTorch reference
    # (no length mask in attention()).

    # ---- decoder recurrence (teacher forcing = 1.0) ---------------------------
    for i in range(s_dec):
        lo = i * b8
        gi_t = gi_dec_sc[lo:lo + b8, :]
        gh_t = jnp.dot(h, d_whh, preferred_element_type=f32) + d_bhh
        h = gru_step(gi_t, gh_t, h)

        # attention, slab form: all s_enc scores in one multiply + one reduce
        h_rep = jnp.tile(h, (s_enc, 1))                   # (s_enc*b8, hid)
        scores = jnp.sum(h_rep * k_sc[...], axis=-1, keepdims=True)  # (s_enc*b8,1)
        m = scores[0:b8, :]
        for s in range(1, s_enc):
            m = jnp.maximum(m, scores[s * b8:(s + 1) * b8, :])
        e = jnp.exp(scores - jnp.tile(m, (s_enc, 1)))     # one EUP push
        weighted = e * v_sc[...]                          # (s_enc*b8, hid)
        attn = weighted[0:b8, :]
        denom = e[0:b8, :]
        for s in range(1, s_enc):
            attn = attn + weighted[s * b8:(s + 1) * b8, :]
            denom = denom + e[s * b8:(s + 1) * b8, :]
        attn = attn * pl.reciprocal(denom, approx=True)

        # combined (h | attn) scratch -> single K=64 matmul in the output head
        ha_sc[lo:lo + b8, :hid] = h
        ha_sc[lo:lo + b8, hid:] = attn

    # ---- output head + cross-entropy, batched over all decoder steps ---------
    ha = ha_sc[...]                                       # (s_dec*b8, 2*hid)
    y = (jnp.dot(ha, w_out_ref[:, :h2], preferred_element_type=f32)
         + b_out_ref[:, :h2])
    y = jnp.maximum(y, 0.0)
    logits = (jnp.dot(y, w_out_ref[:, 128:], preferred_element_type=f32)
              + b_out_ref[:, 128:])                       # (s_dec*b8, n_vocab)

    mx = jnp.max(logits, axis=-1, keepdims=True)
    shifted = logits - mx
    lse = jnp.log(jnp.sum(jnp.exp(shifted), axis=-1, keepdims=True))
    logp = shifted - lse

    lbl = lbl_ids_ref[...]                                # (s_dec*b8, 1) int32
    iota_v = jax.lax.broadcasted_iota(jnp.int32, (s_dec * b8, n_vocab), 1)
    onehot_l = (iota_v == lbl).astype(f32)
    nll = -jnp.sum(logp * onehot_l, axis=-1, keepdims=True)   # (s_dec*b8, 1)
    mask = (lbl != pad_idx).astype(f32)                   # ignore_index mask

    # per-step mean CE (ignore_index), summed over steps, / opt.batch_size
    total = jnp.zeros((1, 1), f32)
    for i in range(s_dec):
        lo = i * b8
        msk = mask[lo:lo + b8, :]
        cnt = jnp.maximum(jnp.sum(msk, keepdims=True), 1.0)   # guard all-PAD step
        total = total + jnp.sum(nll[lo:lo + b8, :] * msk, keepdims=True) / cnt
    loss_ref[...] = total * inv_batch


# -------------------------------------------------------------- parameters ---
def init_params(key):
    keys = jax.random.split(key, 20)
    s = 0.1

    def nrm(k, shape):
        return jax.random.normal(k, shape, jnp.float32) * s

    def gru_params(k0, k1, k2, k3, in_dim):
        return dict(wih=nrm(k0, (in_dim, 3 * RNN_HID_DIM)),
                    whh=nrm(k1, (RNN_HID_DIM, 3 * RNN_HID_DIM)),
                    bih=nrm(k2, (3 * RNN_HID_DIM,)),
                    bhh=nrm(k3, (3 * RNN_HID_DIM,)))

    p = {}
    emb = nrm(keys[0], (N_VOCAB, WORD_EMB_DIM))
    p['embedding'] = emb.at[PAD_IDX].set(0.0)            # padding_idx row is zero
    p['enc'] = gru_params(keys[1], keys[2], keys[3], keys[4], WORD_EMB_DIM)
    p['dec'] = gru_params(keys[5], keys[6], keys[7], keys[8], WORD_EMB_DIM)
    p['kv_w'] = nrm(keys[9], (RNN_HID_DIM, 2 * RNN_HID_DIM))
    p['kv_b'] = nrm(keys[10], (2 * RNN_HID_DIM,))
    p['ctx_w'] = nrm(keys[11], (CTX_IN_DIM, CTX_EMB_DIM))
    p['ctx_b'] = jnp.zeros((CTX_EMB_DIM,), jnp.float32)
    p['c2a_w1'] = nrm(keys[12], (RNN_HID_DIM + CTX_EMB_DIM, RNN_HID_DIM))
    p['c2a_b1'] = jnp.zeros((RNN_HID_DIM,), jnp.float32)
    p['c2a_w2'] = nrm(keys[13], (RNN_HID_DIM, RNN_HID_DIM))
    p['c2a_b2'] = jnp.zeros((RNN_HID_DIM,), jnp.float32)
    out_dim = 2 * RNN_HID_DIM                             # use_attention=True
    p['out_w1'] = nrm(keys[14], (out_dim, out_dim))
    p['out_b1'] = jnp.zeros((out_dim,), jnp.float32)
    p['out_w2'] = nrm(keys[15], (out_dim, N_VOCAB))
    p['out_b2'] = jnp.zeros((N_VOCAB,), jnp.float32)
    return p


def pack_params(p):
    """Pack the 20 weight/bias tensors into 7 operands. Done ONCE, outside jit."""
    f32 = jnp.float32
    hid = RNN_HID_DIM

    def row(b):
        return b.reshape(1, -1).astype(f32)

    gru_w = jnp.stack([p['enc']['wih'], p['enc']['whh'],
                       p['dec']['wih'], p['dec']['whh']])            # (4,32,96)
    gru_b = jnp.stack([row(p['enc']['bih']), row(p['enc']['bhh']),
                       row(p['dec']['bih']), row(p['dec']['bhh'])])  # (4,1,96)

    k_w, v_w = p['kv_w'][:, :hid], p['kv_w'][:, hid:]
    k_b, v_b = p['kv_b'][:hid], p['kv_b'][hid:]
    ctx_w_pad = jnp.zeros((hid, hid), f32).at[:CTX_IN_DIM, :CTX_EMB_DIM].set(p['ctx_w'])
    ctx_b_pad = jnp.zeros((hid,), f32).at[:CTX_EMB_DIM].set(p['ctx_b'])
    c2a_ctx_pad = jnp.zeros((hid, hid), f32).at[:CTX_EMB_DIM, :].set(p['c2a_w1'][hid:, :])

    w32 = jnp.stack([k_w, v_w, p['c2a_w1'][:hid, :], p['c2a_w2'],
                     ctx_w_pad, c2a_ctx_pad])                        # (6,32,32)
    b32 = jnp.stack([row(k_b), row(v_b), row(p['c2a_b1']), row(p['c2a_b2']),
                     row(ctx_b_pad), jnp.zeros((1, hid), f32)])      # (6,1,32)

    h2 = 2 * hid
    w_out = (jnp.zeros((h2, 256), f32)
             .at[:, :h2].set(p['out_w1'])        # cols [0:64)   (lane-tile 0)
             .at[:, 128:].set(p['out_w2']))      # cols [128:256) (lane-tile 1)
    b_out = (jnp.zeros((1, 256), f32)
             .at[0, :h2].set(p['out_b1'])
             .at[0, 128:].set(p['out_b2']))

    return dict(emb=p['embedding'].astype(f32), gru_w=gru_w, gru_b=gru_b,
                w32=w32, b32=b32, w_out=w_out, b_out=b_out)


# ----------------------------------------------------------------- forward ---
@jax.jit
def forward(packed, txt, txt_lens, lbl, ctx):
    """Batched mirror of Seq2SeqModel.forward over G independent batch groups.

    txt:      (G, ENC_LEN, BSZ) int32, pad beyond txt_lens
    txt_lens: (G, BSZ)          int32
    lbl:      (G, DEC_LEN, BSZ) int32
    ctx:      (G, BSZ, CTX_IN_DIM) float32
    Returns per-group scalar losses of shape (G,).
    """
    g, s_enc, b = txt.shape
    s_dec = lbl.shape[1]
    b8 = B_PAD
    pad_b = b8 - b

    # --- minimal host glue: pad batch dims, build decoder inputs, flatten -----
    txt_p = jnp.pad(txt, ((0, 0), (0, 0), (0, pad_b)), constant_values=PAD_IDX)
    lbl_p = jnp.pad(lbl, ((0, 0), (0, 0), (0, pad_b)), constant_values=PAD_IDX)
    lens_p = jnp.pad(txt_lens, ((0, 0), (0, pad_b)), constant_values=0)
    ctx_p = jnp.pad(ctx, ((0, 0), (0, pad_b), (0, CTX_PAD - CTX_IN_DIM)))

    bos = jnp.full((g, 1, b8), BOS_IDX, dtype=lbl_p.dtype)
    dec_in = jnp.concatenate([bos, lbl_p[:, :-1, :]], axis=1)   # teacher forcing=1.0

    txt_ids = txt_p.reshape(g, s_enc * b8, 1).astype(jnp.int32)
    dec_ids = dec_in.reshape(g, s_dec * b8, 1).astype(jnp.int32)
    lbl_ids = lbl_p.reshape(g, s_dec * b8, 1).astype(jnp.int32)
    lens_col = lens_p.reshape(g, b8, 1).astype(jnp.int32)
    ctx_p = ctx_p.astype(jnp.float32)

    kernel = functools.partial(
        _seq2seq_kernel, s_enc=s_enc, s_dec=s_dec, b8=b8, hid=RNN_HID_DIM,
        n_vocab=N_VOCAB, pad_idx=PAD_IDX, inv_batch=1.0 / OPT_BATCH_SIZE)

    grp = lambda gi: (gi, 0, 0)        # per-group data blocks
    cst2 = lambda gi: (0, 0)           # resident 2-D weights
    cst3 = lambda gi: (0, 0, 0)        # resident 3-D weight stacks

    losses = pl.pallas_call(
        kernel,
        grid=(g,),
        out_shape=jax.ShapeDtypeStruct((g, 1, 1), jnp.float32),
        in_specs=[
            # data: one group per grid step
            pl.BlockSpec((None, s_enc * b8, 1), grp),
            pl.BlockSpec((None, b8, 1), grp),
            pl.BlockSpec((None, s_dec * b8, 1), grp),
            pl.BlockSpec((None, s_dec * b8, 1), grp),
            pl.BlockSpec((None, b8, CTX_PAD), grp),
            # packed weights: constant block index -> loaded once, kept in VMEM
            pl.BlockSpec((N_VOCAB, WORD_EMB_DIM), cst2),
            pl.BlockSpec((4, RNN_HID_DIM, 3 * RNN_HID_DIM), cst3),
            pl.BlockSpec((4, 1, 3 * RNN_HID_DIM), cst3),
            pl.BlockSpec((6, RNN_HID_DIM, RNN_HID_DIM), cst3),
            pl.BlockSpec((6, 1, RNN_HID_DIM), cst3),
            pl.BlockSpec((2 * RNN_HID_DIM, 256), cst2),
            pl.BlockSpec((1, 256), cst2),
        ],
        out_specs=pl.BlockSpec((None, 1, 1), grp),
        scratch_shapes=[
            pltpu.VMEM((s_enc * b8, 3 * RNN_HID_DIM), jnp.float32),  # gi_enc
            pltpu.VMEM((s_dec * b8, 3 * RNN_HID_DIM), jnp.float32),  # gi_dec
            pltpu.VMEM((s_enc * b8, RNN_HID_DIM), jnp.float32),      # enc_hs
            pltpu.VMEM((s_enc * b8, RNN_HID_DIM), jnp.float32),      # K slab
            pltpu.VMEM((s_enc * b8, RNN_HID_DIM), jnp.float32),      # V slab
            pltpu.VMEM((s_dec * b8, 2 * RNN_HID_DIM), jnp.float32),  # (h|attn)
        ],
        compiler_params=pltpu.CompilerParams(
            dimension_semantics=("parallel",)),     # v7x: 2 TCs split the groups
    )(txt_ids, lens_col, dec_ids, lbl_ids, ctx_p,
      packed['emb'], packed['gru_w'], packed['gru_b'],
      packed['w32'], packed['b32'], packed['w_out'], packed['b_out'])

    return losses[:, 0, 0]


# -------------------------------------------------------------------- main ---
if __name__ == "__main__":
    key = jax.random.PRNGKey(0)
    k_par, k_len, k_txt, k_lbl, k_ctx = jax.random.split(key, 5)

    params = init_params(k_par)
    packed = pack_params(params)        # once, outside the hot path

    g = NUM_GROUPS
    txt_lens = jax.random.randint(k_len, (g, BSZ), 1, ENC_LEN + 1, jnp.int32)
    txt = jax.random.randint(k_txt, (g, ENC_LEN, BSZ), 3, N_VOCAB, jnp.int32)
    pos = jnp.arange(ENC_LEN, dtype=jnp.int32)[None, :, None]       # (1, S, 1)
    txt = jnp.where(pos < txt_lens[:, None, :], txt, PAD_IDX)       # pad tail

    lbl = jax.random.randint(k_lbl, (g, DEC_LEN, BSZ), 3, N_VOCAB, jnp.int32)
    ctx = jax.random.normal(k_ctx, (g, BSZ, CTX_IN_DIM), jnp.float32)

    losses = forward(packed, txt, txt_lens, lbl, ctx)
    losses = jax.block_until_ready(losses)
    assert losses.shape == (g,)
    assert bool(jnp.all(jnp.isfinite(losses))), f"non-finite losses: {losses}"
    print("KERNEL_OK")
</pallas_src>

<mosaic_0001>
module attributes {stable_mosaic.version = 11 : i64} {
  func.func @_seq2seq_kernel(%arg0: i32, %arg1: memref<1x64x1xi32, #tpu.memory_space<vmem>>, %arg2: memref<1x8x1xi32, #tpu.memory_space<vmem>>, %arg3: memref<1x48x1xi32, #tpu.memory_space<vmem>>, %arg4: memref<1x48x1xi32, #tpu.memory_space<vmem>>, %arg5: memref<1x8x32xf32, #tpu.memory_space<vmem>>, %arg6: memref<128x32xf32, #tpu.memory_space<vmem>>, %arg7: memref<4x32x96xf32, #tpu.memory_space<vmem>>, %arg8: memref<4x1x96xf32, #tpu.memory_space<vmem>>, %arg9: memref<6x32x32xf32, #tpu.memory_space<vmem>>, %arg10: memref<6x1x32xf32, #tpu.memory_space<vmem>>, %arg11: memref<64x256xf32, #tpu.memory_space<vmem>>, %arg12: memref<1x256xf32, #tpu.memory_space<vmem>>, %arg13: memref<1x1x1xf32, #tpu.memory_space<vmem>>, %arg14: memref<64x96xf32, #tpu.memory_space<vmem>>, %arg15: memref<48x96xf32, #tpu.memory_space<vmem>>, %arg16: memref<64x32xf32, #tpu.memory_space<vmem>>, %arg17: memref<64x32xf32, #tpu.memory_space<vmem>>, %arg18: memref<64x32xf32, #tpu.memory_space<vmem>>, %arg19: memref<48x64xf32, #tpu.memory_space<vmem>>) attributes {dimension_semantics = [#tpu.dimension_semantics<parallel>], iteration_bounds = array<i64: 8>, scalar_prefetch = 0 : i64, scratch_operands = 6 : i64, tpu.core_type = #tpu.core_type<tc>, window_params = [{transform_indices = @transform_0, window_bounds = array<i64: 1, 64, 1>}, {transform_indices = @transform_1, window_bounds = array<i64: 1, 8, 1>}, {transform_indices = @transform_2, window_bounds = array<i64: 1, 48, 1>}, {transform_indices = @transform_3, window_bounds = array<i64: 1, 48, 1>}, {transform_indices = @transform_4, window_bounds = array<i64: 1, 8, 32>}, {pipeline_mode = #tpu.pipeline_mode<synchronous>, transform_indices = @transform_5, window_bounds = array<i64: 128, 32>}, {pipeline_mode = #tpu.pipeline_mode<synchronous>, transform_indices = @transform_6, window_bounds = array<i64: 4, 32, 96>}, {pipeline_mode = #tpu.pipeline_mode<synchronous>, transform_indices = @transform_7, window_bounds = array<i64: 4, 1, 96>}, {pipeline_mode = #tpu.pipeline_mode<synchronous>, transform_indices = @transform_8, window_bounds = array<i64: 6, 32, 32>}, {pipeline_mode = #tpu.pipeline_mode<synchronous>, transform_indices = @transform_9, window_bounds = array<i64: 6, 1, 32>}, {pipeline_mode = #tpu.pipeline_mode<synchronous>, transform_indices = @transform_10, window_bounds = array<i64: 64, 256>}, {pipeline_mode = #tpu.pipeline_mode<synchronous>, transform_indices = @transform_11, window_bounds = array<i64: 1, 256>}, {transform_indices = @transform_12, window_bounds = array<i64: 1, 1, 1>}]} {
    %c0 = arith.constant 0 : index
    %c0_0 = arith.constant 0 : index
    %0 = vector.load %arg6[%c0, %c0_0] : memref<128x32xf32, #tpu.memory_space<vmem>>, vector<128x32xf32>
    %c0_1 = arith.constant 0 : index
    %c0_2 = arith.constant 0 : index
    %c0_3 = arith.constant 0 : index
    %1 = vector.load %arg1[%c0_1, %c0_2, %c0_3] : memref<1x64x1xi32, #tpu.memory_space<vmem>>, vector<1x64x1xi32>
    %2 = vector.shape_cast %1 : vector<1x64x1xi32> to vector<64x1xi32>
    %3 = tpu.iota {dimensions = array<i32: 1>} : vector<64x128xi32>
    %4 = vector.broadcast %2 : vector<64x1xi32> to vector<64x128xi32>
    %5 = arith.cmpi eq, %3, %4 : vector<64x128xi32>
    %6 = arith.extui %5 : vector<64x128xi1> to vector<64x128xi32>
    %7 = arith.sitofp %6 : vector<64x128xi32> to vector<64x128xf32>
    %cst = arith.constant dense<0.000000e+00> : vector<64x32xf32>
    %8 = tpu.matmul %7, %0, %cst {dimension_numbers = #tpu.dot_dimension_numbers<[1], [0], [0], [1], [0, 0, 1, 1], [], []>} : vector<64x128xf32>, vector<128x32xf32>, vector<64x32xf32> -> vector<64x32xf32>
    %c0_4 = arith.constant 0 : index
    %c0_5 = arith.constant 0 : index
    %c0_6 = arith.constant 0 : index
    %9 = vector.load %arg3[%c0_4, %c0_5, %c0_6] : memref<1x48x1xi32, #tpu.memory_space<vmem>>, vector<1x48x1xi32>
    %10 = vector.shape_cast %9 : vector<1x48x1xi32> to vector<48x1xi32>
    %11 = tpu.iota {dimensions = array<i32: 1>} : vector<48x128xi32>
    %12 = vector.broadcast %10 : vector<48x1xi32> to vector<48x128xi32>
    %13 = arith.cmpi eq, %11, %12 : vector<48x128xi32>
    %14 = arith.extui %13 : vector<48x128xi1> to vector<48x128xi32>
    %15 = arith.sitofp %14 : vector<48x128xi32> to vector<48x128xf32>
    %cst_7 = arith.constant dense<0.000000e+00> : vector<48x32xf32>
    %16 = tpu.matmul %15, %0, %cst_7 {dimension_numbers = #tpu.dot_dimension_numbers<[1], [0], [0], [1], [0, 0, 1, 1], [], []>} : vector<48x128xf32>, vector<128x32xf32>, vector<48x32xf32> -> vector<48x32xf32>
    %c0_8 = arith.constant 0 : index
    %c0_9 = arith.constant 0 : index
    %c0_10 = arith.constant 0 : index
    %17 = vector.load %arg7[%c0_8, %c0_9, %c0_10] : memref<4x32x96xf32, #tpu.memory_space<vmem>>, vector<1x32x96xf32>
    %18 = vector.shape_cast %17 : vector<1x32x96xf32> to vector<32x96xf32>
    %cst_11 = arith.constant dense<0.000000e+00> : vector<64x96xf32>
    %19 = tpu.matmul %8, %18, %cst_11 {dimension_numbers = #tpu.dot_dimension_numbers<[1], [0], [0], [1], [0, 0, 1, 1], [], []>} : vector<64x32xf32>, vector<32x96xf32>, vector<64x96xf32> -> vector<64x96xf32>
    %c0_12 = arith.constant 0 : index
    %c0_13 = arith.constant 0 : index
    %c0_14 = arith.constant 0 : index
    %20 = vector.load %arg8[%c0_12, %c0_13, %c0_14] : memref<4x1x96xf32, #tpu.memory_space<vmem>>, vector<1x1x96xf32>
    %21 = vector.shape_cast %20 : vector<1x1x96xf32> to vector<1x96xf32>
    %22 = vector.broadcast %21 : vector<1x96xf32> to vector<64x96xf32>
    %23 = arith.addf %19, %22 : vector<64x96xf32>
    %c0_15 = arith.constant 0 : index
    %c0_16 = arith.constant 0 : index
    %24 = vector.load %arg14[%c0_15, %c0_16] : memref<64x96xf32, #tpu.memory_space<vmem>>, vector<64x96xf32>
    tpu.vector_store %arg14[%c0_15, %c0_16], %23 {strides = array<i32>} : memref<64x96xf32, #tpu.memory_space<vmem>>, vector<64x96xf32>,
    %c2 = arith.constant 2 : index
    %c0_17 = arith.constant 0 : index
    %c0_18 = arith.constant 0 : index
    %25 = vector.load %arg7[%c2, %c0_17, %c0_18] : memref<4x32x96xf32, #tpu.memory_space<vmem>>, vector<1x32x96xf32>
    %26 = vector.shape_cast %25 : vector<1x32x96xf32> to vector<32x96xf32>
    %cst_19 = arith.constant dense<0.000000e+00> : vector<48x96xf32>
    %27 = tpu.matmul %16, %26, %cst_19 {dimension_numbers = #tpu.dot_dimension_numbers<[1], [0], [0], [1], [0, 0, 1, 1], [], []>} : vector<48x32xf32>, vector<32x96xf32>, vector<48x96xf32> -> vector<48x96xf32>
    %c2_20 = arith.constant 2 : index
    %c0_21 = arith.constant 0 : index
    %c0_22 = arith.constant 0 : index
    %28 = vector.load %arg8[%c2_20, %c0_21, %c0_22] : memref<4x1x96xf32, #tpu.memory_space<vmem>>, vector<1x1x96xf32>
    %29 = vector.shape_cast %28 : vector<1x1x96xf32> to vector<1x96xf32>
    %30 = vector.broadcast %29 : vector<1x96xf32> to vector<48x96xf32>
    %31 = arith.addf %27, %30 : vector<48x96xf32>
    %c0_23 = arith.constant 0 : index
    %c0_24 = arith.constant 0 : index
    %32 = vector.load %arg15[%c0_23, %c0_24] : memref<48x96xf32, #tpu.memory_space<vmem>>, vector<48x96xf32>
    tpu.vector_store %arg15[%c0_23, %c0_24], %31 {strides = array<i32>} : memref<48x96xf32, #tpu.memory_space<vmem>>, vector<48x96xf32>,
    %c1 = arith.constant 1 : index
    %c0_25 = arith.constant 0 : index
    %c0_26 = arith.constant 0 : index
    %33 = vector.load %arg7[%c1, %c0_25, %c0_26] : memref<4x32x96xf32, #tpu.memory_space<vmem>>, vector<1x32x96xf32>
    %34 = vector.shape_cast %33 : vector<1x32x96xf32> to vector<32x96xf32>
    %c1_27 = arith.constant 1 : index
    %c0_28 = arith.constant 0 : index
    %c0_29 = arith.constant 0 : index
    %35 = vector.load %arg8[%c1_27, %c0_28, %c0_29] : memref<4x1x96xf32, #tpu.memory_space<vmem>>, vector<1x1x96xf32>
    %36 = vector.shape_cast %35 : vector<1x1x96xf32> to vector<1x96xf32>
    %c3 = arith.constant 3 : index
    %c0_30 = arith.constant 0 : index
    %c0_31 = arith.constant 0 : index
    %37 = vector.load %arg7[%c3, %c0_30, %c0_31] : memref<4x32x96xf32, #tpu.memory_space<vmem>>, vector<1x32x96xf32>
    %38 = vector.shape_cast %37 : vector<1x32x96xf32> to vector<32x96xf32>
    %c3_32 = arith.constant 3 : index
    %c0_33 = arith.constant 0 : index
    %c0_34 = arith.constant 0 : index
    %39 = vector.load %arg8[%c3_32, %c0_33, %c0_34] : memref<4x1x96xf32, #tpu.memory_space<vmem>>, vector<1x1x96xf32>
    %40 = vector.shape_cast %39 : vector<1x1x96xf32> to vector<1x96xf32>
    %c0_35 = arith.constant 0 : index
    %c0_36 = arith.constant 0 : index
    %c0_37 = arith.constant 0 : index
    %41 = vector.load %arg2[%c0_35, %c0_36, %c0_37] : memref<1x8x1xi32, #tpu.memory_space<vmem>>, vector<1x8x1xi32>
    %42 = vector.shape_cast %41 : vector<1x8x1xi32> to vector<8x1xi32>
    %cst_38 = arith.constant 0.000000e+00 : f32
    %43 = vector.broadcast %cst_38 : f32 to vector<8x32xf32>
    %c0_39 = arith.constant 0 : index
    %c0_40 = arith.constant 0 : index
    %44 = vector.load %arg14[%c0_39, %c0_40] : memref<64x96xf32, #tpu.memory_space<vmem>>, vector<8x96xf32>
    %cst_41 = arith.constant dense<0.000000e+00> : vector<8x96xf32>
    %45 = tpu.matmul %43, %34, %cst_41 {dimension_numbers = #tpu.dot_dimension_numbers<[1], [0], [0], [1], [0, 0, 1, 1], [], []>} : vector<8x32xf32>, vector<32x96xf32>, vector<8x96xf32> -> vector<8x96xf32>
    %46 = vector.broadcast %36 : vector<1x96xf32> to vector<8x96xf32>
    %47 = arith.addf %45, %46 : vector<8x96xf32>
    %48 = vector.extract_strided_slice %44 {offsets = [0, 0], sizes = [8, 64], strides = [1, 1]} : vector<8x96xf32> to vector<8x64xf32>
    %49 = vector.extract_strided_slice %47 {offsets = [0, 0], sizes = [8, 64], strides = [1, 1]} : vector<8x96xf32> to vector<8x64xf32>
    %50 = arith.addf %48, %49 : vector<8x64xf32>
    %51 = arith.negf %50 : vector<8x64xf32>
    %52 = math.exp %51 : vector<8x64xf32>
    %cst_42 = arith.constant 1.000000e+00 : f32
    %53 = vector.broadcast %cst_42 : f32 to vector<8x64xf32>
    %54 = arith.addf %53, %52 : vector<8x64xf32>
    %55 = arith.divf %53, %54 : vector<8x64xf32>
    %56 = vector.extract_strided_slice %55 {offsets = [0, 0], sizes = [8, 32], strides = [1, 1]} : vector<8x64xf32> to vector<8x32xf32>
    %57 = vector.extract_strided_slice %55 {offsets = [0, 32], sizes = [8, 32], strides = [1, 1]} : vector<8x64xf32> to vector<8x32xf32>
    %58 = vector.extract_strided_slice %44 {offsets = [0, 64], sizes = [8, 32], strides = [1, 1]} : vector<8x96xf32> to vector<8x32xf32>
    %59 = vector.extract_strided_slice %47 {offsets = [0, 64], sizes = [8, 32], strides = [1, 1]} : vector<8x96xf32> to vector<8x32xf32>
    %60 = arith.mulf %56, %59 : vector<8x32xf32>
    %61 = arith.addf %58, %60 : vector<8x32xf32>
    %62 = math.tanh %61 : vector<8x32xf32>
    %cst_43 = arith.constant 1.000000e+00 : f32
    %63 = vector.broadcast %cst_43 : f32 to vector<8x32xf32>
    %64 = arith.subf %63, %57 : vector<8x32xf32>
    %65 = arith.mulf %64, %62 : vector<8x32xf32>
    %66 = arith.mulf %57, %43 : vector<8x32xf32>
    %67 = arith.addf %65, %66 : vector<8x32xf32>
    %c0_i32 = arith.constant 0 : i32
    %68 = vector.broadcast %c0_i32 : i32 to vector<8x1xi32>
    %69 = arith.cmpi sgt, %42, %68 : vector<8x1xi32>
    %70 = arith.extui %69 : vector<8x1xi1> to vector<8x1xi32>
    %71 = arith.sitofp %70 : vector<8x1xi32> to vector<8x1xf32>
    %72 = vector.broadcast %71 : vector<8x1xf32> to vector<8x32xf32>
    %73 = arith.mulf %67, %72 : vector<8x32xf32>
    %c0_44 = arith.constant 0 : index
    %c0_45 = arith.constant 0 : index
    %74 = vector.load %arg16[%c0_44, %c0_45] : memref<64x32xf32, #tpu.memory_space<vmem>>, vector<8x32xf32>
    tpu.vector_store %arg16[%c0_44, %c0_45], %73 {strides = array<i32>} : memref<64x32xf32, #tpu.memory_space<vmem>>, vector<8x32xf32>,
    %75 = vector.broadcast %71 : vector<8x1xf32> to vector<8x32xf32>
    %76 = arith.mulf %75, %67 : vector<8x32xf32>
    %cst_46 = arith.constant 1.000000e+00 : f32
    %77 = vector.broadcast %cst_46 : f32 to vector<8x1xf32>
    %78 = arith.subf %77, %71 : vector<8x1xf32>
    %79 = vector.broadcast %78 : vector<8x1xf32> to vector<8x32xf32>
    %80 = arith.mulf %79, %43 : vector<8x32xf32>
    %81 = arith.addf %76, %80 : vector<8x32xf32>
    %c8 = arith.constant 8 : index
    %c0_47 = arith.constant 0 : index
    %82 = vector.load %arg14[%c8, %c0_47] : memref<64x96xf32, #tpu.memory_space<vmem>>, vector<8x96xf32>
    %cst_48 = arith.constant dense<0.000000e+00> : vector<8x96xf32>
    %83 = tpu.matmul %81, %34, %cst_48 {dimension_numbers = #tpu.dot_dimension_numbers<[1], [0], [0], [1], [0, 0, 1, 1], [], []>} : vector<8x32xf32>, vector<32x96xf32>, vector<8x96xf32> -> vector<8x96xf32>
    %84 = vector.broadcast %36 : vector<1x96xf32> to vector<8x96xf32>
    %85 = arith.addf %83, %84 : vector<8x96xf32>
    %86 = vector.extract_strided_slice %82 {offsets = [0, 0], sizes = [8, 64], strides = [1, 1]} : vector<8x96xf32> to vector<8x64xf32>
    %87 = vector.extract_strided_slice %85 {offsets = [0, 0], sizes = [8, 64], strides = [1, 1]} : vector<8x96xf32> to vector<8x64xf32>
    %88 = arith.addf %86, %87 : vector<8x64xf32>
    %89 = arith.negf %88 : vector<8x64xf32>
    %90 = math.exp %89 : vector<8x64xf32>
    %cst_49 = arith.constant 1.000000e+00 : f32
    %91 = vector.broadcast %cst_49 : f32 to vector<8x64xf32>
    %92 = arith.addf %91, %90 : vector<8x64xf32>
    %93 = arith.divf %91, %92 : vector<8x64xf32>
    %94 = vector.extract_strided_slice %93 {offsets = [0, 0], sizes = [8, 32], strides = [1, 1]} : vector<8x64xf32> to vector<8x32xf32>
    %95 = vector.extract_strided_slice %93 {offsets = [0, 32], sizes = [8, 32], strides = [1, 1]} : vector<8x64xf32> to vector<8x32xf32>
    %96 = vector.extract_strided_slice %82 {offsets = [0, 64], sizes = [8, 32], strides = [1, 1]} : vector<8x96xf32> to vector<8x32xf32>
    %97 = vector.extract_strided_slice %85 {offsets = [0, 64], sizes = [8, 32], strides = [1, 1]} : vector<8x96xf32> to vector<8x32xf32>
    %98 = arith.mulf %94, %97 : vector<8x32xf32>
    %99 = arith.addf %96, %98 : vector<8x32xf32>
    %100 = math.tanh %99 : vector<8x32xf32>
    %cst_50 = arith.constant 1.000000e+00 : f32
    %101 = vector.broadcast %cst_50 : f32 to vector<8x32xf32>
    %102 = arith.subf %101, %95 : vector<8x32xf32>
    %103 = arith.mulf %102, %100 : vector<8x32xf32>
    %104 = arith.mulf %95, %81 : vector<8x32xf32>
    %105 = arith.addf %103, %104 : vector<8x32xf32>
    %c1_i32 = arith.constant 1 : i32
    %106 = vector.broadcast %c1_i32 : i32 to vector<8x1xi32>
    %107 = arith.cmpi sgt, %42, %106 : vector<8x1xi32>
    %108 = arith.extui %107 : vector<8x1xi1> to vector<8x1xi32>
    %109 = arith.sitofp %108 : vector<8x1xi32> to vector<8x1xf32>
    %110 = vector.broadcast %109 : vector<8x1xf32> to vector<8x32xf32>
    %111 = arith.mulf %105, %110 : vector<8x32xf32>
    %c8_51 = arith.constant 8 : index
    %c0_52 = arith.constant 0 : index
    %112 = vector.load %arg16[%c8_51, %c0_52] : memref<64x32xf32, #tpu.memory_space<vmem>>, vector<8x32xf32>
    tpu.vector_store %arg16[%c8_51, %c0_52], %111 {strides = array<i32>} : memref<64x32xf32, #tpu.memory_space<vmem>>, vector<8x32xf32>,
    %113 = vector.broadcast %109 : vector<8x1xf32> to vector<8x32xf32>
    %114 = arith.mulf %113, %105 : vector<8x32xf32>
    %cst_53 = arith.constant 1.000000e+00 : f32
    %115 = vector.broadcast %cst_53 : f32 to vector<8x1xf32>
    %116 = arith.subf %115, %109 : vector<8x1xf32>
    %117 = vector.broadcast %116 : vector<8x1xf32> to vector<8x32xf32>
    %118 = arith.mulf %117, %81 : vector<8x32xf32>
    %119 = arith.addf %114, %118 : vector<8x32xf32>
    %c16 = arith.constant 16 : index
    %c0_54 = arith.constant 0 : index
    %120 = vector.load %arg14[%c16, %c0_54] : memref<64x96xf32, #tpu.memory_space<vmem>>, vector<8x96xf32>
    %cst_55 = arith.constant dense<0.000000e+00> : vector<8x96xf32>
    %121 = tpu.matmul %119, %34, %cst_55 {dimension_numbers = #tpu.dot_dimension_numbers<[1], [0], [0], [1], [0, 0, 1, 1], [], []>} : vector<8x32xf32>, vector<32x96xf32>, vector<8x96xf32> -> vector<8x96xf32>
    %122 = vector.broadcast %36 : vector<1x96xf32> to vector<8x96xf32>
    %123 = arith.addf %121, %122 : vector<8x96xf32>
    %124 = vector.extract_strided_slice %120 {offsets = [0, 0], sizes = [8, 64], strides = [1, 1]} : vector<8x96xf32> to vector<8x64xf32>
    %125 = vector.extract_strided_slice %123 {offsets = [0, 0], sizes = [8, 64], strides = [1, 1]} : vector<8x96xf32> to vector<8x64xf32>
    %126 = arith.addf %124, %125 : vector<8x64xf32>
    %127 = arith.negf %126 : vector<8x64xf32>
    %128 = math.exp %127 : vector<8x64xf32>
    %cst_56 = arith.constant 1.000000e+00 : f32
    %129 = vector.broadcast %cst_56 : f32 to vector<8x64xf32>
    %130 = arith.addf %129, %128 : vector<8x64xf32>
    %131 = arith.divf %129, %130 : vector<8x64xf32>
    %132 = vector.extract_strided_slice %131 {offsets = [0, 0], sizes = [8, 32], strides = [1, 1]} : vector<8x64xf32> to vector<8x32xf32>
    %133 = vector.extract_strided_slice %131 {offsets = [0, 32], sizes = [8, 32], strides = [1, 1]} : vector<8x64xf32> to vector<8x32xf32>
    %134 = vector.extract_strided_slice %120 {offsets = [0, 64], sizes = [8, 32], strides = [1, 1]} : vector<8x96xf32> to vector<8x32xf32>
    %135 = vector.extract_strided_slice %123 {offsets = [0, 64], sizes = [8, 32], strides = [1, 1]} : vector<8x96xf32> to vector<8x32xf32>
    %136 = arith.mulf %132, %135 : vector<8x32xf32>
    %137 = arith.addf %134, %136 : vector<8x32xf32>
    %138 = math.tanh %137 : vector<8x32xf32>
    %cst_57 = arith.constant 1.000000e+00 : f32
    %139 = vector.broadcast %cst_57 : f32 to vector<8x32xf32>
    %140 = arith.subf %139, %133 : vector<8x32xf32>
    %141 = arith.mulf %140, %138 : vector<8x32xf32>
    %142 = arith.mulf %133, %119 : vector<8x32xf32>
    %143 = arith.addf %141, %142 : vector<8x32xf32>
    %c2_i32 = arith.constant 2 : i32
    %144 = vector.broadcast %c2_i32 : i32 to vector<8x1xi32>
    %145 = arith.cmpi sgt, %42, %144 : vector<8x1xi32>
    %146 = arith.extui %145 : vector<8x1xi1> to vector<8x1xi32>
    %147 = arith.sitofp %146 : vector<8x1xi32> to vector<8x1xf32>
    %148 = vector.broadcast %147 : vector<8x1xf32> to vector<8x32xf32>
    %149 = arith.mulf %143, %148 : vector<8x32xf32>
    %c16_58 = arith.constant 16 : index
    %c0_59 = arith.constant 0 : index
    %150 = vector.load %arg16[%c16_58, %c0_59] : memref<64x32xf32, #tpu.memory_space<vmem>>, vector<8x32xf32>
    tpu.vector_store %arg16[%c16_58, %c0_59], %149 {strides = array<i32>} : memref<64x32xf32, #tpu.memory_space<vmem>>, vector<8x32xf32>,
    %151 = vector.broadcast %147 : vector<8x1xf32> to vector<8x32xf32>
    %152 = arith.mulf %151, %143 : vector<8x32xf32>
    %cst_60 = arith.constant 1.000000e+00 : f32
    %153 = vector.broadcast %cst_60 : f32 to vector<8x1xf32>
    %154 = arith.subf %153, %147 : vector<8x1xf32>
    %155 = vector.broadcast %154 : vector<8x1xf32> to vector<8x32xf32>
    %156 = arith.mulf %155, %119 : vector<8x32xf32>
    %157 = arith.addf %152, %156 : vector<8x32xf32>
    %c24 = arith.constant 24 : index
    %c0_61 = arith.constant 0 : index
    %158 = vector.load %arg14[%c24, %c0_61] : memref<64x96xf32, #tpu.memory_space<vmem>>, vector<8x96xf32>
    %cst_62 = arith.constant dense<0.000000e+00> : vector<8x96xf32>
    %159 = tpu.matmul %157, %34, %cst_62 {dimension_numbers = #tpu.dot_dimension_numbers<[1], [0], [0], [1], [0, 0, 1, 1], [], []>} : vector<8x32xf32>, vector<32x96xf32>, vector<8x96xf32> -> vector<8x96xf32>
    %160 = vector.broadcast %36 : vector<1x96xf32> to vector<8x96xf32>
    %161 = arith.addf %159, %160 : vector<8x96xf32>
    %162 = vector.extract_strided_slice %158 {offsets = [0, 0], sizes = [8, 64], strides = [1, 1]} : vector<8x96xf32> to vector<8x64xf32>
    %163 = vector.extract_strided_slice %161 {offsets = [0, 0], sizes = [8, 64], strides = [1, 1]} : vector<8x96xf32> to vector<8x64xf32>
    %164 = arith.addf %162, %163 : vector<8x64xf32>
    %165 = arith.negf %164 : vector<8x64xf32>
    %166 = math.exp %165 : vector<8x64xf32>
    %cst_63 = arith.constant 1.000000e+00 : f32
    %167 = vector.broadcast %cst_63 : f32 to vector<8x64xf32>
    %168 = arith.addf %167, %166 : vector<8x64xf32>
    %169 = arith.divf %167, %168 : vector<8x64xf32>
    %170 = vector.extract_strided_slice %169 {offsets = [0, 0], sizes = [8, 32], strides = [1, 1]} : vector<8x64xf32> to vector<8x32xf32>
    %171 = vector.extract_strided_slice %169 {offsets = [0, 32], sizes = [8, 32], strides = [1, 1]} : vector<8x64xf32> to vector<8x32xf32>
    %172 = vector.extract_strided_slice %158 {offsets = [0, 64], sizes = [8, 32], strides = [1, 1]} : vector<8x96xf32> to vector<8x32xf32>
    %173 = vector.extract_strided_slice %161 {offsets = [0, 64], sizes = [8, 32], strides = [1, 1]} : vector<8x96xf32> to vector<8x32xf32>
    %174 = arith.mulf %170, %173 : vector<8x32xf32>
    %175 = arith.addf %172, %174 : vector<8x32xf32>
    %176 = math.tanh %175 : vector<8x32xf32>
    %cst_64 = arith.constant 1.000000e+00 : f32
    %177 = vector.broadcast %cst_64 : f32 to vector<8x32xf32>
    %178 = arith.subf %177, %171 : vector<8x32xf32>
    %179 = arith.mulf %178, %176 : vector<8x32xf32>
    %180 = arith.mulf %171, %157 : vector<8x32xf32>
    %181 = arith.addf %179, %180 : vector<8x32xf32>
    %c3_i32 = arith.constant 3 : i32
    %182 = vector.broadcast %c3_i32 : i32 to vector<8x1xi32>
    %183 = arith.cmpi sgt, %42, %182 : vector<8x1xi32>
    %184 = arith.extui %183 : vector<8x1xi1> to vector<8x1xi32>
    %185 = arith.sitofp %184 : vector<8x1xi32> to vector<8x1xf32>
    %186 = vector.broadcast %185 : vector<8x1xf32> to vector<8x32xf32>
    %187 = arith.mulf %181, %186 : vector<8x32xf32>
    %c24_65 = arith.constant 24 : index
    %c0_66 = arith.constant 0 : index
    %188 = vector.load %arg16[%c24_65, %c0_66] : memref<64x32xf32, #tpu.memory_space<vmem>>, vector<8x32xf32>
    tpu.vector_store %arg16[%c24_65, %c0_66], %187 {strides = array<i32>} : memref<64x32xf32, #tpu.memory_space<vmem>>, vector<8x32xf32>,
    %189 = vector.broadcast %185 : vector<8x1xf32> to vector<8x32xf32>
    %190 = arith.mulf %189, %181 : vector<8x32xf32>
    %cst_67 = arith.constant 1.000000e+00 : f32
    %191 = vector.broadcast %cst_67 : f32 to vector<8x1xf32>
    %192 = arith.subf %191, %185 : vector<8x1xf32>
    %193 = vector.broadcast %192 : vector<8x1xf32> to vector<8x32xf32>
    %194 = arith.mulf %193, %157 : vector<8x32xf32>
    %195 = arith.addf %190, %194 : vector<8x32xf32>
    %c32 = arith.constant 32 : index
    %c0_68 = arith.constant 0 : index
    %196 = vector.load %arg14[%c32, %c0_68] : memref<64x96xf32, #tpu.memory_space<vmem>>, vector<8x96xf32>
    %cst_69 = arith.constant dense<0.000000e+00> : vector<8x96xf32>
    %197 = tpu.matmul %195, %34, %cst_69 {dimension_numbers = #tpu.dot_dimension_numbers<[1], [0], [0], [1], [0, 0, 1, 1], [], []>} : vector<8x32xf32>, vector<32x96xf32>, vector<8x96xf32> -> vector<8x96xf32>
    %198 = vector.broadcast %36 : vector<1x96xf32> to vector<8x96xf32>
    %199 = arith.addf %197, %198 : vector<8x96xf32>
    %200 = vector.extract_strided_slice %196 {offsets = [0, 0], sizes = [8, 64], strides = [1, 1]} : vector<8x96xf32> to vector<8x64xf32>
    %201 = vector.extract_strided_slice %199 {offsets = [0, 0], sizes = [8, 64], strides = [1, 1]} : vector<8x96xf32> to vector<8x64xf32>
    %202 = arith.addf %200, %201 : vector<8x64xf32>
    %203 = arith.negf %202 : vector<8x64xf32>
    %204 = math.exp %203 : vector<8x64xf32>
    %cst_70 = arith.constant 1.000000e+00 : f32
    %205 = vector.broadcast %cst_70 : f32 to vector<8x64xf32>
    %206 = arith.addf %205, %204 : vector<8x64xf32>
    %207 = arith.divf %205, %206 : vector<8x64xf32>
    %208 = vector.extract_strided_slice %207 {offsets = [0, 0], sizes = [8, 32], strides = [1, 1]} : vector<8x64xf32> to vector<8x32xf32>
    %209 = vector.extract_strided_slice %207 {offsets = [0, 32], sizes = [8, 32], strides = [1, 1]} : vector<8x64xf32> to vector<8x32xf32>
    %210 = vector.extract_strided_slice %196 {offsets = [0, 64], sizes = [8, 32], strides = [1, 1]} : vector<8x96xf32> to vector<8x32xf32>
    %211 = vector.extract_strided_slice %199 {offsets = [0, 64], sizes = [8, 32], strides = [1, 1]} : vector<8x96xf32> to vector<8x32xf32>
    %212 = arith.mulf %208, %211 : vector<8x32xf32>
    %213 = arith.addf %210, %212 : vector<8x32xf32>
    %214 = math.tanh %213 : vector<8x32xf32>
    %cst_71 = arith.constant 1.000000e+00 : f32
    %215 = vector.broadcast %cst_71 : f32 to vector<8x32xf32>
    %216 = arith.subf %215, %209 : vector<8x32xf32>
    %217 = arith.mulf %216, %214 : vector<8x32xf32>
    %218 = arith.mulf %209, %195 : vector<8x32xf32>
    %219 = arith.addf %217, %218 : vector<8x32xf32>
    %c4_i32 = arith.constant 4 : i32
    %220 = vector.broadcast %c4_i32 : i32 to vector<8x1xi32>
    %221 = arith.cmpi sgt, %42, %220 : vector<8x1xi32>
    %222 = arith.extui %221 : vector<8x1xi1> to vector<8x1xi32>
    %223 = arith.sitofp %222 : vector<8x1xi32> to vector<8x1xf32>
    %224 = vector.broadcast %223 : vector<8x1xf32> to vector<8x32xf32>
    %225 = arith.mulf %219, %224 : vector<8x32xf32>
    %c32_72 = arith.constant 32 : index
    %c0_73 = arith.constant 0 : index
    %226 = vector.load %arg16[%c32_72, %c0_73] : memref<64x32xf32, #tpu.memory_space<vmem>>, vector<8x32xf32>
    tpu.vector_store %arg16[%c32_72, %c0_73], %225 {strides = array<i32>} : memref<64x32xf32, #tpu.memory_space<vmem>>, vector<8x32xf32>,
    %227 = vector.broadcast %223 : vector<8x1xf32> to vector<8x32xf32>
    %228 = arith.mulf %227, %219 : vector<8x32xf32>
    %cst_74 = arith.constant 1.000000e+00 : f32
    %229 = vector.broadcast %cst_74 : f32 to vector<8x1xf32>
    %230 = arith.subf %229, %223 : vector<8x1xf32>
    %231 = vector.broadcast %230 : vector<8x1xf32> to vector<8x32xf32>
    %232 = arith.mulf %231, %195 : vector<8x32xf32>
    %233 = arith.addf %228, %232 : vector<8x32xf32>
    %c40 = arith.constant 40 : index
    %c0_75 = arith.constant 0 : index
    %234 = vector.load %arg14[%c40, %c0_75] : memref<64x96xf32, #tpu.memory_space<vmem>>, vector<8x96xf32>
    %cst_76 = arith.constant dense<0.000000e+00> : vector<8x96xf32>
    %235 = tpu.matmul %233, %34, %cst_76 {dimension_numbers = #tpu.dot_dimension_numbers<[1], [0], [0], [1], [0, 0, 1, 1], [], []>} : vector<8x32xf32>, vector<32x96xf32>, vector<8x96xf32> -> vector<8x96xf32>
    %236 = vector.broadcast %36 : vector<1x96xf32> to vector<8x96xf32>
    %237 = arith.addf %235, %236 : vector<8x96xf32>
    %238 = vector.extract_strided_slice %234 {offsets = [0, 0], sizes = [8, 64], strides = [1, 1]} : vector<8x96xf32> to vector<8x64xf32>
    %239 = vector.extract_strided_slice %237 {offsets = [0, 0], sizes = [8, 64], strides = [1, 1]} : vector<8x96xf32> to vector<8x64xf32>
    %240 = arith.addf %238, %239 : vector<8x64xf32>
    %241 = arith.negf %240 : vector<8x64xf32>
    %242 = math.exp %241 : vector<8x64xf32>
    %cst_77 = arith.constant 1.000000e+00 : f32
    %243 = vector.broadcast %cst_77 : f32 to vector<8x64xf32>
    %244 = arith.addf %243, %242 : vector<8x64xf32>
    %245 = arith.divf %243, %244 : vector<8x64xf32>
    %246 = vector.extract_strided_slice %245 {offsets = [0, 0], sizes = [8, 32], strides = [1, 1]} : vector<8x64xf32> to vector<8x32xf32>
    %247 = vector.extract_strided_slice %245 {offsets = [0, 32], sizes = [8, 32], strides = [1, 1]} : vector<8x64xf32> to vector<8x32xf32>
    %248 = vector.extract_strided_slice %234 {offsets = [0, 64], sizes = [8, 32], strides = [1, 1]} : vector<8x96xf32> to vector<8x32xf32>
    %249 = vector.extract_strided_slice %237 {offsets = [0, 64], sizes = [8, 32], strides = [1, 1]} : vector<8x96xf32> to vector<8x32xf32>
    %250 = arith.mulf %246, %249 : vector<8x32xf32>
    %251 = arith.addf %248, %250 : vector<8x32xf32>
    %252 = math.tanh %251 : vector<8x32xf32>
    %cst_78 = arith.constant 1.000000e+00 : f32
    %253 = vector.broadcast %cst_78 : f32 to vector<8x32xf32>
    %254 = arith.subf %253, %247 : vector<8x32xf32>
    %255 = arith.mulf %254, %252 : vector<8x32xf32>
    %256 = arith.mulf %247, %233 : vector<8x32xf32>
    %257 = arith.addf %255, %256 : vector<8x32xf32>
    %c5_i32 = arith.constant 5 : i32
    %258 = vector.broadcast %c5_i32 : i32 to vector<8x1xi32>
    %259 = arith.cmpi sgt, %42, %258 : vector<8x1xi32>
    %260 = arith.extui %259 : vector<8x1xi1> to vector<8x1xi32>
    %261 = arith.sitofp %260 : vector<8x1xi32> to vector<8x1xf32>
    %262 = vector.broadcast %261 : vector<8x1xf32> to vector<8x32xf32>
    %263 = arith.mulf %257, %262 : vector<8x32xf32>
    %c40_79 = arith.constant 40 : index
    %c0_80 = arith.constant 0 : index
    %264 = vector.load %arg16[%c40_79, %c0_80] : memref<64x32xf32, #tpu.memory_space<vmem>>, vector<8x32xf32>
    tpu.vector_store %arg16[%c40_79, %c0_80], %263 {strides = array<i32>} : memref<64x32xf32, #tpu.memory_space<vmem>>, vector<8x32xf32>,
    %265 = vector.broadcast %261 : vector<8x1xf32> to vector<8x32xf32>
    %266 = arith.mulf %265, %257 : vector<8x32xf32>
    %cst_81 = arith.constant 1.000000e+00 : f32
    %267 = vector.broadcast %cst_81 : f32 to vector<8x1xf32>
    %268 = arith.subf %267, %261 : vector<8x1xf32>
    %269 = vector.broadcast %268 : vector<8x1xf32> to vector<8x32xf32>
    %270 = arith.mulf %269, %233 : vector<8x32xf32>
    %271 = arith.addf %266, %270 : vector<8x32xf32>
    %c48 = arith.constant 48 : index
    %c0_82 = arith.constant 0 : index
    %272 = vector.load %arg14[%c48, %c0_82] : memref<64x96xf32, #tpu.memory_space<vmem>>, vector<8x96xf32>
    %cst_83 = arith.constant dense<0.000000e+00> : vector<8x96xf32>
    %273 = tpu.matmul %271, %34, %cst_83 {dimension_numbers = #tpu.dot_dimension_numbers<[1], [0], [0], [1], [0, 0, 1, 1], [], []>} : vector<8x32xf32>, vector<32x96xf32>, vector<8x96xf32> -> vector<8x96xf32>
    %274 = vector.broadcast %36 : vector<1x96xf32> to vector<8x96xf32>
    %275 = arith.addf %273, %274 : vector<8x96xf32>
    %276 = vector.extract_strided_slice %272 {offsets = [0, 0], sizes = [8, 64], strides = [1, 1]} : vector<8x96xf32> to vector<8x64xf32>
    %277 = vector.extract_strided_slice %275 {offsets = [0, 0], sizes = [8, 64], strides = [1, 1]} : vector<8x96xf32> to vector<8x64xf32>
    %278 = arith.addf %276, %277 : vector<8x64xf32>
    %279 = arith.negf %278 : vector<8x64xf32>
    %280 = math.exp %279 : vector<8x64xf32>
    %cst_84 = arith.constant 1.000000e+00 : f32
    %281 = vector.broadcast %cst_84 : f32 to vector<8x64xf32>
    %282 = arith.addf %281, %280 : vector<8x64xf32>
    %283 = arith.divf %281, %282 : vector<8x64xf32>
    %284 = vector.extract_strided_slice %283 {offsets = [0, 0], sizes = [8, 32], strides = [1, 1]} : vector<8x64xf32> to vector<8x32xf32>
    %285 = vector.extract_strided_slice %283 {offsets = [0, 32], sizes = [8, 32], strides = [1, 1]} : vector<8x64xf32> to vector<8x32xf32>
    %286 = vector.extract_strided_slice %272 {offsets = [0, 64], sizes = [8, 32], strides = [1, 1]} : vector<8x96xf32> to vector<8x32xf32>
    %287 = vector.extract_strided_slice %275 {offsets = [0, 64], sizes = [8, 32], strides = [1, 1]} : vector<8x96xf32> to vector<8x32xf32>
    %288 = arith.mulf %284, %287 : vector<8x32xf32>
    %289 = arith.addf %286, %288 : vector<8x32xf32>
    %290 = math.tanh %289 : vector<8x32xf32>
    %cst_85 = arith.constant 1.000000e+00 : f32
    %291 = vector.broadcast %cst_85 : f32 to vector<8x32xf32>
    %292 = arith.subf %291, %285 : vector<8x32xf32>
    %293 = arith.mulf %292, %290 : vector<8x32xf32>
    %294 = arith.mulf %285, %271 : vector<8x32xf32>
    %295 = arith.addf %293, %294 : vector<8x32xf32>
    %c6_i32 = arith.constant 6 : i32
    %296 = vector.broadcast %c6_i32 : i32 to vector<8x1xi32>
    %297 = arith.cmpi sgt, %42, %296 : vector<8x1xi32>
    %298 = arith.extui %297 : vector<8x1xi1> to vector<8x1xi32>
    %299 = arith.sitofp %298 : vector<8x1xi32> to vector<8x1xf32>
    %300 = vector.broadcast %299 : vector<8x1xf32> to vector<8x32xf32>
    %301 = arith.mulf %295, %300 : vector<8x32xf32>
    %c48_86 = arith.constant 48 : index
    %c0_87 = arith.constant 0 : index
    %302 = vector.load %arg16[%c48_86, %c0_87] : memref<64x32xf32, #tpu.memory_space<vmem>>, vector<8x32xf32>
    tpu.vector_store %arg16[%c48_86, %c0_87], %301 {strides = array<i32>} : memref<64x32xf32, #tpu.memory_space<vmem>>, vector<8x32xf32>,
    %303 = vector.broadcast %299 : vector<8x1xf32> to vector<8x32xf32>
    %304 = arith.mulf %303, %295 : vector<8x32xf32>
    %cst_88 = arith.constant 1.000000e+00 : f32
    %305 = vector.broadcast %cst_88 : f32 to vector<8x1xf32>
    %306 = arith.subf %305, %299 : vector<8x1xf32>
    %307 = vector.broadcast %306 : vector<8x1xf32> to vector<8x32xf32>
    %308 = arith.mulf %307, %271 : vector<8x32xf32>
    %309 = arith.addf %304, %308 : vector<8x32xf32>
    %c56 = arith.constant 56 : index
    %c0_89 = arith.constant 0 : index
    %310 = vector.load %arg14[%c56, %c0_89] : memref<64x96xf32, #tpu.memory_space<vmem>>, vector<8x96xf32>
    %cst_90 = arith.constant dense<0.000000e+00> : vector<8x96xf32>
    %311 = tpu.matmul %309, %34, %cst_90 {dimension_numbers = #tpu.dot_dimension_numbers<[1], [0], [0], [1], [0, 0, 1, 1], [], []>} : vector<8x32xf32>, vector<32x96xf32>, vector<8x96xf32> -> vector<8x96xf32>
    %312 = vector.broadcast %36 : vector<1x96xf32> to vector<8x96xf32>
    %313 = arith.addf %311, %312 : vector<8x96xf32>
    %314 = vector.extract_strided_slice %310 {offsets = [0, 0], sizes = [8, 64], strides = [1, 1]} : vector<8x96xf32> to vector<8x64xf32>
    %315 = vector.extract_strided_slice %313 {offsets = [0, 0], sizes = [8, 64], strides = [1, 1]} : vector<8x96xf32> to vector<8x64xf32>
    %316 = arith.addf %314, %315 : vector<8x64xf32>
    %317 = arith.negf %316 : vector<8x64xf32>
    %318 = math.exp %317 : vector<8x64xf32>
    %cst_91 = arith.constant 1.000000e+00 : f32
    %319 = vector.broadcast %cst_91 : f32 to vector<8x64xf32>
    %320 = arith.addf %319, %318 : vector<8x64xf32>
    %321 = arith.divf %319, %320 : vector<8x64xf32>
    %322 = vector.extract_strided_slice %321 {offsets = [0, 0], sizes = [8, 32], strides = [1, 1]} : vector<8x64xf32> to vector<8x32xf32>
    %323 = vector.extract_strided_slice %321 {offsets = [0, 32], sizes = [8, 32], strides = [1, 1]} : vector<8x64xf32> to vector<8x32xf32>
    %324 = vector.extract_strided_slice %310 {offsets = [0, 64], sizes = [8, 32], strides = [1, 1]} : vector<8x96xf32> to vector<8x32xf32>
    %325 = vector.extract_strided_slice %313 {offsets = [0, 64], sizes = [8, 32], strides = [1, 1]} : vector<8x96xf32> to vector<8x32xf32>
    %326 = arith.mulf %322, %325 : vector<8x32xf32>
    %327 = arith.addf %324, %326 : vector<8x32xf32>
    %328 = math.tanh %327 : vector<8x32xf32>
    %cst_92 = arith.constant 1.000000e+00 : f32
    %329 = vector.broadcast %cst_92 : f32 to vector<8x32xf32>
    %330 = arith.subf %329, %323 : vector<8x32xf32>
    %331 = arith.mulf %330, %328 : vector<8x32xf32>
    %332 = arith.mulf %323, %309 : vector<8x32xf32>
    %333 = arith.addf %331, %332 : vector<8x32xf32>
    %c7_i32 = arith.constant 7 : i32
    %334 = vector.broadcast %c7_i32 : i32 to vector<8x1xi32>
    %335 = arith.cmpi sgt, %42, %334 : vector<8x1xi32>
    %336 = arith.extui %335 : vector<8x1xi1> to vector<8x1xi32>
    %337 = arith.sitofp %336 : vector<8x1xi32> to vector<8x1xf32>
    %338 = vector.broadcast %337 : vector<8x1xf32> to vector<8x32xf32>
    %339 = arith.mulf %333, %338 : vector<8x32xf32>
    %c56_93 = arith.constant 56 : index
    %c0_94 = arith.constant 0 : index
    %340 = vector.load %arg16[%c56_93, %c0_94] : memref<64x32xf32, #tpu.memory_space<vmem>>, vector<8x32xf32>
    tpu.vector_store %arg16[%c56_93, %c0_94], %339 {strides = array<i32>} : memref<64x32xf32, #tpu.memory_space<vmem>>, vector<8x32xf32>,
    %341 = vector.broadcast %337 : vector<8x1xf32> to vector<8x32xf32>
    %342 = arith.mulf %341, %333 : vector<8x32xf32>
    %cst_95 = arith.constant 1.000000e+00 : f32
    %343 = vector.broadcast %cst_95 : f32 to vector<8x1xf32>
    %344 = arith.subf %343, %337 : vector<8x1xf32>
    %345 = vector.broadcast %344 : vector<8x1xf32> to vector<8x32xf32>
    %346 = arith.mulf %345, %309 : vector<8x32xf32>
    %347 = arith.addf %342, %346 : vector<8x32xf32>
    %c0_96 = arith.constant 0 : index
    %c0_97 = arith.constant 0 : index
    %c0_98 = arith.constant 0 : index
    %348 = vector.load %arg5[%c0_96, %c0_97, %c0_98] : memref<1x8x32xf32, #tpu.memory_space<vmem>>, vector<1x8x32xf32>
    %349 = vector.shape_cast %348 : vector<1x8x32xf32> to vector<8x32xf32>
    %c4 = arith.constant 4 : index
    %c0_99 = arith.constant 0 : index
    %c0_100 = arith.constant 0 : index
    %350 = vector.load %arg9[%c4, %c0_99, %c0_100] : memref<6x32x32xf32, #tpu.memory_space<vmem>>, vector<1x32x32xf32>
    %351 = vector.shape_cast %350 : vector<1x32x32xf32> to vector<32x32xf32>
    %cst_101 = arith.constant dense<0.000000e+00> : vector<8x32xf32>
    %352 = tpu.matmul %349, %351, %cst_101 {dimension_numbers = #tpu.dot_dimension_numbers<[1], [0], [0], [1], [0, 0, 1, 1], [], []>} : vector<8x32xf32>, vector<32x32xf32>, vector<8x32xf32> -> vector<8x32xf32>
    %c4_102 = arith.constant 4 : index
    %c0_103 = arith.constant 0 : index
    %c0_104 = arith.constant 0 : index
    %353 = vector.load %arg10[%c4_102, %c0_103, %c0_104] : memref<6x1x32xf32, #tpu.memory_space<vmem>>, vector<1x1x32xf32>
    %354 = vector.shape_cast %353 : vector<1x1x32xf32> to vector<1x32xf32>
    %355 = vector.broadcast %354 : vector<1x32xf32> to vector<8x32xf32>
    %356 = arith.addf %352, %355 : vector<8x32xf32>
    %c2_105 = arith.constant 2 : index
    %c0_106 = arith.constant 0 : index
    %c0_107 = arith.constant 0 : index
    %357 = vector.load %arg9[%c2_105, %c0_106, %c0_107] : memref<6x32x32xf32, #tpu.memory_space<vmem>>, vector<1x32x32xf32>
    %358 = vector.shape_cast %357 : vector<1x32x32xf32> to vector<32x32xf32>
    %cst_108 = arith.constant dense<0.000000e+00> : vector<8x32xf32>
    %359 = tpu.matmul %347, %358, %cst_108 {dimension_numbers = #tpu.dot_dimension_numbers<[1], [0], [0], [1], [0, 0, 1, 1], [], []>} : vector<8x32xf32>, vector<32x32xf32>, vector<8x32xf32> -> vector<8x32xf32>
    %c5 = arith.constant 5 : index
    %c0_109 = arith.constant 0 : index
    %c0_110 = arith.constant 0 : index
    %360 = vector.load %arg9[%c5, %c0_109, %c0_110] : memref<6x32x32xf32, #tpu.memory_space<vmem>>, vector<1x32x32xf32>
    %361 = vector.shape_cast %360 : vector<1x32x32xf32> to vector<32x32xf32>
    %cst_111 = arith.constant dense<0.000000e+00> : vector<8x32xf32>
    %362 = tpu.matmul %356, %361, %cst_111 {dimension_numbers = #tpu.dot_dimension_numbers<[1], [0], [0], [1], [0, 0, 1, 1], [], []>} : vector<8x32xf32>, vector<32x32xf32>, vector<8x32xf32> -> vector<8x32xf32>
    %363 = arith.addf %359, %362 : vector<8x32xf32>
    %c2_112 = arith.constant 2 : index
    %c0_113 = arith.constant 0 : index
    %c0_114 = arith.constant 0 : index
    %364 = vector.load %arg10[%c2_112, %c0_113, %c0_114] : memref<6x1x32xf32, #tpu.memory_space<vmem>>, vector<1x1x32xf32>
    %365 = vector.shape_cast %364 : vector<1x1x32xf32> to vector<1x32xf32>
    %366 = vector.broadcast %365 : vector<1x32xf32> to vector<8x32xf32>
    %367 = arith.addf %363, %366 : vector<8x32xf32>
    %cst_115 = arith.constant 0.000000e+00 : f32
    %368 = vector.broadcast %cst_115 : f32 to vector<8x32xf32>
    %369 = arith.maximumf %367, %368 : vector<8x32xf32>
    %c3_116 = arith.constant 3 : index
    %c0_117 = arith.constant 0 : index
    %c0_118 = arith.constant 0 : index
    %370 = vector.load %arg9[%c3_116, %c0_117, %c0_118] : memref<6x32x32xf32, #tpu.memory_space<vmem>>, vector<1x32x32xf32>
    %371 = vector.shape_cast %370 : vector<1x32x32xf32> to vector<32x32xf32>
    %cst_119 = arith.constant dense<0.000000e+00> : vector<8x32xf32>
    %372 = tpu.matmul %369, %371, %cst_119 {dimension_numbers = #tpu.dot_dimension_numbers<[1], [0], [0], [1], [0, 0, 1, 1], [], []>} : vector<8x32xf32>, vector<32x32xf32>, vector<8x32xf32> -> vector<8x32xf32>
    %c3_120 = arith.constant 3 : index
    %c0_121 = arith.constant 0 : index
    %c0_122 = arith.constant 0 : index
    %373 = vector.load %arg10[%c3_120, %c0_121, %c0_122] : memref<6x1x32xf32, #tpu.memory_space<vmem>>, vector<1x1x32xf32>
    %374 = vector.shape_cast %373 : vector<1x1x32xf32> to vector<1x32xf32>
    %375 = vector.broadcast %374 : vector<1x32xf32> to vector<8x32xf32>
    %376 = arith.addf %372, %375 : vector<8x32xf32>
    %c0_123 = arith.constant 0 : index
    %c0_124 = arith.constant 0 : index
    %377 = vector.load %arg16[%c0_123, %c0_124] : memref<64x32xf32, #tpu.memory_space<vmem>>, vector<64x32xf32>
    %c0_125 = arith.constant 0 : index
    %c0_126 = arith.constant 0 : index
    %c0_127 = arith.constant 0 : index
    %378 = vector.load %arg9[%c0_125, %c0_126, %c0_127] : memref<6x32x32xf32, #tpu.memory_space<vmem>>, vector<1x32x32xf32>
    %379 = vector.shape_cast %378 : vector<1x32x32xf32> to vector<32x32xf32>
    %cst_128 = arith.constant dense<0.000000e+00> : vector<64x32xf32>
    %380 = tpu.matmul %377, %379, %cst_128 {dimension_numbers = #tpu.dot_dimension_numbers<[1], [0], [0], [1], [0, 0, 1, 1], [], []>} : vector<64x32xf32>, vector<32x32xf32>, vector<64x32xf32> -> vector<64x32xf32>
    %c0_129 = arith.constant 0 : index
    %c0_130 = arith.constant 0 : index
    %c0_131 = arith.constant 0 : index
    %381 = vector.load %arg10[%c0_129, %c0_130, %c0_131] : memref<6x1x32xf32, #tpu.memory_space<vmem>>, vector<1x1x32xf32>
    %382 = vector.shape_cast %381 : vector<1x1x32xf32> to vector<1x32xf32>
    %383 = vector.broadcast %382 : vector<1x32xf32> to vector<64x32xf32>
    %384 = arith.addf %380, %383 : vector<64x32xf32>
    %c0_132 = arith.constant 0 : index
    %c0_133 = arith.constant 0 : index
    %385 = vector.load %arg17[%c0_132, %c0_133] : memref<64x32xf32, #tpu.memory_space<vmem>>, vector<64x32xf32>
    tpu.vector_store %arg17[%c0_132, %c0_133], %384 {strides = array<i32>} : memref<64x32xf32, #tpu.memory_space<vmem>>, vector<64x32xf32>,
    %c1_134 = arith.constant 1 : index
    %c0_135 = arith.constant 0 : index
    %c0_136 = arith.constant 0 : index
    %386 = vector.load %arg9[%c1_134, %c0_135, %c0_136] : memref<6x32x32xf32, #tpu.memory_space<vmem>>, vector<1x32x32xf32>
    %387 = vector.shape_cast %386 : vector<1x32x32xf32> to vector<32x32xf32>
    %cst_137 = arith.constant dense<0.000000e+00> : vector<64x32xf32>
    %388 = tpu.matmul %377, %387, %cst_137 {dimension_numbers = #tpu.dot_dimension_numbers<[1], [0], [0], [1], [0, 0, 1, 1], [], []>} : vector<64x32xf32>, vector<32x32xf32>, vector<64x32xf32> -> vector<64x32xf32>
    %c1_138 = arith.constant 1 : index
    %c0_139 = arith.constant 0 : index
    %c0_140 = arith.constant 0 : index
    %389 = vector.load %arg10[%c1_138, %c0_139, %c0_140] : memref<6x1x32xf32, #tpu.memory_space<vmem>>, vector<1x1x32xf32>
    %390 = vector.shape_cast %389 : vector<1x1x32xf32> to vector<1x32xf32>
    %391 = vector.broadcast %390 : vector<1x32xf32> to vector<64x32xf32>
    %392 = arith.addf %388, %391 : vector<64x32xf32>
    %c0_141 = arith.constant 0 : index
    %c0_142 = arith.constant 0 : index
    %393 = vector.load %arg18[%c0_141, %c0_142] : memref<64x32xf32, #tpu.memory_space<vmem>>, vector<64x32xf32>
    tpu.vector_store %arg18[%c0_141, %c0_142], %392 {strides = array<i32>} : memref<64x32xf32, #tpu.memory_space<vmem>>, vector<64x32xf32>,
    %c0_143 = arith.constant 0 : index
    %c0_144 = arith.constant 0 : index
    %394 = vector.load %arg15[%c0_143, %c0_144] : memref<48x96xf32, #tpu.memory_space<vmem>>, vector<8x96xf32>
    %cst_145 = arith.constant dense<0.000000e+00> : vector<8x96xf32>
    %395 = tpu.matmul %376, %38, %cst_145 {dimension_numbers = #tpu.dot_dimension_numbers<[1], [0], [0], [1], [0, 0, 1, 1], [], []>} : vector<8x32xf32>, vector<32x96xf32>, vector<8x96xf32> -> vector<8x96xf32>
    %396 = vector.broadcast %40 : vector<1x96xf32> to vector<8x96xf32>
    %397 = arith.addf %395, %396 : vector<8x96xf32>
    %398 = vector.extract_strided_slice %394 {offsets = [0, 0], sizes = [8, 64], strides = [1, 1]} : vector<8x96xf32> to vector<8x64xf32>
    %399 = vector.extract_strided_slice %397 {offsets = [0, 0], sizes = [8, 64], strides = [1, 1]} : vector<8x96xf32> to vector<8x64xf32>
    %400 = arith.addf %398, %399 : vector<8x64xf32>
    %401 = arith.negf %400 : vector<8x64xf32>
    %402 = math.exp %401 : vector<8x64xf32>
    %cst_146 = arith.constant 1.000000e+00 : f32
    %403 = vector.broadcast %cst_146 : f32 to vector<8x64xf32>
    %404 = arith.addf %403, %402 : vector<8x64xf32>
    %405 = arith.divf %403, %404 : vector<8x64xf32>
    %406 = vector.extract_strided_slice %405 {offsets = [0, 0], sizes = [8, 32], strides = [1, 1]} : vector<8x64xf32> to vector<8x32xf32>
    %407 = vector.extract_strided_slice %405 {offsets = [0, 32], sizes = [8, 32], strides = [1, 1]} : vector<8x64xf32> to vector<8x32xf32>
    %408 = vector.extract_strided_slice %394 {offsets = [0, 64], sizes = [8, 32], strides = [1, 1]} : vector<8x96xf32> to vector<8x32xf32>
    %409 = vector.extract_strided_slice %397 {offsets = [0, 64], sizes = [8, 32], strides = [1, 1]} : vector<8x96xf32> to vector<8x32xf32>
    %410 = arith.mulf %406, %409 : vector<8x32xf32>
    %411 = arith.addf %408, %410 : vector<8x32xf32>
    %412 = math.tanh %411 : vector<8x32xf32>
    %cst_147 = arith.constant 1.000000e+00 : f32
    %413 = vector.broadcast %cst_147 : f32 to vector<8x32xf32>
    %414 = arith.subf %413, %407 : vector<8x32xf32>
    %415 = arith.mulf %414, %412 : vector<8x32xf32>
    %416 = arith.mulf %407, %376 : vector<8x32xf32>
    %417 = arith.addf %415, %416 : vector<8x32xf32>
    %418 = tpu.concatenate %417, %417, %417, %417, %417, %417, %417, %417 in 0 : vector<8x32xf32>, vector<8x32xf32>, vector<8x32xf32>, vector<8x32xf32>, vector<8x32xf32>, vector<8x32xf32>, vector<8x32xf32>, vector<8x32xf32> -> vector<64x32xf32>
    %c0_148 = arith.constant 0 : index
    %c0_149 = arith.constant 0 : index
    %419 = vector.load %arg17[%c0_148, %c0_149] : memref<64x32xf32, #tpu.memory_space<vmem>>, vector<64x32xf32>
    %420 = arith.mulf %418, %419 : vector<64x32xf32>
    %cst_150 = arith.constant dense<0.000000e+00> : vector<64xf32>
    %421 = vector.multi_reduction <add>, %420, %cst_150 [1] : vector<64x32xf32> to vector<64xf32>
    %422 = vector.shape_cast %421 : vector<64xf32> to vector<64x1xf32>
    %423 = vector.extract_strided_slice %422 {offsets = [0, 0], sizes = [8, 1], strides = [1, 1]} : vector<64x1xf32> to vector<8x1xf32>
    %424 = vector.extract_strided_slice %422 {offsets = [8, 0], sizes = [8, 1], strides = [1, 1]} : vector<64x1xf32> to vector<8x1xf32>
    %425 = arith.maximumf %423, %424 : vector<8x1xf32>
    %426 = vector.extract_strided_slice %422 {offsets = [16, 0], sizes = [8, 1], strides = [1, 1]} : vector<64x1xf32> to vector<8x1xf32>
    %427 = arith.maximumf %425, %426 : vector<8x1xf32>
    %428 = vector.extract_strided_slice %422 {offsets = [24, 0], sizes = [8, 1], strides = [1, 1]} : vector<64x1xf32> to vector<8x1xf32>
    %429 = arith.maximumf %427, %428 : vector<8x1xf32>
    %430 = vector.extract_strided_slice %422 {offsets = [32, 0], sizes = [8, 1], strides = [1, 1]} : vector<64x1xf32> to vector<8x1xf32>
    %431 = arith.maximumf %429, %430 : vector<8x1xf32>
    %432 = vector.extract_strided_slice %422 {offsets = [40, 0], sizes = [8, 1], strides = [1, 1]} : vector<64x1xf32> to vector<8x1xf32>
    %433 = arith.maximumf %431, %432 : vector<8x1xf32>
    %434 = vector.extract_strided_slice %422 {offsets = [48, 0], sizes = [8, 1], strides = [1, 1]} : vector<64x1xf32> to vector<8x1xf32>
    %435 = arith.maximumf %433, %434 : vector<8x1xf32>
    %436 = vector.extract_strided_slice %422 {offsets = [56, 0], sizes = [8, 1], strides = [1, 1]} : vector<64x1xf32> to vector<8x1xf32>
    %437 = arith.maximumf %435, %436 : vector<8x1xf32>
    %438 = tpu.concatenate %437, %437, %437, %437, %437, %437, %437, %437 in 0 : vector<8x1xf32>, vector<8x1xf32>, vector<8x1xf32>, vector<8x1xf32>, vector<8x1xf32>, vector<8x1xf32>, vector<8x1xf32>, vector<8x1xf32> -> vector<64x1xf32>
    %439 = arith.subf %422, %438 : vector<64x1xf32>
    %440 = math.exp %439 : vector<64x1xf32>
    %c0_151 = arith.constant 0 : index
    %c0_152 = arith.constant 0 : index
    %441 = vector.load %arg18[%c0_151, %c0_152] : memref<64x32xf32, #tpu.memory_space<vmem>>, vector<64x32xf32>
    %442 = vector.broadcast %440 : vector<64x1xf32> to vector<64x32xf32>
    %443 = arith.mulf %442, %441 : vector<64x32xf32>
    %444 = vector.extract_strided_slice %443 {offsets = [0, 0], sizes = [8, 32], strides = [1, 1]} : vector<64x32xf32> to vector<8x32xf32>
    %445 = vector.extract_strided_slice %440 {offsets = [0, 0], sizes = [8, 1], strides = [1, 1]} : vector<64x1xf32> to vector<8x1xf32>
    %446 = vector.extract_strided_slice %443 {offsets = [8, 0], sizes = [8, 32], strides = [1, 1]} : vector<64x32xf32> to vector<8x32xf32>
    %447 = arith.addf %444, %446 : vector<8x32xf32>
    %448 = vector.extract_strided_slice %440 {offsets = [8, 0], sizes = [8, 1], strides = [1, 1]} : vector<64x1xf32> to vector<8x1xf32>
    %449 = arith.addf %445, %448 : vector<8x1xf32>
    %450 = vector.extract_strided_slice %443 {offsets = [16, 0], sizes = [8, 32], strides = [1, 1]} : vector<64x32xf32> to vector<8x32xf32>
    %451 = arith.addf %447, %450 : vector<8x32xf32>
    %452 = vector.extract_strided_slice %440 {offsets = [16, 0], sizes = [8, 1], strides = [1, 1]} : vector<64x1xf32> to vector<8x1xf32>
    %453 = arith.addf %449, %452 : vector<8x1xf32>
    %454 = vector.extract_strided_slice %443 {offsets = [24, 0], sizes = [8, 32], strides = [1, 1]} : vector<64x32xf32> to vector<8x32xf32>
    %455 = arith.addf %451, %454 : vector<8x32xf32>
    %456 = vector.extract_strided_slice %440 {offsets = [24, 0], sizes = [8, 1], strides = [1, 1]} : vector<64x1xf32> to vector<8x1xf32>
    %457 = arith.addf %453, %456 : vector<8x1xf32>
    %458 = vector.extract_strided_slice %443 {offsets = [32, 0], sizes = [8, 32], strides = [1, 1]} : vector<64x32xf32> to vector<8x32xf32>
    %459 = arith.addf %455, %458 : vector<8x32xf32>
    %460 = vector.extract_strided_slice %440 {offsets = [32, 0], sizes = [8, 1], strides = [1, 1]} : vector<64x1xf32> to vector<8x1xf32>
    %461 = arith.addf %457, %460 : vector<8x1xf32>
    %462 = vector.extract_strided_slice %443 {offsets = [40, 0], sizes = [8, 32], strides = [1, 1]} : vector<64x32xf32> to vector<8x32xf32>
    %463 = arith.addf %459, %462 : vector<8x32xf32>
    %464 = vector.extract_strided_slice %440 {offsets = [40, 0], sizes = [8, 1], strides = [1, 1]} : vector<64x1xf32> to vector<8x1xf32>
    %465 = arith.addf %461, %464 : vector<8x1xf32>
    %466 = vector.extract_strided_slice %443 {offsets = [48, 0], sizes = [8, 32], strides = [1, 1]} : vector<64x32xf32> to vector<8x32xf32>
    %467 = arith.addf %463, %466 : vector<8x32xf32>
    %468 = vector.extract_strided_slice %440 {offsets = [48, 0], sizes = [8, 1], strides = [1, 1]} : vector<64x1xf32> to vector<8x1xf32>
    %469 = arith.addf %465, %468 : vector<8x1xf32>
    %470 = vector.extract_strided_slice %443 {offsets = [56, 0], sizes = [8, 32], strides = [1, 1]} : vector<64x32xf32> to vector<8x32xf32>
    %471 = arith.addf %467, %470 : vector<8x32xf32>
    %472 = vector.extract_strided_slice %440 {offsets = [56, 0], sizes = [8, 1], strides = [1, 1]} : vector<64x1xf32> to vector<8x1xf32>
    %473 = arith.addf %469, %472 : vector<8x1xf32>
    %474 = tpu.reciprocal %473 {approx = true} : vector<8x1xf32> -> vector<8x1xf32>
    %475 = vector.broadcast %474 : vector<8x1xf32> to vector<8x32xf32>
    %476 = arith.mulf %471, %475 : vector<8x32xf32>
    %c0_153 = arith.constant 0 : index
    %c0_154 = arith.constant 0 : index
    %477 = vector.load %arg19[%c0_153, %c0_154] : memref<48x64xf32, #tpu.memory_space<vmem>>, vector<8x32xf32>
    tpu.vector_store %arg19[%c0_153, %c0_154], %417 {strides = array<i32>} : memref<48x64xf32, #tpu.memory_space<vmem>>, vector<8x32xf32>,
    %c0_155 = arith.constant 0 : index
    %c32_156 = arith.constant 32 : index
    %478 = vector.load %arg19[%c0_155, %c32_156] : memref<48x64xf32, #tpu.memory_space<vmem>>, vector<8x32xf32>
    tpu.vector_store %arg19[%c0_155, %c32_156], %476 {strides = array<i32>} : memref<48x64xf32, #tpu.memory_space<vmem>>, vector<8x32xf32>,
    %c8_157 = arith.constant 8 : index
    %c0_158 = arith.constant 0 : index
    %479 = vector.load %arg15[%c8_157, %c0_158] : memref<48x96xf32, #tpu.memory_space<vmem>>, vector<8x96xf32>
    %cst_159 = arith.constant dense<0.000000e+00> : vector<8x96xf32>
    %480 = tpu.matmul %417, %38, %cst_159 {dimension_numbers = #tpu.dot_dimension_numbers<[1], [0], [0], [1], [0, 0, 1, 1], [], []>} : vector<8x32xf32>, vector<32x96xf32>, vector<8x96xf32> -> vector<8x96xf32>
    %481 = vector.broadcast %40 : vector<1x96xf32> to vector<8x96xf32>
    %482 = arith.addf %480, %481 : vector<8x96xf32>
    %483 = vector.extract_strided_slice %479 {offsets = [0, 0], sizes = [8, 64], strides = [1, 1]} : vector<8x96xf32> to vector<8x64xf32>
    %484 = vector.extract_strided_slice %482 {offsets = [0, 0], sizes = [8, 64], strides = [1, 1]} : vector<8x96xf32> to vector<8x64xf32>
    %485 = arith.addf %483, %484 : vector<8x64xf32>
    %486 = arith.negf %485 : vector<8x64xf32>
    %487 = math.exp %486 : vector<8x64xf32>
    %cst_160 = arith.constant 1.000000e+00 : f32
    %488 = vector.broadcast %cst_160 : f32 to vector<8x64xf32>
    %489 = arith.addf %488, %487 : vector<8x64xf32>
    %490 = arith.divf %488, %489 : vector<8x64xf32>
    %491 = vector.extract_strided_slice %490 {offsets = [0, 0], sizes = [8, 32], strides = [1, 1]} : vector<8x64xf32> to vector<8x32xf32>
    %492 = vector.extract_strided_slice %490 {offsets = [0, 32], sizes = [8, 32], strides = [1, 1]} : vector<8x64xf32> to vector<8x32xf32>
    %493 = vector.extract_strided_slice %479 {offsets = [0, 64], sizes = [8, 32], strides = [1, 1]} : vector<8x96xf32> to vector<8x32xf32>
    %494 = vector.extract_strided_slice %482 {offsets = [0, 64], sizes = [8, 32], strides = [1, 1]} : vector<8x96xf32> to vector<8x32xf32>
    %495 = arith.mulf %491, %494 : vector<8x32xf32>
    %496 = arith.addf %493, %495 : vector<8x32xf32>
    %497 = math.tanh %496 : vector<8x32xf32>
    %cst_161 = arith.constant 1.000000e+00 : f32
    %498 = vector.broadcast %cst_161 : f32 to vector<8x32xf32>
    %499 = arith.subf %498, %492 : vector<8x32xf32>
    %500 = arith.mulf %499, %497 : vector<8x32xf32>
    %501 = arith.mulf %492, %417 : vector<8x32xf32>
    %502 = arith.addf %500, %501 : vector<8x32xf32>
    %503 = tpu.concatenate %502, %502, %502, %502, %502, %502, %502, %502 in 0 : vector<8x32xf32>, vector<8x32xf32>, vector<8x32xf32>, vector<8x32xf32>, vector<8x32xf32>, vector<8x32xf32>, vector<8x32xf32>, vector<8x32xf32> -> vector<64x32xf32>
    %c0_162 = arith.constant 0 : index
    %c0_163 = arith.constant 0 : index
    %504 = vector.load %arg17[%c0_162, %c0_163] : memref<64x32xf32, #tpu.memory_space<vmem>>, vector<64x32xf32>
    %505 = arith.mulf %503, %504 : vector<64x32xf32>
    %cst_164 = arith.constant dense<0.000000e+00> : vector<64xf32>
    %506 = vector.multi_reduction <add>, %505, %cst_164 [1] : vector<64x32xf32> to vector<64xf32>
    %507 = vector.shape_cast %506 : vector<64xf32> to vector<64x1xf32>
    %508 = vector.extract_strided_slice %507 {offsets = [0, 0], sizes = [8, 1], strides = [1, 1]} : vector<64x1xf32> to vector<8x1xf32>
    %509 = vector.extract_strided_slice %507 {offsets = [8, 0], sizes = [8, 1], strides = [1, 1]} : vector<64x1xf32> to vector<8x1xf32>
    %510 = arith.maximumf %508, %509 : vector<8x1xf32>
    %511 = vector.extract_strided_slice %507 {offsets = [16, 0], sizes = [8, 1], strides = [1, 1]} : vector<64x1xf32> to vector<8x1xf32>
    %512 = arith.maximumf %510, %511 : vector<8x1xf32>
    %513 = vector.extract_strided_slice %507 {offsets = [24, 0], sizes = [8, 1], strides = [1, 1]} : vector<64x1xf32> to vector<8x1xf32>
    %514 = arith.maximumf %512, %513 : vector<8x1xf32>
    %515 = vector.extract_strided_slice %507 {offsets = [32, 0], sizes = [8, 1], strides = [1, 1]} : vector<64x1xf32> to vector<8x1xf32>
    %516 = arith.maximumf %514, %515 : vector<8x1xf32>
    %517 = vector.extract_strided_slice %507 {offsets = [40, 0], sizes = [8, 1], strides = [1, 1]} : vector<64x1xf32> to vector<8x1xf32>
    %518 = arith.maximumf %516, %517 : vector<8x1xf32>
    %519 = vector.extract_strided_slice %507 {offsets = [48, 0], sizes = [8, 1], strides = [1, 1]} : vector<64x1xf32> to vector<8x1xf32>
    %520 = arith.maximumf %518, %519 : vector<8x1xf32>
    %521 = vector.extract_strided_slice %507 {offsets = [56, 0], sizes = [8, 1], strides = [1, 1]} : vector<64x1xf32> to vector<8x1xf32>
    %522 = arith.maximumf %520, %521 : vector<8x1xf32>
    %523 = tpu.concatenate %522, %522, %522, %522, %522, %522, %522, %522 in 0 : vector<8x1xf32>, vector<8x1xf32>, vector<8x1xf32>, vector<8x1xf32>, vector<8x1xf32>, vector<8x1xf32>, vector<8x1xf32>, vector<8x1xf32> -> vector<64x1xf32>
    %524 = arith.subf %507, %523 : vector<64x1xf32>
    %525 = math.exp %524 : vector<64x1xf32>
    %c0_165 = arith.constant 0 : index
    %c0_166 = arith.constant 0 : index
    %526 = vector.load %arg18[%c0_165, %c0_166] : memref<64x32xf32, #tpu.memory_space<vmem>>, vector<64x32xf32>
    %527 = vector.broadcast %525 : vector<64x1xf32> to vector<64x32xf32>
    %528 = arith.mulf %527, %526 : vector<64x32xf32>
    %529 = vector.extract_strided_slice %528 {offsets = [0, 0], sizes = [8, 32], strides = [1, 1]} : vector<64x32xf32> to vector<8x32xf32>
    %530 = vector.extract_strided_slice %525 {offsets = [0, 0], sizes = [8, 1], strides = [1, 1]} : vector<64x1xf32> to vector<8x1xf32>
    %531 = vector.extract_strided_slice %528 {offsets = [8, 0], sizes = [8, 32], strides = [1, 1]} : vector<64x32xf32> to vector<8x32xf32>
    %532 = arith.addf %529, %531 : vector<8x32xf32>
    %533 = vector.extract_strided_slice %525 {offsets = [8, 0], sizes = [8, 1], strides = [1, 1]} : vector<64x1xf32> to vector<8x1xf32>
    %534 = arith.addf %530, %533 : vector<8x1xf32>
    %535 = vector.extract_strided_slice %528 {offsets = [16, 0], sizes = [8, 32], strides = [1, 1]} : vector<64x32xf32> to vector<8x32xf32>
    %536 = arith.addf %532, %535 : vector<8x32xf32>
    %537 = vector.extract_strided_slice %525 {offsets = [16, 0], sizes = [8, 1], strides = [1, 1]} : vector<64x1xf32> to vector<8x1xf32>
    %538 = arith.addf %534, %537 : vector<8x1xf32>
    %539 = vector.extract_strided_slice %528 {offsets = [24, 0], sizes = [8, 32], strides = [1, 1]} : vector<64x32xf32> to vector<8x32xf32>
    %540 = arith.addf %536, %539 : vector<8x32xf32>
    %541 = vector.extract_strided_slice %525 {offsets = [24, 0], sizes = [8, 1], strides = [1, 1]} : vector<64x1xf32> to vector<8x1xf32>
    %542 = arith.addf %538, %541 : vector<8x1xf32>
    %543 = vector.extract_strided_slice %528 {offsets = [32, 0], sizes = [8, 32], strides = [1, 1]} : vector<64x32xf32> to vector<8x32xf32>
    %544 = arith.addf %540, %543 : vector<8x32xf32>
    %545 = vector.extract_strided_slice %525 {offsets = [32, 0], sizes = [8, 1], strides = [1, 1]} : vector<64x1xf32> to vector<8x1xf32>
    %546 = arith.addf %542, %545 : vector<8x1xf32>
    %547 = vector.extract_strided_slice %528 {offsets = [40, 0], sizes = [8, 32], strides = [1, 1]} : vector<64x32xf32> to vector<8x32xf32>
    %548 = arith.addf %544, %547 : vector<8x32xf32>
    %549 = vector.extract_strided_slice %525 {offsets = [40, 0], sizes = [8, 1], strides = [1, 1]} : vector<64x1xf32> to vector<8x1xf32>
    %550 = arith.addf %546, %549 : vector<8x1xf32>
    %551 = vector.extract_strided_slice %528 {offsets = [48, 0], sizes = [8, 32], strides = [1, 1]} : vector<64x32xf32> to vector<8x32xf32>
    %552 = arith.addf %548, %551 : vector<8x32xf32>
    %553 = vector.extract_strided_slice %525 {offsets = [48, 0], sizes = [8, 1], strides = [1, 1]} : vector<64x1xf32> to vector<8x1xf32>
    %554 = arith.addf %550, %553 : vector<8x1xf32>
    %555 = vector.extract_strided_slice %528 {offsets = [56, 0], sizes = [8, 32], strides = [1, 1]} : vector<64x32xf32> to vector<8x32xf32>
    %556 = arith.addf %552, %555 : vector<8x32xf32>
    %557 = vector.extract_strided_slice %525 {offsets = [56, 0], sizes = [8, 1], strides = [1, 1]} : vector<64x1xf32> to vector<8x1xf32>
    %558 = arith.addf %554, %557 : vector<8x1xf32>
    %559 = tpu.reciprocal %558 {approx = true} : vector<8x1xf32> -> vector<8x1xf32>
    %560 = vector.broadcast %559 : vector<8x1xf32> to vector<8x32xf32>
    %561 = arith.mulf %556, %560 : vector<8x32xf32>
    %c8_167 = arith.constant 8 : index
    %c0_168 = arith.constant 0 : index
    %562 = vector.load %arg19[%c8_167, %c0_168] : memref<48x64xf32, #tpu.memory_space<vmem>>, vector<8x32xf32>
    tpu.vector_store %arg19[%c8_167, %c0_168], %502 {strides = array<i32>} : memref<48x64xf32, #tpu.memory_space<vmem>>, vector<8x32xf32>,
    %c8_169 = arith.constant 8 : index
    %c32_170 = arith.constant 32 : index
    %563 = vector.load %arg19[%c8_169, %c32_170] : memref<48x64xf32, #tpu.memory_space<vmem>>, vector<8x32xf32>
    tpu.vector_store %arg19[%c8_169, %c32_170], %561 {strides = array<i32>} : memref<48x64xf32, #tpu.memory_space<vmem>>, vector<8x32xf32>,
    %c16_171 = arith.constant 16 : index
    %c0_172 = arith.constant 0 : index
    %564 = vector.load %arg15[%c16_171, %c0_172] : memref<48x96xf32, #tpu.memory_space<vmem>>, vector<8x96xf32>
    %cst_173 = arith.constant dense<0.000000e+00> : vector<8x96xf32>
    %565 = tpu.matmul %502, %38, %cst_173 {dimension_numbers = #tpu.dot_dimension_numbers<[1], [0], [0], [1], [0, 0, 1, 1], [], []>} : vector<8x32xf32>, vector<32x96xf32>, vector<8x96xf32> -> vector<8x96xf32>
    %566 = vector.broadcast %40 : vector<1x96xf32> to vector<8x96xf32>
    %567 = arith.addf %565, %566 : vector<8x96xf32>
    %568 = vector.extract_strided_slice %564 {offsets = [0, 0], sizes = [8, 64], strides = [1, 1]} : vector<8x96xf32> to vector<8x64xf32>
    %569 = vector.extract_strided_slice %567 {offsets = [0, 0], sizes = [8, 64], strides = [1, 1]} : vector<8x96xf32> to vector<8x64xf32>
    %570 = arith.addf %568, %569 : vector<8x64xf32>
    %571 = arith.negf %570 : vector<8x64xf32>
    %572 = math.exp %571 : vector<8x64xf32>
    %cst_174 = arith.constant 1.000000e+00 : f32
    %573 = vector.broadcast %cst_174 : f32 to vector<8x64xf32>
    %574 = arith.addf %573, %572 : vector<8x64xf32>
    %575 = arith.divf %573, %574 : vector<8x64xf32>
    %576 = vector.extract_strided_slice %575 {offsets = [0, 0], sizes = [8, 32], strides = [1, 1]} : vector<8x64xf32> to vector<8x32xf32>
    %577 = vector.extract_strided_slice %575 {offsets = [0, 32], sizes = [8, 32], strides = [1, 1]} : vector<8x64xf32> to vector<8x32xf32>
    %578 = vector.extract_strided_slice %564 {offsets = [0, 64], sizes = [8, 32], strides = [1, 1]} : vector<8x96xf32> to vector<8x32xf32>
    %579 = vector.extract_strided_slice %567 {offsets = [0, 64], sizes = [8, 32], strides = [1, 1]} : vector<8x96xf32> to vector<8x32xf32>
    %580 = arith.mulf %576, %579 : vector<8x32xf32>
    %581 = arith.addf %578, %580 : vector<8x32xf32>
    %582 = math.tanh %581 : vector<8x32xf32>
    %cst_175 = arith.constant 1.000000e+00 : f32
    %583 = vector.broadcast %cst_175 : f32 to vector<8x32xf32>
    %584 = arith.subf %583, %577 : vector<8x32xf32>
    %585 = arith.mulf %584, %582 : vector<8x32xf32>
    %586 = arith.mulf %577, %502 : vector<8x32xf32>
    %587 = arith.addf %585, %586 : vector<8x32xf32>
    %588 = tpu.concatenate %587, %587, %587, %587, %587, %587, %587, %587 in 0 : vector<8x32xf32>, vector<8x32xf32>, vector<8x32xf32>, vector<8x32xf32>, vector<8x32xf32>, vector<8x32xf32>, vector<8x32xf32>, vector<8x32xf32> -> vector<64x32xf32>
    %c0_176 = arith.constant 0 : index
    %c0_177 = arith.constant 0 : index
    %589 = vector.load %arg17[%c0_176, %c0_177] : memref<64x32xf32, #tpu.memory_space<vmem>>, vector<64x32xf32>
    %590 = arith.mulf %588, %589 : vector<64x32xf32>
    %cst_178 = arith.constant dense<0.000000e+00> : vector<64xf32>
    %591 = vector.multi_reduction <add>, %590, %cst_178 [1] : vector<64x32xf32> to vector<64xf32>
    %592 = vector.shape_cast %591 : vector<64xf32> to vector<64x1xf32>
    %593 = vector.extract_strided_slice %592 {offsets = [0, 0], sizes = [8, 1], strides = [1, 1]} : vector<64x1xf32> to vector<8x1xf32>
    %594 = vector.extract_strided_slice %592 {offsets = [8, 0], sizes = [8, 1], strides = [1, 1]} : vector<64x1xf32> to vector<8x1xf32>
    %595 = arith.maximumf %593, %594 : vector<8x1xf32>
    %596 = vector.extract_strided_slice %592 {offsets = [16, 0], sizes = [8, 1], strides = [1, 1]} : vector<64x1xf32> to vector<8x1xf32>
    %597 = arith.maximumf %595, %596 : vector<8x1xf32>
    %598 = vector.extract_strided_slice %592 {offsets = [24, 0], sizes = [8, 1], strides = [1, 1]} : vector<64x1xf32> to vector<8x1xf32>
    %599 = arith.maximumf %597, %598 : vector<8x1xf32>
    %600 = vector.extract_strided_slice %592 {offsets = [32, 0], sizes = [8, 1], strides = [1, 1]} : vector<64x1xf32> to vector<8x1xf32>
    %601 = arith.maximumf %599, %600 : vector<8x1xf32>
    %602 = vector.extract_strided_slice %592 {offsets = [40, 0], sizes = [8, 1], strides = [1, 1]} : vector<64x1xf32> to vector<8x1xf32>
    %603 = arith.maximumf %601, %602 : vector<8x1xf32>
    %604 = vector.extract_strided_slice %592 {offsets = [48, 0], sizes = [8, 1], strides = [1, 1]} : vector<64x1xf32> to vector<8x1xf32>
    %605 = arith.maximumf %603, %604 : vector<8x1xf32>
    %606 = vector.extract_strided_slice %592 {offsets = [56, 0], sizes = [8, 1], strides = [1, 1]} : vector<64x1xf32> to vector<8x1xf32>
    %607 = arith.maximumf %605, %606 : vector<8x1xf32>
    %608 = tpu.concatenate %607, %607, %607, %607, %607, %607, %607, %607 in 0 : vector<8x1xf32>, vector<8x1xf32>, vector<8x1xf32>, vector<8x1xf32>, vector<8x1xf32>, vector<8x1xf32>, vector<8x1xf32>, vector<8x1xf32> -> vector<64x1xf32>
    %609 = arith.subf %592, %608 : vector<64x1xf32>
    %610 = math.exp %609 : vector<64x1xf32>
    %c0_179 = arith.constant 0 : index
    %c0_180 = arith.constant 0 : index
    %611 = vector.load %arg18[%c0_179, %c0_180] : memref<64x32xf32, #tpu.memory_space<vmem>>, vector<64x32xf32>
    %612 = vector.broadcast %610 : vector<64x1xf32> to vector<64x32xf32>
    %613 = arith.mulf %612, %611 : vector<64x32xf32>
    %614 = vector.extract_strided_slice %613 {offsets = [0, 0], sizes = [8, 32], strides = [1, 1]} : vector<64x32xf32> to vector<8x32xf32>
    %615 = vector.extract_strided_slice %610 {offsets = [0, 0], sizes = [8, 1], strides = [1, 1]} : vector<64x1xf32> to vector<8x1xf32>
    %616 = vector.extract_strided_slice %613 {offsets = [8, 0], sizes = [8, 32], strides = [1, 1]} : vector<64x32xf32> to vector<8x32xf32>
    %617 = arith.addf %614, %616 : vector<8x32xf32>
    %618 = vector.extract_strided_slice %610 {offsets = [8, 0], sizes = [8, 1], strides = [1, 1]} : vector<64x1xf32> to vector<8x1xf32>
    %619 = arith.addf %615, %618 : vector<8x1xf32>
    %620 = vector.extract_strided_slice %613 {offsets = [16, 0], sizes = [8, 32], strides = [1, 1]} : vector<64x32xf32> to vector<8x32xf32>
    %621 = arith.addf %617, %620 : vector<8x32xf32>
    %622 = vector.extract_strided_slice %610 {offsets = [16, 0], sizes = [8, 1], strides = [1, 1]} : vector<64x1xf32> to vector<8x1xf32>
    %623 = arith.addf %619, %622 : vector<8x1xf32>
    %624 = vector.extract_strided_slice %613 {offsets = [24, 0], sizes = [8, 32], strides = [1, 1]} : vector<64x32xf32> to vector<8x32xf32>
    %625 = arith.addf %621, %624 : vector<8x32xf32>
    %626 = vector.extract_strided_slice %610 {offsets = [24, 0], sizes = [8, 1], strides = [1, 1]} : vector<64x1xf32> to vector<8x1xf32>
    %627 = arith.addf %623, %626 : vector<8x1xf32>
    %628 = vector.extract_strided_slice %613 {offsets = [32, 0], sizes = [8, 32], strides = [1, 1]} : vector<64x32xf32> to vector<8x32xf32>
    %629 = arith.addf %625, %628 : vector<8x32xf32>
    %630 = vector.extract_strided_slice %610 {offsets = [32, 0], sizes = [8, 1], strides = [1, 1]} : vector<64x1xf32> to vector<8x1xf32>
    %631 = arith.addf %627, %630 : vector<8x1xf32>
    %632 = vector.extract_strided_slice %613 {offsets = [40, 0], sizes = [8, 32], strides = [1, 1]} : vector<64x32xf32> to vector<8x32xf32>
    %633 = arith.addf %629, %632 : vector<8x32xf32>
    %634 = vector.extract_strided_slice %610 {offsets = [40, 0], sizes = [8, 1], strides = [1, 1]} : vector<64x1xf32> to vector<8x1xf32>
    %635 = arith.addf %631, %634 : vector<8x1xf32>
    %636 = vector.extract_strided_slice %613 {offsets = [48, 0], sizes = [8, 32], strides = [1, 1]} : vector<64x32xf32> to vector<8x32xf32>
    %637 = arith.addf %633, %636 : vector<8x32xf32>
    %638 = vector.extract_strided_slice %610 {offsets = [48, 0], sizes = [8, 1], strides = [1, 1]} : vector<64x1xf32> to vector<8x1xf32>
    %639 = arith.addf %635, %638 : vector<8x1xf32>
    %640 = vector.extract_strided_slice %613 {offsets = [56, 0], sizes = [8, 32], strides = [1, 1]} : vector<64x32xf32> to vector<8x32xf32>
    %641 = arith.addf %637, %640 : vector<8x32xf32>
    %642 = vector.extract_strided_slice %610 {offsets = [56, 0], sizes = [8, 1], strides = [1, 1]} : vector<64x1xf32> to vector<8x1xf32>
    %643 = arith.addf %639, %642 : vector<8x1xf32>
    %644 = tpu.reciprocal %643 {approx = true} : vector<8x1xf32> -> vector<8x1xf32>
    %645 = vector.broadcast %644 : vector<8x1xf32> to vector<8x32xf32>
    %646 = arith.mulf %641, %645 : vector<8x32xf32>
    %c16_181 = arith.constant 16 : index
    %c0_182 = arith.constant 0 : index
    %647 = vector.load %arg19[%c16_181, %c0_182] : memref<48x64xf32, #tpu.memory_space<vmem>>, vector<8x32xf32>
    tpu.vector_store %arg19[%c16_181, %c0_182], %587 {strides = array<i32>} : memref<48x64xf32, #tpu.memory_space<vmem>>, vector<8x32xf32>,
    %c16_183 = arith.constant 16 : index
    %c32_184 = arith.constant 32 : index
    %648 = vector.load %arg19[%c16_183, %c32_184] : memref<48x64xf32, #tpu.memory_space<vmem>>, vector<8x32xf32>
    tpu.vector_store %arg19[%c16_183, %c32_184], %646 {strides = array<i32>} : memref<48x64xf32, #tpu.memory_space<vmem>>, vector<8x32xf32>,
    %c24_185 = arith.constant 24 : index
    %c0_186 = arith.constant 0 : index
    %649 = vector.load %arg15[%c24_185, %c0_186] : memref<48x96xf32, #tpu.memory_space<vmem>>, vector<8x96xf32>
    %cst_187 = arith.constant dense<0.000000e+00> : vector<8x96xf32>
    %650 = tpu.matmul %587, %38, %cst_187 {dimension_numbers = #tpu.dot_dimension_numbers<[1], [0], [0], [1], [0, 0, 1, 1], [], []>} : vector<8x32xf32>, vector<32x96xf32>, vector<8x96xf32> -> vector<8x96xf32>
    %651 = vector.broadcast %40 : vector<1x96xf32> to vector<8x96xf32>
    %652 = arith.addf %650, %651 : vector<8x96xf32>
    %653 = vector.extract_strided_slice %649 {offsets = [0, 0], sizes = [8, 64], strides = [1, 1]} : vector<8x96xf32> to vector<8x64xf32>
    %654 = vector.extract_strided_slice %652 {offsets = [0, 0], sizes = [8, 64], strides = [1, 1]} : vector<8x96xf32> to vector<8x64xf32>
    %655 = arith.addf %653, %654 : vector<8x64xf32>
    %656 = arith.negf %655 : vector<8x64xf32>
    %657 = math.exp %656 : vector<8x64xf32>
    %cst_188 = arith.constant 1.000000e+00 : f32
    %658 = vector.broadcast %cst_188 : f32 to vector<8x64xf32>
    %659 = arith.addf %658, %657 : vector<8x64xf32>
    %660 = arith.divf %658, %659 : vector<8x64xf32>
    %661 = vector.extract_strided_slice %660 {offsets = [0, 0], sizes = [8, 32], strides = [1, 1]} : vector<8x64xf32> to vector<8x32xf32>
    %662 = vector.extract_strided_slice %660 {offsets = [0, 32], sizes = [8, 32], strides = [1, 1]} : vector<8x64xf32> to vector<8x32xf32>
    %663 = vector.extract_strided_slice %649 {offsets = [0, 64], sizes = [8, 32], strides = [1, 1]} : vector<8x96xf32> to vector<8x32xf32>
    %664 = vector.extract_strided_slice %652 {offsets = [0, 64], sizes = [8, 32], strides = [1, 1]} : vector<8x96xf32> to vector<8x32xf32>
    %665 = arith.mulf %661, %664 : vector<8x32xf32>
    %666 = arith.addf %663, %665 : vector<8x32xf32>
    %667 = math.tanh %666 : vector<8x32xf32>
    %cst_189 = arith.constant 1.000000e+00 : f32
    %668 = vector.broadcast %cst_189 : f32 to vector<8x32xf32>
    %669 = arith.subf %668, %662 : vector<8x32xf32>
    %670 = arith.mulf %669, %667 : vector<8x32xf32>
    %671 = arith.mulf %662, %587 : vector<8x32xf32>
    %672 = arith.addf %670, %671 : vector<8x32xf32>
    %673 = tpu.concatenate %672, %672, %672, %672, %672, %672, %672, %672 in 0 : vector<8x32xf32>, vector<8x32xf32>, vector<8x32xf32>, vector<8x32xf32>, vector<8x32xf32>, vector<8x32xf32>, vector<8x32xf32>, vector<8x32xf32> -> vector<64x32xf32>
    %c0_190 = arith.constant 0 : index
    %c0_191 = arith.constant 0 : index
    %674 = vector.load %arg17[%c0_190, %c0_191] : memref<64x32xf32, #tpu.memory_space<vmem>>, vector<64x32xf32>
    %675 = arith.mulf %673, %674 : vector<64x32xf32>
    %cst_192 = arith.constant dense<0.000000e+00> : vector<64xf32>
    %676 = vector.multi_reduction <add>, %675, %cst_192 [1] : vector<64x32xf32> to vector<64xf32>
    %677 = vector.shape_cast %676 : vector<64xf32> to vector<64x1xf32>
    %678 = vector.extract_strided_slice %677 {offsets = [0, 0], sizes = [8, 1], strides = [1, 1]} : vector<64x1xf32> to vector<8x1xf32>
    %679 = vector.extract_strided_slice %677 {offsets = [8, 0], sizes = [8, 1], strides = [1, 1]} : vector<64x1xf32> to vector<8x1xf32>
    %680 = arith.maximumf %678, %679 : vector<8x1xf32>
    %681 = vector.extract_strided_slice %677 {offsets = [16, 0], sizes = [8, 1], strides = [1, 1]} : vector<64x1xf32> to vector<8x1xf32>
    %682 = arith.maximumf %680, %681 : vector<8x1xf32>
    %683 = vector.extract_strided_slice %677 {offsets = [24, 0], sizes = [8, 1], strides = [1, 1]} : vector<64x1xf32> to vector<8x1xf32>
    %684 = arith.maximumf %682, %683 : vector<8x1xf32>
    %685 = vector.extract_strided_slice %677 {offsets = [32, 0], sizes = [8, 1], strides = [1, 1]} : vector<64x1xf32> to vector<8x1xf32>
    %686 = arith.maximumf %684, %685 : vector<8x1xf32>
    %687 = vector.extract_strided_slice %677 {offsets = [40, 0], sizes = [8, 1], strides = [1, 1]} : vector<64x1xf32> to vector<8x1xf32>
    %688 = arith.maximumf %686, %687 : vector<8x1xf32>
    %689 = vector.extract_strided_slice %677 {offsets = [48, 0], sizes = [8, 1], strides = [1, 1]} : vector<64x1xf32> to vector<8x1xf32>
    %690 = arith.maximumf %688, %689 : vector<8x1xf32>
    %691 = vector.extract_strided_slice %677 {offsets = [56, 0], sizes = [8, 1], strides = [1, 1]} : vector<64x1xf32> to vector<8x1xf32>
    %692 = arith.maximumf %690, %691 : vector<8x1xf32>
    %693 = tpu.concatenate %692, %692, %692, %692, %692, %692, %692, %692 in 0 : vector<8x1xf32>, vector<8x1xf32>, vector<8x1xf32>, vector<8x1xf32>, vector<8x1xf32>, vector<8x1xf32>, vector<8x1xf32>, vector<8x1xf32> -> vector<64x1xf32>
    %694 = arith.subf %677, %693 : vector<64x1xf32>
    %695 = math.exp %694 : vector<64x1xf32>
    %c0_193 = arith.constant 0 : index
    %c0_194 = arith.constant 0 : index
    %696 = vector.load %arg18[%c0_193, %c0_194] : memref<64x32xf32, #tpu.memory_space<vmem>>, vector<64x32xf32>
    %697 = vector.broadcast %695 : vector<64x1xf32> to vector<64x32xf32>
    %698 = arith.mulf %697, %696 : vector<64x32xf32>
    %699 = vector.extract_strided_slice %698 {offsets = [0, 0], sizes = [8, 32], strides = [1, 1]} : vector<64x32xf32> to vector<8x32xf32>
    %700 = vector.extract_strided_slice %695 {offsets = [0, 0], sizes = [8, 1], strides = [1, 1]} : vector<64x1xf32> to vector<8x1xf32>
    %701 = vector.extract_strided_slice %698 {offsets = [8, 0], sizes = [8, 32], strides = [1, 1]} : vector<64x32xf32> to vector<8x32xf32>
    %702 = arith.addf %699, %701 : vector<8x32xf32>
    %703 = vector.extract_strided_slice %695 {offsets = [8, 0], sizes = [8, 1], strides = [1, 1]} : vector<64x1xf32> to vector<8x1xf32>
    %704 = arith.addf %700, %703 : vector<8x1xf32>
    %705 = vector.extract_strided_slice %698 {offsets = [16, 0], sizes = [8, 32], strides = [1, 1]} : vector<64x32xf32> to vector<8x32xf32>
    %706 = arith.addf %702, %705 : vector<8x32xf32>
    %707 = vector.extract_strided_slice %695 {offsets = [16, 0], sizes = [8, 1], strides = [1, 1]} : vector<64x1xf32> to vector<8x1xf32>
    %708 = arith.addf %704, %707 : vector<8x1xf32>
    %709 = vector.extract_strided_slice %698 {offsets = [24, 0], sizes = [8, 32], strides = [1, 1]} : vector<64x32xf32> to vector<8x32xf32>
    %710 = arith.addf %706, %709 : vector<8x32xf32>
    %711 = vector.extract_strided_slice %695 {offsets = [24, 0], sizes = [8, 1], strides = [1, 1]} : vector<64x1xf32> to vector<8x1xf32>
    %712 = arith.addf %708, %711 : vector<8x1xf32>
    %713 = vector.extract_strided_slice %698 {offsets = [32, 0], sizes = [8, 32], strides = [1, 1]} : vector<64x32xf32> to vector<8x32xf32>
    %714 = arith.addf %710, %713 : vector<8x32xf32>
    %715 = vector.extract_strided_slice %695 {offsets = [32, 0], sizes = [8, 1], strides = [1, 1]} : vector<64x1xf32> to vector<8x1xf32>
    %716 = arith.addf %712, %715 : vector<8x1xf32>
    %717 = vector.extract_strided_slice %698 {offsets = [40, 0], sizes = [8, 32], strides = [1, 1]} : vector<64x32xf32> to vector<8x32xf32>
    %718 = arith.addf %714, %717 : vector<8x32xf32>
    %719 = vector.extract_strided_slice %695 {offsets = [40, 0], sizes = [8, 1], strides = [1, 1]} : vector<64x1xf32> to vector<8x1xf32>
    %720 = arith.addf %716, %719 : vector<8x1xf32>
    %721 = vector.extract_strided_slice %698 {offsets = [48, 0], sizes = [8, 32], strides = [1, 1]} : vector<64x32xf32> to vector<8x32xf32>
    %722 = arith.addf %718, %721 : vector<8x32xf32>
    %723 = vector.extract_strided_slice %695 {offsets = [48, 0], sizes = [8, 1], strides = [1, 1]} : vector<64x1xf32> to vector<8x1xf32>
    %724 = arith.addf %720, %723 : vector<8x1xf32>
    %725 = vector.extract_strided_slice %698 {offsets = [56, 0], sizes = [8, 32], strides = [1, 1]} : vector<64x32xf32> to vector<8x32xf32>
    %726 = arith.addf %722, %725 : vector<8x32xf32>
    %727 = vector.extract_strided_slice %695 {offsets = [56, 0], sizes = [8, 1], strides = [1, 1]} : vector<64x1xf32> to vector<8x1xf32>
    %728 = arith.addf %724, %727 : vector<8x1xf32>
    %729 = tpu.reciprocal %728 {approx = true} : vector<8x1xf32> -> vector<8x1xf32>
    %730 = vector.broadcast %729 : vector<8x1xf32> to vector<8x32xf32>
    %731 = arith.mulf %726, %730 : vector<8x32xf32>
    %c24_195 = arith.constant 24 : index
    %c0_196 = arith.constant 0 : index
    %732 = vector.load %arg19[%c24_195, %c0_196] : memref<48x64xf32, #tpu.memory_space<vmem>>, vector<8x32xf32>
    tpu.vector_store %arg19[%c24_195, %c0_196], %672 {strides = array<i32>} : memref<48x64xf32, #tpu.memory_space<vmem>>, vector<8x32xf32>,
    %c24_197 = arith.constant 24 : index
    %c32_198 = arith.constant 32 : index
    %733 = vector.load %arg19[%c24_197, %c32_198] : memref<48x64xf32, #tpu.memory_space<vmem>>, vector<8x32xf32>
    tpu.vector_store %arg19[%c24_197, %c32_198], %731 {strides = array<i32>} : memref<48x64xf32, #tpu.memory_space<vmem>>, vector<8x32xf32>,
    %c32_199 = arith.constant 32 : index
    %c0_200 = arith.constant 0 : index
    %734 = vector.load %arg15[%c32_199, %c0_200] : memref<48x96xf32, #tpu.memory_space<vmem>>, vector<8x96xf32>
    %cst_201 = arith.constant dense<0.000000e+00> : vector<8x96xf32>
    %735 = tpu.matmul %672, %38, %cst_201 {dimension_numbers = #tpu.dot_dimension_numbers<[1], [0], [0], [1], [0, 0, 1, 1], [], []>} : vector<8x32xf32>, vector<32x96xf32>, vector<8x96xf32> -> vector<8x96xf32>
    %736 = vector.broadcast %40 : vector<1x96xf32> to vector<8x96xf32>
    %737 = arith.addf %735, %736 : vector<8x96xf32>
    %738 = vector.extract_strided_slice %734 {offsets = [0, 0], sizes = [8, 64], strides = [1, 1]} : vector<8x96xf32> to vector<8x64xf32>
    %739 = vector.extract_strided_slice %737 {offsets = [0, 0], sizes = [8, 64], strides = [1, 1]} : vector<8x96xf32> to vector<8x64xf32>
    %740 = arith.addf %738, %739 : vector<8x64xf32>
    %741 = arith.negf %740 : vector<8x64xf32>
    %742 = math.exp %741 : vector<8x64xf32>
    %cst_202 = arith.constant 1.000000e+00 : f32
    %743 = vector.broadcast %cst_202 : f32 to vector<8x64xf32>
    %744 = arith.addf %743, %742 : vector<8x64xf32>
    %745 = arith.divf %743, %744 : vector<8x64xf32>
    %746 = vector.extract_strided_slice %745 {offsets = [0, 0], sizes = [8, 32], strides = [1, 1]} : vector<8x64xf32> to vector<8x32xf32>
    %747 = vector.extract_strided_slice %745 {offsets = [0, 32], sizes = [8, 32], strides = [1, 1]} : vector<8x64xf32> to vector<8x32xf32>
    %748 = vector.extract_strided_slice %734 {offsets = [0, 64], sizes = [8, 32], strides = [1, 1]} : vector<8x96xf32> to vector<8x32xf32>
    %749 = vector.extract_strided_slice %737 {offsets = [0, 64], sizes = [8, 32], strides = [1, 1]} : vector<8x96xf32> to vector<8x32xf32>
    %750 = arith.mulf %746, %749 : vector<8x32xf32>
    %751 = arith.addf %748, %750 : vector<8x32xf32>
    %752 = math.tanh %751 : vector<8x32xf32>
    %cst_203 = arith.constant 1.000000e+00 : f32
    %753 = vector.broadcast %cst_203 : f32 to vector<8x32xf32>
    %754 = arith.subf %753, %747 : vector<8x32xf32>
    %755 = arith.mulf %754, %752 : vector<8x32xf32>
    %756 = arith.mulf %747, %672 : vector<8x32xf32>
    %757 = arith.addf %755, %756 : vector<8x32xf32>
    %758 = tpu.concatenate %757, %757, %757, %757, %757, %757, %757, %757 in 0 : vector<8x32xf32>, vector<8x32xf32>, vector<8x32xf32>, vector<8x32xf32>, vector<8x32xf32>, vector<8x32xf32>, vector<8x32xf32>, vector<8x32xf32> -> vector<64x32xf32>
    %c0_204 = arith.constant 0 : index
    %c0_205 = arith.constant 0 : index
    %759 = vector.load %arg17[%c0_204, %c0_205] : memref<64x32xf32, #tpu.memory_space<vmem>>, vector<64x32xf32>
    %760 = arith.mulf %758, %759 : vector<64x32xf32>
    %cst_206 = arith.constant dense<0.000000e+00> : vector<64xf32>
    %761 = vector.multi_reduction <add>, %760, %cst_206 [1] : vector<64x32xf32> to vector<64xf32>
    %762 = vector.shape_cast %761 : vector<64xf32> to vector<64x1xf32>
    %763 = vector.extract_strided_slice %762 {offsets = [0, 0], sizes = [8, 1], strides = [1, 1]} : vector<64x1xf32> to vector<8x1xf32>
    %764 = vector.extract_strided_slice %762 {offsets = [8, 0], sizes = [8, 1], strides = [1, 1]} : vector<64x1xf32> to vector<8x1xf32>
    %765 = arith.maximumf %763, %764 : vector<8x1xf32>
    %766 = vector.extract_strided_slice %762 {offsets = [16, 0], sizes = [8, 1], strides = [1, 1]} : vector<64x1xf32> to vector<8x1xf32>
    %767 = arith.maximumf %765, %766 : vector<8x1xf32>
    %768 = vector.extract_strided_slice %762 {offsets = [24, 0], sizes = [8, 1], strides = [1, 1]} : vector<64x1xf32> to vector<8x1xf32>
    %769 = arith.maximumf %767, %768 : vector<8x1xf32>
    %770 = vector.extract_strided_slice %762 {offsets = [32, 0], sizes = [8, 1], strides = [1, 1]} : vector<64x1xf32> to vector<8x1xf32>
    %771 = arith.maximumf %769, %770 : vector<8x1xf32>
    %772 = vector.extract_strided_slice %762 {offsets = [40, 0], sizes = [8, 1], strides = [1, 1]} : vector<64x1xf32> to vector<8x1xf32>
    %773 = arith.maximumf %771, %772 : vector<8x1xf32>
    %774 = vector.extract_strided_slice %762 {offsets = [48, 0], sizes = [8, 1], strides = [1, 1]} : vector<64x1xf32> to vector<8x1xf32>
    %775 = arith.maximumf %773, %774 : vector<8x1xf32>
    %776 = vector.extract_strided_slice %762 {offsets = [56, 0], sizes = [8, 1], strides = [1, 1]} : vector<64x1xf32> to vector<8x1xf32>
    %777 = arith.maximumf %775, %776 : vector<8x1xf32>
    %778 = tpu.concatenate %777, %777, %777, %777, %777, %777, %777, %777 in 0 : vector<8x1xf32>, vector<8x1xf32>, vector<8x1xf32>, vector<8x1xf32>, vector<8x1xf32>, vector<8x1xf32>, vector<8x1xf32>, vector<8x1xf32> -> vector<64x1xf32>
    %779 = arith.subf %762, %778 : vector<64x1xf32>
    %780 = math.exp %779 : vector<64x1xf32>
    %c0_207 = arith.constant 0 : index
    %c0_208 = arith.constant 0 : index
    %781 = vector.load %arg18[%c0_207, %c0_208] : memref<64x32xf32, #tpu.memory_space<vmem>>, vector<64x32xf32>
    %782 = vector.broadcast %780 : vector<64x1xf32> to vector<64x32xf32>
    %783 = arith.mulf %782, %781 : vector<64x32xf32>
    %784 = vector.extract_strided_slice %783 {offsets = [0, 0], sizes = [8, 32], strides = [1, 1]} : vector<64x32xf32> to vector<8x32xf32>
    %785 = vector.extract_strided_slice %780 {offsets = [0, 0], sizes = [8, 1], strides = [1, 1]} : vector<64x1xf32> to vector<8x1xf32>
    %786 = vector.extract_strided_slice %783 {offsets = [8, 0], sizes = [8, 32], strides = [1, 1]} : vector<64x32xf32> to vector<8x32xf32>
    %787 = arith.addf %784, %786 : vector<8x32xf32>
    %788 = vector.extract_strided_slice %780 {offsets = [8, 0], sizes = [8, 1], strides = [1, 1]} : vector<64x1xf32> to vector<8x1xf32>
    %789 = arith.addf %785, %788 : vector<8x1xf32>
    %790 = vector.extract_strided_slice %783 {offsets = [16, 0], sizes = [8, 32], strides = [1, 1]} : vector<64x32xf32> to vector<8x32xf32>
    %791 = arith.addf %787, %790 : vector<8x32xf32>
    %792 = vector.extract_strided_slice %780 {offsets = [16, 0], sizes = [8, 1], strides = [1, 1]} : vector<64x1xf32> to vector<8x1xf32>
    %793 = arith.addf %789, %792 : vector<8x1xf32>
    %794 = vector.extract_strided_slice %783 {offsets = [24, 0], sizes = [8, 32], strides = [1, 1]} : vector<64x32xf32> to vector<8x32xf32>
    %795 = arith.addf %791, %794 : vector<8x32xf32>
    %796 = vector.extract_strided_slice %780 {offsets = [24, 0], sizes = [8, 1], strides = [1, 1]} : vector<64x1xf32> to vector<8x1xf32>
    %797 = arith.addf %793, %796 : vector<8x1xf32>
    %798 = vector.extract_strided_slice %783 {offsets = [32, 0], sizes = [8, 32], strides = [1, 1]} : vector<64x32xf32> to vector<8x32xf32>
    %799 = arith.addf %795, %798 : vector<8x32xf32>
    %800 = vector.extract_strided_slice %780 {offsets = [32, 0], sizes = [8, 1], strides = [1, 1]} : vector<64x1xf32> to vector<8x1xf32>
    %801 = arith.addf %797, %800 : vector<8x1xf32>
    %802 = vector.extract_strided_slice %783 {offsets = [40, 0], sizes = [8, 32], strides = [1, 1]} : vector<64x32xf32> to vector<8x32xf32>
    %803 = arith.addf %799, %802 : vector<8x32xf32>
    %804 = vector.extract_strided_slice %780 {offsets = [40, 0], sizes = [8, 1], strides = [1, 1]} : vector<64x1xf32> to vector<8x1xf32>
    %805 = arith.addf %801, %804 : vector<8x1xf32>
    %806 = vector.extract_strided_slice %783 {offsets = [48, 0], sizes = [8, 32], strides = [1, 1]} : vector<64x32xf32> to vector<8x32xf32>
    %807 = arith.addf %803, %806 : vector<8x32xf32>
    %808 = vector.extract_strided_slice %780 {offsets = [48, 0], sizes = [8, 1], strides = [1, 1]} : vector<64x1xf32> to vector<8x1xf32>
    %809 = arith.addf %805, %808 : vector<8x1xf32>
    %810 = vector.extract_strided_slice %783 {offsets = [56, 0], sizes = [8, 32], strides = [1, 1]} : vector<64x32xf32> to vector<8x32xf32>
    %811 = arith.addf %807, %810 : vector<8x32xf32>
    %812 = vector.extract_strided_slice %780 {offsets = [56, 0], sizes = [8, 1], strides = [1, 1]} : vector<64x1xf32> to vector<8x1xf32>
    %813 = arith.addf %809, %812 : vector<8x1xf32>
    %814 = tpu.reciprocal %813 {approx = true} : vector<8x1xf32> -> vector<8x1xf32>
    %815 = vector.broadcast %814 : vector<8x1xf32> to vector<8x32xf32>
    %816 = arith.mulf %811, %815 : vector<8x32xf32>
    %c32_209 = arith.constant 32 : index
    %c0_210 = arith.constant 0 : index
    %817 = vector.load %arg19[%c32_209, %c0_210] : memref<48x64xf32, #tpu.memory_space<vmem>>, vector<8x32xf32>
    tpu.vector_store %arg19[%c32_209, %c0_210], %757 {strides = array<i32>} : memref<48x64xf32, #tpu.memory_space<vmem>>, vector<8x32xf32>,
    %c32_211 = arith.constant 32 : index
    %c32_212 = arith.constant 32 : index
    %818 = vector.load %arg19[%c32_211, %c32_212] : memref<48x64xf32, #tpu.memory_space<vmem>>, vector<8x32xf32>
    tpu.vector_store %arg19[%c32_211, %c32_212], %816 {strides = array<i32>} : memref<48x64xf32, #tpu.memory_space<vmem>>, vector<8x32xf32>,
    %c40_213 = arith.constant 40 : index
    %c0_214 = arith.constant 0 : index
    %819 = vector.load %arg15[%c40_213, %c0_214] : memref<48x96xf32, #tpu.memory_space<vmem>>, vector<8x96xf32>
    %cst_215 = arith.constant dense<0.000000e+00> : vector<8x96xf32>
    %820 = tpu.matmul %757, %38, %cst_215 {dimension_numbers = #tpu.dot_dimension_numbers<[1], [0], [0], [1], [0, 0, 1, 1], [], []>} : vector<8x32xf32>, vector<32x96xf32>, vector<8x96xf32> -> vector<8x96xf32>
    %821 = vector.broadcast %40 : vector<1x96xf32> to vector<8x96xf32>
    %822 = arith.addf %820, %821 : vector<8x96xf32>
    %823 = vector.extract_strided_slice %819 {offsets = [0, 0], sizes = [8, 64], strides = [1, 1]} : vector<8x96xf32> to vector<8x64xf32>
    %824 = vector.extract_strided_slice %822 {offsets = [0, 0], sizes = [8, 64], strides = [1, 1]} : vector<8x96xf32> to vector<8x64xf32>
    %825 = arith.addf %823, %824 : vector<8x64xf32>
    %826 = arith.negf %825 : vector<8x64xf32>
    %827 = math.exp %826 : vector<8x64xf32>
    %cst_216 = arith.constant 1.000000e+00 : f32
    %828 = vector.broadcast %cst_216 : f32 to vector<8x64xf32>
    %829 = arith.addf %828, %827 : vector<8x64xf32>
    %830 = arith.divf %828, %829 : vector<8x64xf32>
    %831 = vector.extract_strided_slice %830 {offsets = [0, 0], sizes = [8, 32], strides = [1, 1]} : vector<8x64xf32> to vector<8x32xf32>
    %832 = vector.extract_strided_slice %830 {offsets = [0, 32], sizes = [8, 32], strides = [1, 1]} : vector<8x64xf32> to vector<8x32xf32>
    %833 = vector.extract_strided_slice %819 {offsets = [0, 64], sizes = [8, 32], strides = [1, 1]} : vector<8x96xf32> to vector<8x32xf32>
    %834 = vector.extract_strided_slice %822 {offsets = [0, 64], sizes = [8, 32], strides = [1, 1]} : vector<8x96xf32> to vector<8x32xf32>
    %835 = arith.mulf %831, %834 : vector<8x32xf32>
    %836 = arith.addf %833, %835 : vector<8x32xf32>
    %837 = math.tanh %836 : vector<8x32xf32>
    %cst_217 = arith.constant 1.000000e+00 : f32
    %838 = vector.broadcast %cst_217 : f32 to vector<8x32xf32>
    %839 = arith.subf %838, %832 : vector<8x32xf32>
    %840 = arith.mulf %839, %837 : vector<8x32xf32>
    %841 = arith.mulf %832, %757 : vector<8x32xf32>
    %842 = arith.addf %840, %841 : vector<8x32xf32>
    %843 = tpu.concatenate %842, %842, %842, %842, %842, %842, %842, %842 in 0 : vector<8x32xf32>, vector<8x32xf32>, vector<8x32xf32>, vector<8x32xf32>, vector<8x32xf32>, vector<8x32xf32>, vector<8x32xf32>, vector<8x32xf32> -> vector<64x32xf32>
    %c0_218 = arith.constant 0 : index
    %c0_219 = arith.constant 0 : index
    %844 = vector.load %arg17[%c0_218, %c0_219] : memref<64x32xf32, #tpu.memory_space<vmem>>, vector<64x32xf32>
    %845 = arith.mulf %843, %844 : vector<64x32xf32>
    %cst_220 = arith.constant dense<0.000000e+00> : vector<64xf32>
    %846 = vector.multi_reduction <add>, %845, %cst_220 [1] : vector<64x32xf32> to vector<64xf32>
    %847 = vector.shape_cast %846 : vector<64xf32> to vector<64x1xf32>
    %848 = vector.extract_strided_slice %847 {offsets = [0, 0], sizes = [8, 1], strides = [1, 1]} : vector<64x1xf32> to vector<8x1xf32>
    %849 = vector.extract_strided_slice %847 {offsets = [8, 0], sizes = [8, 1], strides = [1, 1]} : vector<64x1xf32> to vector<8x1xf32>
    %850 = arith.maximumf %848, %849 : vector<8x1xf32>
    %851 = vector.extract_strided_slice %847 {offsets = [16, 0], sizes = [8, 1], strides = [1, 1]} : vector<64x1xf32> to vector<8x1xf32>
    %852 = arith.maximumf %850, %851 : vector<8x1xf32>
    %853 = vector.extract_strided_slice %847 {offsets = [24, 0], sizes = [8, 1], strides = [1, 1]} : vector<64x1xf32> to vector<8x1xf32>
    %854 = arith.maximumf %852, %853 : vector<8x1xf32>
    %855 = vector.extract_strided_slice %847 {offsets = [32, 0], sizes = [8, 1], strides = [1, 1]} : vector<64x1xf32> to vector<8x1xf32>
    %856 = arith.maximumf %854, %855 : vector<8x1xf32>
    %857 = vector.extract_strided_slice %847 {offsets = [40, 0], sizes = [8, 1], strides = [1, 1]} : vector<64x1xf32> to vector<8x1xf32>
    %858 = arith.maximumf %856, %857 : vector<8x1xf32>
    %859 = vector.extract_strided_slice %847 {offsets = [48, 0], sizes = [8, 1], strides = [1, 1]} : vector<64x1xf32> to vector<8x1xf32>
    %860 = arith.maximumf %858, %859 : vector<8x1xf32>
    %861 = vector.extract_strided_slice %847 {offsets = [56, 0], sizes = [8, 1], strides = [1, 1]} : vector<64x1xf32> to vector<8x1xf32>
    %862 = arith.maximumf %860, %861 : vector<8x1xf32>
    %863 = tpu.concatenate %862, %862, %862, %862, %862, %862, %862, %862 in 0 : vector<8x1xf32>, vector<8x1xf32>, vector<8x1xf32>, vector<8x1xf32>, vector<8x1xf32>, vector<8x1xf32>, vector<8x1xf32>, vector<8x1xf32> -> vector<64x1xf32>
    %864 = arith.subf %847, %863 : vector<64x1xf32>
    %865 = math.exp %864 : vector<64x1xf32>
    %c0_221 = arith.constant 0 : index
    %c0_222 = arith.constant 0 : index
    %866 = vector.load %arg18[%c0_221, %c0_222] : memref<64x32xf32, #tpu.memory_space<vmem>>, vector<64x32xf32>
    %867 = vector.broadcast %865 : vector<64x1xf32> to vector<64x32xf32>
    %868 = arith.mulf %867, %866 : vector<64x32xf32>
    %869 = vector.extract_strided_slice %868 {offsets = [0, 0], sizes = [8, 32], strides = [1, 1]} : vector<64x32xf32> to vector<8x32xf32>
    %870 = vector.extract_strided_slice %865 {offsets = [0, 0], sizes = [8, 1], strides = [1, 1]} : vector<64x1xf32> to vector<8x1xf32>
    %871 = vector.extract_strided_slice %868 {offsets = [8, 0], sizes = [8, 32], strides = [1, 1]} : vector<64x32xf32> to vector<8x32xf32>
    %872 = arith.addf %869, %871 : vector<8x32xf32>
    %873 = vector.extract_strided_slice %865 {offsets = [8, 0], sizes = [8, 1], strides = [1, 1]} : vector<64x1xf32> to vector<8x1xf32>
    %874 = arith.addf %870, %873 : vector<8x1xf32>
    %875 = vector.extract_strided_slice %868 {offsets = [16, 0], sizes = [8, 32], strides = [1, 1]} : vector<64x32xf32> to vector<8x32xf32>
    %876 = arith.addf %872, %875 : vector<8x32xf32>
    %877 = vector.extract_strided_slice %865 {offsets = [16, 0], sizes = [8, 1], strides = [1, 1]} : vector<64x1xf32> to vector<8x1xf32>
    %878 = arith.addf %874, %877 : vector<8x1xf32>
    %879 = vector.extract_strided_slice %868 {offsets = [24, 0], sizes = [8, 32], strides = [1, 1]} : vector<64x32xf32> to vector<8x32xf32>
    %880 = arith.addf %876, %879 : vector<8x32xf32>
    %881 = vector.extract_strided_slice %865 {offsets = [24, 0], sizes = [8, 1], strides = [1, 1]} : vector<64x1xf32> to vector<8x1xf32>
    %882 = arith.addf %878, %881 : vector<8x1xf32>
    %883 = vector.extract_strided_slice %868 {offsets = [32, 0], sizes = [8, 32], strides = [1, 1]} : vector<64x32xf32> to vector<8x32xf32>
    %884 = arith.addf %880, %883 : vector<8x32xf32>
    %885 = vector.extract_strided_slice %865 {offsets = [32, 0], sizes = [8, 1], strides = [1, 1]} : vector<64x1xf32> to vector<8x1xf32>
    %886 = arith.addf %882, %885 : vector<8x1xf32>
    %887 = vector.extract_strided_slice %868 {offsets = [40, 0], sizes = [8, 32], strides = [1, 1]} : vector<64x32xf32> to vector<8x32xf32>
    %888 = arith.addf %884, %887 : vector<8x32xf32>
    %889 = vector.extract_strided_slice %865 {offsets = [40, 0], sizes = [8, 1], strides = [1, 1]} : vector<64x1xf32> to vector<8x1xf32>
    %890 = arith.addf %886, %889 : vector<8x1xf32>
    %891 = vector.extract_strided_slice %868 {offsets = [48, 0], sizes = [8, 32], strides = [1, 1]} : vector<64x32xf32> to vector<8x32xf32>
    %892 = arith.addf %888, %891 : vector<8x32xf32>
    %893 = vector.extract_strided_slice %865 {offsets = [48, 0], sizes = [8, 1], strides = [1, 1]} : vector<64x1xf32> to vector<8x1xf32>
    %894 = arith.addf %890, %893 : vector<8x1xf32>
    %895 = vector.extract_strided_slice %868 {offsets = [56, 0], sizes = [8, 32], strides = [1, 1]} : vector<64x32xf32> to vector<8x32xf32>
    %896 = arith.addf %892, %895 : vector<8x32xf32>
    %897 = vector.extract_strided_slice %865 {offsets = [56, 0], sizes = [8, 1], strides = [1, 1]} : vector<64x1xf32> to vector<8x1xf32>
    %898 = arith.addf %894, %897 : vector<8x1xf32>
    %899 = tpu.reciprocal %898 {approx = true} : vector<8x1xf32> -> vector<8x1xf32>
    %900 = vector.broadcast %899 : vector<8x1xf32> to vector<8x32xf32>
    %901 = arith.mulf %896, %900 : vector<8x32xf32>
    %c40_223 = arith.constant 40 : index
    %c0_224 = arith.constant 0 : index
    %902 = vector.load %arg19[%c40_223, %c0_224] : memref<48x64xf32, #tpu.memory_space<vmem>>, vector<8x32xf32>
    tpu.vector_store %arg19[%c40_223, %c0_224], %842 {strides = array<i32>} : memref<48x64xf32, #tpu.memory_space<vmem>>, vector<8x32xf32>,
    %c40_225 = arith.constant 40 : index
    %c32_226 = arith.constant 32 : index
    %903 = vector.load %arg19[%c40_225, %c32_226] : memref<48x64xf32, #tpu.memory_space<vmem>>, vector<8x32xf32>
    tpu.vector_store %arg19[%c40_225, %c32_226], %901 {strides = array<i32>} : memref<48x64xf32, #tpu.memory_space<vmem>>, vector<8x32xf32>,
    %c0_227 = arith.constant 0 : index
    %c0_228 = arith.constant 0 : index
    %904 = vector.load %arg19[%c0_227, %c0_228] : memref<48x64xf32, #tpu.memory_space<vmem>>, vector<48x64xf32>
    %c0_229 = arith.constant 0 : index
    %c0_230 = arith.constant 0 : index
    %905 = vector.load %arg11[%c0_229, %c0_230] : memref<64x256xf32, #tpu.memory_space<vmem>>, vector<64x64xf32>
    %cst_231 = arith.constant dense<0.000000e+00> : vector<48x64xf32>
    %906 = tpu.matmul %904, %905, %cst_231 {dimension_numbers = #tpu.dot_dimension_numbers<[1], [0], [0], [1], [0, 0, 1, 1], [], []>} : vector<48x64xf32>, vector<64x64xf32>, vector<48x64xf32> -> vector<48x64xf32>
    %c0_232 = arith.constant 0 : index
    %c0_233 = arith.constant 0 : index
    %907 = vector.load %arg12[%c0_232, %c0_233] : memref<1x256xf32, #tpu.memory_space<vmem>>, vector<1x64xf32>
    %908 = vector.broadcast %907 : vector<1x64xf32> to vector<48x64xf32>
    %909 = arith.addf %906, %908 : vector<48x64xf32>
    %cst_234 = arith.constant 0.000000e+00 : f32
    %910 = vector.broadcast %cst_234 : f32 to vector<48x64xf32>
    %911 = arith.maximumf %909, %910 : vector<48x64xf32>
    %c0_235 = arith.constant 0 : index
    %c128 = arith.constant 128 : index
    %912 = vector.load %arg11[%c0_235, %c128] : memref<64x256xf32, #tpu.memory_space<vmem>>, vector<64x128xf32>
    %cst_236 = arith.constant dense<0.000000e+00> : vector<48x128xf32>
    %913 = tpu.matmul %911, %912, %cst_236 {dimension_numbers = #tpu.dot_dimension_numbers<[1], [0], [0], [1], [0, 0, 1, 1], [], []>} : vector<48x64xf32>, vector<64x128xf32>, vector<48x128xf32> -> vector<48x128xf32>
    %c0_237 = arith.constant 0 : index
    %c128_238 = arith.constant 128 : index
    %914 = vector.load %arg12[%c0_237, %c128_238] : memref<1x256xf32, #tpu.memory_space<vmem>>, vector<1x128xf32>
    %915 = vector.broadcast %914 : vector<1x128xf32> to vector<48x128xf32>
    %916 = arith.addf %913, %915 : vector<48x128xf32>
    %cst_239 = arith.constant dense<0xFF800000> : vector<48xf32>
    %917 = vector.multi_reduction <maximumf>, %916, %cst_239 [1] : vector<48x128xf32> to vector<48xf32>
    %918 = vector.shape_cast %917 : vector<48xf32> to vector<48x1xf32>
    %919 = vector.broadcast %918 : vector<48x1xf32> to vector<48x128xf32>
    %920 = arith.subf %916, %919 : vector<48x128xf32>
    %921 = math.exp %920 : vector<48x128xf32>
    %cst_240 = arith.constant dense<0.000000e+00> : vector<48xf32>
    %922 = vector.multi_reduction <add>, %921, %cst_240 [1] : vector<48x128xf32> to vector<48xf32>
    %923 = vector.shape_cast %922 : vector<48xf32> to vector<48x1xf32>
    %924 = math.log %923 : vector<48x1xf32>
    %925 = vector.broadcast %924 : vector<48x1xf32> to vector<48x128xf32>
    %926 = arith.subf %920, %925 : vector<48x128xf32>
    %c0_241 = arith.constant 0 : index
    %c0_242 = arith.constant 0 : index
    %c0_243 = arith.constant 0 : index
    %927 = vector.load %arg4[%c0_241, %c0_242, %c0_243] : memref<1x48x1xi32, #tpu.memory_space<vmem>>, vector<1x48x1xi32>
    %928 = vector.shape_cast %927 : vector<1x48x1xi32> to vector<48x1xi32>
    %929 = tpu.iota {dimensions = array<i32: 1>} : vector<48x128xi32>
    %930 = vector.broadcast %928 : vector<48x1xi32> to vector<48x128xi32>
    %931 = arith.cmpi eq, %929, %930 : vector<48x128xi32>
    %932 = arith.extui %931 : vector<48x128xi1> to vector<48x128xi32>
    %933 = arith.sitofp %932 : vector<48x128xi32> to vector<48x128xf32>
    %934 = arith.mulf %926, %933 : vector<48x128xf32>
    %cst_244 = arith.constant dense<0.000000e+00> : vector<48xf32>
    %935 = vector.multi_reduction <add>, %934, %cst_244 [1] : vector<48x128xf32> to vector<48xf32>
    %936 = vector.shape_cast %935 : vector<48xf32> to vector<48x1xf32>
    %cst_245 = arith.constant 0.000000e+00 : f32
    %937 = vector.broadcast %cst_245 : f32 to vector<48x1xf32>
    %938 = arith.subf %937, %936 : vector<48x1xf32>
    %c0_i32_246 = arith.constant 0 : i32
    %939 = vector.broadcast %c0_i32_246 : i32 to vector<48x1xi32>
    %940 = arith.cmpi ne, %928, %939 : vector<48x1xi32>
    %941 = arith.extui %940 : vector<48x1xi1> to vector<48x1xi32>
    %942 = arith.sitofp %941 : vector<48x1xi32> to vector<48x1xf32>
    %cst_247 = arith.constant 0.000000e+00 : f32
    %943 = vector.broadcast %cst_247 : f32 to vector<1x1xf32>
    %944 = vector.extract_strided_slice %942 {offsets = [0, 0], sizes = [8, 1], strides = [1, 1]} : vector<48x1xf32> to vector<8x1xf32>
    %945 = vector.shape_cast %944 : vector<8x1xf32> to vector<1x8x1xf32>
    %cst_248 = arith.constant dense<0.000000e+00> : vector<1xf32>
    %946 = vector.multi_reduction <add>, %945, %cst_248 [1, 2] : vector<1x8x1xf32> to vector<1xf32>
    %947 = vector.shape_cast %946 : vector<1xf32> to vector<1x1x1xf32>
    %948 = vector.extract %947[0, 0, 0] : f32 from vector<1x1x1xf32>
    %949 = vector.broadcast %948 : f32 to vector<1x1xf32>
    %cst_249 = arith.constant 1.000000e+00 : f32
    %950 = vector.broadcast %cst_249 : f32 to vector<1x1xf32>
    %951 = arith.maximumf %949, %950 : vector<1x1xf32>
    %952 = vector.extract_strided_slice %938 {offsets = [0, 0], sizes = [8, 1], strides = [1, 1]} : vector<48x1xf32> to vector<8x1xf32>
    %953 = arith.mulf %952, %944 : vector<8x1xf32>
    %954 = vector.shape_cast %953 : vector<8x1xf32> to vector<1x8x1xf32>
    %cst_250 = arith.constant dense<0.000000e+00> : vector<1xf32>
    %955 = vector.multi_reduction <add>, %954, %cst_250 [1, 2] : vector<1x8x1xf32> to vector<1xf32>
    %956 = vector.shape_cast %955 : vector<1xf32> to vector<1x1x1xf32>
    %957 = vector.extract %956[0, 0, 0] : f32 from vector<1x1x1xf32>
    %958 = vector.broadcast %957 : f32 to vector<1x1xf32>
    %959 = arith.divf %958, %951 : vector<1x1xf32>
    %960 = arith.addf %943, %959 : vector<1x1xf32>
    %961 = vector.extract_strided_slice %942 {offsets = [8, 0], sizes = [8, 1], strides = [1, 1]} : vector<48x1xf32> to vector<8x1xf32>
    %962 = vector.shape_cast %961 : vector<8x1xf32> to vector<1x8x1xf32>
    %cst_251 = arith.constant dense<0.000000e+00> : vector<1xf32>
    %963 = vector.multi_reduction <add>, %962, %cst_251 [1, 2] : vector<1x8x1xf32> to vector<1xf32>
    %964 = vector.shape_cast %963 : vector<1xf32> to vector<1x1x1xf32>
    %965 = vector.extract %964[0, 0, 0] : f32 from vector<1x1x1xf32>
    %966 = vector.broadcast %965 : f32 to vector<1x1xf32>
    %cst_252 = arith.constant 1.000000e+00 : f32
    %967 = vector.broadcast %cst_252 : f32 to vector<1x1xf32>
    %968 = arith.maximumf %966, %967 : vector<1x1xf32>
    %969 = vector.extract_strided_slice %938 {offsets = [8, 0], sizes = [8, 1], strides = [1, 1]} : vector<48x1xf32> to vector<8x1xf32>
    %970 = arith.mulf %969, %961 : vector<8x1xf32>
    %971 = vector.shape_cast %970 : vector<8x1xf32> to vector<1x8x1xf32>
    %cst_253 = arith.constant dense<0.000000e+00> : vector<1xf32>
    %972 = vector.multi_reduction <add>, %971, %cst_253 [1, 2] : vector<1x8x1xf32> to vector<1xf32>
    %973 = vector.shape_cast %972 : vector<1xf32> to vector<1x1x1xf32>
    %974 = vector.extract %973[0, 0, 0] : f32 from vector<1x1x1xf32>
    %975 = vector.broadcast %974 : f32 to vector<1x1xf32>
    %976 = arith.divf %975, %968 : vector<1x1xf32>
    %977 = arith.addf %960, %976 : vector<1x1xf32>
    %978 = vector.extract_strided_slice %942 {offsets = [16, 0], sizes = [8, 1], strides = [1, 1]} : vector<48x1xf32> to vector<8x1xf32>
    %979 = vector.shape_cast %978 : vector<8x1xf32> to vector<1x8x1xf32>
    %cst_254 = arith.constant dense<0.000000e+00> : vector<1xf32>
    %980 = vector.multi_reduction <add>, %979, %cst_254 [1, 2] : vector<1x8x1xf32> to vector<1xf32>
    %981 = vector.shape_cast %980 : vector<1xf32> to vector<1x1x1xf32>
    %982 = vector.extract %981[0, 0, 0] : f32 from vector<1x1x1xf32>
    %983 = vector.broadcast %982 : f32 to vector<1x1xf32>
    %cst_255 = arith.constant 1.000000e+00 : f32
    %984 = vector.broadcast %cst_255 : f32 to vector<1x1xf32>
    %985 = arith.maximumf %983, %984 : vector<1x1xf32>
    %986 = vector.extract_strided_slice %938 {offsets = [16, 0], sizes = [8, 1], strides = [1, 1]} : vector<48x1xf32> to vector<8x1xf32>
    %987 = arith.mulf %986, %978 : vector<8x1xf32>
    %988 = vector.shape_cast %987 : vector<8x1xf32> to vector<1x8x1xf32>
    %cst_256 = arith.constant dense<0.000000e+00> : vector<1xf32>
    %989 = vector.multi_reduction <add>, %988, %cst_256 [1, 2] : vector<1x8x1xf32> to vector<1xf32>
    %990 = vector.shape_cast %989 : vector<1xf32> to vector<1x1x1xf32>
    %991 = vector.extract %990[0, 0, 0] : f32 from vector<1x1x1xf32>
    %992 = vector.broadcast %991 : f32 to vector<1x1xf32>
    %993 = arith.divf %992, %985 : vector<1x1xf32>
    %994 = arith.addf %977, %993 : vector<1x1xf32>
    %995 = vector.extract_strided_slice %942 {offsets = [24, 0], sizes = [8, 1], strides = [1, 1]} : vector<48x1xf32> to vector<8x1xf32>
    %996 = vector.shape_cast %995 : vector<8x1xf32> to vector<1x8x1xf32>
    %cst_257 = arith.constant dense<0.000000e+00> : vector<1xf32>
    %997 = vector.multi_reduction <add>, %996, %cst_257 [1, 2] : vector<1x8x1xf32> to vector<1xf32>
    %998 = vector.shape_cast %997 : vector<1xf32> to vector<1x1x1xf32>
    %999 = vector.extract %998[0, 0, 0] : f32 from vector<1x1x1xf32>
    %1000 = vector.broadcast %999 : f32 to vector<1x1xf32>
    %cst_258 = arith.constant 1.000000e+00 : f32
    %1001 = vector.broadcast %cst_258 : f32 to vector<1x1xf32>
    %1002 = arith.maximumf %1000, %1001 : vector<1x1xf32>
    %1003 = vector.extract_strided_slice %938 {offsets = [24, 0], sizes = [8, 1], strides = [1, 1]} : vector<48x1xf32> to vector<8x1xf32>
    %1004 = arith.mulf %1003, %995 : vector<8x1xf32>
    %1005 = vector.shape_cast %1004 : vector<8x1xf32> to vector<1x8x1xf32>
    %cst_259 = arith.constant dense<0.000000e+00> : vector<1xf32>
    %1006 = vector.multi_reduction <add>, %1005, %cst_259 [1, 2] : vector<1x8x1xf32> to vector<1xf32>
    %1007 = vector.shape_cast %1006 : vector<1xf32> to vector<1x1x1xf32>
    %1008 = vector.extract %1007[0, 0, 0] : f32 from vector<1x1x1xf32>
    %1009 = vector.broadcast %1008 : f32 to vector<1x1xf32>
    %1010 = arith.divf %1009, %1002 : vector<1x1xf32>
    %1011 = arith.addf %994, %1010 : vector<1x1xf32>
    %1012 = vector.extract_strided_slice %942 {offsets = [32, 0], sizes = [8, 1], strides = [1, 1]} : vector<48x1xf32> to vector<8x1xf32>
    %1013 = vector.shape_cast %1012 : vector<8x1xf32> to vector<1x8x1xf32>
    %cst_260 = arith.constant dense<0.000000e+00> : vector<1xf32>
    %1014 = vector.multi_reduction <add>, %1013, %cst_260 [1, 2] : vector<1x8x1xf32> to vector<1xf32>
    %1015 = vector.shape_cast %1014 : vector<1xf32> to vector<1x1x1xf32>
    %1016 = vector.extract %1015[0, 0, 0] : f32 from vector<1x1x1xf32>
    %1017 = vector.broadcast %1016 : f32 to vector<1x1xf32>
    %cst_261 = arith.constant 1.000000e+00 : f32
    %1018 = vector.broadcast %cst_261 : f32 to vector<1x1xf32>
    %1019 = arith.maximumf %1017, %1018 : vector<1x1xf32>
    %1020 = vector.extract_strided_slice %938 {offsets = [32, 0], sizes = [8, 1], strides = [1, 1]} : vector<48x1xf32> to vector<8x1xf32>
    %1021 = arith.mulf %1020, %1012 : vector<8x1xf32>
    %1022 = vector.shape_cast %1021 : vector<8x1xf32> to vector<1x8x1xf32>
    %cst_262 = arith.constant dense<0.000000e+00> : vector<1xf32>
    %1023 = vector.multi_reduction <add>, %1022, %cst_262 [1, 2] : vector<1x8x1xf32> to vector<1xf32>
    %1024 = vector.shape_cast %1023 : vector<1xf32> to vector<1x1x1xf32>
    %1025 = vector.extract %1024[0, 0, 0] : f32 from vector<1x1x1xf32>
    %1026 = vector.broadcast %1025 : f32 to vector<1x1xf32>
    %1027 = arith.divf %1026, %1019 : vector<1x1xf32>
    %1028 = arith.addf %1011, %1027 : vector<1x1xf32>
    %1029 = vector.extract_strided_slice %942 {offsets = [40, 0], sizes = [8, 1], strides = [1, 1]} : vector<48x1xf32> to vector<8x1xf32>
    %1030 = vector.shape_cast %1029 : vector<8x1xf32> to vector<1x8x1xf32>
    %cst_263 = arith.constant dense<0.000000e+00> : vector<1xf32>
    %1031 = vector.multi_reduction <add>, %1030, %cst_263 [1, 2] : vector<1x8x1xf32> to vector<1xf32>
    %1032 = vector.shape_cast %1031 : vector<1xf32> to vector<1x1x1xf32>
    %1033 = vector.extract %1032[0, 0, 0] : f32 from vector<1x1x1xf32>
    %1034 = vector.broadcast %1033 : f32 to vector<1x1xf32>
    %cst_264 = arith.constant 1.000000e+00 : f32
    %1035 = vector.broadcast %cst_264 : f32 to vector<1x1xf32>
    %1036 = arith.maximumf %1034, %1035 : vector<1x1xf32>
    %1037 = vector.extract_strided_slice %938 {offsets = [40, 0], sizes = [8, 1], strides = [1, 1]} : vector<48x1xf32> to vector<8x1xf32>
    %1038 = arith.mulf %1037, %1029 : vector<8x1xf32>
    %1039 = vector.shape_cast %1038 : vector<8x1xf32> to vector<1x8x1xf32>
    %cst_265 = arith.constant dense<0.000000e+00> : vector<1xf32>
    %1040 = vector.multi_reduction <add>, %1039, %cst_265 [1, 2] : vector<1x8x1xf32> to vector<1xf32>
    %1041 = vector.shape_cast %1040 : vector<1xf32> to vector<1x1x1xf32>
    %1042 = vector.extract %1041[0, 0, 0] : f32 from vector<1x1x1xf32>
    %1043 = vector.broadcast %1042 : f32 to vector<1x1xf32>
    %1044 = arith.divf %1043, %1036 : vector<1x1xf32>
    %1045 = arith.addf %1028, %1044 : vector<1x1xf32>
    %cst_266 = arith.constant 2.500000e-01 : f32
    %1046 = vector.broadcast %cst_266 : f32 to vector<1x1xf32>
    %1047 = arith.mulf %1045, %1046 : vector<1x1xf32>
    %c0_267 = arith.constant 0 : index
    %c0_268 = arith.constant 0 : index
    %c0_269 = arith.constant 0 : index
    %1048 = vector.load %arg13[%c0_267, %c0_268, %c0_269] : memref<1x1x1xf32, #tpu.memory_space<vmem>>, vector<1x1x1xf32>
    %1049 = vector.shape_cast %1048 : vector<1x1x1xf32> to vector<1x1xf32>
    %1050 = vector.shape_cast %1047 : vector<1x1xf32> to vector<1x1x1xf32>
    tpu.vector_store %arg13[%c0_267, %c0_268, %c0_269], %1050 {strides = array<i32>} : memref<1x1x1xf32, #tpu.memory_space<vmem>>, vector<1x1x1xf32>,
    return
  }
  func.func @transform_0(%arg0: i32) -> (i32, i32, i32) {
    %c0_i32 = arith.constant 0 : i32
    %c0_i32_0 = arith.constant 0 : i32
    %c0_i32_1 = arith.constant 0 : i32
    return %arg0, %c0_i32, %c0_i32_0 : i32, i32, i32
  }
  func.func @transform_1(%arg0: i32) -> (i32, i32, i32) {
    %c0_i32 = arith.constant 0 : i32
    %c0_i32_0 = arith.constant 0 : i32
    %c0_i32_1 = arith.constant 0 : i32
    return %arg0, %c0_i32, %c0_i32_0 : i32, i32, i32
  }
  func.func @transform_2(%arg0: i32) -> (i32, i32, i32) {
    %c0_i32 = arith.constant 0 : i32
    %c0_i32_0 = arith.constant 0 : i32
    %c0_i32_1 = arith.constant 0 : i32
    return %arg0, %c0_i32, %c0_i32_0 : i32, i32, i32
  }
  func.func @transform_3(%arg0: i32) -> (i32, i32, i32) {
    %c0_i32 = arith.constant 0 : i32
    %c0_i32_0 = arith.constant 0 : i32
    %c0_i32_1 = arith.constant 0 : i32
    return %arg0, %c0_i32, %c0_i32_0 : i32, i32, i32
  }
  func.func @transform_4(%arg0: i32) -> (i32, i32, i32) {
    %c0_i32 = arith.constant 0 : i32
    %c0_i32_0 = arith.constant 0 : i32
    %c0_i32_1 = arith.constant 0 : i32
    return %arg0, %c0_i32, %c0_i32_0 : i32, i32, i32
  }
  func.func @transform_5(%arg0: i32) -> (i32, i32) {
    %c0_i32 = arith.constant 0 : i32
    %c0_i32_0 = arith.constant 0 : i32
    %c0_i32_1 = arith.constant 0 : i32
    return %c0_i32, %c0_i32_0 : i32, i32
  }
  func.func @transform_6(%arg0: i32) -> (i32, i32, i32) {
    %c0_i32 = arith.constant 0 : i32
    %c0_i32_0 = arith.constant 0 : i32
    %c0_i32_1 = arith.constant 0 : i32
    %c0_i32_2 = arith.constant 0 : i32
    return %c0_i32, %c0_i32_0, %c0_i32_1 : i32, i32, i32
  }
  func.func @transform_7(%arg0: i32) -> (i32, i32, i32) {
    %c0_i32 = arith.constant 0 : i32
    %c0_i32_0 = arith.constant 0 : i32
    %c0_i32_1 = arith.constant 0 : i32
    %c0_i32_2 = arith.constant 0 : i32
    return %c0_i32, %c0_i32_0, %c0_i32_1 : i32, i32, i32
  }
  func.func @transform_8(%arg0: i32) -> (i32, i32, i32) {
    %c0_i32 = arith.constant 0 : i32
    %c0_i32_0 = arith.constant 0 : i32
    %c0_i32_1 = arith.constant 0 : i32
    %c0_i32_2 = arith.constant 0 : i32
    return %c0_i32, %c0_i32_0, %c0_i32_1 : i32, i32, i32
  }
  func.func @transform_9(%arg0: i32) -> (i32, i32, i32) {
    %c0_i32 = arith.constant 0 : i32
    %c0_i32_0 = arith.constant 0 : i32
    %c0_i32_1 = arith.constant 0 : i32
    %c0_i32_2 = arith.constant 0 : i32
    return %c0_i32, %c0_i32_0, %c0_i32_1 : i32, i32, i32
  }
  func.func @transform_10(%arg0: i32) -> (i32, i32) {
    %c0_i32 = arith.constant 0 : i32
    %c0_i32_0 = arith.constant 0 : i32
    %c0_i32_1 = arith.constant 0 : i32
    return %c0_i32, %c0_i32_0 : i32, i32
  }
  func.func @transform_11(%arg0: i32) -> (i32, i32) {
    %c0_i32 = arith.constant 0 : i32
    %c0_i32_0 = arith.constant 0 : i32
    %c0_i32_1 = arith.constant 0 : i32
    return %c0_i32, %c0_i32_0 : i32, i32
  }
  func.func @transform_12(%arg0: i32) -> (i32, i32, i32) {
    %c0_i32 = arith.constant 0 : i32
    %c0_i32_0 = arith.constant 0 : i32
    %c0_i32_1 = arith.constant 0 : i32
    return %arg0, %c0_i32, %c0_i32_0 : i32, i32, i32
  }
}

</mosaic_0001>

<llo_original>
// kernel: forward.1
$region0: #{forward.1}
  #allocation0 [shape = 'u32[]', space=smem, size = 0x4, offset = 0x4, fixed_abs, tag = 'smem constant byte address 0x4 - core index']
  #allocation1 [shape = 'u32[144,128]{1,0:T(1,128)}', space=vmem, size = 0x12000, scoped, tag = 'internal scratch']
  #allocation2 [shape = 'f32[64,96]{1,0:T(8,128)}', space=vmem, size = 0x8000, scoped, tag = 'scratch operand']
  #allocation3 [shape = 'f32[48,96]{1,0:T(8,128)}', space=vmem, size = 0x6000, scoped, tag = 'scratch operand']
  #allocation4 [shape = 'f32[64,32]{1,0:T(8,128)}', space=vmem, size = 0x8000, scoped, tag = 'scratch operand']
  #allocation5 [shape = 'f32[64,32]{1,0:T(8,128)}', space=vmem, size = 0x8000, scoped, tag = 'scratch operand']
  #allocation6 [shape = 'f32[64,32]{1,0:T(8,128)}', space=vmem, size = 0x8000, scoped, tag = 'scratch operand']
  #allocation7 [shape = 'f32[48,64]{1,0:T(8,128)}', space=vmem, size = 0x6000, scoped, tag = 'scratch operand']
  %s0 = inlined_call_operand.vmem [shape: s32[8,64,1], index: 0, kind: input, shape index: {}]
  %s1 = inlined_call_operand.vmem [shape: s32[8,8,1], index: 1, kind: input, shape index: {}]
  %s2 = inlined_call_operand.vmem [shape: s32[8,48,1], index: 2, kind: input, shape index: {}]
  %s3 = inlined_call_operand.vmem [shape: s32[8,48,1], index: 3, kind: input, shape index: {}]
  %s4 = inlined_call_operand.vmem [shape: f32[8,8,32], index: 4, kind: input, shape index: {}]
  %s5 = inlined_call_operand.vmem [shape: f32[128,32], index: 5, kind: input, shape index: {}]
  %s6 = inlined_call_operand.vmem [shape: f32[4,32,96], index: 6, kind: input, shape index: {}]
  %s7 = inlined_call_operand.vmem [shape: f32[4,1,96], index: 7, kind: input, shape index: {}]
  %s8 = inlined_call_operand.vmem [shape: f32[6,32,32], index: 8, kind: input, shape index: {}]
  %s9 = inlined_call_operand.vmem [shape: f32[6,1,32], index: 9, kind: input, shape index: {}]
  %s10 = inlined_call_operand.vmem [shape: f32[64,256], index: 10, kind: input, shape index: {}]
  %s11 = inlined_call_operand.vmem [shape: f32[1,256], index: 11, kind: input, shape index: {}]
  %s12 = inlined_call_operand.vmem [shape: f32[8,1,1], index: 12, kind: output, shape index: {}]
  %s13 = sld [smem:[#allocation0]]
  $region81: #{forward.1} parent=0
    _
  %s15 = ssub.s32 1, %s13
  %s16 = scalar_select 0, %s15, %s13
  loop: start=0, step=1, limit=10
  $region2: #{forward.1} parent=0 // loop_pre_header
    _
  $region3: #{forward.1} parent=0 // loop_header
    %s18 = sphi 0, %s22
    %p19 = scmp.ge.s32.totalorder %s18, 10
    %s28 = sphi 0, %s30
    %s31 = sphi 0, %s28
    %s32 = sphi 0, %s31
    %s48 = sphi 0, %s32
    %s54 = sphi 0, %s56
    %s57 = sphi 0, %s54
    %s58 = sphi 0, %s57
    %s74 = sphi 0, %s58
    %s80 = sphi 0, %s82
    %s83 = sphi 0, %s80
    %s84 = sphi 0, %s83
    %s100 = sphi 0, %s84
    %s106 = sphi 0, %s108
    %s109 = sphi 0, %s106
    %s110 = sphi 0, %s109
    %s126 = sphi 0, %s110
    %s132 = sphi 0, %s134
    %s135 = sphi 0, %s132
    %s136 = sphi 0, %s135
    %s152 = sphi 0, %s136
    %s156 = sphi 0, %s156
    %s158 = sphi 0, %s156
    %s159 = sphi 0, %s158
    %s173 = sphi 0, %s159
    %s177 = sphi 0, %s177
    %s179 = sphi 0, %s177
    %s180 = sphi 0, %s179
    %s194 = sphi 0, %s180
    %s198 = sphi 0, %s198
    %s200 = sphi 0, %s198
    %s201 = sphi 0, %s200
    %s215 = sphi 0, %s201
    %s219 = sphi 0, %s219
    %s221 = sphi 0, %s219
    %s222 = sphi 0, %s221
    %s236 = sphi 0, %s222
    %s240 = sphi 0, %s240
    %s242 = sphi 0, %s240
    %s243 = sphi 0, %s242
    %s257 = sphi 0, %s243
    %s261 = sphi 0, %s261
    %s263 = sphi 0, %s261
    %s264 = sphi 0, %s263
    %s278 = sphi 0, %s264
    %s282 = sphi 0, %s282
    %s284 = sphi 0, %s282
    %s285 = sphi 0, %s284
    %s299 = sphi 0, %s285
    %s305 = sphi 0, %s307
    %s308 = sphi 0, %s305
    %s309 = sphi 0, %s308
    %s325 = sphi 0, %s309
  $region4: #{forward.1} parent=0 // loop_header_branch
    %21 = sbr.rel (%p19) target = $region8
  $region5: #{forward.1} parent=0 // loop_body
    %s23 = ssub.s32 %s18, 1
    %s24 = ssub.s32 %s18, 2
    %s25 = sadd.s32 %s18, 1
    %s26 = ssub.s32 %s18, %s25
    %p27 = scmp.eq.s32.totalorder %s26, 0
    %s29 = sadd.s32 %s28, 1
    %s30 = scalar_select %p27, %s28, %s29
    %p33 = pneg %p27
    %p34 = scmp.eq.s32.totalorder %s18, 7
    %p35 = por %p33, %p34
    %p36 = scmp.ne.s32.totalorder %s28, %s31
    %p37 = scmp.eq.s32.totalorder %s18, 0
    %p38 = por %p36, %p37
    %p39 = scmp.ne.s32.totalorder %s28, %s31
    %p40 = scmp.eq.s32.totalorder %s23, 7
    %p41 = por %p39, %p40
    %p42 = scmp.ne.s32.totalorder %s31, %s32
    %p43 = scmp.eq.s32.totalorder %s23, 0
    %p44 = por %p42, %p43
    %p45 = scmp.ne.s32.totalorder %s31, %s32
    %p46 = scmp.eq.s32.totalorder %s24, 7
    %p47 = por %p45, %p46
    %p49 = scmp.ne.s32.totalorder %s32, %s48
    %p50 = scmp.eq.s32.totalorder %s24, 0
    %p51 = por %p49, %p50
    %s52 = ssub.s32 %s18, %s25
    %p53 = scmp.eq.s32.totalorder %s52, 0
    %s55 = sadd.s32 %s54, 1
    %s56 = scalar_select %p53, %s54, %s55
    %p59 = pneg %p53
    %p60 = scmp.eq.s32.totalorder %s18, 7
    %p61 = por %p59, %p60
    %p62 = scmp.ne.s32.totalorder %s54, %s57
    %p63 = scmp.eq.s32.totalorder %s18, 0
    %p64 = por %p62, %p63
    %p65 = scmp.ne.s32.totalorder %s54, %s57
    %p66 = scmp.eq.s32.totalorder %s23, 7
    %p67 = por %p65, %p66
    %p68 = scmp.ne.s32.totalorder %s57, %s58
    %p69 = scmp.eq.s32.totalorder %s23, 0
    %p70 = por %p68, %p69
    %p71 = scmp.ne.s32.totalorder %s57, %s58
    %p72 = scmp.eq.s32.totalorder %s24, 7
    %p73 = por %p71, %p72
    %p75 = scmp.ne.s32.totalorder %s58, %s74
    %p76 = scmp.eq.s32.totalorder %s24, 0
    %p77 = por %p75, %p76
    %s78 = ssub.s32 %s18, %s25
    %p79 = scmp.eq.s32.totalorder %s78, 0
    %s81 = sadd.s32 %s80, 1
    %s82 = scalar_select %p79, %s80, %s81
    %p85 = pneg %p79
    %p86 = scmp.eq.s32.totalorder %s18, 7
    %p87 = por %p85, %p86
    %p88 = scmp.ne.s32.totalorder %s80, %s83
    %p89 = scmp.eq.s32.totalorder %s18, 0
    %p90 = por %p88, %p89
    %p91 = scmp.ne.s32.totalorder %s80, %s83
    %p92 = scmp.eq.s32.totalorder %s23, 7
    %p93 = por %p91, %p92
    %p94 = scmp.ne.s32.totalorder %s83, %s84
    %p95 = scmp.eq.s32.totalorder %s23, 0
    %p96 = por %p94, %p95
    %p97 = scmp.ne.s32.totalorder %s83, %s84
    %p98 = scmp.eq.s32.totalorder %s24, 7
    %p99 = por %p97, %p98
    %p101 = scmp.ne.s32.totalorder %s84, %s100
    %p102 = scmp.eq.s32.totalorder %s24, 0
    %p103 = por %p101, %p102
    %s104 = ssub.s32 %s18, %s25
    %p105 = scmp.eq.s32.totalorder %s104, 0
    %s107 = sadd.s32 %s106, 1
    %s108 = scalar_select %p105, %s106, %s107
    %p111 = pneg %p105
    %p112 = scmp.eq.s32.totalorder %s18, 7
    %p113 = por %p111, %p112
    %p114 = scmp.ne.s32.totalorder %s106, %s109
    %p115 = scmp.eq.s32.totalorder %s18, 0
    %p116 = por %p114, %p115
    %p117 = scmp.ne.s32.totalorder %s106, %s109
    %p118 = scmp.eq.s32.totalorder %s23, 7
    %p119 = por %p117, %p118
    %p120 = scmp.ne.s32.totalorder %s109, %s110
    %p121 = scmp.eq.s32.totalorder %s23, 0
    %p122 = por %p120, %p121
    %p123 = scmp.ne.s32.totalorder %s109, %s110
    %p124 = scmp.eq.s32.totalorder %s24, 7
    %p125 = por %p123, %p124
    %p127 = scmp.ne.s32.totalorder %s110, %s126
    %p128 = scmp.eq.s32.totalorder %s24, 0
    %p129 = por %p127, %p128
    %s130 = ssub.s32 %s18, %s25
    %p131 = scmp.eq.s32.totalorder %s130, 0
    %s133 = sadd.s32 %s132, 1
    %s134 = scalar_select %p131, %s132, %s133
    %p137 = pneg %p131
    %p138 = scmp.eq.s32.totalorder %s18, 7
    %p139 = por %p137, %p138
    %p140 = scmp.ne.s32.totalorder %s132, %s135
    %p141 = scmp.eq.s32.totalorder %s18, 0
    %p142 = por %p140, %p141
    %p143 = scmp.ne.s32.totalorder %s132, %s135
    %p144 = scmp.eq.s32.totalorder %s23, 7
    %p145 = por %p143, %p144
    %p146 = scmp.ne.s32.totalorder %s135, %s136
    %p147 = scmp.eq.s32.totalorder %s23, 0
    %p148 = por %p146, %p147
    %p149 = scmp.ne.s32.totalorder %s135, %s136
    %p150 = scmp.eq.s32.totalorder %s24, 7
    %p151 = por %p149, %p150
    %p153 = scmp.ne.s32.totalorder %s136, %s152
    %p154 = scmp.eq.s32.totalorder %s24, 0
    %p155 = por %p153, %p154
    %s157 = sadd.s32 %s156, 1
    %p160 = scmp.eq.s32.totalorder %s18, 7
    %p161 = scmp.ne.s32.totalorder %s156, %s158
    %p162 = scmp.eq.s32.totalorder %s18, 0
    %p163 = por %p161, %p162
    %p164 = scmp.ne.s32.totalorder %s156, %s158
    %p165 = scmp.eq.s32.totalorder %s23, 7
    %p166 = por %p164, %p165
    %p167 = scmp.ne.s32.totalorder %s158, %s159
    %p168 = scmp.eq.s32.totalorder %s23, 0
    %p169 = por %p167, %p168
    %p170 = scmp.ne.s32.totalorder %s158, %s159
    %p171 = scmp.eq.s32.totalorder %s24, 7
    %p172 = por %p170, %p171
    %p174 = scmp.ne.s32.totalorder %s159, %s173
    %p175 = scmp.eq.s32.totalorder %s24, 0
    %p176 = por %p174, %p175
    %s178 = sadd.s32 %s177, 1
    %p181 = scmp.eq.s32.totalorder %s18, 7
    %p182 = scmp.ne.s32.totalorder %s177, %s179
    %p183 = scmp.eq.s32.totalorder %s18, 0
    %p184 = por %p182, %p183
    %p185 = scmp.ne.s32.totalorder %s177, %s179
    %p186 = scmp.eq.s32.totalorder %s23, 7
    %p187 = por %p185, %p186
    %p188 = scmp.ne.s32.totalorder %s179, %s180
    %p189 = scmp.eq.s32.totalorder %s23, 0
    %p190 = por %p188, %p189
    %p191 = scmp.ne.s32.totalorder %s179, %s180
    %p192 = scmp.eq.s32.totalorder %s24, 7
    %p193 = por %p191, %p192
    %p195 = scmp.ne.s32.totalorder %s180, %s194
    %p196 = scmp.eq.s32.totalorder %s24, 0
    %p197 = por %p195, %p196
    %s199 = sadd.s32 %s198, 1
    %p202 = scmp.eq.s32.totalorder %s18, 7
    %p203 = scmp.ne.s32.totalorder %s198, %s200
    %p204 = scmp.eq.s32.totalorder %s18, 0
    %p205 = por %p203, %p204
    %p206 = scmp.ne.s32.totalorder %s198, %s200
    %p207 = scmp.eq.s32.totalorder %s23, 7
    %p208 = por %p206, %p207
    %p209 = scmp.ne.s32.totalorder %s200, %s201
    %p210 = scmp.eq.s32.totalorder %s23, 0
    %p211 = por %p209, %p210
    %p212 = scmp.ne.s32.totalorder %s200, %s201
    %p213 = scmp.eq.s32.totalorder %s24, 7
    %p214 = por %p212, %p213
    %p216 = scmp.ne.s32.totalorder %s201, %s215
    %p217 = scmp.eq.s32.totalorder %s24, 0
    %p218 = por %p216, %p217
    %s220 = sadd.s32 %s219, 1
    %p223 = scmp.eq.s32.totalorder %s18, 7
    %p224 = scmp.ne.s32.totalorder %s219, %s221
    %p225 = scmp.eq.s32.totalorder %s18, 0
    %p226 = por %p224, %p225
    %p227 = scmp.ne.s32.totalorder %s219, %s221
    %p228 = scmp.eq.s32.totalorder %s23, 7
    %p229 = por %p227, %p228
    %p230 = scmp.ne.s32.totalorder %s221, %s222
    %p231 = scmp.eq.s32.totalorder %s23, 0
    %p232 = por %p230, %p231
    %p233 = scmp.ne.s32.totalorder %s221, %s222
    %p234 = scmp.eq.s32.totalorder %s24, 7
    %p235 = por %p233, %p234
    %p237 = scmp.ne.s32.totalorder %s222, %s236
    %p238 = scmp.eq.s32.totalorder %s24, 0
    %p239 = por %p237, %p238
    %s241 = sadd.s32 %s240, 1
    %p244 = scmp.eq.s32.totalorder %s18, 7
    %p245 = scmp.ne.s32.totalorder %s240, %s242
    %p246 = scmp.eq.s32.totalorder %s18, 0
    %p247 = por %p245, %p246
    %p248 = scmp.ne.s32.totalorder %s240, %s242
    %p249 = scmp.eq.s32.totalorder %s23, 7
    %p250 = por %p248, %p249
    %p251 = scmp.ne.s32.totalorder %s242, %s243
    %p252 = scmp.eq.s32.totalorder %s23, 0
    %p253 = por %p251, %p252
    %p254 = scmp.ne.s32.totalorder %s242, %s243
    %p255 = scmp.eq.s32.totalorder %s24, 7
    %p256 = por %p254, %p255
    %p258 = scmp.ne.s32.totalorder %s243, %s257
    %p259 = scmp.eq.s32.totalorder %s24, 0
    %p260 = por %p258, %p259
    %s262 = sadd.s32 %s261, 1
    %p265 = scmp.eq.s32.totalorder %s18, 7
    %p266 = scmp.ne.s32.totalorder %s261, %s263
    %p267 = scmp.eq.s32.totalorder %s18, 0
    %p268 = por %p266, %p267
    %p269 = scmp.ne.s32.totalorder %s261, %s263
    %p270 = scmp.eq.s32.totalorder %s23, 7
    %p271 = por %p269, %p270
    %p272 = scmp.ne.s32.totalorder %s263, %s264
    %p273 = scmp.eq.s32.totalorder %s23, 0
    %p274 = por %p272, %p273
    %p275 = scmp.ne.s32.totalorder %s263, %s264
    %p276 = scmp.eq.s32.totalorder %s24, 7
    %p277 = por %p275, %p276
    %p279 = scmp.ne.s32.totalorder %s264, %s278
    %p280 = scmp.eq.s32.totalorder %s24, 0
    %p281 = por %p279, %p280
    %s283 = sadd.s32 %s282, 1
    %p286 = scmp.eq.s32.totalorder %s18, 7
    %p287 = scmp.ne.s32.totalorder %s282, %s284
    %p288 = scmp.eq.s32.totalorder %s18, 0
    %p289 = por %p287, %p288
    %p290 = scmp.ne.s32.totalorder %s282, %s284
    %p291 = scmp.eq.s32.totalorder %s23, 7
    %p292 = por %p290, %p291
    %p293 = scmp.ne.s32.totalorder %s284, %s285
    %p294 = scmp.eq.s32.totalorder %s23, 0
    %p295 = por %p293, %p294
    %p296 = scmp.ne.s32.totalorder %s284, %s285
    %p297 = scmp.eq.s32.totalorder %s24, 7
    %p298 = por %p296, %p297
    %p300 = scmp.ne.s32.totalorder %s285, %s299
    %p301 = scmp.eq.s32.totalorder %s24, 0
    %p302 = por %p300, %p301
    %s303 = ssub.s32 %s18, %s25
    %p304 = scmp.eq.s32.totalorder %s303, 0
    %s306 = sadd.s32 %s305, 1
    %s307 = scalar_select %p304, %s305, %s306
    %p310 = pneg %p304
    %p311 = scmp.eq.s32.totalorder %s18, 7
    %p312 = por %p310, %p311
    %p313 = scmp.ne.s32.totalorder %s305, %s308
    %p314 = scmp.eq.s32.totalorder %s18, 0
    %p315 = por %p313, %p314
    %p316 = scmp.ne.s32.totalorder %s305, %s308
    %p317 = scmp.eq.s32.totalorder %s23, 7
    %p318 = por %p316, %p317
    %p319 = scmp.ne.s32.totalorder %s308, %s309
    %p320 = scmp.eq.s32.totalorder %s23, 0
    %p321 = por %p319, %p320
    %p322 = scmp.ne.s32.totalorder %s308, %s309
    %p323 = scmp.eq.s32.totalorder %s24, 7
    %p324 = por %p322, %p323
    %p326 = scmp.ne.s32.totalorder %s309, %s325
    %p327 = scmp.eq.s32.totalorder %s24, 0
    %p328 = por %p326, %p327
    %p329 = scmp.le.s32.totalorder 1, %s18
    %p330 = scmp.lt.s32.totalorder %s18, 9
    %p331 = pnand %p329, %p330
    %p332 = pneg %p331
    // Predicated region
    $region9: #{forward.1} parent=5 // pred_check
      _
    $region10: #{forward.1} parent=5 // pred_check_branch
      %334 = sbr.rel (%p331) target = $region12
    $region11: #{forward.1} parent=5 // pred_region
      %s335 = ssub.s32 %s18, 1
      // Predicated region
      $region13: #{forward.1} parent=11 // pred_check
        %p336 = pneg %p169
      $region14: #{forward.1} parent=11 // pred_check_branch
        %338 = sbr.rel (%p336) target = $region16
      $region15: #{forward.1} parent=11 // pred_region
        _
      $region16: #{forward.1} parent=11 // pred_fallthru
        _
      // Predicated region
      $region17: #{forward.1} parent=11 // pred_check
        %p339 = pneg %p190
      $region18: #{forward.1} parent=11 // pred_check_branch
        %341 = sbr.rel (%p339) target = $region20
      $region19: #{forward.1} parent=11 // pred_region
        _
      $region20: #{forward.1} parent=11 // pred_fallthru
        _
      // Predicated region
      $region21: #{forward.1} parent=11 // pred_check
        %p342 = pneg %p211
      $region22: #{forward.1} parent=11 // pred_check_branch
        %344 = sbr.rel (%p342) target = $region24
      $region23: #{forward.1} parent=11 // pred_region
        _
      $region24: #{forward.1} parent=11 // pred_fallthru
        _
      // Predicated region
      $region25: #{forward.1} parent=11 // pred_check
        %p345 = pneg %p232
      $region26: #{forward.1} parent=11 // pred_check_branch
        %347 = sbr.rel (%p345) target = $region28
      $region27: #{forward.1} parent=11 // pred_region
        _
      $region28: #{forward.1} parent=11 // pred_fallthru
        _
      // Predicated region
      $region29: #{forward.1} parent=11 // pred_check
        %p348 = pneg %p253
      $region30: #{forward.1} parent=11 // pred_check_branch
        %350 = sbr.rel (%p348) target = $region32
      $region31: #{forward.1} parent=11 // pred_region
        _
      $region32: #{forward.1} parent=11 // pred_fallthru
        _
      // Predicated region
      $region33: #{forward.1} parent=11 // pred_check
        %p351 = pneg %p274
      $region34: #{forward.1} parent=11 // pred_check_branch
        %353 = sbr.rel (%p351) target = $region36
      $region35: #{forward.1} parent=11 // pred_region
        _
      $region36: #{forward.1} parent=11 // pred_fallthru
        _
      // Predicated region
      $region37: #{forward.1} parent=11 // pred_check
        %p354 = pneg %p295
      $region38: #{forward.1} parent=11 // pred_check_branch
        %356 = sbr.rel (%p354) target = $region40
      $region39: #{forward.1} parent=11 // pred_region
        _
      $region40: #{forward.1} parent=11 // pred_fallthru
        _
    $region12: #{forward.1} parent=5 // pred_fallthru
      _
    %p357 = scmp.lt.s32.totalorder %s18, 8
    // Predicated region
    $region41: #{forward.1} parent=5 // pred_check
      %p358 = pneg %p357
    $region42: #{forward.1} parent=5 // pred_check_branch
      %360 = sbr.rel (%p358) target = $region44
    $region43: #{forward.1} parent=5 // pred_region
      // Predicated region
      $region45: #{forward.1} parent=43 // pred_check
        %p361 = pneg %p38
      $region46: #{forward.1} parent=43 // pred_check_branch
        %363 = sbr.rel (%p361) target = $region48
      $region47: #{forward.1} parent=43 // pred_region
        %p364 = scmp.lt.s32.totalorder %s18, 7
        %s365 = scalar_select %p364, %s18, 7
        %s366 = smul.addr %s365, 8
        %s367 = smul.addr %s366, 8
        %s368 = scalar_lea.vmem %s0, %s367
      $region48: #{forward.1} parent=43 // pred_fallthru
        _
      // Predicated region
      $region49: #{forward.1} parent=43 // pred_check
        %p369 = pneg %p64
      $region50: #{forward.1} parent=43 // pred_check_branch
        %371 = sbr.rel (%p369) target = $region52
      $region51: #{forward.1} parent=43 // pred_region
        %p372 = scmp.lt.s32.totalorder %s18, 7
        %s373 = scalar_select %p372, %s18, 7
        %s374 = smul.addr %s373, 8
        %s375 = scalar_lea.vmem %s1, %s374
      $region52: #{forward.1} parent=43 // pred_fallthru
        _
      // Predicated region
      $region53: #{forward.1} parent=43 // pred_check
        %p376 = pneg %p90
      $region54: #{forward.1} parent=43 // pred_check_branch
        %378 = sbr.rel (%p376) target = $region56
      $region55: #{forward.1} parent=43 // pred_region
        %p379 = scmp.lt.s32.totalorder %s18, 7
        %s380 = scalar_select %p379, %s18, 7
        %s381 = smul.addr %s380, 6
        %s382 = smul.addr %s381, 8
        %s383 = scalar_lea.vmem %s2, %s382
      $region56: #{forward.1} parent=43 // pred_fallthru
        _
      // Predicated region
      $region57: #{forward.1} parent=43 // pred_check
        %p384 = pneg %p116
      $region58: #{forward.1} parent=43 // pred_check_branch
        %386 = sbr.rel (%p384) target = $region60
      $region59: #{forward.1} parent=43 // pred_region
        %p387 = scmp.lt.s32.totalorder %s18, 7
        %s388 = scalar_select %p387, %s18, 7
        %s389 = smul.addr %s388, 6
        %s390 = smul.addr %s389, 8
        %s391 = scalar_lea.vmem %s3, %s390
      $region60: #{forward.1} parent=43 // pred_fallthru
        _
      // Predicated region
      $region61: #{forward.1} parent=43 // pred_check
        %p392 = pneg %p142
      $region62: #{forward.1} parent=43 // pred_check_branch
        %394 = sbr.rel (%p392) target = $region64
      $region63: #{forward.1} parent=43 // pred_region
        %p395 = scmp.lt.s32.totalorder %s18, 7
        %s396 = scalar_select %p395, %s18, 7
        %s397 = smul.addr %s396, 8
        %s398 = scalar_lea.vmem %s4, %s397
      $region64: #{forward.1} parent=43 // pred_fallthru
        _
    $region44: #{forward.1} parent=5 // pred_fallthru
      _
    %p399 = scmp.le.s32.totalorder 1, %s18
    %p400 = scmp.lt.s32.totalorder %s18, 9
    %p401 = pnand %p399, %p400
    %p402 = pneg %p401
    // Predicated region
    $region65: #{forward.1} parent=5 // pred_check
      _
    $region66: #{forward.1} parent=5 // pred_check_branch
      %404 = sbr.rel (%p401) target = $region68
    $region67: #{forward.1} parent=5 // pred_region
      %s405 = ssub.s32 %s18, 1
      %p406 = scmp.lt.s32.totalorder %s23, 7
      %s407 = scalar_select %p406, %s23, 7
      %s408 = smul.addr %s407, 8
      %s409 = smul.addr %s408, 8
      %s410 = scalar_lea.vmem %s0, %s409
      %p411 = pneg %p44
      %p412 = pneg %p41
      %p413 = scmp.lt.s32.totalorder %s23, 7
      %s414 = scalar_select %p413, %s23, 7
      %s415 = smul.addr %s414, 8
      %s416 = scalar_lea.vmem %s1, %s415
      %p417 = pneg %p70
      %p418 = pneg %p67
      %p419 = scmp.lt.s32.totalorder %s23, 7
      %s420 = scalar_select %p419, %s23, 7
      %s421 = smul.addr %s420, 6
      %s422 = smul.addr %s421, 8
      %s423 = scalar_lea.vmem %s2, %s422
      %p424 = pneg %p96
      %p425 = pneg %p93
      %p426 = scmp.lt.s32.totalorder %s23, 7
      %s427 = scalar_select %p426, %s23, 7
      %s428 = smul.addr %s427, 6
      %s429 = smul.addr %s428, 8
      %s430 = scalar_lea.vmem %s3, %s429
      %p431 = pneg %p122
      %p432 = pneg %p119
      %p433 = scmp.lt.s32.totalorder %s23, 7
      %s434 = scalar_select %p433, %s23, 7
      %s435 = smul.addr %s434, 8
      %s436 = scalar_lea.vmem %s4, %s435
      %p437 = pneg %p148
      %p438 = pneg %p145
      %p439 = pneg %p169
      %p440 = pneg %p166
      %p441 = pneg %p190
      %p442 = pneg %p187
      %p443 = pneg %p211
      %p444 = pneg %p208
      %p445 = pneg %p232
      %p446 = pneg %p229
      %p447 = pneg %p253
      %p448 = pneg %p250
      %p449 = pneg %p274
      %p450 = pneg %p271
      %p451 = pneg %p295
      %p452 = pneg %p292
      %p453 = pneg %p321
      %p454 = pneg %p318
      %p455 = scmp.lt.s32.totalorder %s23, 7
      %s456 = scalar_select %p455, %s23, 7
      %s457 = scalar_lea.vmem %s12, %s456
      %p458 = scmp.lt.s32.totalorder %s23, 7
      %s459 = scalar_select %p458, %s23, 7
      %s460 = smul.addr %s459, 8
      %s461 = smul.addr %s460, 8
      %s462 = scalar_lea.vmem %s0, %s461
      %p463 = scmp.lt.s32.totalorder %s23, 7
      %s464 = scalar_select %p463, %s23, 7
      %s465 = smul.addr %s464, 8
      %s466 = scalar_lea.vmem %s1, %s465
      %p467 = scmp.lt.s32.totalorder %s23, 7
      %s468 = scalar_select %p467, %s23, 7
      %s469 = smul.addr %s468, 6
      %s470 = smul.addr %s469, 8
      %s471 = scalar_lea.vmem %s2, %s470
      %p472 = scmp.lt.s32.totalorder %s23, 7
      %s473 = scalar_select %p472, %s23, 7
      %s474 = smul.addr %s473, 6
      %s475 = smul.addr %s474, 8
      %s476 = scalar_lea.vmem %s3, %s475
      %p477 = scmp.lt.s32.totalorder %s23, 7
      %s478 = scalar_select %p477, %s23, 7
      %s479 = smul.addr %s478, 8
      %s480 = scalar_lea.vmem %s4, %s479
      %p481 = scmp.lt.s32.totalorder %s23, 7
      %s482 = scalar_select %p481, %s23, 7
      %s483 = scalar_lea.vmem %s12, %s482
      %v484 = vld [vmem:[%s5] sm:$0xff]
      %v485 = vld [vmem:[%s5 + $0x8] sm:$0xff]
      %v486 = vld [vmem:[%s5 + $0x10] sm:$0xff]
      %v487 = vld [vmem:[%s5 + $0x18] sm:$0xff]
      %v488 = vld [vmem:[%s5 + $0x20] sm:$0xff]
      %v489 = vld [vmem:[%s5 + $0x28] sm:$0xff]
      %v490 = vld [vmem:[%s5 + $0x30] sm:$0xff]
      %v491 = vld [vmem:[%s5 + $0x38] sm:$0xff]
      %v492 = vld [vmem:[%s5 + $0x40] sm:$0xff]
      %v493 = vld [vmem:[%s5 + $0x48] sm:$0xff]
      %v494 = vld [vmem:[%s5 + $0x50] sm:$0xff]
      %v495 = vld [vmem:[%s5 + $0x58] sm:$0xff]
      %v496 = vld [vmem:[%s5 + $0x60] sm:$0xff]
      %v497 = vld [vmem:[%s5 + $0x68] sm:$0xff]
      %v498 = vld [vmem:[%s5 + $0x70] sm:$0xff]
      %v499 = vld [vmem:[%s5 + $0x78] sm:$0xff]
      %v500 = vld [vmem:[%s462] sm:$0xff]
      %v501 = vld [vmem:[%s462 + $0x8] sm:$0xff]
      %v502 = vld [vmem:[%s462 + $0x10] sm:$0xff]
      %v503 = vld [vmem:[%s462 + $0x18] sm:$0xff]
      %v504 = vld [vmem:[%s462 + $0x20] sm:$0xff]
      %v505 = vld [vmem:[%s462 + $0x28] sm:$0xff]
      %v506 = vld [vmem:[%s462 + $0x30] sm:$0xff]
      %v507 = vld [vmem:[%s462 + $0x38] sm:$0xff]
      %v508 = vlaneseq
      %v509 = vand.u32 %v508, 127
      %510 = vset.pattern.permute.xlu0 0
      %511 = vperm.xlu0 %510, %v500
      %v512 = vpop.permute.xlu0 %511
      %513 = vset.pattern.permute.xlu0 0
      %514 = vperm.xlu0 %513, %v501
      %v515 = vpop.permute.xlu0 %514
      %516 = vset.pattern.permute.xlu0 0
      %517 = vperm.xlu0 %516, %v502
      %v518 = vpop.permute.xlu0 %517
      %519 = vset.pattern.permute.xlu0 0
      %520 = vperm.xlu0 %519, %v503
      %v521 = vpop.permute.xlu0 %520
      %522 = vset.pattern.permute.xlu0 0
      %523 = vperm.xlu0 %522, %v504
      %v524 = vpop.permute.xlu0 %523
      %525 = vset.pattern.permute.xlu0 0
      %526 = vperm.xlu0 %525, %v505
      %v527 = vpop.permute.xlu0 %526
      %528 = vset.pattern.permute.xlu0 0
      %529 = vperm.xlu0 %528, %v506
      %v530 = vpop.permute.xlu0 %529
      %531 = vset.pattern.permute.xlu0 0
      %532 = vperm.xlu0 %531, %v507
      %v533 = vpop.permute.xlu0 %532
      %vm534 = vcmp.eq.s32.totalorder %v509, %v512
      %vm535 = vcmp.eq.s32.totalorder %v509, %v515
      %vm536 = vcmp.eq.s32.totalorder %v509, %v518
      %vm537 = vcmp.eq.s32.totalorder %v509, %v521
      %vm538 = vcmp.eq.s32.totalorder %v509, %v524
      %vm539 = vcmp.eq.s32.totalorder %v509, %v527
      %vm540 = vcmp.eq.s32.totalorder %v509, %v530
      %vm541 = vcmp.eq.s32.totalorder %v509, %v533
      %v542 = vsel %vm534, 1, 0
      %v543 = vsel %vm535, 1, 0
      %v544 = vsel %vm536, 1, 0
      %v545 = vsel %vm537, 1, 0
      %v546 = vsel %vm538, 1, 0
      %v547 = vsel %vm539, 1, 0
      %v548 = vsel %vm540, 1, 0
      %v549 = vsel %vm541, 1, 0
      %v550 = vcvt.s32.f32 %v542
      %v551 = vcvt.s32.f32 %v543
      %v552 = vcvt.s32.f32 %v544
      %v553 = vcvt.s32.f32 %v545
      %v554 = vcvt.s32.f32 %v546
      %v555 = vcvt.s32.f32 %v547
      %v556 = vcvt.s32.f32 %v548
      %v557 = vcvt.s32.f32 %v549
      %558 = vmatprep.subr.mxu0 0.0
      %559 = vmatpush1.msra.mxu0 %v499
      %560 = vmatprep.subr.mxu0 0.0
      %561 = vmatpush1.msra.mxu0 %v498
      %562 = vmatprep.subr.mxu0 0.0
      %563 = vmatpush1.msra.mxu0 %v497
      %564 = vmatprep.subr.mxu0 0.0
      %565 = vmatpush1.msra.mxu0 %v496
      %566 = vmatprep.subr.mxu0 0.0
      %567 = vmatpush1.msra.mxu0 %v495
      %568 = vmatprep.subr.mxu0 0.0
      %569 = vmatpush1.msra.mxu0 %v494
      %570 = vmatprep.subr.mxu0 0.0
      %571 = vmatpush1.msra.mxu0 %v493
      %572 = vmatprep.subr.mxu0 0.0
      %573 = vmatpush1.msra.mxu0 %v492
      %574 = vmatprep.subr.mxu0 0.0
      %575 = vmatpush1.msra.mxu0 %v491
      %576 = vmatprep.subr.mxu0 0.0
      %577 = vmatpush1.msra.mxu0 %v490
      %578 = vmatprep.subr.mxu0 0.0
      %579 = vmatpush1.msra.mxu0 %v489
      %580 = vmatprep.subr.mxu0 0.0
      %581 = vmatpush1.msra.mxu0 %v488
      %582 = vmatprep.subr.mxu0 0.0
      %583 = vmatpush1.msra.mxu0 %v487
      %584 = vmatprep.subr.mxu0 0.0
      %585 = vmatpush1.msra.mxu0 %v486
      %586 = vmatprep.subr.mxu0 0.0
      %587 = vmatpush1.msra.mxu0 %v485
      %588 = vmatprep.subr.mxu0 0.0
      %589 = vmatpush1.msra.mxu0 %v484
      %590 = vmatprep.subr.mxu0 0.0
      %591 = vmatpush2.msra.mxu0 0.0
      %592 = vmatprep.subr.mxu0 0.0
      %593 = vmatpush2.msra.mxu0 0.0
      %594 = vmatprep.subr.mxu0 0.0
      %595 = vmatpush2.msra.mxu0 0.0
      %596 = vmatprep.subr.mxu0 0.0
      %597 = vmatpush2.msra.mxu0 0.0
      %598 = vmatprep.subr.mxu0 0.0
      %599 = vmatpush2.msra.mxu0 0.0
      %600 = vmatprep.subr.mxu0 0.0
      %601 = vmatpush2.msra.mxu0 0.0
      %602 = vmatprep.subr.mxu0 0.0
      %603 = vmatpush2.msra.mxu0 0.0
      %604 = vmatprep.subr.mxu0 0.0
      %605 = vmatpush2.msra.mxu0 0.0
      %606 = vmatprep.subr.mxu0 0.0
      %607 = vmatpush2.msra.mxu0 0.0
      %608 = vmatprep.subr.mxu0 0.0
      %609 = vmatpush2.msra.mxu0 0.0
      %610 = vmatprep.subr.mxu0 0.0
      %611 = vmatpush2.msra.mxu0 0.0
      %612 = vmatprep.subr.mxu0 0.0
      %613 = vmatpush2.msra.mxu0 0.0
      %614 = vmatprep.subr.mxu0 0.0
      %615 = vmatpush2.msra.mxu0 0.0
      %616 = vmatprep.subr.mxu0 0.0
      %617 = vmatpush2.msra.mxu0 0.0
      %618 = vmatprep.subr.mxu0 0.0
      %619 = vmatpush2.msra.mxu0 0.0
      %620 = vmatprep.subr.mxu0 0.0
      %621 = vmatpush2.msra.mxu0 0.0
      %622 = vmatprep.mubr.f32.mxu0 0.0
      %623 = vmatmul.mubr.f32.gmra.mxu0 %v550
      %v624 = vpop.f32.mrf.mxu0
      %v625 = vadd.f32 0.0, %v624
      %v626 = vpop.f32.mrf.mxu0
      %627 = vmatprep.mubr.f32.mxu0 0.0
      %628 = vmatmul.mubr.f32.gmra.mxu0 %v551
      %v629 = vpop.f32.mrf.mxu0
      %v630 = vadd.f32 0.0, %v629
      %v631 = vpop.f32.mrf.mxu0
      %632 = vmatprep.mubr.f32.mxu0 0.0
      %633 = vmatmul.mubr.f32.gmra.mxu0 %v552
      %v634 = vpop.f32.mrf.mxu0
      %v635 = vadd.f32 0.0, %v634
      %v636 = vpop.f32.mrf.mxu0
      %637 = vmatprep.mubr.f32.mxu0 0.0
      %638 = vmatmul.mubr.f32.gmra.mxu0 %v553
      %v639 = vpop.f32.mrf.mxu0
      %v640 = vadd.f32 0.0, %v639
      %v641 = vpop.f32.mrf.mxu0
      %642 = vmatprep.mubr.f32.mxu0 0.0
      %643 = vmatmul.mubr.f32.gmra.mxu0 %v554
      %v644 = vpop.f32.mrf.mxu0
      %v645 = vadd.f32 0.0, %v644
      %v646 = vpop.f32.mrf.mxu0
      %647 = vmatprep.mubr.f32.mxu0 0.0
      %648 = vmatmul.mubr.f32.gmra.mxu0 %v555
      %v649 = vpop.f32.mrf.mxu0
      %v650 = vadd.f32 0.0, %v649
      %v651 = vpop.f32.mrf.mxu0
      %652 = vmatprep.mubr.f32.mxu0 0.0
      %653 = vmatmul.mubr.f32.gmra.mxu0 %v556
      %v654 = vpop.f32.mrf.mxu0
      %v655 = vadd.f32 0.0, %v654
      %v656 = vpop.f32.mrf.mxu0
      %657 = vmatprep.mubr.f32.mxu0 0.0
      %658 = vmatmul.mubr.f32.gmra.mxu0 %v557
      %v659 = vpop.f32.mrf.mxu0
      %v660 = vadd.f32 0.0, %v659
      %v661 = vpop.f32.mrf.mxu0
      %662 = vdwg.mxu0
      %v663 = vld [vmem:[%s471] sm:$0xff]
      %v664 = vld [vmem:[%s471 + $0x8] sm:$0xff]
      %v665 = vld [vmem:[%s471 + $0x10] sm:$0xff]
      %v666 = vld [vmem:[%s471 + $0x18] sm:$0xff]
      %v667 = vld [vmem:[%s471 + $0x20] sm:$0xff]
      %v668 = vld [vmem:[%s471 + $0x28] sm:$0xff]
      %669 = vset.pattern.permute.xlu0 0
      %670 = vperm.xlu0 %669, %v663
      %v671 = vpop.permute.xlu0 %670
      %672 = vset.pattern.permute.xlu0 0
      %673 = vperm.xlu0 %672, %v664
      %v674 = vpop.permute.xlu0 %673
      %675 = vset.pattern.permute.xlu0 0
      %676 = vperm.xlu0 %675, %v665
      %v677 = vpop.permute.xlu0 %676
      %678 = vset.pattern.permute.xlu0 0
      %679 = vperm.xlu0 %678, %v666
      %v680 = vpop.permute.xlu0 %679
      %681 = vset.pattern.permute.xlu0 0
      %682 = vperm.xlu0 %681, %v667
      %v683 = vpop.permute.xlu0 %682
      %684 = vset.pattern.permute.xlu0 0
      %685 = vperm.xlu0 %684, %v668
      %v686 = vpop.permute.xlu0 %685
      %vm687 = vcmp.eq.s32.totalorder %v509, %v671
      %vm688 = vcmp.eq.s32.totalorder %v509, %v674
      %vm689 = vcmp.eq.s32.totalorder %v509, %v677
      %vm690 = vcmp.eq.s32.totalorder %v509, %v680
      %vm691 = vcmp.eq.s32.totalorder %v509, %v683
      %vm692 = vcmp.eq.s32.totalorder %v509, %v686
      %v693 = vsel %vm687, 1, 0
      %v694 = vsel %vm688, 1, 0
      %v695 = vsel %vm689, 1, 0
      %v696 = vsel %vm690, 1, 0
      %v697 = vsel %vm691, 1, 0
      %v698 = vsel %vm692, 1, 0
      %v699 = vcvt.s32.f32 %v693
      %v700 = vcvt.s32.f32 %v694
      %v701 = vcvt.s32.f32 %v695
      %v702 = vcvt.s32.f32 %v696
      %v703 = vcvt.s32.f32 %v697
      %v704 = vcvt.s32.f32 %v698
      %705 = vmatprep.subr.mxu0 0.0
      %706 = vmatpush1.msra.mxu0 %v499
      %707 = vmatprep.subr.mxu0 0.0
      %708 = vmatpush1.msra.mxu0 %v498
      %709 = vmatprep.subr.mxu0 0.0
      %710 = vmatpush1.msra.mxu0 %v497
      %711 = vmatprep.subr.mxu0 0.0
      %712 = vmatpush1.msra.mxu0 %v496
      %713 = vmatprep.subr.mxu0 0.0
      %714 = vmatpush1.msra.mxu0 %v495
      %715 = vmatprep.subr.mxu0 0.0
      %716 = vmatpush1.msra.mxu0 %v494
      %717 = vmatprep.subr.mxu0 0.0
      %718 = vmatpush1.msra.mxu0 %v493
      %719 = vmatprep.subr.mxu0 0.0
      %720 = vmatpush1.msra.mxu0 %v492
      %721 = vmatprep.subr.mxu0 0.0
      %722 = vmatpush1.msra.mxu0 %v491
      %723 = vmatprep.subr.mxu0 0.0
      %724 = vmatpush1.msra.mxu0 %v490
      %725 = vmatprep.subr.mxu0 0.0
      %726 = vmatpush1.msra.mxu0 %v489
      %727 = vmatprep.subr.mxu0 0.0
      %728 = vmatpush1.msra.mxu0 %v488
      %729 = vmatprep.subr.mxu0 0.0
      %730 = vmatpush1.msra.mxu0 %v487
      %731 = vmatprep.subr.mxu0 0.0
      %732 = vmatpush1.msra.mxu0 %v486
      %733 = vmatprep.subr.mxu0 0.0
      %734 = vmatpush1.msra.mxu0 %v485
      %735 = vmatprep.subr.mxu0 0.0
      %736 = vmatpush1.msra.mxu0 %v484
      %737 = vmatprep.subr.mxu0 0.0
      %738 = vmatpush2.msra.mxu0 0.0
      %739 = vmatprep.subr.mxu0 0.0
      %740 = vmatpush2.msra.mxu0 0.0
      %741 = vmatprep.subr.mxu0 0.0
      %742 = vmatpush2.msra.mxu0 0.0
      %743 = vmatprep.subr.mxu0 0.0
      %744 = vmatpush2.msra.mxu0 0.0
      %745 = vmatprep.subr.mxu0 0.0
      %746 = vmatpush2.msra.mxu0 0.0
      %747 = vmatprep.subr.mxu0 0.0
      %748 = vmatpush2.msra.mxu0 0.0
      %749 = vmatprep.subr.mxu0 0.0
      %750 = vmatpush2.msra.mxu0 0.0
      %751 = vmatprep.subr.mxu0 0.0
      %752 = vmatpush2.msra.mxu0 0.0
      %753 = vmatprep.subr.mxu0 0.0
      %754 = vmatpush2.msra.mxu0 0.0
      %755 = vmatprep.subr.mxu0 0.0
      %756 = vmatpush2.msra.mxu0 0.0
      %757 = vmatprep.subr.mxu0 0.0
      %758 = vmatpush2.msra.mxu0 0.0
      %759 = vmatprep.subr.mxu0 0.0
      %760 = vmatpush2.msra.mxu0 0.0
      %761 = vmatprep.subr.mxu0 0.0
      %762 = vmatpush2.msra.mxu0 0.0
      %763 = vmatprep.subr.mxu0 0.0
      %764 = vmatpush2.msra.mxu0 0.0
      %765 = vmatprep.subr.mxu0 0.0
      %766 = vmatpush2.msra.mxu0 0.0
      %767 = vmatprep.subr.mxu0 0.0
      %768 = vmatpush2.msra.mxu0 0.0
      %769 = vmatprep.mubr.f32.mxu0 0.0
      %770 = vmatmul.mubr.f32.gmra.mxu0 %v699
      %v771 = vpop.f32.mrf.mxu0
      %v772 = vadd.f32 0.0, %v771
      %v773 = vpop.f32.mrf.mxu0
      %774 = vmatprep.mubr.f32.mxu0 0.0
      %775 = vmatmul.mubr.f32.gmra.mxu0 %v700
      %v776 = vpop.f32.mrf.mxu0
      %v777 = vadd.f32 0.0, %v776
      %v778 = vpop.f32.mrf.mxu0
      %779 = vmatprep.mubr.f32.mxu0 0.0
      %780 = vmatmul.mubr.f32.gmra.mxu0 %v701
      %v781 = vpop.f32.mrf.mxu0
      %v782 = vadd.f32 0.0, %v781
      %v783 = vpop.f32.mrf.mxu0
      %784 = vmatprep.mubr.f32.mxu0 0.0
      %785 = vmatmul.mubr.f32.gmra.mxu0 %v702
      %v786 = vpop.f32.mrf.mxu0
      %v787 = vadd.f32 0.0, %v786
      %v788 = vpop.f32.mrf.mxu0
      %789 = vmatprep.mubr.f32.mxu0 0.0
      %790 = vmatmul.mubr.f32.gmra.mxu0 %v703
      %v791 = vpop.f32.mrf.mxu0
      %v792 = vadd.f32 0.0, %v791
      %v793 = vpop.f32.mrf.mxu0
      %794 = vmatprep.mubr.f32.mxu0 0.0
      %795 = vmatmul.mubr.f32.gmra.mxu0 %v704
      %v796 = vpop.f32.mrf.mxu0
      %v797 = vadd.f32 0.0, %v796
      %v798 = vpop.f32.mrf.mxu0
      %799 = vdwg.mxu0
      %v800 = vld [vmem:[%s6] sm:$0xff]
      %v801 = vld [vmem:[%s6 + $0x8] sm:$0xff]
      %v802 = vld [vmem:[%s6 + $0x10] sm:$0xff]
      %v803 = vld [vmem:[%s6 + $0x18] sm:$0xff]
      %v804 = vld [vmem:[%s7] sm:$0x1]
      %v806 = vlaneseq
      %v807 = vshrl.u32 %v806, 7
      %v808 = vsub.s32 0, %v807
      %v809 = vrot.slane %v804, %v808
      %vm811 = vcmask 261120
      %v813 = vsel %vm811, %v625, 0
      %v816 = vsel %vm811, %v630, 0
      %v819 = vsel %vm811, %v635, 0
      %v822 = vsel %vm811, %v640, 0
      %v825 = vsel %vm811, %v645, 0
      %v828 = vsel %vm811, %v650, 0
      %v831 = vsel %vm811, %v655, 0
      %v834 = vsel %vm811, %v660, 0
      %836 = vmatprep.subr.mxu0 0.0
      %837 = vmatpush1.msra.mxu0 0.0
      %838 = vmatprep.subr.mxu0 0.0
      %839 = vmatpush1.msra.mxu0 0.0
      %840 = vmatprep.subr.mxu0 0.0
      %841 = vmatpush1.msra.mxu0 0.0
      %842 = vmatprep.subr.mxu0 0.0
      %843 = vmatpush1.msra.mxu0 0.0
      %844 = vmatprep.subr.mxu0 0.0
      %845 = vmatpush1.msra.mxu0 0.0
      %846 = vmatprep.subr.mxu0 0.0
      %847 = vmatpush1.msra.mxu0 0.0
      %848 = vmatprep.subr.mxu0 0.0
      %849 = vmatpush1.msra.mxu0 0.0
      %850 = vmatprep.subr.mxu0 0.0
      %851 = vmatpush1.msra.mxu0 0.0
      %852 = vmatprep.subr.mxu0 0.0
      %853 = vmatpush1.msra.mxu0 0.0
      %854 = vmatprep.subr.mxu0 0.0
      %855 = vmatpush1.msra.mxu0 0.0
      %856 = vmatprep.subr.mxu0 0.0
      %857 = vmatpush1.msra.mxu0 0.0
      %858 = vmatprep.subr.mxu0 0.0
      %859 = vmatpush1.msra.mxu0 0.0
      %860 = vmatprep.subr.mxu0 0.0
      %861 = vmatpush1.msra.mxu0 %v803
      %862 = vmatprep.subr.mxu0 0.0
      %863 = vmatpush1.msra.mxu0 %v802
      %864 = vmatprep.subr.mxu0 0.0
      %865 = vmatpush1.msra.mxu0 %v801
      %866 = vmatprep.subr.mxu0 0.0
      %867 = vmatpush1.msra.mxu0 %v800
      %868 = vmatprep.subr.mxu0 0.0
      %869 = vmatpush2.msra.mxu0 0.0
      %870 = vmatprep.subr.mxu0 0.0
      %871 = vmatpush2.msra.mxu0 0.0
      %872 = vmatprep.subr.mxu0 0.0
      %873 = vmatpush2.msra.mxu0 0.0
      %874 = vmatprep.subr.mxu0 0.0
      %875 = vmatpush2.msra.mxu0 0.0
      %876 = vmatprep.subr.mxu0 0.0
      %877 = vmatpush2.msra.mxu0 0.0
      %878 = vmatprep.subr.mxu0 0.0
      %879 = vmatpush2.msra.mxu0 0.0
      %880 = vmatprep.subr.mxu0 0.0
      %881 = vmatpush2.msra.mxu0 0.0
      %882 = vmatprep.subr.mxu0 0.0
      %883 = vmatpush2.msra.mxu0 0.0
      %884 = vmatprep.subr.mxu0 0.0
      %885 = vmatpush2.msra.mxu0 0.0
      %886 = vmatprep.subr.mxu0 0.0
      %887 = vmatpush2.msra.mxu0 0.0
      %888 = vmatprep.subr.mxu0 0.0
      %889 = vmatpush2.msra.mxu0 0.0
      %890 = vmatprep.subr.mxu0 0.0
      %891 = vmatpush2.msra.mxu0 0.0
      %892 = vmatprep.subr.mxu0 0.0
      %893 = vmatpush2.msra.mxu0 0.0
      %894 = vmatprep.subr.mxu0 0.0
      %895 = vmatpush2.msra.mxu0 0.0
      %896 = vmatprep.subr.mxu0 0.0
      %897 = vmatpush2.msra.mxu0 0.0
      %898 = vmatprep.subr.mxu0 0.0
      %899 = vmatpush2.msra.mxu0 0.0
      %900 = vmatprep.mubr.f32.mxu0 0.0
      %901 = vmatmul.mubr.f32.gmra.mxu0 %v813
      %v902 = vpop.f32.mrf.mxu0
      %v903 = vadd.f32 %v809, %v902
      %v904 = vpop.f32.mrf.mxu0
      %905 = vmatprep.mubr.f32.mxu0 0.0
      %906 = vmatmul.mubr.f32.gmra.mxu0 %v816
      %v907 = vpop.f32.mrf.mxu0
      %v908 = vadd.f32 %v809, %v907
      %v909 = vpop.f32.mrf.mxu0
      %910 = vmatprep.mubr.f32.mxu0 0.0
      %911 = vmatmul.mubr.f32.gmra.mxu0 %v819
      %v912 = vpop.f32.mrf.mxu0
      %v913 = vadd.f32 %v809, %v912
      %v914 = vpop.f32.mrf.mxu0
      %915 = vmatprep.mubr.f32.mxu0 0.0
      %916 = vmatmul.mubr.f32.gmra.mxu0 %v822
      %v917 = vpop.f32.mrf.mxu0
      %v918 = vadd.f32 %v809, %v917
      %v919 = vpop.f32.mrf.mxu0
      %920 = vmatprep.mubr.f32.mxu0 0.0
      %921 = vmatmul.mubr.f32.gmra.mxu0 %v825
      %v922 = vpop.f32.mrf.mxu0
      %v923 = vadd.f32 %v809, %v922
      %v924 = vpop.f32.mrf.mxu0
      %925 = vmatprep.mubr.f32.mxu0 0.0
      %926 = vmatmul.mubr.f32.gmra.mxu0 %v828
      %v927 = vpop.f32.mrf.mxu0
      %v928 = vadd.f32 %v809, %v927
      %v929 = vpop.f32.mrf.mxu0
      %930 = vmatprep.mubr.f32.mxu0 0.0
      %931 = vmatmul.mubr.f32.gmra.mxu0 %v831
      %v932 = vpop.f32.mrf.mxu0
      %v933 = vadd.f32 %v809, %v932
      %v934 = vpop.f32.mrf.mxu0
      %935 = vmatprep.mubr.f32.mxu0 0.0
      %936 = vmatmul.mubr.f32.gmra.mxu0 %v834
      %v937 = vpop.f32.mrf.mxu0
      %v938 = vadd.f32 %v809, %v937
      %v939 = vpop.f32.mrf.mxu0
      %940 = vdwg.mxu0
      %vm941 = vcmask 785408
      %942 = vst.msk [vmem:[#allocation2] sm:$0xff] %vm941, %v903
      %943 = vst.msk [vmem:[#allocation2 + $0x8] sm:$0xff] %vm941, %v908
      %944 = vst.msk [vmem:[#allocation2 + $0x10] sm:$0xff] %vm941, %v913
      %945 = vst.msk [vmem:[#allocation2 + $0x18] sm:$0xff] %vm941, %v918
      %946 = vst.msk [vmem:[#allocation2 + $0x20] sm:$0xff] %vm941, %v923
      %947 = vst.msk [vmem:[#allocation2 + $0x28] sm:$0xff] %vm941, %v928
      %948 = vst.msk [vmem:[#allocation2 + $0x30] sm:$0xff] %vm941, %v933
      %949 = vst.msk [vmem:[#allocation2 + $0x38] sm:$0xff] %vm941, %v938
      %s950 = scalar_lea.vmem %s6, 64
      %v951 = vld [vmem:[%s950] sm:$0xff]
      %v952 = vld [vmem:[%s950 + $0x8] sm:$0xff]
      %v953 = vld [vmem:[%s950 + $0x10] sm:$0xff]
      %v954 = vld [vmem:[%s950 + $0x18] sm:$0xff]
      %s955 = scalar_lea.vmem %s7, 2
      %v956 = vld [vmem:[%s955] sm:$0x1]
      %v958 = vlaneseq
      %v959 = vshrl.u32 %v958, 7
      %v960 = vsub.s32 0, %v959
      %v961 = vrot.slane %v956, %v960
      %v964 = vsel %vm811, %v772, 0
      %v967 = vsel %vm811, %v777, 0
      %v970 = vsel %vm811, %v782, 0
      %v973 = vsel %vm811, %v787, 0
      %v976 = vsel %vm811, %v792, 0
      %v979 = vsel %vm811, %v797, 0
      %981 = vmatprep.subr.mxu0 0.0
      %982 = vmatpush1.msra.mxu0 0.0
      %983 = vmatprep.subr.mxu0 0.0
      %984 = vmatpush1.msra.mxu0 0.0
      %985 = vmatprep.subr.mxu0 0.0
      %986 = vmatpush1.msra.mxu0 0.0
      %987 = vmatprep.subr.mxu0 0.0
      %988 = vmatpush1.msra.mxu0 0.0
      %989 = vmatprep.subr.mxu0 0.0
      %990 = vmatpush1.msra.mxu0 0.0
      %991 = vmatprep.subr.mxu0 0.0
      %992 = vmatpush1.msra.mxu0 0.0
      %993 = vmatprep.subr.mxu0 0.0
      %994 = vmatpush1.msra.mxu0 0.0
      %995 = vmatprep.subr.mxu0 0.0
      %996 = vmatpush1.msra.mxu0 0.0
      %997 = vmatprep.subr.mxu0 0.0
      %998 = vmatpush1.msra.mxu0 0.0
      %999 = vmatprep.subr.mxu0 0.0
      %1000 = vmatpush1.msra.mxu0 0.0
      %1001 = vmatprep.subr.mxu0 0.0
      %1002 = vmatpush1.msra.mxu0 0.0
      %1003 = vmatprep.subr.mxu0 0.0
      %1004 = vmatpush1.msra.mxu0 0.0
      %1005 = vmatprep.subr.mxu0 0.0
      %1006 = vmatpush1.msra.mxu0 %v954
      %1007 = vmatprep.subr.mxu0 0.0
      %1008 = vmatpush1.msra.mxu0 %v953
      %1009 = vmatprep.subr.mxu0 0.0
      %1010 = vmatpush1.msra.mxu0 %v952
      %1011 = vmatprep.subr.mxu0 0.0
      %1012 = vmatpush1.msra.mxu0 %v951
      %1013 = vmatprep.subr.mxu0 0.0
      %1014 = vmatpush2.msra.mxu0 0.0
      %1015 = vmatprep.subr.mxu0 0.0
      %1016 = vmatpush2.msra.mxu0 0.0
      %1017 = vmatprep.subr.mxu0 0.0
      %1018 = vmatpush2.msra.mxu0 0.0
      %1019 = vmatprep.subr.mxu0 0.0
      %1020 = vmatpush2.msra.mxu0 0.0
      %1021 = vmatprep.subr.mxu0 0.0
      %1022 = vmatpush2.msra.mxu0 0.0
      %1023 = vmatprep.subr.mxu0 0.0
      %1024 = vmatpush2.msra.mxu0 0.0
      %1025 = vmatprep.subr.mxu0 0.0
      %1026 = vmatpush2.msra.mxu0 0.0
      %1027 = vmatprep.subr.mxu0 0.0
      %1028 = vmatpush2.msra.mxu0 0.0
      %1029 = vmatprep.subr.mxu0 0.0
      %1030 = vmatpush2.msra.mxu0 0.0
      %1031 = vmatprep.subr.mxu0 0.0
      %1032 = vmatpush2.msra.mxu0 0.0
      %1033 = vmatprep.subr.mxu0 0.0
      %1034 = vmatpush2.msra.mxu0 0.0
      %1035 = vmatprep.subr.mxu0 0.0
      %1036 = vmatpush2.msra.mxu0 0.0
      %1037 = vmatprep.subr.mxu0 0.0
      %1038 = vmatpush2.msra.mxu0 0.0
      %1039 = vmatprep.subr.mxu0 0.0
      %1040 = vmatpush2.msra.mxu0 0.0
      %1041 = vmatprep.subr.mxu0 0.0
      %1042 = vmatpush2.msra.mxu0 0.0
      %1043 = vmatprep.subr.mxu0 0.0
      %1044 = vmatpush2.msra.mxu0 0.0
      %1045 = vmatprep.mubr.f32.mxu0 0.0
      %1046 = vmatmul.mubr.f32.gmra.mxu0 %v964
      %v1047 = vpop.f32.mrf.mxu0
      %v1048 = vadd.f32 %v961, %v1047
      %v1049 = vpop.f32.mrf.mxu0
      %1050 = vmatprep.mubr.f32.mxu0 0.0
      %1051 = vmatmul.mubr.f32.gmra.mxu0 %v967
      %v1052 = vpop.f32.mrf.mxu0
      %v1053 = vadd.f32 %v961, %v1052
      %v1054 = vpop.f32.mrf.mxu0
      %1055 = vmatprep.mubr.f32.mxu0 0.0
      %1056 = vmatmul.mubr.f32.gmra.mxu0 %v970
      %v1057 = vpop.f32.mrf.mxu0
      %v1058 = vadd.f32 %v961, %v1057
      %v1059 = vpop.f32.mrf.mxu0
      %1060 = vmatprep.mubr.f32.mxu0 0.0
      %1061 = vmatmul.mubr.f32.gmra.mxu0 %v973
      %v1062 = vpop.f32.mrf.mxu0
      %v1063 = vadd.f32 %v961, %v1062
      %v1064 = vpop.f32.mrf.mxu0
      %1065 = vmatprep.mubr.f32.mxu0 0.0
      %1066 = vmatmul.mubr.f32.gmra.mxu0 %v976
      %v1067 = vpop.f32.mrf.mxu0
      %v1068 = vadd.f32 %v961, %v1067
      %v1069 = vpop.f32.mrf.mxu0
      %1070 = vmatprep.mubr.f32.mxu0 0.0
      %1071 = vmatmul.mubr.f32.gmra.mxu0 %v979
      %v1072 = vpop.f32.mrf.mxu0
      %v1073 = vadd.f32 %v961, %v1072
      %v1074 = vpop.f32.mrf.mxu0
      %1075 = vdwg.mxu0
      %1076 = vst.msk [vmem:[#allocation3] sm:$0xff] %vm941, %v1048
      %1077 = vst.msk [vmem:[#allocation3 + $0x8] sm:$0xff] %vm941, %v1053
      %1078 = vst.msk [vmem:[#allocation3 + $0x10] sm:$0xff] %vm941, %v1058
      %1079 = vst.msk [vmem:[#allocation3 + $0x18] sm:$0xff] %vm941, %v1063
      %1080 = vst.msk [vmem:[#allocation3 + $0x20] sm:$0xff] %vm941, %v1068
      %1081 = vst.msk [vmem:[#allocation3 + $0x28] sm:$0xff] %vm941, %v1073
      %s1082 = scalar_lea.vmem %s6, 32
      %v1083 = vld [vmem:[%s1082] sm:$0xff]
      %v1084 = vld [vmem:[%s1082 + $0x8] sm:$0xff]
      %v1085 = vld [vmem:[%s1082 + $0x10] sm:$0xff]
      %v1086 = vld [vmem:[%s1082 + $0x18] sm:$0xff]
      %s1087 = scalar_lea.vmem %s7, 1
      %v1088 = vld [vmem:[%s1087] sm:$0x1]
      %s1089 = scalar_lea.vmem %s6, 96
      %v1090 = vld [vmem:[%s1089] sm:$0xff]
      %v1091 = vld [vmem:[%s1089 + $0x8] sm:$0xff]
      %v1092 = vld [vmem:[%s1089 + $0x10] sm:$0xff]
      %v1093 = vld [vmem:[%s1089 + $0x18] sm:$0xff]
      %s1094 = scalar_lea.vmem %s7, 3
      %v1095 = vld [vmem:[%s1094] sm:$0x1]
      %v1096 = vld [vmem:[%s466] sm:$0xff]
      %v1097 = vld [vmem:[#allocation2] sm:$0xff]
      %v1099 = vlaneseq
      %v1100 = vshrl.u32 %v1099, 7
      %v1101 = vsub.s32 0, %v1100
      %v1102 = vrot.slane %v1088, %v1101
      %v1105 = vsel %vm811, 0.0, 0
      %1107 = vmatprep.subr.mxu0 0.0
      %1108 = vmatpush1.msra.mxu0 0.0
      %1109 = vmatprep.subr.mxu0 0.0
      %1110 = vmatpush1.msra.mxu0 0.0
      %1111 = vmatprep.subr.mxu0 0.0
      %1112 = vmatpush1.msra.mxu0 0.0
      %1113 = vmatprep.subr.mxu0 0.0
      %1114 = vmatpush1.msra.mxu0 0.0
      %1115 = vmatprep.subr.mxu0 0.0
      %1116 = vmatpush1.msra.mxu0 0.0
      %1117 = vmatprep.subr.mxu0 0.0
      %1118 = vmatpush1.msra.mxu0 0.0
      %1119 = vmatprep.subr.mxu0 0.0
      %1120 = vmatpush1.msra.mxu0 0.0
      %1121 = vmatprep.subr.mxu0 0.0
      %1122 = vmatpush1.msra.mxu0 0.0
      %1123 = vmatprep.subr.mxu0 0.0
      %1124 = vmatpush1.msra.mxu0 0.0
      %1125 = vmatprep.subr.mxu0 0.0
      %1126 = vmatpush1.msra.mxu0 0.0
      %1127 = vmatprep.subr.mxu0 0.0
      %1128 = vmatpush1.msra.mxu0 0.0
      %1129 = vmatprep.subr.mxu0 0.0
      %1130 = vmatpush1.msra.mxu0 0.0
      %1131 = vmatprep.subr.mxu0 0.0
      %1132 = vmatpush1.msra.mxu0 %v1086
      %1133 = vmatprep.subr.mxu0 0.0
      %1134 = vmatpush1.msra.mxu0 %v1085
      %1135 = vmatprep.subr.mxu0 0.0
      %1136 = vmatpush1.msra.mxu0 %v1084
      %1137 = vmatprep.subr.mxu0 0.0
      %1138 = vmatpush1.msra.mxu0 %v1083
      %1139 = vmatprep.subr.mxu0 0.0
      %1140 = vmatpush2.msra.mxu0 0.0
      %1141 = vmatprep.subr.mxu0 0.0
      %1142 = vmatpush2.msra.mxu0 0.0
      %1143 = vmatprep.subr.mxu0 0.0
      %1144 = vmatpush2.msra.mxu0 0.0
      %1145 = vmatprep.subr.mxu0 0.0
      %1146 = vmatpush2.msra.mxu0 0.0
      %1147 = vmatprep.subr.mxu0 0.0
      %1148 = vmatpush2.msra.mxu0 0.0
      %1149 = vmatprep.subr.mxu0 0.0
      %1150 = vmatpush2.msra.mxu0 0.0
      %1151 = vmatprep.subr.mxu0 0.0
      %1152 = vmatpush2.msra.mxu0 0.0
      %1153 = vmatprep.subr.mxu0 0.0
      %1154 = vmatpush2.msra.mxu0 0.0
      %1155 = vmatprep.subr.mxu0 0.0
      %1156 = vmatpush2.msra.mxu0 0.0
      %1157 = vmatprep.subr.mxu0 0.0
      %1158 = vmatpush2.msra.mxu0 0.0
      %1159 = vmatprep.subr.mxu0 0.0
      %1160 = vmatpush2.msra.mxu0 0.0
      %1161 = vmatprep.subr.mxu0 0.0
      %1162 = vmatpush2.msra.mxu0 0.0
      %1163 = vmatprep.subr.mxu0 0.0
      %1164 = vmatpush2.msra.mxu0 0.0
      %1165 = vmatprep.subr.mxu0 0.0
      %1166 = vmatpush2.msra.mxu0 0.0
      %1167 = vmatprep.subr.mxu0 0.0
      %1168 = vmatpush2.msra.mxu0 0.0
      %1169 = vmatprep.subr.mxu0 0.0
      %1170 = vmatpush2.msra.mxu0 0.0
      %1171 = vmatprep.mubr.f32.mxu0 0.0
      %1172 = vmatmul.mubr.f32.gmra.mxu0 %v1105
      %v1173 = vpop.f32.mrf.mxu0
      %v1174 = vadd.f32 %v1102, %v1173
      %v1175 = vpop.f32.mrf.mxu0
      %1176 = vdwg.mxu0
      %v1177 = vadd.f32 %v1097, %v1174
      %v1178 = vxor.u32 %v1177, 2147483648
      %v1179 = vmul.f32 %v1178, 1.442695
      %v1180 = vpow.pop %v1179
      %v1181 = vadd.f32 %v1180, 1.0
      %v1182 = vrcp.pop %v1181
      %v1183 = vmul.f32 1.0, %v1182
      %1185 = vrot.lane.b32.xlu0 %v1174, 64
      %v1186 = vpop.permute.xlu0 %1185
      %v1188 = vmul.f32 %v1183, %v1186
      %1190 = vrot.lane.b32.xlu0 %v1188, 64
      %v1191 = vpop.permute.xlu0 %1190
      %v1193 = vadd.f32 %v1097, %v1191
      %v1194 = vtanh.pop %v1193
      %v1195 = vsub.f32 1.0, %v1183
      %1197 = vrot.lane.b32.xlu0 %v1194, 96
      %v1198 = vpop.permute.xlu0 %1197
      %v1200 = vmul.f32 %v1195, %v1198
      %v1201 = vmul.f32 %v1183, 0.0
      %v1202 = vadd.f32 %v1200, %v1201
      %vm1203 = vcmp.gt.s32.totalorder %v1096, 0
      %v1204 = vsel %vm1203, 1, 0
      %v1205 = vcvt.s32.f32 %v1204
      %1207 = vset.pattern.permute.xlu0 0
      %1208 = vperm.xlu0 %1207, %v1205
      %v1209 = vpop.permute.xlu0 %1208
      %v1211 = vmul.f32 %v1202, %v1209
      %1213 = vrot.lane.b32.xlu0 %v1211, 96
      %v1214 = vpop.permute.xlu0 %1213
      %1216 = vst.msk [vmem:[#allocation4] sm:$0xff] %vm811, %v1214
      %v1217 = vsub.f32 1.0, %v1205
      %1219 = vset.pattern.permute.xlu0 0
      %1220 = vperm.xlu0 %1219, %v1217
      %v1221 = vpop.permute.xlu0 %1220
      %v1223 = vmul.f32 %v1221, 0.0
      %v1224 = vadd.f32 %v1211, %v1223
      %v1225 = vld [vmem:[#allocation2 + $0x8] sm:$0xff]
      %1227 = vrot.lane.b32.xlu0 %v1224, 96
      %v1228 = vpop.permute.xlu0 %1227
      %v1229 = vsel %vm811, %v1228, 0
      %1231 = vmatprep.subr.mxu0 0.0
      %1232 = vmatpush1.msra.mxu0 0.0
      %1233 = vmatprep.subr.mxu0 0.0
      %1234 = vmatpush1.msra.mxu0 0.0
      %1235 = vmatprep.subr.mxu0 0.0
      %1236 = vmatpush1.msra.mxu0 0.0
      %1237 = vmatprep.subr.mxu0 0.0
      %1238 = vmatpush1.msra.mxu0 0.0
      %1239 = vmatprep.subr.mxu0 0.0
      %1240 = vmatpush1.msra.mxu0 0.0
      %1241 = vmatprep.subr.mxu0 0.0
      %1242 = vmatpush1.msra.mxu0 0.0
      %1243 = vmatprep.subr.mxu0 0.0
      %1244 = vmatpush1.msra.mxu0 0.0
      %1245 = vmatprep.subr.mxu0 0.0
      %1246 = vmatpush1.msra.mxu0 0.0
      %1247 = vmatprep.subr.mxu0 0.0
      %1248 = vmatpush1.msra.mxu0 0.0
      %1249 = vmatprep.subr.mxu0 0.0
      %1250 = vmatpush1.msra.mxu0 0.0
      %1251 = vmatprep.subr.mxu0 0.0
      %1252 = vmatpush1.msra.mxu0 0.0
      %1253 = vmatprep.subr.mxu0 0.0
      %1254 = vmatpush1.msra.mxu0 0.0
      %1255 = vmatprep.subr.mxu0 0.0
      %1256 = vmatpush1.msra.mxu0 %v1086
      %1257 = vmatprep.subr.mxu0 0.0
      %1258 = vmatpush1.msra.mxu0 %v1085
      %1259 = vmatprep.subr.mxu0 0.0
      %1260 = vmatpush1.msra.mxu0 %v1084
      %1261 = vmatprep.subr.mxu0 0.0
      %1262 = vmatpush1.msra.mxu0 %v1083
      %1263 = vmatprep.subr.mxu0 0.0
      %1264 = vmatpush2.msra.mxu0 0.0
      %1265 = vmatprep.subr.mxu0 0.0
      %1266 = vmatpush2.msra.mxu0 0.0
      %1267 = vmatprep.subr.mxu0 0.0
      %1268 = vmatpush2.msra.mxu0 0.0
      %1269 = vmatprep.subr.mxu0 0.0
      %1270 = vmatpush2.msra.mxu0 0.0
      %1271 = vmatprep.subr.mxu0 0.0
      %1272 = vmatpush2.msra.mxu0 0.0
      %1273 = vmatprep.subr.mxu0 0.0
      %1274 = vmatpush2.msra.mxu0 0.0
      %1275 = vmatprep.subr.mxu0 0.0
      %1276 = vmatpush2.msra.mxu0 0.0
      %1277 = vmatprep.subr.mxu0 0.0
      %1278 = vmatpush2.msra.mxu0 0.0
      %1279 = vmatprep.subr.mxu0 0.0
      %1280 = vmatpush2.msra.mxu0 0.0
      %1281 = vmatprep.subr.mxu0 0.0
      %1282 = vmatpush2.msra.mxu0 0.0
      %1283 = vmatprep.subr.mxu0 0.0
      %1284 = vmatpush2.msra.mxu0 0.0
      %1285 = vmatprep.subr.mxu0 0.0
      %1286 = vmatpush2.msra.mxu0 0.0
      %1287 = vmatprep.subr.mxu0 0.0
      %1288 = vmatpush2.msra.mxu0 0.0
      %1289 = vmatprep.subr.mxu0 0.0
      %1290 = vmatpush2.msra.mxu0 0.0
      %1291 = vmatprep.subr.mxu0 0.0
      %1292 = vmatpush2.msra.mxu0 0.0
      %1293 = vmatprep.subr.mxu0 0.0
      %1294 = vmatpush2.msra.mxu0 0.0
      %1295 = vmatprep.mubr.f32.mxu0 0.0
      %1296 = vmatmul.mubr.f32.gmra.mxu0 %v1229
      %v1297 = vpop.f32.mrf.mxu0
      %v1298 = vadd.f32 %v1102, %v1297
      %v1299 = vpop.f32.mrf.mxu0
      %1300 = vdwg.mxu0
      %v1301 = vadd.f32 %v1225, %v1298
      %v1302 = vxor.u32 %v1301, 2147483648
      %v1303 = vmul.f32 %v1302, 1.442695
      %v1304 = vpow.pop %v1303
      %v1305 = vadd.f32 %v1304, 1.0
      %v1306 = vrcp.pop %v1305
      %v1307 = vmul.f32 1.0, %v1306
      %1309 = vrot.lane.b32.xlu0 %v1298, 64
      %v1310 = vpop.permute.xlu0 %1309
      %v1312 = vmul.f32 %v1307, %v1310
      %1314 = vrot.lane.b32.xlu0 %v1312, 64
      %v1315 = vpop.permute.xlu0 %1314
      %v1317 = vadd.f32 %v1225, %v1315
      %v1318 = vtanh.pop %v1317
      %v1319 = vsub.f32 1.0, %v1307
      %1321 = vrot.lane.b32.xlu0 %v1318, 96
      %v1322 = vpop.permute.xlu0 %1321
      %v1324 = vmul.f32 %v1319, %v1322
      %v1325 = vmul.f32 %v1307, %v1224
      %v1326 = vadd.f32 %v1324, %v1325
      %vm1327 = vcmp.gt.s32.totalorder %v1096, 1
      %v1328 = vsel %vm1327, 1, 0
      %v1329 = vcvt.s32.f32 %v1328
      %1331 = vset.pattern.permute.xlu0 0
      %1332 = vperm.xlu0 %1331, %v1329
      %v1333 = vpop.permute.xlu0 %1332
      %v1335 = vmul.f32 %v1326, %v1333
      %1337 = vrot.lane.b32.xlu0 %v1335, 96
      %v1338 = vpop.permute.xlu0 %1337
      %1340 = vst.msk [vmem:[#allocation4 + $0x8] sm:$0xff] %vm811, %v1338
      %v1341 = vsub.f32 1.0, %v1329
      %1343 = vset.pattern.permute.xlu0 0
      %1344 = vperm.xlu0 %1343, %v1341
      %v1345 = vpop.permute.xlu0 %1344
      %v1347 = vmul.f32 %v1345, %v1224
      %v1348 = vadd.f32 %v1335, %v1347
      %v1349 = vld [vmem:[#allocation2 + $0x10] sm:$0xff]
      %1351 = vrot.lane.b32.xlu0 %v1348, 96
      %v1352 = vpop.permute.xlu0 %1351
      %v1353 = vsel %vm811, %v1352, 0
      %1355 = vmatprep.subr.mxu0 0.0
      %1356 = vmatpush1.msra.mxu0 0.0
      %1357 = vmatprep.subr.mxu0 0.0
      %1358 = vmatpush1.msra.mxu0 0.0
      %1359 = vmatprep.subr.mxu0 0.0
      %1360 = vmatpush1.msra.mxu0 0.0
      %1361 = vmatprep.subr.mxu0 0.0
      %1362 = vmatpush1.msra.mxu0 0.0
      %1363 = vmatprep.subr.mxu0 0.0
      %1364 = vmatpush1.msra.mxu0 0.0
      %1365 = vmatprep.subr.mxu0 0.0
      %1366 = vmatpush1.msra.mxu0 0.0
      %1367 = vmatprep.subr.mxu0 0.0
      %1368 = vmatpush1.msra.mxu0 0.0
      %1369 = vmatprep.subr.mxu0 0.0
      %1370 = vmatpush1.msra.mxu0 0.0
      %1371 = vmatprep.subr.mxu0 0.0
      %1372 = vmatpush1.msra.mxu0 0.0
      %1373 = vmatprep.subr.mxu0 0.0
      %1374 = vmatpush1.msra.mxu0 0.0
      %1375 = vmatprep.subr.mxu0 0.0
      %1376 = vmatpush1.msra.mxu0 0.0
      %1377 = vmatprep.subr.mxu0 0.0
      %1378 = vmatpush1.msra.mxu0 0.0
      %1379 = vmatprep.subr.mxu0 0.0
      %1380 = vmatpush1.msra.mxu0 %v1086
      %1381 = vmatprep.subr.mxu0 0.0
      %1382 = vmatpush1.msra.mxu0 %v1085
      %1383 = vmatprep.subr.mxu0 0.0
      %1384 = vmatpush1.msra.mxu0 %v1084
      %1385 = vmatprep.subr.mxu0 0.0
      %1386 = vmatpush1.msra.mxu0 %v1083
      %1387 = vmatprep.subr.mxu0 0.0
      %1388 = vmatpush2.msra.mxu0 0.0
      %1389 = vmatprep.subr.mxu0 0.0
      %1390 = vmatpush2.msra.mxu0 0.0
      %1391 = vmatprep.subr.mxu0 0.0
      %1392 = vmatpush2.msra.mxu0 0.0
      %1393 = vmatprep.subr.mxu0 0.0
      %1394 = vmatpush2.msra.mxu0 0.0
      %1395 = vmatprep.subr.mxu0 0.0
      %1396 = vmatpush2.msra.mxu0 0.0
      %1397 = vmatprep.subr.mxu0 0.0
      %1398 = vmatpush2.msra.mxu0 0.0
      %1399 = vmatprep.subr.mxu0 0.0
      %1400 = vmatpush2.msra.mxu0 0.0
      %1401 = vmatprep.subr.mxu0 0.0
      %1402 = vmatpush2.msra.mxu0 0.0
      %1403 = vmatprep.subr.mxu0 0.0
      %1404 = vmatpush2.msra.mxu0 0.0
      %1405 = vmatprep.subr.mxu0 0.0
      %1406 = vmatpush2.msra.mxu0 0.0
      %1407 = vmatprep.subr.mxu0 0.0
      %1408 = vmatpush2.msra.mxu0 0.0
      %1409 = vmatprep.subr.mxu0 0.0
      %1410 = vmatpush2.msra.mxu0 0.0
      %1411 = vmatprep.subr.mxu0 0.0
      %1412 = vmatpush2.msra.mxu0 0.0
      %1413 = vmatprep.subr.mxu0 0.0
      %1414 = vmatpush2.msra.mxu0 0.0
      %1415 = vmatprep.subr.mxu0 0.0
      %1416 = vmatpush2.msra.mxu0 0.0
      %1417 = vmatprep.subr.mxu0 0.0
      %1418 = vmatpush2.msra.mxu0 0.0
      %1419 = vmatprep.mubr.f32.mxu0 0.0
      %1420 = vmatmul.mubr.f32.gmra.mxu0 %v1353
      %v1421 = vpop.f32.mrf.mxu0
      %v1422 = vadd.f32 %v1102, %v1421
      %v1423 = vpop.f32.mrf.mxu0
      %1424 = vdwg.mxu0
      %v1425 = vadd.f32 %v1349, %v1422
      %v1426 = vxor.u32 %v1425, 2147483648
      %v1427 = vmul.f32 %v1426, 1.442695
      %v1428 = vpow.pop %v1427
      %v1429 = vadd.f32 %v1428, 1.0
      %v1430 = vrcp.pop %v1429
      %v1431 = vmul.f32 1.0, %v1430
      %1433 = vrot.lane.b32.xlu0 %v1422, 64
      %v1434 = vpop.permute.xlu0 %1433
      %v1436 = vmul.f32 %v1431, %v1434
      %1438 = vrot.lane.b32.xlu0 %v1436, 64
      %v1439 = vpop.permute.xlu0 %1438
      %v1441 = vadd.f32 %v1349, %v1439
      %v1442 = vtanh.pop %v1441
      %v1443 = vsub.f32 1.0, %v1431
      %1445 = vrot.lane.b32.xlu0 %v1442, 96
      %v1446 = vpop.permute.xlu0 %1445
      %v1448 = vmul.f32 %v1443, %v1446
      %v1449 = vmul.f32 %v1431, %v1348
      %v1450 = vadd.f32 %v1448, %v1449
      %vm1451 = vcmp.gt.s32.totalorder %v1096, 2
      %v1452 = vsel %vm1451, 1, 0
      %v1453 = vcvt.s32.f32 %v1452
      %1455 = vset.pattern.permute.xlu0 0
      %1456 = vperm.xlu0 %1455, %v1453
      %v1457 = vpop.permute.xlu0 %1456
      %v1459 = vmul.f32 %v1450, %v1457
      %1461 = vrot.lane.b32.xlu0 %v1459, 96
      %v1462 = vpop.permute.xlu0 %1461
      %1464 = vst.msk [vmem:[#allocation4 + $0x10] sm:$0xff] %vm811, %v1462
      %v1465 = vsub.f32 1.0, %v1453
      %1467 = vset.pattern.permute.xlu0 0
      %1468 = vperm.xlu0 %1467, %v1465
      %v1469 = vpop.permute.xlu0 %1468
      %v1471 = vmul.f32 %v1469, %v1348
      %v1472 = vadd.f32 %v1459, %v1471
      %v1473 = vld [vmem:[#allocation2 + $0x18] sm:$0xff]
      %1475 = vrot.lane.b32.xlu0 %v1472, 96
      %v1476 = vpop.permute.xlu0 %1475
      %v1477 = vsel %vm811, %v1476, 0
      %1479 = vmatprep.subr.mxu0 0.0
      %1480 = vmatpush1.msra.mxu0 0.0
      %1481 = vmatprep.subr.mxu0 0.0
      %1482 = vmatpush1.msra.mxu0 0.0
      %1483 = vmatprep.subr.mxu0 0.0
      %1484 = vmatpush1.msra.mxu0 0.0
      %1485 = vmatprep.subr.mxu0 0.0
      %1486 = vmatpush1.msra.mxu0 0.0
      %1487 = vmatprep.subr.mxu0 0.0
      %1488 = vmatpush1.msra.mxu0 0.0
      %1489 = vmatprep.subr.mxu0 0.0
      %1490 = vmatpush1.msra.mxu0 0.0
      %1491 = vmatprep.subr.mxu0 0.0
      %1492 = vmatpush1.msra.mxu0 0.0
      %1493 = vmatprep.subr.mxu0 0.0
      %1494 = vmatpush1.msra.mxu0 0.0
      %1495 = vmatprep.subr.mxu0 0.0
      %1496 = vmatpush1.msra.mxu0 0.0
      %1497 = vmatprep.subr.mxu0 0.0
      %1498 = vmatpush1.msra.mxu0 0.0
      %1499 = vmatprep.subr.mxu0 0.0
      %1500 = vmatpush1.msra.mxu0 0.0
      %1501 = vmatprep.subr.mxu0 0.0
      %1502 = vmatpush1.msra.mxu0 0.0
      %1503 = vmatprep.subr.mxu0 0.0
      %1504 = vmatpush1.msra.mxu0 %v1086
      %1505 = vmatprep.subr.mxu0 0.0
      %1506 = vmatpush1.msra.mxu0 %v1085
      %1507 = vmatprep.subr.mxu0 0.0
      %1508 = vmatpush1.msra.mxu0 %v1084
      %1509 = vmatprep.subr.mxu0 0.0
      %1510 = vmatpush1.msra.mxu0 %v1083
      %1511 = vmatprep.subr.mxu0 0.0
      %1512 = vmatpush2.msra.mxu0 0.0
      %1513 = vmatprep.subr.mxu0 0.0
      %1514 = vmatpush2.msra.mxu0 0.0
      %1515 = vmatprep.subr.mxu0 0.0
      %1516 = vmatpush2.msra.mxu0 0.0
      %1517 = vmatprep.subr.mxu0 0.0
      %1518 = vmatpush2.msra.mxu0 0.0
      %1519 = vmatprep.subr.mxu0 0.0
      %1520 = vmatpush2.msra.mxu0 0.0
      %1521 = vmatprep.subr.mxu0 0.0
      %1522 = vmatpush2.msra.mxu0 0.0
      %1523 = vmatprep.subr.mxu0 0.0
      %1524 = vmatpush2.msra.mxu0 0.0
      %1525 = vmatprep.subr.mxu0 0.0
      %1526 = vmatpush2.msra.mxu0 0.0
      %1527 = vmatprep.subr.mxu0 0.0
      %1528 = vmatpush2.msra.mxu0 0.0
      %1529 = vmatprep.subr.mxu0 0.0
      %1530 = vmatpush2.msra.mxu0 0.0
      %1531 = vmatprep.subr.mxu0 0.0
      %1532 = vmatpush2.msra.mxu0 0.0
      %1533 = vmatprep.subr.mxu0 0.0
      %1534 = vmatpush2.msra.mxu0 0.0
      %1535 = vmatprep.subr.mxu0 0.0
      %1536 = vmatpush2.msra.mxu0 0.0
      %1537 = vmatprep.subr.mxu0 0.0
      %1538 = vmatpush2.msra.mxu0 0.0
      %1539 = vmatprep.subr.mxu0 0.0
      %1540 = vmatpush2.msra.mxu0 0.0
      %1541 = vmatprep.subr.mxu0 0.0
      %1542 = vmatpush2.msra.mxu0 0.0
      %1543 = vmatprep.mubr.f32.mxu0 0.0
      %1544 = vmatmul.mubr.f32.gmra.mxu0 %v1477
      %v1545 = vpop.f32.mrf.mxu0
      %v1546 = vadd.f32 %v1102, %v1545
      %v1547 = vpop.f32.mrf.mxu0
      %1548 = vdwg.mxu0
      %v1549 = vadd.f32 %v1473, %v1546
      %v1550 = vxor.u32 %v1549, 2147483648
      %v1551 = vmul.f32 %v1550, 1.442695
      %v1552 = vpow.pop %v1551
      %v1553 = vadd.f32 %v1552, 1.0
      %v1554 = vrcp.pop %v1553
      %v1555 = vmul.f32 1.0, %v1554
      %1557 = vrot.lane.b32.xlu0 %v1546, 64
      %v1558 = vpop.permute.xlu0 %1557
      %v1560 = vmul.f32 %v1555, %v1558
      %1562 = vrot.lane.b32.xlu0 %v1560, 64
      %v1563 = vpop.permute.xlu0 %1562
      %v1565 = vadd.f32 %v1473, %v1563
      %v1566 = vtanh.pop %v1565
      %v1567 = vsub.f32 1.0, %v1555
      %1569 = vrot.lane.b32.xlu0 %v1566, 96
      %v1570 = vpop.permute.xlu0 %1569
      %v1572 = vmul.f32 %v1567, %v1570
      %v1573 = vmul.f32 %v1555, %v1472
      %v1574 = vadd.f32 %v1572, %v1573
      %vm1575 = vcmp.gt.s32.totalorder %v1096, 3
      %v1576 = vsel %vm1575, 1, 0
      %v1577 = vcvt.s32.f32 %v1576
      %1579 = vset.pattern.permute.xlu0 0
      %1580 = vperm.xlu0 %1579, %v1577
      %v1581 = vpop.permute.xlu0 %1580
      %v1583 = vmul.f32 %v1574, %v1581
      %1585 = vrot.lane.b32.xlu0 %v1583, 96
      %v1586 = vpop.permute.xlu0 %1585
      %1588 = vst.msk [vmem:[#allocation4 + $0x18] sm:$0xff] %vm811, %v1586
      %v1589 = vsub.f32 1.0, %v1577
      %1591 = vset.pattern.permute.xlu0 0
      %1592 = vperm.xlu0 %1591, %v1589
      %v1593 = vpop.permute.xlu0 %1592
      %v1595 = vmul.f32 %v1593, %v1472
      %v1596 = vadd.f32 %v1583, %v1595
      %v1597 = vld [vmem:[#allocation2 + $0x20] sm:$0xff]
      %1599 = vrot.lane.b32.xlu0 %v1596, 96
      %v1600 = vpop.permute.xlu0 %1599
      %v1601 = vsel %vm811, %v1600, 0
      %1603 = vmatprep.subr.mxu0 0.0
      %1604 = vmatpush1.msra.mxu0 0.0
      %1605 = vmatprep.subr.mxu0 0.0
      %1606 = vmatpush1.msra.mxu0 0.0
      %1607 = vmatprep.subr.mxu0 0.0
      %1608 = vmatpush1.msra.mxu0 0.0
      %1609 = vmatprep.subr.mxu0 0.0
      %1610 = vmatpush1.msra.mxu0 0.0
      %1611 = vmatprep.subr.mxu0 0.0
      %1612 = vmatpush1.msra.mxu0 0.0
      %1613 = vmatprep.subr.mxu0 0.0
      %1614 = vmatpush1.msra.mxu0 0.0
      %1615 = vmatprep.subr.mxu0 0.0
      %1616 = vmatpush1.msra.mxu0 0.0
      %1617 = vmatprep.subr.mxu0 0.0
      %1618 = vmatpush1.msra.mxu0 0.0
      %1619 = vmatprep.subr.mxu0 0.0
      %1620 = vmatpush1.msra.mxu0 0.0
      %1621 = vmatprep.subr.mxu0 0.0
      %1622 = vmatpush1.msra.mxu0 0.0
      %1623 = vmatprep.subr.mxu0 0.0
      %1624 = vmatpush1.msra.mxu0 0.0
      %1625 = vmatprep.subr.mxu0 0.0
      %1626 = vmatpush1.msra.mxu0 0.0
      %1627 = vmatprep.subr.mxu0 0.0
      %1628 = vmatpush1.msra.mxu0 %v1086
      %1629 = vmatprep.subr.mxu0 0.0
      %1630 = vmatpush1.msra.mxu0 %v1085
      %1631 = vmatprep.subr.mxu0 0.0
      %1632 = vmatpush1.msra.mxu0 %v1084
      %1633 = vmatprep.subr.mxu0 0.0
      %1634 = vmatpush1.msra.mxu0 %v1083
      %1635 = vmatprep.subr.mxu0 0.0
      %1636 = vmatpush2.msra.mxu0 0.0
      %1637 = vmatprep.subr.mxu0 0.0
      %1638 = vmatpush2.msra.mxu0 0.0
      %1639 = vmatprep.subr.mxu0 0.0
      %1640 = vmatpush2.msra.mxu0 0.0
      %1641 = vmatprep.subr.mxu0 0.0
      %1642 = vmatpush2.msra.mxu0 0.0
      %1643 = vmatprep.subr.mxu0 0.0
      %1644 = vmatpush2.msra.mxu0 0.0
      %1645 = vmatprep.subr.mxu0 0.0
      %1646 = vmatpush2.msra.mxu0 0.0
      %1647 = vmatprep.subr.mxu0 0.0
      %1648 = vmatpush2.msra.mxu0 0.0
      %1649 = vmatprep.subr.mxu0 0.0
      %1650 = vmatpush2.msra.mxu0 0.0
      %1651 = vmatprep.subr.mxu0 0.0
      %1652 = vmatpush2.msra.mxu0 0.0
      %1653 = vmatprep.subr.mxu0 0.0
      %1654 = vmatpush2.msra.mxu0 0.0
      %1655 = vmatprep.subr.mxu0 0.0
      %1656 = vmatpush2.msra.mxu0 0.0
      %1657 = vmatprep.subr.mxu0 0.0
      %1658 = vmatpush2.msra.mxu0 0.0
      %1659 = vmatprep.subr.mxu0 0.0
      %1660 = vmatpush2.msra.mxu0 0.0
      %1661 = vmatprep.subr.mxu0 0.0
      %1662 = vmatpush2.msra.mxu0 0.0
      %1663 = vmatprep.subr.mxu0 0.0
      %1664 = vmatpush2.msra.mxu0 0.0
      %1665 = vmatprep.subr.mxu0 0.0
      %1666 = vmatpush2.msra.mxu0 0.0
      %1667 = vmatprep.mubr.f32.mxu0 0.0
      %1668 = vmatmul.mubr.f32.gmra.mxu0 %v1601
      %v1669 = vpop.f32.mrf.mxu0
      %v1670 = vadd.f32 %v1102, %v1669
      %v1671 = vpop.f32.mrf.mxu0
      %1672 = vdwg.mxu0
      %v1673 = vadd.f32 %v1597, %v1670
      %v1674 = vxor.u32 %v1673, 2147483648
      %v1675 = vmul.f32 %v1674, 1.442695
      %v1676 = vpow.pop %v1675
      %v1677 = vadd.f32 %v1676, 1.0
      %v1678 = vrcp.pop %v1677
      %v1679 = vmul.f32 1.0, %v1678
      %1681 = vrot.lane.b32.xlu0 %v1670, 64
      %v1682 = vpop.permute.xlu0 %1681
      %v1684 = vmul.f32 %v1679, %v1682
      %1686 = vrot.lane.b32.xlu0 %v1684, 64
      %v1687 = vpop.permute.xlu0 %1686
      %v1689 = vadd.f32 %v1597, %v1687
      %v1690 = vtanh.pop %v1689
      %v1691 = vsub.f32 1.0, %v1679
      %1693 = vrot.lane.b32.xlu0 %v1690, 96
      %v1694 = vpop.permute.xlu0 %1693
      %v1696 = vmul.f32 %v1691, %v1694
      %v1697 = vmul.f32 %v1679, %v1596
      %v1698 = vadd.f32 %v1696, %v1697
      %vm1699 = vcmp.gt.s32.totalorder %v1096, 4
      %v1700 = vsel %vm1699, 1, 0
      %v1701 = vcvt.s32.f32 %v1700
      %1703 = vset.pattern.permute.xlu0 0
      %1704 = vperm.xlu0 %1703, %v1701
      %v1705 = vpop.permute.xlu0 %1704
      %v1707 = vmul.f32 %v1698, %v1705
      %1709 = vrot.lane.b32.xlu0 %v1707, 96
      %v1710 = vpop.permute.xlu0 %1709
      %1712 = vst.msk [vmem:[#allocation4 + $0x20] sm:$0xff] %vm811, %v1710
      %v1713 = vsub.f32 1.0, %v1701
      %1715 = vset.pattern.permute.xlu0 0
      %1716 = vperm.xlu0 %1715, %v1713
      %v1717 = vpop.permute.xlu0 %1716
      %v1719 = vmul.f32 %v1717, %v1596
      %v1720 = vadd.f32 %v1707, %v1719
      %v1721 = vld [vmem:[#allocation2 + $0x28] sm:$0xff]
      %1723 = vrot.lane.b32.xlu0 %v1720, 96
      %v1724 = vpop.permute.xlu0 %1723
      %v1725 = vsel %vm811, %v1724, 0
      %1727 = vmatprep.subr.mxu0 0.0
      %1728 = vmatpush1.msra.mxu0 0.0
      %1729 = vmatprep.subr.mxu0 0.0
      %1730 = vmatpush1.msra.mxu0 0.0
      %1731 = vmatprep.subr.mxu0 0.0
      %1732 = vmatpush1.msra.mxu0 0.0
      %1733 = vmatprep.subr.mxu0 0.0
      %1734 = vmatpush1.msra.mxu0 0.0
      %1735 = vmatprep.subr.mxu0 0.0
      %1736 = vmatpush1.msra.mxu0 0.0
      %1737 = vmatprep.subr.mxu0 0.0
      %1738 = vmatpush1.msra.mxu0 0.0
      %1739 = vmatprep.subr.mxu0 0.0
      %1740 = vmatpush1.msra.mxu0 0.0
      %1741 = vmatprep.subr.mxu0 0.0
      %1742 = vmatpush1.msra.mxu0 0.0
      %1743 = vmatprep.subr.mxu0 0.0
      %1744 = vmatpush1.msra.mxu0 0.0
      %1745 = vmatprep.subr.mxu0 0.0
      %1746 = vmatpush1.msra.mxu0 0.0
      %1747 = vmatprep.subr.mxu0 0.0
      %1748 = vmatpush1.msra.mxu0 0.0
      %1749 = vmatprep.subr.mxu0 0.0
      %1750 = vmatpush1.msra.mxu0 0.0
      %1751 = vmatprep.subr.mxu0 0.0
      %1752 = vmatpush1.msra.mxu0 %v1086
      %1753 = vmatprep.subr.mxu0 0.0
      %1754 = vmatpush1.msra.mxu0 %v1085
      %1755 = vmatprep.subr.mxu0 0.0
      %1756 = vmatpush1.msra.mxu0 %v1084
      %1757 = vmatprep.subr.mxu0 0.0
      %1758 = vmatpush1.msra.mxu0 %v1083
      %1759 = vmatprep.subr.mxu0 0.0
      %1760 = vmatpush2.msra.mxu0 0.0
      %1761 = vmatprep.subr.mxu0 0.0
      %1762 = vmatpush2.msra.mxu0 0.0
      %1763 = vmatprep.subr.mxu0 0.0
      %1764 = vmatpush2.msra.mxu0 0.0
      %1765 = vmatprep.subr.mxu0 0.0
      %1766 = vmatpush2.msra.mxu0 0.0
      %1767 = vmatprep.subr.mxu0 0.0
      %1768 = vmatpush2.msra.mxu0 0.0
      %1769 = vmatprep.subr.mxu0 0.0
      %1770 = vmatpush2.msra.mxu0 0.0
      %1771 = vmatprep.subr.mxu0 0.0
      %1772 = vmatpush2.msra.mxu0 0.0
      %1773 = vmatprep.subr.mxu0 0.0
      %1774 = vmatpush2.msra.mxu0 0.0
      %1775 = vmatprep.subr.mxu0 0.0
      %1776 = vmatpush2.msra.mxu0 0.0
      %1777 = vmatprep.subr.mxu0 0.0
      %1778 = vmatpush2.msra.mxu0 0.0
      %1779 = vmatprep.subr.mxu0 0.0
      %1780 = vmatpush2.msra.mxu0 0.0
      %1781 = vmatprep.subr.mxu0 0.0
      %1782 = vmatpush2.msra.mxu0 0.0
      %1783 = vmatprep.subr.mxu0 0.0
      %1784 = vmatpush2.msra.mxu0 0.0
      %1785 = vmatprep.subr.mxu0 0.0
      %1786 = vmatpush2.msra.mxu0 0.0
      %1787 = vmatprep.subr.mxu0 0.0
      %1788 = vmatpush2.msra.mxu0 0.0
      %1789 = vmatprep.subr.mxu0 0.0
      %1790 = vmatpush2.msra.mxu0 0.0
      %1791 = vmatprep.mubr.f32.mxu0 0.0
      %1792 = vmatmul.mubr.f32.gmra.mxu0 %v1725
      %v1793 = vpop.f32.mrf.mxu0
      %v1794 = vadd.f32 %v1102, %v1793
      %v1795 = vpop.f32.mrf.mxu0
      %1796 = vdwg.mxu0
      %v1797 = vadd.f32 %v1721, %v1794
      %v1798 = vxor.u32 %v1797, 2147483648
      %v1799 = vmul.f32 %v1798, 1.442695
      %v1800 = vpow.pop %v1799
      %v1801 = vadd.f32 %v1800, 1.0
      %v1802 = vrcp.pop %v1801
      %v1803 = vmul.f32 1.0, %v1802
      %1805 = vrot.lane.b32.xlu0 %v1794, 64
      %v1806 = vpop.permute.xlu0 %1805
      %v1808 = vmul.f32 %v1803, %v1806
      %1810 = vrot.lane.b32.xlu0 %v1808, 64
      %v1811 = vpop.permute.xlu0 %1810
      %v1813 = vadd.f32 %v1721, %v1811
      %v1814 = vtanh.pop %v1813
      %v1815 = vsub.f32 1.0, %v1803
      %1817 = vrot.lane.b32.xlu0 %v1814, 96
      %v1818 = vpop.permute.xlu0 %1817
      %v1820 = vmul.f32 %v1815, %v1818
      %v1821 = vmul.f32 %v1803, %v1720
      %v1822 = vadd.f32 %v1820, %v1821
      %vm1823 = vcmp.gt.s32.totalorder %v1096, 5
      %v1824 = vsel %vm1823, 1, 0
      %v1825 = vcvt.s32.f32 %v1824
      %1827 = vset.pattern.permute.xlu0 0
      %1828 = vperm.xlu0 %1827, %v1825
      %v1829 = vpop.permute.xlu0 %1828
      %v1831 = vmul.f32 %v1822, %v1829
      %1833 = vrot.lane.b32.xlu0 %v1831, 96
      %v1834 = vpop.permute.xlu0 %1833
      %1836 = vst.msk [vmem:[#allocation4 + $0x28] sm:$0xff] %vm811, %v1834
      %v1837 = vsub.f32 1.0, %v1825
      %1839 = vset.pattern.permute.xlu0 0
      %1840 = vperm.xlu0 %1839, %v1837
      %v1841 = vpop.permute.xlu0 %1840
      %v1843 = vmul.f32 %v1841, %v1720
      %v1844 = vadd.f32 %v1831, %v1843
      %v1845 = vld [vmem:[#allocation2 + $0x30] sm:$0xff]
      %1847 = vrot.lane.b32.xlu0 %v1844, 96
      %v1848 = vpop.permute.xlu0 %1847
      %v1849 = vsel %vm811, %v1848, 0
      %1851 = vmatprep.subr.mxu0 0.0
      %1852 = vmatpush1.msra.mxu0 0.0
      %1853 = vmatprep.subr.mxu0 0.0
      %1854 = vmatpush1.msra.mxu0 0.0
      %1855 = vmatprep.subr.mxu0 0.0
      %1856 = vmatpush1.msra.mxu0 0.0
      %1857 = vmatprep.subr.mxu0 0.0
      %1858 = vmatpush1.msra.mxu0 0.0
      %1859 = vmatprep.subr.mxu0 0.0
      %1860 = vmatpush1.msra.mxu0 0.0
      %1861 = vmatprep.subr.mxu0 0.0
      %1862 = vmatpush1.msra.mxu0 0.0
      %1863 = vmatprep.subr.mxu0 0.0
      %1864 = vmatpush1.msra.mxu0 0.0
      %1865 = vmatprep.subr.mxu0 0.0
      %1866 = vmatpush1.msra.mxu0 0.0
      %1867 = vmatprep.subr.mxu0 0.0
      %1868 = vmatpush1.msra.mxu0 0.0
      %1869 = vmatprep.subr.mxu0 0.0
      %1870 = vmatpush1.msra.mxu0 0.0
      %1871 = vmatprep.subr.mxu0 0.0
      %1872 = vmatpush1.msra.mxu0 0.0
      %1873 = vmatprep.subr.mxu0 0.0
      %1874 = vmatpush1.msra.mxu0 0.0
      %1875 = vmatprep.subr.mxu0 0.0
      %1876 = vmatpush1.msra.mxu0 %v1086
      %1877 = vmatprep.subr.mxu0 0.0
      %1878 = vmatpush1.msra.mxu0 %v1085
      %1879 = vmatprep.subr.mxu0 0.0
      %1880 = vmatpush1.msra.mxu0 %v1084
      %1881 = vmatprep.subr.mxu0 0.0
      %1882 = vmatpush1.msra.mxu0 %v1083
      %1883 = vmatprep.subr.mxu0 0.0
      %1884 = vmatpush2.msra.mxu0 0.0
      %1885 = vmatprep.subr.mxu0 0.0
      %1886 = vmatpush2.msra.mxu0 0.0
      %1887 = vmatprep.subr.mxu0 0.0
      %1888 = vmatpush2.msra.mxu0 0.0
      %1889 = vmatprep.subr.mxu0 0.0
      %1890 = vmatpush2.msra.mxu0 0.0
      %1891 = vmatprep.subr.mxu0 0.0
      %1892 = vmatpush2.msra.mxu0 0.0
      %1893 = vmatprep.subr.mxu0 0.0
      %1894 = vmatpush2.msra.mxu0 0.0
      %1895 = vmatprep.subr.mxu0 0.0
      %1896 = vmatpush2.msra.mxu0 0.0
      %1897 = vmatprep.subr.mxu0 0.0
      %1898 = vmatpush2.msra.mxu0 0.0
      %1899 = vmatprep.subr.mxu0 0.0
      %1900 = vmatpush2.msra.mxu0 0.0
      %1901 = vmatprep.subr.mxu0 0.0
      %1902 = vmatpush2.msra.mxu0 0.0
      %1903 = vmatprep.subr.mxu0 0.0
      %1904 = vmatpush2.msra.mxu0 0.0
      %1905 = vmatprep.subr.mxu0 0.0
      %1906 = vmatpush2.msra.mxu0 0.0
      %1907 = vmatprep.subr.mxu0 0.0
      %1908 = vmatpush2.msra.mxu0 0.0
      %1909 = vmatprep.subr.mxu0 0.0
      %1910 = vmatpush2.msra.mxu0 0.0
      %1911 = vmatprep.subr.mxu0 0.0
      %1912 = vmatpush2.msra.mxu0 0.0
      %1913 = vmatprep.subr.mxu0 0.0
      %1914 = vmatpush2.msra.mxu0 0.0
      %1915 = vmatprep.mubr.f32.mxu0 0.0
      %1916 = vmatmul.mubr.f32.gmra.mxu0 %v1849
      %v1917 = vpop.f32.mrf.mxu0
      %v1918 = vadd.f32 %v1102, %v1917
      %v1919 = vpop.f32.mrf.mxu0
      %1920 = vdwg.mxu0
      %v1921 = vadd.f32 %v1845, %v1918
      %v1922 = vxor.u32 %v1921, 2147483648
      %v1923 = vmul.f32 %v1922, 1.442695
      %v1924 = vpow.pop %v1923
      %v1925 = vadd.f32 %v1924, 1.0
      %v1926 = vrcp.pop %v1925
      %v1927 = vmul.f32 1.0, %v1926
      %1929 = vrot.lane.b32.xlu0 %v1918, 64
      %v1930 = vpop.permute.xlu0 %1929
      %v1932 = vmul.f32 %v1927, %v1930
      %1934 = vrot.lane.b32.xlu0 %v1932, 64
      %v1935 = vpop.permute.xlu0 %1934
      %v1937 = vadd.f32 %v1845, %v1935
      %v1938 = vtanh.pop %v1937
      %v1939 = vsub.f32 1.0, %v1927
      %1941 = vrot.lane.b32.xlu0 %v1938, 96
      %v1942 = vpop.permute.xlu0 %1941
      %v1944 = vmul.f32 %v1939, %v1942
      %v1945 = vmul.f32 %v1927, %v1844
      %v1946 = vadd.f32 %v1944, %v1945
      %vm1947 = vcmp.gt.s32.totalorder %v1096, 6
      %v1948 = vsel %vm1947, 1, 0
      %v1949 = vcvt.s32.f32 %v1948
      %1951 = vset.pattern.permute.xlu0 0
      %1952 = vperm.xlu0 %1951, %v1949
      %v1953 = vpop.permute.xlu0 %1952
      %v1955 = vmul.f32 %v1946, %v1953
      %1957 = vrot.lane.b32.xlu0 %v1955, 96
      %v1958 = vpop.permute.xlu0 %1957
      %1960 = vst.msk [vmem:[#allocation4 + $0x30] sm:$0xff] %vm811, %v1958
      %v1961 = vsub.f32 1.0, %v1949
      %1963 = vset.pattern.permute.xlu0 0
      %1964 = vperm.xlu0 %1963, %v1961
      %v1965 = vpop.permute.xlu0 %1964
      %v1967 = vmul.f32 %v1965, %v1844
      %v1968 = vadd.f32 %v1955, %v1967
      %v1969 = vld [vmem:[#allocation2 + $0x38] sm:$0xff]
      %1971 = vrot.lane.b32.xlu0 %v1968, 96
      %v1972 = vpop.permute.xlu0 %1971
      %v1973 = vsel %vm811, %v1972, 0
      %1975 = vmatprep.subr.mxu0 0.0
      %1976 = vmatpush1.msra.mxu0 0.0
      %1977 = vmatprep.subr.mxu0 0.0
      %1978 = vmatpush1.msra.mxu0 0.0
      %1979 = vmatprep.subr.mxu0 0.0
      %1980 = vmatpush1.msra.mxu0 0.0
      %1981 = vmatprep.subr.mxu0 0.0
      %1982 = vmatpush1.msra.mxu0 0.0
      %1983 = vmatprep.subr.mxu0 0.0
      %1984 = vmatpush1.msra.mxu0 0.0
      %1985 = vmatprep.subr.mxu0 0.0
      %1986 = vmatpush1.msra.mxu0 0.0
      %1987 = vmatprep.subr.mxu0 0.0
      %1988 = vmatpush1.msra.mxu0 0.0
      %1989 = vmatprep.subr.mxu0 0.0
      %1990 = vmatpush1.msra.mxu0 0.0
      %1991 = vmatprep.subr.mxu0 0.0
      %1992 = vmatpush1.msra.mxu0 0.0
      %1993 = vmatprep.subr.mxu0 0.0
      %1994 = vmatpush1.msra.mxu0 0.0
      %1995 = vmatprep.subr.mxu0 0.0
      %1996 = vmatpush1.msra.mxu0 0.0
      %1997 = vmatprep.subr.mxu0 0.0
      %1998 = vmatpush1.msra.mxu0 0.0
      %1999 = vmatprep.subr.mxu0 0.0
      %2000 = vmatpush1.msra.mxu0 %v1086
      %2001 = vmatprep.subr.mxu0 0.0
      %2002 = vmatpush1.msra.mxu0 %v1085
      %2003 = vmatprep.subr.mxu0 0.0
      %2004 = vmatpush1.msra.mxu0 %v1084
      %2005 = vmatprep.subr.mxu0 0.0
      %2006 = vmatpush1.msra.mxu0 %v1083
      %2007 = vmatprep.subr.mxu0 0.0
      %2008 = vmatpush2.msra.mxu0 0.0
      %2009 = vmatprep.subr.mxu0 0.0
      %2010 = vmatpush2.msra.mxu0 0.0
      %2011 = vmatprep.subr.mxu0 0.0
      %2012 = vmatpush2.msra.mxu0 0.0
      %2013 = vmatprep.subr.mxu0 0.0
      %2014 = vmatpush2.msra.mxu0 0.0
      %2015 = vmatprep.subr.mxu0 0.0
      %2016 = vmatpush2.msra.mxu0 0.0
      %2017 = vmatprep.subr.mxu0 0.0
      %2018 = vmatpush2.msra.mxu0 0.0
      %2019 = vmatprep.subr.mxu0 0.0
      %2020 = vmatpush2.msra.mxu0 0.0
      %2021 = vmatprep.subr.mxu0 0.0
      %2022 = vmatpush2.msra.mxu0 0.0
      %2023 = vmatprep.subr.mxu0 0.0
      %2024 = vmatpush2.msra.mxu0 0.0
      %2025 = vmatprep.subr.mxu0 0.0
      %2026 = vmatpush2.msra.mxu0 0.0
      %2027 = vmatprep.subr.mxu0 0.0
      %2028 = vmatpush2.msra.mxu0 0.0
      %2029 = vmatprep.subr.mxu0 0.0
      %2030 = vmatpush2.msra.mxu0 0.0
      %2031 = vmatprep.subr.mxu0 0.0
      %2032 = vmatpush2.msra.mxu0 0.0
      %2033 = vmatprep.subr.mxu0 0.0
      %2034 = vmatpush2.msra.mxu0 0.0
      %2035 = vmatprep.subr.mxu0 0.0
      %2036 = vmatpush2.msra.mxu0 0.0
      %2037 = vmatprep.subr.mxu0 0.0
      %2038 = vmatpush2.msra.mxu0 0.0
      %2039 = vmatprep.mubr.f32.mxu0 0.0
      %2040 = vmatmul.mubr.f32.gmra.mxu0 %v1973
      %v2041 = vpop.f32.mrf.mxu0
      %v2042 = vadd.f32 %v1102, %v2041
      %v2043 = vpop.f32.mrf.mxu0
      %2044 = vdwg.mxu0
      %v2045 = vadd.f32 %v1969, %v2042
      %v2046 = vxor.u32 %v2045, 2147483648
      %v2047 = vmul.f32 %v2046, 1.442695
      %v2048 = vpow.pop %v2047
      %v2049 = vadd.f32 %v2048, 1.0
      %v2050 = vrcp.pop %v2049
      %v2051 = vmul.f32 1.0, %v2050
      %2053 = vrot.lane.b32.xlu0 %v2042, 64
      %v2054 = vpop.permute.xlu0 %2053
      %v2056 = vmul.f32 %v2051, %v2054
      %2058 = vrot.lane.b32.xlu0 %v2056, 64
      %v2059 = vpop.permute.xlu0 %2058
      %v2061 = vadd.f32 %v1969, %v2059
      %v2062 = vtanh.pop %v2061
      %v2063 = vsub.f32 1.0, %v2051
      %2065 = vrot.lane.b32.xlu0 %v2062, 96
      %v2066 = vpop.permute.xlu0 %2065
      %v2068 = vmul.f32 %v2063, %v2066
      %v2069 = vmul.f32 %v2051, %v1968
      %v2070 = vadd.f32 %v2068, %v2069
      %vm2071 = vcmp.gt.s32.totalorder %v1096, 7
      %v2072 = vsel %vm2071, 1, 0
      %v2073 = vcvt.s32.f32 %v2072
      %2075 = vset.pattern.permute.xlu0 0
      %2076 = vperm.xlu0 %2075, %v2073
      %v2077 = vpop.permute.xlu0 %2076
      %v2079 = vmul.f32 %v2070, %v2077
      %2081 = vrot.lane.b32.xlu0 %v2079, 96
      %v2082 = vpop.permute.xlu0 %2081
      %2084 = vst.msk [vmem:[#allocation4 + $0x38] sm:$0xff] %vm811, %v2082
      %v2085 = vsub.f32 1.0, %v2073
      %2087 = vset.pattern.permute.xlu0 0
      %2088 = vperm.xlu0 %2087, %v2085
      %v2089 = vpop.permute.xlu0 %2088
      %v2091 = vmul.f32 %v2089, %v1968
      %v2092 = vadd.f32 %v2079, %v2091
      %v2093 = vld [vmem:[%s480] sm:$0xff]
      %s2094 = scalar_lea.vmem %s8, 128
      %v2095 = vld [vmem:[%s2094] sm:$0xff]
      %v2096 = vld [vmem:[%s2094 + $0x8] sm:$0xff]
      %v2097 = vld [vmem:[%s2094 + $0x10] sm:$0xff]
      %v2098 = vld [vmem:[%s2094 + $0x18] sm:$0xff]
      %s2099 = scalar_lea.vmem %s9, 4
      %v2100 = vld [vmem:[%s2099] sm:$0x1]
      %v2102 = vlaneseq
      %v2103 = vshrl.u32 %v2102, 7
      %v2104 = vsub.s32 0, %v2103
      %v2105 = vrot.slane %v2100, %v2104
      %v2108 = vsel %vm811, %v2093, 0
      %2110 = vmatprep.subr.mxu0 0.0
      %2111 = vmatpush1.msra.mxu0 0.0
      %2112 = vmatprep.subr.mxu0 0.0
      %2113 = vmatpush1.msra.mxu0 0.0
      %2114 = vmatprep.subr.mxu0 0.0
      %2115 = vmatpush1.msra.mxu0 0.0
      %2116 = vmatprep.subr.mxu0 0.0
      %2117 = vmatpush1.msra.mxu0 0.0
      %2118 = vmatprep.subr.mxu0 0.0
      %2119 = vmatpush1.msra.mxu0 0.0
      %2120 = vmatprep.subr.mxu0 0.0
      %2121 = vmatpush1.msra.mxu0 0.0
      %2122 = vmatprep.subr.mxu0 0.0
      %2123 = vmatpush1.msra.mxu0 0.0
      %2124 = vmatprep.subr.mxu0 0.0
      %2125 = vmatpush1.msra.mxu0 0.0
      %2126 = vmatprep.subr.mxu0 0.0
      %2127 = vmatpush1.msra.mxu0 0.0
      %2128 = vmatprep.subr.mxu0 0.0
      %2129 = vmatpush1.msra.mxu0 0.0
      %2130 = vmatprep.subr.mxu0 0.0
      %2131 = vmatpush1.msra.mxu0 0.0
      %2132 = vmatprep.subr.mxu0 0.0
      %2133 = vmatpush1.msra.mxu0 0.0
      %2134 = vmatprep.subr.mxu0 0.0
      %2135 = vmatpush1.msra.mxu0 %v2098
      %2136 = vmatprep.subr.mxu0 0.0
      %2137 = vmatpush1.msra.mxu0 %v2097
      %2138 = vmatprep.subr.mxu0 0.0
      %2139 = vmatpush1.msra.mxu0 %v2096
      %2140 = vmatprep.subr.mxu0 0.0
      %2141 = vmatpush1.msra.mxu0 %v2095
      %2142 = vmatprep.subr.mxu0 0.0
      %2143 = vmatpush2.msra.mxu0 0.0
      %2144 = vmatprep.subr.mxu0 0.0
      %2145 = vmatpush2.msra.mxu0 0.0
      %2146 = vmatprep.subr.mxu0 0.0
      %2147 = vmatpush2.msra.mxu0 0.0
      %2148 = vmatprep.subr.mxu0 0.0
      %2149 = vmatpush2.msra.mxu0 0.0
      %2150 = vmatprep.subr.mxu0 0.0
      %2151 = vmatpush2.msra.mxu0 0.0
      %2152 = vmatprep.subr.mxu0 0.0
      %2153 = vmatpush2.msra.mxu0 0.0
      %2154 = vmatprep.subr.mxu0 0.0
      %2155 = vmatpush2.msra.mxu0 0.0
      %2156 = vmatprep.subr.mxu0 0.0
      %2157 = vmatpush2.msra.mxu0 0.0
      %2158 = vmatprep.subr.mxu0 0.0
      %2159 = vmatpush2.msra.mxu0 0.0
      %2160 = vmatprep.subr.mxu0 0.0
      %2161 = vmatpush2.msra.mxu0 0.0
      %2162 = vmatprep.subr.mxu0 0.0
      %2163 = vmatpush2.msra.mxu0 0.0
      %2164 = vmatprep.subr.mxu0 0.0
      %2165 = vmatpush2.msra.mxu0 0.0
      %2166 = vmatprep.subr.mxu0 0.0
      %2167 = vmatpush2.msra.mxu0 0.0
      %2168 = vmatprep.subr.mxu0 0.0
      %2169 = vmatpush2.msra.mxu0 0.0
      %2170 = vmatprep.subr.mxu0 0.0
      %2171 = vmatpush2.msra.mxu0 0.0
      %2172 = vmatprep.subr.mxu0 0.0
      %2173 = vmatpush2.msra.mxu0 0.0
      %2174 = vmatprep.mubr.f32.mxu0 0.0
      %2175 = vmatmul.mubr.f32.gmra.mxu0 %v2108
      %v2176 = vpop.f32.mrf.mxu0
      %v2177 = vadd.f32 %v2105, %v2176
      %v2178 = vpop.f32.mrf.mxu0
      %2179 = vdwg.mxu0
      %s2180 = scalar_lea.vmem %s8, 64
      %v2181 = vld [vmem:[%s2180] sm:$0xff]
      %v2182 = vld [vmem:[%s2180 + $0x8] sm:$0xff]
      %v2183 = vld [vmem:[%s2180 + $0x10] sm:$0xff]
      %v2184 = vld [vmem:[%s2180 + $0x18] sm:$0xff]
      %s2185 = scalar_lea.vmem %s8, 160
      %v2186 = vld [vmem:[%s2185] sm:$0xff]
      %v2187 = vld [vmem:[%s2185 + $0x8] sm:$0xff]
      %v2188 = vld [vmem:[%s2185 + $0x10] sm:$0xff]
      %v2189 = vld [vmem:[%s2185 + $0x18] sm:$0xff]
      %v2191 = vsel %vm811, %v2177, 0
      %2193 = vmatprep.subr.mxu0 0.0
      %2194 = vmatpush1.msra.mxu0 0.0
      %2195 = vmatprep.subr.mxu0 0.0
      %2196 = vmatpush1.msra.mxu0 0.0
      %2197 = vmatprep.subr.mxu0 0.0
      %2198 = vmatpush1.msra.mxu0 0.0
      %2199 = vmatprep.subr.mxu0 0.0
      %2200 = vmatpush1.msra.mxu0 0.0
      %2201 = vmatprep.subr.mxu0 0.0
      %2202 = vmatpush1.msra.mxu0 0.0
      %2203 = vmatprep.subr.mxu0 0.0
      %2204 = vmatpush1.msra.mxu0 0.0
      %2205 = vmatprep.subr.mxu0 0.0
      %2206 = vmatpush1.msra.mxu0 0.0
      %2207 = vmatprep.subr.mxu0 0.0
      %2208 = vmatpush1.msra.mxu0 0.0
      %2209 = vmatprep.subr.mxu0 0.0
      %2210 = vmatpush1.msra.mxu0 0.0
      %2211 = vmatprep.subr.mxu0 0.0
      %2212 = vmatpush1.msra.mxu0 0.0
      %2213 = vmatprep.subr.mxu0 0.0
      %2214 = vmatpush1.msra.mxu0 0.0
      %2215 = vmatprep.subr.mxu0 0.0
      %2216 = vmatpush1.msra.mxu0 0.0
      %2217 = vmatprep.subr.mxu0 0.0
      %2218 = vmatpush1.msra.mxu0 %v2189
      %2219 = vmatprep.subr.mxu0 0.0
      %2220 = vmatpush1.msra.mxu0 %v2188
      %2221 = vmatprep.subr.mxu0 0.0
      %2222 = vmatpush1.msra.mxu0 %v2187
      %2223 = vmatprep.subr.mxu0 0.0
      %2224 = vmatpush1.msra.mxu0 %v2186
      %2225 = vmatprep.subr.mxu0 0.0
      %2226 = vmatpush2.msra.mxu0 0.0
      %2227 = vmatprep.subr.mxu0 0.0
      %2228 = vmatpush2.msra.mxu0 0.0
      %2229 = vmatprep.subr.mxu0 0.0
      %2230 = vmatpush2.msra.mxu0 0.0
      %2231 = vmatprep.subr.mxu0 0.0
      %2232 = vmatpush2.msra.mxu0 0.0
      %2233 = vmatprep.subr.mxu0 0.0
      %2234 = vmatpush2.msra.mxu0 0.0
      %2235 = vmatprep.subr.mxu0 0.0
      %2236 = vmatpush2.msra.mxu0 0.0
      %2237 = vmatprep.subr.mxu0 0.0
      %2238 = vmatpush2.msra.mxu0 0.0
      %2239 = vmatprep.subr.mxu0 0.0
      %2240 = vmatpush2.msra.mxu0 0.0
      %2241 = vmatprep.subr.mxu0 0.0
      %2242 = vmatpush2.msra.mxu0 0.0
      %2243 = vmatprep.subr.mxu0 0.0
      %2244 = vmatpush2.msra.mxu0 0.0
      %2245 = vmatprep.subr.mxu0 0.0
      %2246 = vmatpush2.msra.mxu0 0.0
      %2247 = vmatprep.subr.mxu0 0.0
      %2248 = vmatpush2.msra.mxu0 0.0
      %2249 = vmatprep.subr.mxu0 0.0
      %2250 = vmatpush2.msra.mxu0 0.0
      %2251 = vmatprep.subr.mxu0 0.0
      %2252 = vmatpush2.msra.mxu0 0.0
      %2253 = vmatprep.subr.mxu0 0.0
      %2254 = vmatpush2.msra.mxu0 0.0
      %2255 = vmatprep.subr.mxu0 0.0
      %2256 = vmatpush2.msra.mxu0 0.0
      %2257 = vmatprep.mubr.f32.mxu0 0.0
      %2258 = vmatmul.mubr.f32.gmra.mxu0 %v2191
      %v2259 = vpop.f32.mrf.mxu0
      %v2260 = vadd.f32 0.0, %v2259
      %v2261 = vpop.f32.mrf.mxu0
      %2262 = vdwg.mxu0
      %2264 = vrot.lane.b32.xlu0 %v2092, 96
      %v2265 = vpop.permute.xlu0 %2264
      %v2266 = vsel %vm811, %v2265, 0
      %2268 = vmatprep.subr.mxu0 0.0
      %2269 = vmatpush1.msra.mxu0 0.0
      %2270 = vmatprep.subr.mxu0 0.0
      %2271 = vmatpush1.msra.mxu0 0.0
      %2272 = vmatprep.subr.mxu0 0.0
      %2273 = vmatpush1.msra.mxu0 0.0
      %2274 = vmatprep.subr.mxu0 0.0
      %2275 = vmatpush1.msra.mxu0 0.0
      %2276 = vmatprep.subr.mxu0 0.0
      %2277 = vmatpush1.msra.mxu0 0.0
      %2278 = vmatprep.subr.mxu0 0.0
      %2279 = vmatpush1.msra.mxu0 0.0
      %2280 = vmatprep.subr.mxu0 0.0
      %2281 = vmatpush1.msra.mxu0 0.0
      %2282 = vmatprep.subr.mxu0 0.0
      %2283 = vmatpush1.msra.mxu0 0.0
      %2284 = vmatprep.subr.mxu0 0.0
      %2285 = vmatpush1.msra.mxu0 0.0
      %2286 = vmatprep.subr.mxu0 0.0
      %2287 = vmatpush1.msra.mxu0 0.0
      %2288 = vmatprep.subr.mxu0 0.0
      %2289 = vmatpush1.msra.mxu0 0.0
      %2290 = vmatprep.subr.mxu0 0.0
      %2291 = vmatpush1.msra.mxu0 0.0
      %2292 = vmatprep.subr.mxu0 0.0
      %2293 = vmatpush1.msra.mxu0 %v2184
      %2294 = vmatprep.subr.mxu0 0.0
      %2295 = vmatpush1.msra.mxu0 %v2183
      %2296 = vmatprep.subr.mxu0 0.0
      %2297 = vmatpush1.msra.mxu0 %v2182
      %2298 = vmatprep.subr.mxu0 0.0
      %2299 = vmatpush1.msra.mxu0 %v2181
      %2300 = vmatprep.subr.mxu0 0.0
      %2301 = vmatpush2.msra.mxu0 0.0
      %2302 = vmatprep.subr.mxu0 0.0
      %2303 = vmatpush2.msra.mxu0 0.0
      %2304 = vmatprep.subr.mxu0 0.0
      %2305 = vmatpush2.msra.mxu0 0.0
      %2306 = vmatprep.subr.mxu0 0.0
      %2307 = vmatpush2.msra.mxu0 0.0
      %2308 = vmatprep.subr.mxu0 0.0
      %2309 = vmatpush2.msra.mxu0 0.0
      %2310 = vmatprep.subr.mxu0 0.0
      %2311 = vmatpush2.msra.mxu0 0.0
      %2312 = vmatprep.subr.mxu0 0.0
      %2313 = vmatpush2.msra.mxu0 0.0
      %2314 = vmatprep.subr.mxu0 0.0
      %2315 = vmatpush2.msra.mxu0 0.0
      %2316 = vmatprep.subr.mxu0 0.0
      %2317 = vmatpush2.msra.mxu0 0.0
      %2318 = vmatprep.subr.mxu0 0.0
      %2319 = vmatpush2.msra.mxu0 0.0
      %2320 = vmatprep.subr.mxu0 0.0
      %2321 = vmatpush2.msra.mxu0 0.0
      %2322 = vmatprep.subr.mxu0 0.0
      %2323 = vmatpush2.msra.mxu0 0.0
      %2324 = vmatprep.subr.mxu0 0.0
      %2325 = vmatpush2.msra.mxu0 0.0
      %2326 = vmatprep.subr.mxu0 0.0
      %2327 = vmatpush2.msra.mxu0 0.0
      %2328 = vmatprep.subr.mxu0 0.0
      %2329 = vmatpush2.msra.mxu0 0.0
      %2330 = vmatprep.subr.mxu0 0.0
      %2331 = vmatpush2.msra.mxu0 0.0
      %2332 = vmatprep.mubr.f32.mxu0 0.0
      %2333 = vmatmul.mubr.f32.gmra.mxu0 %v2266
      %v2334 = vpop.f32.mrf.mxu0
      %v2335 = vadd.f32 %v2260, %v2334
      %v2336 = vpop.f32.mrf.mxu0
      %2337 = vdwg.mxu0
      %s2338 = scalar_lea.vmem %s9, 2
      %v2339 = vld [vmem:[%s2338] sm:$0x1]
      %v2341 = vlaneseq
      %v2342 = vshrl.u32 %v2341, 7
      %v2343 = vsub.s32 0, %v2342
      %v2344 = vrot.slane %v2339, %v2343
      %v2346 = vadd.f32 %v2335, %v2344
      %v2347 = vmax.f32 %v2346, 0.0
      %s2348 = scalar_lea.vmem %s8, 96
      %v2349 = vld [vmem:[%s2348] sm:$0xff]
      %v2350 = vld [vmem:[%s2348 + $0x8] sm:$0xff]
      %v2351 = vld [vmem:[%s2348 + $0x10] sm:$0xff]
      %v2352 = vld [vmem:[%s2348 + $0x18] sm:$0xff]
      %s2353 = scalar_lea.vmem %s9, 3
      %v2354 = vld [vmem:[%s2353] sm:$0x1]
      %v2356 = vlaneseq
      %v2357 = vshrl.u32 %v2356, 7
      %v2358 = vsub.s32 0, %v2357
      %v2359 = vrot.slane %v2354, %v2358
      %v2362 = vsel %vm811, %v2347, 0
      %2364 = vmatprep.subr.mxu0 0.0
      %2365 = vmatpush1.msra.mxu0 0.0
      %2366 = vmatprep.subr.mxu0 0.0
      %2367 = vmatpush1.msra.mxu0 0.0
      %2368 = vmatprep.subr.mxu0 0.0
      %2369 = vmatpush1.msra.mxu0 0.0
      %2370 = vmatprep.subr.mxu0 0.0
      %2371 = vmatpush1.msra.mxu0 0.0
      %2372 = vmatprep.subr.mxu0 0.0
      %2373 = vmatpush1.msra.mxu0 0.0
      %2374 = vmatprep.subr.mxu0 0.0
      %2375 = vmatpush1.msra.mxu0 0.0
      %2376 = vmatprep.subr.mxu0 0.0
      %2377 = vmatpush1.msra.mxu0 0.0
      %2378 = vmatprep.subr.mxu0 0.0
      %2379 = vmatpush1.msra.mxu0 0.0
      %2380 = vmatprep.subr.mxu0 0.0
      %2381 = vmatpush1.msra.mxu0 0.0
      %2382 = vmatprep.subr.mxu0 0.0
      %2383 = vmatpush1.msra.mxu0 0.0
      %2384 = vmatprep.subr.mxu0 0.0
      %2385 = vmatpush1.msra.mxu0 0.0
      %2386 = vmatprep.subr.mxu0 0.0
      %2387 = vmatpush1.msra.mxu0 0.0
      %2388 = vmatprep.subr.mxu0 0.0
      %2389 = vmatpush1.msra.mxu0 %v2352
      %2390 = vmatprep.subr.mxu0 0.0
      %2391 = vmatpush1.msra.mxu0 %v2351
      %2392 = vmatprep.subr.mxu0 0.0
      %2393 = vmatpush1.msra.mxu0 %v2350
      %2394 = vmatprep.subr.mxu0 0.0
      %2395 = vmatpush1.msra.mxu0 %v2349
      %2396 = vmatprep.subr.mxu0 0.0
      %2397 = vmatpush2.msra.mxu0 0.0
      %2398 = vmatprep.subr.mxu0 0.0
      %2399 = vmatpush2.msra.mxu0 0.0
      %2400 = vmatprep.subr.mxu0 0.0
      %2401 = vmatpush2.msra.mxu0 0.0
      %2402 = vmatprep.subr.mxu0 0.0
      %2403 = vmatpush2.msra.mxu0 0.0
      %2404 = vmatprep.subr.mxu0 0.0
      %2405 = vmatpush2.msra.mxu0 0.0
      %2406 = vmatprep.subr.mxu0 0.0
      %2407 = vmatpush2.msra.mxu0 0.0
      %2408 = vmatprep.subr.mxu0 0.0
      %2409 = vmatpush2.msra.mxu0 0.0
      %2410 = vmatprep.subr.mxu0 0.0
      %2411 = vmatpush2.msra.mxu0 0.0
      %2412 = vmatprep.subr.mxu0 0.0
      %2413 = vmatpush2.msra.mxu0 0.0
      %2414 = vmatprep.subr.mxu0 0.0
      %2415 = vmatpush2.msra.mxu0 0.0
      %2416 = vmatprep.subr.mxu0 0.0
      %2417 = vmatpush2.msra.mxu0 0.0
      %2418 = vmatprep.subr.mxu0 0.0
      %2419 = vmatpush2.msra.mxu0 0.0
      %2420 = vmatprep.subr.mxu0 0.0
      %2421 = vmatpush2.msra.mxu0 0.0
      %2422 = vmatprep.subr.mxu0 0.0
      %2423 = vmatpush2.msra.mxu0 0.0
      %2424 = vmatprep.subr.mxu0 0.0
      %2425 = vmatpush2.msra.mxu0 0.0
      %2426 = vmatprep.subr.mxu0 0.0
      %2427 = vmatpush2.msra.mxu0 0.0
      %2428 = vmatprep.mubr.f32.mxu0 0.0
      %2429 = vmatmul.mubr.f32.gmra.mxu0 %v2362
      %v2430 = vpop.f32.mrf.mxu0
      %v2431 = vadd.f32 %v2359, %v2430
      %v2432 = vpop.f32.mrf.mxu0
      %2433 = vdwg.mxu0
      %v2434 = vld [vmem:[#allocation4] sm:$0xff]
      %v2435 = vld [vmem:[#allocation4 + $0x8] sm:$0xff]
      %v2436 = vld [vmem:[#allocation4 + $0x10] sm:$0xff]
      %v2437 = vld [vmem:[#allocation4 + $0x18] sm:$0xff]
      %v2438 = vld [vmem:[#allocation4 + $0x20] sm:$0xff]
      %v2439 = vld [vmem:[#allocation4 + $0x28] sm:$0xff]
      %v2440 = vld [vmem:[#allocation4 + $0x30] sm:$0xff]
      %v2441 = vld [vmem:[#allocation4 + $0x38] sm:$0xff]
      %v2442 = vld [vmem:[%s8] sm:$0xff]
      %v2443 = vld [vmem:[%s8 + $0x8] sm:$0xff]
      %v2444 = vld [vmem:[%s8 + $0x10] sm:$0xff]
      %v2445 = vld [vmem:[%s8 + $0x18] sm:$0xff]
      %v2446 = vld [vmem:[%s9] sm:$0x1]
      %v2448 = vlaneseq
      %v2449 = vshrl.u32 %v2448, 7
      %v2450 = vsub.s32 0, %v2449
      %v2451 = vrot.slane %v2446, %v2450
      %v2454 = vsel %vm811, %v2434, 0
      %v2457 = vsel %vm811, %v2435, 0
      %v2460 = vsel %vm811, %v2436, 0
      %v2463 = vsel %vm811, %v2437, 0
      %v2466 = vsel %vm811, %v2438, 0
      %v2469 = vsel %vm811, %v2439, 0
      %v2472 = vsel %vm811, %v2440, 0
      %v2475 = vsel %vm811, %v2441, 0
      %2477 = vmatprep.subr.mxu0 0.0
      %2478 = vmatpush1.msra.mxu0 0.0
      %2479 = vmatprep.subr.mxu0 0.0
      %2480 = vmatpush1.msra.mxu0 0.0
      %2481 = vmatprep.subr.mxu0 0.0
      %2482 = vmatpush1.msra.mxu0 0.0
      %2483 = vmatprep.subr.mxu0 0.0
      %2484 = vmatpush1.msra.mxu0 0.0
      %2485 = vmatprep.subr.mxu0 0.0
      %2486 = vmatpush1.msra.mxu0 0.0
      %2487 = vmatprep.subr.mxu0 0.0
      %2488 = vmatpush1.msra.mxu0 0.0
      %2489 = vmatprep.subr.mxu0 0.0
      %2490 = vmatpush1.msra.mxu0 0.0
      %2491 = vmatprep.subr.mxu0 0.0
      %2492 = vmatpush1.msra.mxu0 0.0
      %2493 = vmatprep.subr.mxu0 0.0
      %2494 = vmatpush1.msra.mxu0 0.0
      %2495 = vmatprep.subr.mxu0 0.0
      %2496 = vmatpush1.msra.mxu0 0.0
      %2497 = vmatprep.subr.mxu0 0.0
      %2498 = vmatpush1.msra.mxu0 0.0
      %2499 = vmatprep.subr.mxu0 0.0
      %2500 = vmatpush1.msra.mxu0 0.0
      %2501 = vmatprep.subr.mxu0 0.0
      %2502 = vmatpush1.msra.mxu0 %v2445
      %2503 = vmatprep.subr.mxu0 0.0
      %2504 = vmatpush1.msra.mxu0 %v2444
      %2505 = vmatprep.subr.mxu0 0.0
      %2506 = vmatpush1.msra.mxu0 %v2443
      %2507 = vmatprep.subr.mxu0 0.0
      %2508 = vmatpush1.msra.mxu0 %v2442
      %2509 = vmatprep.subr.mxu0 0.0
      %2510 = vmatpush2.msra.mxu0 0.0
      %2511 = vmatprep.subr.mxu0 0.0
      %2512 = vmatpush2.msra.mxu0 0.0
      %2513 = vmatprep.subr.mxu0 0.0
      %2514 = vmatpush2.msra.mxu0 0.0
      %2515 = vmatprep.subr.mxu0 0.0
      %2516 = vmatpush2.msra.mxu0 0.0
      %2517 = vmatprep.subr.mxu0 0.0
      %2518 = vmatpush2.msra.mxu0 0.0
      %2519 = vmatprep.subr.mxu0 0.0
      %2520 = vmatpush2.msra.mxu0 0.0
      %2521 = vmatprep.subr.mxu0 0.0
      %2522 = vmatpush2.msra.mxu0 0.0
      %2523 = vmatprep.subr.mxu0 0.0
      %2524 = vmatpush2.msra.mxu0 0.0
      %2525 = vmatprep.subr.mxu0 0.0
      %2526 = vmatpush2.msra.mxu0 0.0
      %2527 = vmatprep.subr.mxu0 0.0
      %2528 = vmatpush2.msra.mxu0 0.0
      %2529 = vmatprep.subr.mxu0 0.0
      %2530 = vmatpush2.msra.mxu0 0.0
      %2531 = vmatprep.subr.mxu0 0.0
      %2532 = vmatpush2.msra.mxu0 0.0
      %2533 = vmatprep.subr.mxu0 0.0
      %2534 = vmatpush2.msra.mxu0 0.0
      %2535 = vmatprep.subr.mxu0 0.0
      %2536 = vmatpush2.msra.mxu0 0.0
      %2537 = vmatprep.subr.mxu0 0.0
      %2538 = vmatpush2.msra.mxu0 0.0
      %2539 = vmatprep.subr.mxu0 0.0
      %2540 = vmatpush2.msra.mxu0 0.0
      %2541 = vmatprep.mubr.f32.mxu0 0.0
      %2542 = vmatmul.mubr.f32.gmra.mxu0 %v2454
      %v2543 = vpop.f32.mrf.mxu0
      %v2544 = vadd.f32 %v2451, %v2543
      %v2545 = vpop.f32.mrf.mxu0
      %2546 = vmatprep.mubr.f32.mxu0 0.0
      %2547 = vmatmul.mubr.f32.gmra.mxu0 %v2457
      %v2548 = vpop.f32.mrf.mxu0
      %v2549 = vadd.f32 %v2451, %v2548
      %v2550 = vpop.f32.mrf.mxu0
      %2551 = vmatprep.mubr.f32.mxu0 0.0
      %2552 = vmatmul.mubr.f32.gmra.mxu0 %v2460
      %v2553 = vpop.f32.mrf.mxu0
      %v2554 = vadd.f32 %v2451, %v2553
      %v2555 = vpop.f32.mrf.mxu0
      %2556 = vmatprep.mubr.f32.mxu0 0.0
      %2557 = vmatmul.mubr.f32.gmra.mxu0 %v2463
      %v2558 = vpop.f32.mrf.mxu0
      %v2559 = vadd.f32 %v2451, %v2558
      %v2560 = vpop.f32.mrf.mxu0
      %2561 = vmatprep.mubr.f32.mxu0 0.0
      %2562 = vmatmul.mubr.f32.gmra.mxu0 %v2466
      %v2563 = vpop.f32.mrf.mxu0
      %v2564 = vadd.f32 %v2451, %v2563
      %v2565 = vpop.f32.mrf.mxu0
      %2566 = vmatprep.mubr.f32.mxu0 0.0
      %2567 = vmatmul.mubr.f32.gmra.mxu0 %v2469
      %v2568 = vpop.f32.mrf.mxu0
      %v2569 = vadd.f32 %v2451, %v2568
      %v2570 = vpop.f32.mrf.mxu0
      %2571 = vmatprep.mubr.f32.mxu0 0.0
      %2572 = vmatmul.mubr.f32.gmra.mxu0 %v2472
      %v2573 = vpop.f32.mrf.mxu0
      %v2574 = vadd.f32 %v2451, %v2573
      %v2575 = vpop.f32.mrf.mxu0
      %2576 = vmatprep.mubr.f32.mxu0 0.0
      %2577 = vmatmul.mubr.f32.gmra.mxu0 %v2475
      %v2578 = vpop.f32.mrf.mxu0
      %v2579 = vadd.f32 %v2451, %v2578
      %v2580 = vpop.f32.mrf.mxu0
      %2581 = vdwg.mxu0
      %2582 = vst.msk [vmem:[#allocation5] sm:$0xff] %vm811, %v2544
      %2583 = vst.msk [vmem:[#allocation5 + $0x8] sm:$0xff] %vm811, %v2549
      %2584 = vst.msk [vmem:[#allocation5 + $0x10] sm:$0xff] %vm811, %v2554
      %2585 = vst.msk [vmem:[#allocation5 + $0x18] sm:$0xff] %vm811, %v2559
      %2586 = vst.msk [vmem:[#allocation5 + $0x20] sm:$0xff] %vm811, %v2564
      %2587 = vst.msk [vmem:[#allocation5 + $0x28] sm:$0xff] %vm811, %v2569
      %2588 = vst.msk [vmem:[#allocation5 + $0x30] sm:$0xff] %vm811, %v2574
      %2589 = vst.msk [vmem:[#allocation5 + $0x38] sm:$0xff] %vm811, %v2579
      %s2590 = scalar_lea.vmem %s8, 32
      %v2591 = vld [vmem:[%s2590] sm:$0xff]
      %v2592 = vld [vmem:[%s2590 + $0x8] sm:$0xff]
      %v2593 = vld [vmem:[%s2590 + $0x10] sm:$0xff]
      %v2594 = vld [vmem:[%s2590 + $0x18] sm:$0xff]
      %s2595 = scalar_lea.vmem %s9, 1
      %v2596 = vld [vmem:[%s2595] sm:$0x1]
      %v2598 = vlaneseq
      %v2599 = vshrl.u32 %v2598, 7
      %v2600 = vsub.s32 0, %v2599
      %v2601 = vrot.slane %v2596, %v2600
      %2603 = vmatprep.subr.mxu0 0.0
      %2604 = vmatpush1.msra.mxu0 0.0
      %2605 = vmatprep.subr.mxu0 0.0
      %2606 = vmatpush1.msra.mxu0 0.0
      %2607 = vmatprep.subr.mxu0 0.0
      %2608 = vmatpush1.msra.mxu0 0.0
      %2609 = vmatprep.subr.mxu0 0.0
      %2610 = vmatpush1.msra.mxu0 0.0
      %2611 = vmatprep.subr.mxu0 0.0
      %2612 = vmatpush1.msra.mxu0 0.0
      %2613 = vmatprep.subr.mxu0 0.0
      %2614 = vmatpush1.msra.mxu0 0.0
      %2615 = vmatprep.subr.mxu0 0.0
      %2616 = vmatpush1.msra.mxu0 0.0
      %2617 = vmatprep.subr.mxu0 0.0
      %2618 = vmatpush1.msra.mxu0 0.0
      %2619 = vmatprep.subr.mxu0 0.0
      %2620 = vmatpush1.msra.mxu0 0.0
      %2621 = vmatprep.subr.mxu0 0.0
      %2622 = vmatpush1.msra.mxu0 0.0
      %2623 = vmatprep.subr.mxu0 0.0
      %2624 = vmatpush1.msra.mxu0 0.0
      %2625 = vmatprep.subr.mxu0 0.0
      %2626 = vmatpush1.msra.mxu0 0.0
      %2627 = vmatprep.subr.mxu0 0.0
      %2628 = vmatpush1.msra.mxu0 %v2594
      %2629 = vmatprep.subr.mxu0 0.0
      %2630 = vmatpush1.msra.mxu0 %v2593
      %2631 = vmatprep.subr.mxu0 0.0
      %2632 = vmatpush1.msra.mxu0 %v2592
      %2633 = vmatprep.subr.mxu0 0.0
      %2634 = vmatpush1.msra.mxu0 %v2591
      %2635 = vmatprep.subr.mxu0 0.0
      %2636 = vmatpush2.msra.mxu0 0.0
      %2637 = vmatprep.subr.mxu0 0.0
      %2638 = vmatpush2.msra.mxu0 0.0
      %2639 = vmatprep.subr.mxu0 0.0
      %2640 = vmatpush2.msra.mxu0 0.0
      %2641 = vmatprep.subr.mxu0 0.0
      %2642 = vmatpush2.msra.mxu0 0.0
      %2643 = vmatprep.subr.mxu0 0.0
      %2644 = vmatpush2.msra.mxu0 0.0
      %2645 = vmatprep.subr.mxu0 0.0
      %2646 = vmatpush2.msra.mxu0 0.0
      %2647 = vmatprep.subr.mxu0 0.0
      %2648 = vmatpush2.msra.mxu0 0.0
      %2649 = vmatprep.subr.mxu0 0.0
      %2650 = vmatpush2.msra.mxu0 0.0
      %2651 = vmatprep.subr.mxu0 0.0
      %2652 = vmatpush2.msra.mxu0 0.0
      %2653 = vmatprep.subr.mxu0 0.0
      %2654 = vmatpush2.msra.mxu0 0.0
      %2655 = vmatprep.subr.mxu0 0.0
      %2656 = vmatpush2.msra.mxu0 0.0
      %2657 = vmatprep.subr.mxu0 0.0
      %2658 = vmatpush2.msra.mxu0 0.0
      %2659 = vmatprep.subr.mxu0 0.0
      %2660 = vmatpush2.msra.mxu0 0.0
      %2661 = vmatprep.subr.mxu0 0.0
      %2662 = vmatpush2.msra.mxu0 0.0
      %2663 = vmatprep.subr.mxu0 0.0
      %2664 = vmatpush2.msra.mxu0 0.0
      %2665 = vmatprep.subr.mxu0 0.0
      %2666 = vmatpush2.msra.mxu0 0.0
      %2667 = vmatprep.mubr.f32.mxu0 0.0
      %2668 = vmatmul.mubr.f32.gmra.mxu0 %v2454
      %v2669 = vpop.f32.mrf.mxu0
      %v2670 = vadd.f32 %v2601, %v2669
      %v2671 = vpop.f32.mrf.mxu0
      %2672 = vmatprep.mubr.f32.mxu0 0.0
      %2673 = vmatmul.mubr.f32.gmra.mxu0 %v2457
      %v2674 = vpop.f32.mrf.mxu0
      %v2675 = vadd.f32 %v2601, %v2674
      %v2676 = vpop.f32.mrf.mxu0
      %2677 = vmatprep.mubr.f32.mxu0 0.0
      %2678 = vmatmul.mubr.f32.gmra.mxu0 %v2460
      %v2679 = vpop.f32.mrf.mxu0
      %v2680 = vadd.f32 %v2601, %v2679
      %v2681 = vpop.f32.mrf.mxu0
      %2682 = vmatprep.mubr.f32.mxu0 0.0
      %2683 = vmatmul.mubr.f32.gmra.mxu0 %v2463
      %v2684 = vpop.f32.mrf.mxu0
      %v2685 = vadd.f32 %v2601, %v2684
      %v2686 = vpop.f32.mrf.mxu0
      %2687 = vmatprep.mubr.f32.mxu0 0.0
      %2688 = vmatmul.mubr.f32.gmra.mxu0 %v2466
      %v2689 = vpop.f32.mrf.mxu0
      %v2690 = vadd.f32 %v2601, %v2689
      %v2691 = vpop.f32.mrf.mxu0
      %2692 = vmatprep.mubr.f32.mxu0 0.0
      %2693 = vmatmul.mubr.f32.gmra.mxu0 %v2469
      %v2694 = vpop.f32.mrf.mxu0
      %v2695 = vadd.f32 %v2601, %v2694
      %v2696 = vpop.f32.mrf.mxu0
      %2697 = vmatprep.mubr.f32.mxu0 0.0
      %2698 = vmatmul.mubr.f32.gmra.mxu0 %v2472
      %v2699 = vpop.f32.mrf.mxu0
      %v2700 = vadd.f32 %v2601, %v2699
      %v2701 = vpop.f32.mrf.mxu0
      %2702 = vmatprep.mubr.f32.mxu0 0.0
      %2703 = vmatmul.mubr.f32.gmra.mxu0 %v2475
      %v2704 = vpop.f32.mrf.mxu0
      %v2705 = vadd.f32 %v2601, %v2704
      %v2706 = vpop.f32.mrf.mxu0
      %2707 = vdwg.mxu0
      %2708 = vst.msk [vmem:[#allocation6] sm:$0xff] %vm811, %v2670
      %2709 = vst.msk [vmem:[#allocation6 + $0x8] sm:$0xff] %vm811, %v2675
      %2710 = vst.msk [vmem:[#allocation6 + $0x10] sm:$0xff] %vm811, %v2680
      %2711 = vst.msk [vmem:[#allocation6 + $0x18] sm:$0xff] %vm811, %v2685
      %2712 = vst.msk [vmem:[#allocation6 + $0x20] sm:$0xff] %vm811, %v2690
      %2713 = vst.msk [vmem:[#allocation6 + $0x28] sm:$0xff] %vm811, %v2695
      %2714 = vst.msk [vmem:[#allocation6 + $0x30] sm:$0xff] %vm811, %v2700
      %2715 = vst.msk [vmem:[#allocation6 + $0x38] sm:$0xff] %vm811, %v2705
      %v2716 = vld [vmem:[#allocation3] sm:$0xff]
      %v2718 = vlaneseq
      %v2719 = vshrl.u32 %v2718, 7
      %v2720 = vsub.s32 0, %v2719
      %v2721 = vrot.slane %v1095, %v2720
      %v2724 = vsel %vm811, %v2431, 0
      %2726 = vmatprep.subr.mxu0 0.0
      %2727 = vmatpush1.msra.mxu0 0.0
      %2728 = vmatprep.subr.mxu0 0.0
      %2729 = vmatpush1.msra.mxu0 0.0
      %2730 = vmatprep.subr.mxu0 0.0
      %2731 = vmatpush1.msra.mxu0 0.0
      %2732 = vmatprep.subr.mxu0 0.0
      %2733 = vmatpush1.msra.mxu0 0.0
      %2734 = vmatprep.subr.mxu0 0.0
      %2735 = vmatpush1.msra.mxu0 0.0
      %2736 = vmatprep.subr.mxu0 0.0
      %2737 = vmatpush1.msra.mxu0 0.0
      %2738 = vmatprep.subr.mxu0 0.0
      %2739 = vmatpush1.msra.mxu0 0.0
      %2740 = vmatprep.subr.mxu0 0.0
      %2741 = vmatpush1.msra.mxu0 0.0
      %2742 = vmatprep.subr.mxu0 0.0
      %2743 = vmatpush1.msra.mxu0 0.0
      %2744 = vmatprep.subr.mxu0 0.0
      %2745 = vmatpush1.msra.mxu0 0.0
      %2746 = vmatprep.subr.mxu0 0.0
      %2747 = vmatpush1.msra.mxu0 0.0
      %2748 = vmatprep.subr.mxu0 0.0
      %2749 = vmatpush1.msra.mxu0 0.0
      %2750 = vmatprep.subr.mxu0 0.0
      %2751 = vmatpush1.msra.mxu0 %v1093
      %2752 = vmatprep.subr.mxu0 0.0
      %2753 = vmatpush1.msra.mxu0 %v1092
      %2754 = vmatprep.subr.mxu0 0.0
      %2755 = vmatpush1.msra.mxu0 %v1091
      %2756 = vmatprep.subr.mxu0 0.0
      %2757 = vmatpush1.msra.mxu0 %v1090
      %2758 = vmatprep.subr.mxu0 0.0
      %2759 = vmatpush2.msra.mxu0 0.0
      %2760 = vmatprep.subr.mxu0 0.0
      %2761 = vmatpush2.msra.mxu0 0.0
      %2762 = vmatprep.subr.mxu0 0.0
      %2763 = vmatpush2.msra.mxu0 0.0
      %2764 = vmatprep.subr.mxu0 0.0
      %2765 = vmatpush2.msra.mxu0 0.0
      %2766 = vmatprep.subr.mxu0 0.0
      %2767 = vmatpush2.msra.mxu0 0.0
      %2768 = vmatprep.subr.mxu0 0.0
      %2769 = vmatpush2.msra.mxu0 0.0
      %2770 = vmatprep.subr.mxu0 0.0
      %2771 = vmatpush2.msra.mxu0 0.0
      %2772 = vmatprep.subr.mxu0 0.0
      %2773 = vmatpush2.msra.mxu0 0.0
      %2774 = vmatprep.subr.mxu0 0.0
      %2775 = vmatpush2.msra.mxu0 0.0
      %2776 = vmatprep.subr.mxu0 0.0
      %2777 = vmatpush2.msra.mxu0 0.0
      %2778 = vmatprep.subr.mxu0 0.0
      %2779 = vmatpush2.msra.mxu0 0.0
      %2780 = vmatprep.subr.mxu0 0.0
      %2781 = vmatpush2.msra.mxu0 0.0
      %2782 = vmatprep.subr.mxu0 0.0
      %2783 = vmatpush2.msra.mxu0 0.0
      %2784 = vmatprep.subr.mxu0 0.0
      %2785 = vmatpush2.msra.mxu0 0.0
      %2786 = vmatprep.subr.mxu0 0.0
      %2787 = vmatpush2.msra.mxu0 0.0
      %2788 = vmatprep.subr.mxu0 0.0
      %2789 = vmatpush2.msra.mxu0 0.0
      %2790 = vmatprep.mubr.f32.mxu0 0.0
      %2791 = vmatmul.mubr.f32.gmra.mxu0 %v2724
      %v2792 = vpop.f32.mrf.mxu0
      %v2793 = vadd.f32 %v2721, %v2792
      %v2794 = vpop.f32.mrf.mxu0
      %2795 = vdwg.mxu0
      %v2796 = vadd.f32 %v2716, %v2793
      %v2797 = vxor.u32 %v2796, 2147483648
      %v2798 = vmul.f32 %v2797, 1.442695
      %v2799 = vpow.pop %v2798
      %v2800 = vadd.f32 %v2799, 1.0
      %v2801 = vrcp.pop %v2800
      %v2802 = vmul.f32 1.0, %v2801
      %2804 = vrot.lane.b32.xlu0 %v2793, 64
      %v2805 = vpop.permute.xlu0 %2804
      %v2807 = vmul.f32 %v2802, %v2805
      %2809 = vrot.lane.b32.xlu0 %v2807, 64
      %v2810 = vpop.permute.xlu0 %2809
      %v2812 = vadd.f32 %v2716, %v2810
      %v2813 = vtanh.pop %v2812
      %v2814 = vsub.f32 1.0, %v2802
      %2816 = vrot.lane.b32.xlu0 %v2813, 96
      %v2817 = vpop.permute.xlu0 %2816
      %v2819 = vmul.f32 %v2814, %v2817
      %2820 = vrot.lane.b32.xlu0 %v2431, 32
      %v2821 = vpop.permute.xlu0 %2820
      %v2823 = vmul.f32 %v2802, %v2821
      %v2824 = vadd.f32 %v2819, %v2823
      %v2825 = vld [vmem:[#allocation5] sm:$0xff]
      %v2826 = vld [vmem:[#allocation5 + $0x8] sm:$0xff]
      %v2827 = vld [vmem:[#allocation5 + $0x10] sm:$0xff]
      %v2828 = vld [vmem:[#allocation5 + $0x18] sm:$0xff]
      %v2829 = vld [vmem:[#allocation5 + $0x20] sm:$0xff]
      %v2830 = vld [vmem:[#allocation5 + $0x28] sm:$0xff]
      %v2831 = vld [vmem:[#allocation5 + $0x30] sm:$0xff]
      %v2832 = vld [vmem:[#allocation5 + $0x38] sm:$0xff]
      %2841 = vrot.lane.b32.xlu0 %v2825, 32
      %v2842 = vpop.permute.xlu0 %2841
      %2843 = vrot.lane.b32.xlu0 %v2826, 32
      %v2844 = vpop.permute.xlu0 %2843
      %2845 = vrot.lane.b32.xlu0 %v2827, 32
      %v2846 = vpop.permute.xlu0 %2845
      %2847 = vrot.lane.b32.xlu0 %v2828, 32
      %v2848 = vpop.permute.xlu0 %2847
      %2849 = vrot.lane.b32.xlu0 %v2829, 32
      %v2850 = vpop.permute.xlu0 %2849
      %2851 = vrot.lane.b32.xlu0 %v2830, 32
      %v2852 = vpop.permute.xlu0 %2851
      %2853 = vrot.lane.b32.xlu0 %v2831, 32
      %v2854 = vpop.permute.xlu0 %2853
      %2855 = vrot.lane.b32.xlu0 %v2832, 32
      %v2856 = vpop.permute.xlu0 %2855
      %v2865 = vmul.f32 %v2824, %v2842
      %v2866 = vmul.f32 %v2824, %v2844
      %v2867 = vmul.f32 %v2824, %v2846
      %v2868 = vmul.f32 %v2824, %v2848
      %v2869 = vmul.f32 %v2824, %v2850
      %v2870 = vmul.f32 %v2824, %v2852
      %v2871 = vmul.f32 %v2824, %v2854
      %v2872 = vmul.f32 %v2824, %v2856
      %2881 = vrot.lane.b32.xlu0 %v2865, 96
      %v2882 = vpop.permute.xlu0 %2881
      %2883 = vrot.lane.b32.xlu0 %v2866, 96
      %v2884 = vpop.permute.xlu0 %2883
      %2885 = vrot.lane.b32.xlu0 %v2867, 96
      %v2886 = vpop.permute.xlu0 %2885
      %2887 = vrot.lane.b32.xlu0 %v2868, 96
      %v2888 = vpop.permute.xlu0 %2887
      %2889 = vrot.lane.b32.xlu0 %v2869, 96
      %v2890 = vpop.permute.xlu0 %2889
      %2891 = vrot.lane.b32.xlu0 %v2870, 96
      %v2892 = vpop.permute.xlu0 %2891
      %2893 = vrot.lane.b32.xlu0 %v2871, 96
      %v2894 = vpop.permute.xlu0 %2893
      %2895 = vrot.lane.b32.xlu0 %v2872, 96
      %v2896 = vpop.permute.xlu0 %2895
      %v2905 = vsel %vm811, %v2882, 0.0
      %2906 = vadd.xlane.f32.xlu0 %v2905
      %v2907 = vpop.xlane.xlu0 %2906
      %v2908 = vsel %vm811, %v2884, 0.0
      %2909 = vadd.xlane.f32.xlu0 %v2908
      %v2910 = vpop.xlane.xlu0 %2909
      %v2911 = vsel %vm811, %v2886, 0.0
      %2912 = vadd.xlane.f32.xlu0 %v2911
      %v2913 = vpop.xlane.xlu0 %2912
      %v2914 = vsel %vm811, %v2888, 0.0
      %2915 = vadd.xlane.f32.xlu0 %v2914
      %v2916 = vpop.xlane.xlu0 %2915
      %v2917 = vsel %vm811, %v2890, 0.0
      %2918 = vadd.xlane.f32.xlu0 %v2917
      %v2919 = vpop.xlane.xlu0 %2918
      %v2920 = vsel %vm811, %v2892, 0.0
      %2921 = vadd.xlane.f32.xlu0 %v2920
      %v2922 = vpop.xlane.xlu0 %2921
      %v2923 = vsel %vm811, %v2894, 0.0
      %2924 = vadd.xlane.f32.xlu0 %v2923
      %v2925 = vpop.xlane.xlu0 %2924
      %v2926 = vsel %vm811, %v2896, 0.0
      %2927 = vadd.xlane.f32.xlu0 %v2926
      %v2928 = vpop.xlane.xlu0 %2927
      %v2929 = vmax.f32 %v2907, %v2910
      %v2930 = vmax.f32 %v2929, %v2913
      %v2931 = vmax.f32 %v2930, %v2916
      %v2932 = vmax.f32 %v2931, %v2919
      %v2933 = vmax.f32 %v2932, %v2922
      %v2934 = vmax.f32 %v2933, %v2925
      %v2935 = vmax.f32 %v2934, %v2928
      %v2936 = vsub.f32 %v2907, %v2935
      %v2937 = vsub.f32 %v2910, %v2935
      %v2938 = vsub.f32 %v2913, %v2935
      %v2939 = vsub.f32 %v2916, %v2935
      %v2940 = vsub.f32 %v2919, %v2935
      %v2941 = vsub.f32 %v2922, %v2935
      %v2942 = vsub.f32 %v2925, %v2935
      %v2943 = vsub.f32 %v2928, %v2935
      %v2944 = vmul.f32 %v2936, 1.442695
      %v2945 = vpow.pop %v2944
      %v2946 = vmul.f32 %v2937, 1.442695
      %v2947 = vpow.pop %v2946
      %v2948 = vmul.f32 %v2938, 1.442695
      %v2949 = vpow.pop %v2948
      %v2950 = vmul.f32 %v2939, 1.442695
      %v2951 = vpow.pop %v2950
      %v2952 = vmul.f32 %v2940, 1.442695
      %v2953 = vpow.pop %v2952
      %v2954 = vmul.f32 %v2941, 1.442695
      %v2955 = vpow.pop %v2954
      %v2956 = vmul.f32 %v2942, 1.442695
      %v2957 = vpow.pop %v2956
      %v2958 = vmul.f32 %v2943, 1.442695
      %v2959 = vpow.pop %v2958
      %v2960 = vld [vmem:[#allocation6] sm:$0xff]
      %v2961 = vld [vmem:[#allocation6 + $0x8] sm:$0xff]
      %v2962 = vld [vmem:[#allocation6 + $0x10] sm:$0xff]
      %v2963 = vld [vmem:[#allocation6 + $0x18] sm:$0xff]
      %v2964 = vld [vmem:[#allocation6 + $0x20] sm:$0xff]
      %v2965 = vld [vmem:[#allocation6 + $0x28] sm:$0xff]
      %v2966 = vld [vmem:[#allocation6 + $0x30] sm:$0xff]
      %v2967 = vld [vmem:[#allocation6 + $0x38] sm:$0xff]
      %2969 = vset.pattern.permute.xlu0 0
      %2970 = vperm.xlu0 %2969, %v2945
      %v2971 = vpop.permute.xlu0 %2970
      %2974 = vset.pattern.permute.xlu0 0
      %2975 = vperm.xlu0 %2974, %v2947
      %v2976 = vpop.permute.xlu0 %2975
      %2979 = vset.pattern.permute.xlu0 0
      %2980 = vperm.xlu0 %2979, %v2949
      %v2981 = vpop.permute.xlu0 %2980
      %2984 = vset.pattern.permute.xlu0 0
      %2985 = vperm.xlu0 %2984, %v2951
      %v2986 = vpop.permute.xlu0 %2985
      %2989 = vset.pattern.permute.xlu0 0
      %2990 = vperm.xlu0 %2989, %v2953
      %v2991 = vpop.permute.xlu0 %2990
      %2994 = vset.pattern.permute.xlu0 0
      %2995 = vperm.xlu0 %2994, %v2955
      %v2996 = vpop.permute.xlu0 %2995
      %2999 = vset.pattern.permute.xlu0 0
      %3000 = vperm.xlu0 %2999, %v2957
      %v3001 = vpop.permute.xlu0 %3000
      %3004 = vset.pattern.permute.xlu0 0
      %3005 = vperm.xlu0 %3004, %v2959
      %v3006 = vpop.permute.xlu0 %3005
      %v3008 = vmul.f32 %v2971, %v2960
      %v3009 = vmul.f32 %v2976, %v2961
      %v3010 = vmul.f32 %v2981, %v2962
      %v3011 = vmul.f32 %v2986, %v2963
      %v3012 = vmul.f32 %v2991, %v2964
      %v3013 = vmul.f32 %v2996, %v2965
      %v3014 = vmul.f32 %v3001, %v2966
      %v3015 = vmul.f32 %v3006, %v2967
      %v3016 = vadd.f32 %v3008, %v3009
      %v3017 = vadd.f32 %v2945, %v2947
      %v3018 = vadd.f32 %v3016, %v3010
      %v3019 = vadd.f32 %v3017, %v2949
      %v3020 = vadd.f32 %v3018, %v3011
      %v3021 = vadd.f32 %v3019, %v2951
      %v3022 = vadd.f32 %v3020, %v3012
      %v3023 = vadd.f32 %v3021, %v2953
      %v3024 = vadd.f32 %v3022, %v3013
      %v3025 = vadd.f32 %v3023, %v2955
      %v3026 = vadd.f32 %v3024, %v3014
      %v3027 = vadd.f32 %v3025, %v2957
      %v3028 = vadd.f32 %v3026, %v3015
      %v3029 = vadd.f32 %v3027, %v2959
      %v3030 = vrcp.pop %v3029
      %3032 = vset.pattern.permute.xlu0 0
      %3033 = vperm.xlu0 %3032, %v3030
      %v3034 = vpop.permute.xlu0 %3033
      %v3036 = vmul.f32 %v3028, %v3034
      %3038 = vrot.lane.b32.xlu0 %v2824, 96
      %v3039 = vpop.permute.xlu0 %3038
      %3041 = vst.msk [vmem:[#allocation7] sm:$0xff] %vm811, %v3039
      %3043 = vrot.lane.b32.xlu0 %v3036, 32
      %v3044 = vpop.permute.xlu0 %3043
      %vm3046 = vcmask 523520
      %3047 = vst.msk [vmem:[#allocation7] sm:$0xff] %vm3046, %v3044
      %v3048 = vld [vmem:[#allocation3 + $0x8] sm:$0xff]
      %v3049 = vsel %vm811, %v3039, 0
      %3051 = vmatprep.subr.mxu0 0.0
      %3052 = vmatpush1.msra.mxu0 0.0
      %3053 = vmatprep.subr.mxu0 0.0
      %3054 = vmatpush1.msra.mxu0 0.0
      %3055 = vmatprep.subr.mxu0 0.0
      %3056 = vmatpush1.msra.mxu0 0.0
      %3057 = vmatprep.subr.mxu0 0.0
      %3058 = vmatpush1.msra.mxu0 0.0
      %3059 = vmatprep.subr.mxu0 0.0
      %3060 = vmatpush1.msra.mxu0 0.0
      %3061 = vmatprep.subr.mxu0 0.0
      %3062 = vmatpush1.msra.mxu0 0.0
      %3063 = vmatprep.subr.mxu0 0.0
      %3064 = vmatpush1.msra.mxu0 0.0
      %3065 = vmatprep.subr.mxu0 0.0
      %3066 = vmatpush1.msra.mxu0 0.0
      %3067 = vmatprep.subr.mxu0 0.0
      %3068 = vmatpush1.msra.mxu0 0.0
      %3069 = vmatprep.subr.mxu0 0.0
      %3070 = vmatpush1.msra.mxu0 0.0
      %3071 = vmatprep.subr.mxu0 0.0
      %3072 = vmatpush1.msra.mxu0 0.0
      %3073 = vmatprep.subr.mxu0 0.0
      %3074 = vmatpush1.msra.mxu0 0.0
      %3075 = vmatprep.subr.mxu0 0.0
      %3076 = vmatpush1.msra.mxu0 %v1093
      %3077 = vmatprep.subr.mxu0 0.0
      %3078 = vmatpush1.msra.mxu0 %v1092
      %3079 = vmatprep.subr.mxu0 0.0
      %3080 = vmatpush1.msra.mxu0 %v1091
      %3081 = vmatprep.subr.mxu0 0.0
      %3082 = vmatpush1.msra.mxu0 %v1090
      %3083 = vmatprep.subr.mxu0 0.0
      %3084 = vmatpush2.msra.mxu0 0.0
      %3085 = vmatprep.subr.mxu0 0.0
      %3086 = vmatpush2.msra.mxu0 0.0
      %3087 = vmatprep.subr.mxu0 0.0
      %3088 = vmatpush2.msra.mxu0 0.0
      %3089 = vmatprep.subr.mxu0 0.0
      %3090 = vmatpush2.msra.mxu0 0.0
      %3091 = vmatprep.subr.mxu0 0.0
      %3092 = vmatpush2.msra.mxu0 0.0
      %3093 = vmatprep.subr.mxu0 0.0
      %3094 = vmatpush2.msra.mxu0 0.0
      %3095 = vmatprep.subr.mxu0 0.0
      %3096 = vmatpush2.msra.mxu0 0.0
      %3097 = vmatprep.subr.mxu0 0.0
      %3098 = vmatpush2.msra.mxu0 0.0
      %3099 = vmatprep.subr.mxu0 0.0
      %3100 = vmatpush2.msra.mxu0 0.0
      %3101 = vmatprep.subr.mxu0 0.0
      %3102 = vmatpush2.msra.mxu0 0.0
      %3103 = vmatprep.subr.mxu0 0.0
      %3104 = vmatpush2.msra.mxu0 0.0
      %3105 = vmatprep.subr.mxu0 0.0
      %3106 = vmatpush2.msra.mxu0 0.0
      %3107 = vmatprep.subr.mxu0 0.0
      %3108 = vmatpush2.msra.mxu0 0.0
      %3109 = vmatprep.subr.mxu0 0.0
      %3110 = vmatpush2.msra.mxu0 0.0
      %3111 = vmatprep.subr.mxu0 0.0
      %3112 = vmatpush2.msra.mxu0 0.0
      %3113 = vmatprep.subr.mxu0 0.0
      %3114 = vmatpush2.msra.mxu0 0.0
      %3115 = vmatprep.mubr.f32.mxu0 0.0
      %3116 = vmatmul.mubr.f32.gmra.mxu0 %v3049
      %v3117 = vpop.f32.mrf.mxu0
      %v3118 = vadd.f32 %v2721, %v3117
      %v3119 = vpop.f32.mrf.mxu0
      %3120 = vdwg.mxu0
      %v3121 = vadd.f32 %v3048, %v3118
      %v3122 = vxor.u32 %v3121, 2147483648
      %v3123 = vmul.f32 %v3122, 1.442695
      %v3124 = vpow.pop %v3123
      %v3125 = vadd.f32 %v3124, 1.0
      %v3126 = vrcp.pop %v3125
      %v3127 = vmul.f32 1.0, %v3126
      %3129 = vrot.lane.b32.xlu0 %v3118, 64
      %v3130 = vpop.permute.xlu0 %3129
      %v3132 = vmul.f32 %v3127, %v3130
      %3134 = vrot.lane.b32.xlu0 %v3132, 64
      %v3135 = vpop.permute.xlu0 %3134
      %v3137 = vadd.f32 %v3048, %v3135
      %v3138 = vtanh.pop %v3137
      %v3139 = vsub.f32 1.0, %v3127
      %3141 = vrot.lane.b32.xlu0 %v3138, 96
      %v3142 = vpop.permute.xlu0 %3141
      %v3144 = vmul.f32 %v3139, %v3142
      %v3145 = vmul.f32 %v3127, %v2824
      %v3146 = vadd.f32 %v3144, %v3145
      %v3147 = vld [vmem:[#allocation5] sm:$0xff]
      %v3148 = vld [vmem:[#allocation5 + $0x8] sm:$0xff]
      %v3149 = vld [vmem:[#allocation5 + $0x10] sm:$0xff]
      %v3150 = vld [vmem:[#allocation5 + $0x18] sm:$0xff]
      %v3151 = vld [vmem:[#allocation5 + $0x20] sm:$0xff]
      %v3152 = vld [vmem:[#allocation5 + $0x28] sm:$0xff]
      %v3153 = vld [vmem:[#allocation5 + $0x30] sm:$0xff]
      %v3154 = vld [vmem:[#allocation5 + $0x38] sm:$0xff]
      %3163 = vrot.lane.b32.xlu0 %v3147, 32
      %v3164 = vpop.permute.xlu0 %3163
      %3165 = vrot.lane.b32.xlu0 %v3148, 32
      %v3166 = vpop.permute.xlu0 %3165
      %3167 = vrot.lane.b32.xlu0 %v3149, 32
      %v3168 = vpop.permute.xlu0 %3167
      %3169 = vrot.lane.b32.xlu0 %v3150, 32
      %v3170 = vpop.permute.xlu0 %3169
      %3171 = vrot.lane.b32.xlu0 %v3151, 32
      %v3172 = vpop.permute.xlu0 %3171
      %3173 = vrot.lane.b32.xlu0 %v3152, 32
      %v3174 = vpop.permute.xlu0 %3173
      %3175 = vrot.lane.b32.xlu0 %v3153, 32
      %v3176 = vpop.permute.xlu0 %3175
      %3177 = vrot.lane.b32.xlu0 %v3154, 32
      %v3178 = vpop.permute.xlu0 %3177
      %v3187 = vmul.f32 %v3146, %v3164
      %v3188 = vmul.f32 %v3146, %v3166
      %v3189 = vmul.f32 %v3146, %v3168
      %v3190 = vmul.f32 %v3146, %v3170
      %v3191 = vmul.f32 %v3146, %v3172
      %v3192 = vmul.f32 %v3146, %v3174
      %v3193 = vmul.f32 %v3146, %v3176
      %v3194 = vmul.f32 %v3146, %v3178
      %3203 = vrot.lane.b32.xlu0 %v3187, 96
      %v3204 = vpop.permute.xlu0 %3203
      %3205 = vrot.lane.b32.xlu0 %v3188, 96
      %v3206 = vpop.permute.xlu0 %3205
      %3207 = vrot.lane.b32.xlu0 %v3189, 96
      %v3208 = vpop.permute.xlu0 %3207
      %3209 = vrot.lane.b32.xlu0 %v3190, 96
      %v3210 = vpop.permute.xlu0 %3209
      %3211 = vrot.lane.b32.xlu0 %v3191, 96
      %v3212 = vpop.permute.xlu0 %3211
      %3213 = vrot.lane.b32.xlu0 %v3192, 96
      %v3214 = vpop.permute.xlu0 %3213
      %3215 = vrot.lane.b32.xlu0 %v3193, 96
      %v3216 = vpop.permute.xlu0 %3215
      %3217 = vrot.lane.b32.xlu0 %v3194, 96
      %v3218 = vpop.permute.xlu0 %3217
      %v3227 = vsel %vm811, %v3204, 0.0
      %3228 = vadd.xlane.f32.xlu0 %v3227
      %v3229 = vpop.xlane.xlu0 %3228
      %v3230 = vsel %vm811, %v3206, 0.0
      %3231 = vadd.xlane.f32.xlu0 %v3230
      %v3232 = vpop.xlane.xlu0 %3231
      %v3233 = vsel %vm811, %v3208, 0.0
      %3234 = vadd.xlane.f32.xlu0 %v3233
      %v3235 = vpop.xlane.xlu0 %3234
      %v3236 = vsel %vm811, %v3210, 0.0
      %3237 = vadd.xlane.f32.xlu0 %v3236
      %v3238 = vpop.xlane.xlu0 %3237
      %v3239 = vsel %vm811, %v3212, 0.0
      %3240 = vadd.xlane.f32.xlu0 %v3239
      %v3241 = vpop.xlane.xlu0 %3240
      %v3242 = vsel %vm811, %v3214, 0.0
      %3243 = vadd.xlane.f32.xlu0 %v3242
      %v3244 = vpop.xlane.xlu0 %3243
      %v3245 = vsel %vm811, %v3216, 0.0
      %3246 = vadd.xlane.f32.xlu0 %v3245
      %v3247 = vpop.xlane.xlu0 %3246
      %v3248 = vsel %vm811, %v3218, 0.0
      %3249 = vadd.xlane.f32.xlu0 %v3248
      %v3250 = vpop.xlane.xlu0 %3249
      %v3251 = vmax.f32 %v3229, %v3232
      %v3252 = vmax.f32 %v3251, %v3235
      %v3253 = vmax.f32 %v3252, %v3238
      %v3254 = vmax.f32 %v3253, %v3241
      %v3255 = vmax.f32 %v3254, %v3244
      %v3256 = vmax.f32 %v3255, %v3247
      %v3257 = vmax.f32 %v3256, %v3250
      %v3258 = vsub.f32 %v3229, %v3257
      %v3259 = vsub.f32 %v3232, %v3257
      %v3260 = vsub.f32 %v3235, %v3257
      %v3261 = vsub.f32 %v3238, %v3257
      %v3262 = vsub.f32 %v3241, %v3257
      %v3263 = vsub.f32 %v3244, %v3257
      %v3264 = vsub.f32 %v3247, %v3257
      %v3265 = vsub.f32 %v3250, %v3257
      %v3266 = vmul.f32 %v3258, 1.442695
      %v3267 = vpow.pop %v3266
      %v3268 = vmul.f32 %v3259, 1.442695
      %v3269 = vpow.pop %v3268
      %v3270 = vmul.f32 %v3260, 1.442695
      %v3271 = vpow.pop %v3270
      %v3272 = vmul.f32 %v3261, 1.442695
      %v3273 = vpow.pop %v3272
      %v3274 = vmul.f32 %v3262, 1.442695
      %v3275 = vpow.pop %v3274
      %v3276 = vmul.f32 %v3263, 1.442695
      %v3277 = vpow.pop %v3276
      %v3278 = vmul.f32 %v3264, 1.442695
      %v3279 = vpow.pop %v3278
      %v3280 = vmul.f32 %v3265, 1.442695
      %v3281 = vpow.pop %v3280
      %v3282 = vld [vmem:[#allocation6] sm:$0xff]
      %v3283 = vld [vmem:[#allocation6 + $0x8] sm:$0xff]
      %v3284 = vld [vmem:[#allocation6 + $0x10] sm:$0xff]
      %v3285 = vld [vmem:[#allocation6 + $0x18] sm:$0xff]
      %v3286 = vld [vmem:[#allocation6 + $0x20] sm:$0xff]
      %v3287 = vld [vmem:[#allocation6 + $0x28] sm:$0xff]
      %v3288 = vld [vmem:[#allocation6 + $0x30] sm:$0xff]
      %v3289 = vld [vmem:[#allocation6 + $0x38] sm:$0xff]
      %3291 = vset.pattern.permute.xlu0 0
      %3292 = vperm.xlu0 %3291, %v3267
      %v3293 = vpop.permute.xlu0 %3292
      %3296 = vset.pattern.permute.xlu0 0
      %3297 = vperm.xlu0 %3296, %v3269
      %v3298 = vpop.permute.xlu0 %3297
      %3301 = vset.pattern.permute.xlu0 0
      %3302 = vperm.xlu0 %3301, %v3271
      %v3303 = vpop.permute.xlu0 %3302
      %3306 = vset.pattern.permute.xlu0 0
      %3307 = vperm.xlu0 %3306, %v3273
      %v3308 = vpop.permute.xlu0 %3307
      %3311 = vset.pattern.permute.xlu0 0
      %3312 = vperm.xlu0 %3311, %v3275
      %v3313 = vpop.permute.xlu0 %3312
      %3316 = vset.pattern.permute.xlu0 0
      %3317 = vperm.xlu0 %3316, %v3277
      %v3318 = vpop.permute.xlu0 %3317
      %3321 = vset.pattern.permute.xlu0 0
      %3322 = vperm.xlu0 %3321, %v3279
      %v3323 = vpop.permute.xlu0 %3322
      %3326 = vset.pattern.permute.xlu0 0
      %3327 = vperm.xlu0 %3326, %v3281
      %v3328 = vpop.permute.xlu0 %3327
      %v3330 = vmul.f32 %v3293, %v3282
      %v3331 = vmul.f32 %v3298, %v3283
      %v3332 = vmul.f32 %v3303, %v3284
      %v3333 = vmul.f32 %v3308, %v3285
      %v3334 = vmul.f32 %v3313, %v3286
      %v3335 = vmul.f32 %v3318, %v3287
      %v3336 = vmul.f32 %v3323, %v3288
      %v3337 = vmul.f32 %v3328, %v3289
      %v3338 = vadd.f32 %v3330, %v3331
      %v3339 = vadd.f32 %v3267, %v3269
      %v3340 = vadd.f32 %v3338, %v3332
      %v3341 = vadd.f32 %v3339, %v3271
      %v3342 = vadd.f32 %v3340, %v3333
      %v3343 = vadd.f32 %v3341, %v3273
      %v3344 = vadd.f32 %v3342, %v3334
      %v3345 = vadd.f32 %v3343, %v3275
      %v3346 = vadd.f32 %v3344, %v3335
      %v3347 = vadd.f32 %v3345, %v3277
      %v3348 = vadd.f32 %v3346, %v3336
      %v3349 = vadd.f32 %v3347, %v3279
      %v3350 = vadd.f32 %v3348, %v3337
      %v3351 = vadd.f32 %v3349, %v3281
      %v3352 = vrcp.pop %v3351
      %3354 = vset.pattern.permute.xlu0 0
      %3355 = vperm.xlu0 %3354, %v3352
      %v3356 = vpop.permute.xlu0 %3355
      %v3358 = vmul.f32 %v3350, %v3356
      %3360 = vrot.lane.b32.xlu0 %v3146, 96
      %v3361 = vpop.permute.xlu0 %3360
      %3363 = vst.msk [vmem:[#allocation7 + $0x8] sm:$0xff] %vm811, %v3361
      %3365 = vrot.lane.b32.xlu0 %v3358, 32
      %v3366 = vpop.permute.xlu0 %3365
      %3368 = vst.msk [vmem:[#allocation7 + $0x8] sm:$0xff] %vm3046, %v3366
      %v3369 = vld [vmem:[#allocation3 + $0x10] sm:$0xff]
      %v3370 = vsel %vm811, %v3361, 0
      %3372 = vmatprep.subr.mxu0 0.0
      %3373 = vmatpush1.msra.mxu0 0.0
      %3374 = vmatprep.subr.mxu0 0.0
      %3375 = vmatpush1.msra.mxu0 0.0
      %3376 = vmatprep.subr.mxu0 0.0
      %3377 = vmatpush1.msra.mxu0 0.0
      %3378 = vmatprep.subr.mxu0 0.0
      %3379 = vmatpush1.msra.mxu0 0.0
      %3380 = vmatprep.subr.mxu0 0.0
      %3381 = vmatpush1.msra.mxu0 0.0
      %3382 = vmatprep.subr.mxu0 0.0
      %3383 = vmatpush1.msra.mxu0 0.0
      %3384 = vmatprep.subr.mxu0 0.0
      %3385 = vmatpush1.msra.mxu0 0.0
      %3386 = vmatprep.subr.mxu0 0.0
      %3387 = vmatpush1.msra.mxu0 0.0
      %3388 = vmatprep.subr.mxu0 0.0
      %3389 = vmatpush1.msra.mxu0 0.0
      %3390 = vmatprep.subr.mxu0 0.0
      %3391 = vmatpush1.msra.mxu0 0.0
      %3392 = vmatprep.subr.mxu0 0.0
      %3393 = vmatpush1.msra.mxu0 0.0
      %3394 = vmatprep.subr.mxu0 0.0
      %3395 = vmatpush1.msra.mxu0 0.0
      %3396 = vmatprep.subr.mxu0 0.0
      %3397 = vmatpush1.msra.mxu0 %v1093
      %3398 = vmatprep.subr.mxu0 0.0
      %3399 = vmatpush1.msra.mxu0 %v1092
      %3400 = vmatprep.subr.mxu0 0.0
      %3401 = vmatpush1.msra.mxu0 %v1091
      %3402 = vmatprep.subr.mxu0 0.0
      %3403 = vmatpush1.msra.mxu0 %v1090
      %3404 = vmatprep.subr.mxu0 0.0
      %3405 = vmatpush2.msra.mxu0 0.0
      %3406 = vmatprep.subr.mxu0 0.0
      %3407 = vmatpush2.msra.mxu0 0.0
      %3408 = vmatprep.subr.mxu0 0.0
      %3409 = vmatpush2.msra.mxu0 0.0
      %3410 = vmatprep.subr.mxu0 0.0
      %3411 = vmatpush2.msra.mxu0 0.0
      %3412 = vmatprep.subr.mxu0 0.0
      %3413 = vmatpush2.msra.mxu0 0.0
      %3414 = vmatprep.subr.mxu0 0.0
      %3415 = vmatpush2.msra.mxu0 0.0
      %3416 = vmatprep.subr.mxu0 0.0
      %3417 = vmatpush2.msra.mxu0 0.0
      %3418 = vmatprep.subr.mxu0 0.0
      %3419 = vmatpush2.msra.mxu0 0.0
      %3420 = vmatprep.subr.mxu0 0.0
      %3421 = vmatpush2.msra.mxu0 0.0
      %3422 = vmatprep.subr.mxu0 0.0
      %3423 = vmatpush2.msra.mxu0 0.0
      %3424 = vmatprep.subr.mxu0 0.0
      %3425 = vmatpush2.msra.mxu0 0.0
      %3426 = vmatprep.subr.mxu0 0.0
      %3427 = vmatpush2.msra.mxu0 0.0
      %3428 = vmatprep.subr.mxu0 0.0
      %3429 = vmatpush2.msra.mxu0 0.0
      %3430 = vmatprep.subr.mxu0 0.0
      %3431 = vmatpush2.msra.mxu0 0.0
      %3432 = vmatprep.subr.mxu0 0.0
      %3433 = vmatpush2.msra.mxu0 0.0
      %3434 = vmatprep.subr.mxu0 0.0
      %3435 = vmatpush2.msra.mxu0 0.0
      %3436 = vmatprep.mubr.f32.mxu0 0.0
      %3437 = vmatmul.mubr.f32.gmra.mxu0 %v3370
      %v3438 = vpop.f32.mrf.mxu0
      %v3439 = vadd.f32 %v2721, %v3438
      %v3440 = vpop.f32.mrf.mxu0
      %3441 = vdwg.mxu0
      %v3442 = vadd.f32 %v3369, %v3439
      %v3443 = vxor.u32 %v3442, 2147483648
      %v3444 = vmul.f32 %v3443, 1.442695
      %v3445 = vpow.pop %v3444
      %v3446 = vadd.f32 %v3445, 1.0
      %v3447 = vrcp.pop %v3446
      %v3448 = vmul.f32 1.0, %v3447
      %3450 = vrot.lane.b32.xlu0 %v3439, 64
      %v3451 = vpop.permute.xlu0 %3450
      %v3453 = vmul.f32 %v3448, %v3451
      %3455 = vrot.lane.b32.xlu0 %v3453, 64
      %v3456 = vpop.permute.xlu0 %3455
      %v3458 = vadd.f32 %v3369, %v3456
      %v3459 = vtanh.pop %v3458
      %v3460 = vsub.f32 1.0, %v3448
      %3462 = vrot.lane.b32.xlu0 %v3459, 96
      %v3463 = vpop.permute.xlu0 %3462
      %v3465 = vmul.f32 %v3460, %v3463
      %v3466 = vmul.f32 %v3448, %v3146
      %v3467 = vadd.f32 %v3465, %v3466
      %v3468 = vld [vmem:[#allocation5] sm:$0xff]
      %v3469 = vld [vmem:[#allocation5 + $0x8] sm:$0xff]
      %v3470 = vld [vmem:[#allocation5 + $0x10] sm:$0xff]
      %v3471 = vld [vmem:[#allocation5 + $0x18] sm:$0xff]
      %v3472 = vld [vmem:[#allocation5 + $0x20] sm:$0xff]
      %v3473 = vld [vmem:[#allocation5 + $0x28] sm:$0xff]
      %v3474 = vld [vmem:[#allocation5 + $0x30] sm:$0xff]
      %v3475 = vld [vmem:[#allocation5 + $0x38] sm:$0xff]
      %3484 = vrot.lane.b32.xlu0 %v3468, 32
      %v3485 = vpop.permute.xlu0 %3484
      %3486 = vrot.lane.b32.xlu0 %v3469, 32
      %v3487 = vpop.permute.xlu0 %3486
      %3488 = vrot.lane.b32.xlu0 %v3470, 32
      %v3489 = vpop.permute.xlu0 %3488
      %3490 = vrot.lane.b32.xlu0 %v3471, 32
      %v3491 = vpop.permute.xlu0 %3490
      %3492 = vrot.lane.b32.xlu0 %v3472, 32
      %v3493 = vpop.permute.xlu0 %3492
      %3494 = vrot.lane.b32.xlu0 %v3473, 32
      %v3495 = vpop.permute.xlu0 %3494
      %3496 = vrot.lane.b32.xlu0 %v3474, 32
      %v3497 = vpop.permute.xlu0 %3496
      %3498 = vrot.lane.b32.xlu0 %v3475, 32
      %v3499 = vpop.permute.xlu0 %3498
      %v3508 = vmul.f32 %v3467, %v3485
      %v3509 = vmul.f32 %v3467, %v3487
      %v3510 = vmul.f32 %v3467, %v3489
      %v3511 = vmul.f32 %v3467, %v3491
      %v3512 = vmul.f32 %v3467, %v3493
      %v3513 = vmul.f32 %v3467, %v3495
      %v3514 = vmul.f32 %v3467, %v3497
      %v3515 = vmul.f32 %v3467, %v3499
      %3524 = vrot.lane.b32.xlu0 %v3508, 96
      %v3525 = vpop.permute.xlu0 %3524
      %3526 = vrot.lane.b32.xlu0 %v3509, 96
      %v3527 = vpop.permute.xlu0 %3526
      %3528 = vrot.lane.b32.xlu0 %v3510, 96
      %v3529 = vpop.permute.xlu0 %3528
      %3530 = vrot.lane.b32.xlu0 %v3511, 96
      %v3531 = vpop.permute.xlu0 %3530
      %3532 = vrot.lane.b32.xlu0 %v3512, 96
      %v3533 = vpop.permute.xlu0 %3532
      %3534 = vrot.lane.b32.xlu0 %v3513, 96
      %v3535 = vpop.permute.xlu0 %3534
      %3536 = vrot.lane.b32.xlu0 %v3514, 96
      %v3537 = vpop.permute.xlu0 %3536
      %3538 = vrot.lane.b32.xlu0 %v3515, 96
      %v3539 = vpop.permute.xlu0 %3538
      %v3548 = vsel %vm811, %v3525, 0.0
      %3549 = vadd.xlane.f32.xlu0 %v3548
      %v3550 = vpop.xlane.xlu0 %3549
      %v3551 = vsel %vm811, %v3527, 0.0
      %3552 = vadd.xlane.f32.xlu0 %v3551
      %v3553 = vpop.xlane.xlu0 %3552
      %v3554 = vsel %vm811, %v3529, 0.0
      %3555 = vadd.xlane.f32.xlu0 %v3554
      %v3556 = vpop.xlane.xlu0 %3555
      %v3557 = vsel %vm811, %v3531, 0.0
      %3558 = vadd.xlane.f32.xlu0 %v3557
      %v3559 = vpop.xlane.xlu0 %3558
      %v3560 = vsel %vm811, %v3533, 0.0
      %3561 = vadd.xlane.f32.xlu0 %v3560
      %v3562 = vpop.xlane.xlu0 %3561
      %v3563 = vsel %vm811, %v3535, 0.0
      %3564 = vadd.xlane.f32.xlu0 %v3563
      %v3565 = vpop.xlane.xlu0 %3564
      %v3566 = vsel %vm811, %v3537, 0.0
      %3567 = vadd.xlane.f32.xlu0 %v3566
      %v3568 = vpop.xlane.xlu0 %3567
      %v3569 = vsel %vm811, %v3539, 0.0
      %3570 = vadd.xlane.f32.xlu0 %v3569
      %v3571 = vpop.xlane.xlu0 %3570
      %v3572 = vmax.f32 %v3550, %v3553
      %v3573 = vmax.f32 %v3572, %v3556
      %v3574 = vmax.f32 %v3573, %v3559
      %v3575 = vmax.f32 %v3574, %v3562
      %v3576 = vmax.f32 %v3575, %v3565
      %v3577 = vmax.f32 %v3576, %v3568
      %v3578 = vmax.f32 %v3577, %v3571
      %v3579 = vsub.f32 %v3550, %v3578
      %v3580 = vsub.f32 %v3553, %v3578
      %v3581 = vsub.f32 %v3556, %v3578
      %v3582 = vsub.f32 %v3559, %v3578
      %v3583 = vsub.f32 %v3562, %v3578
      %v3584 = vsub.f32 %v3565, %v3578
      %v3585 = vsub.f32 %v3568, %v3578
      %v3586 = vsub.f32 %v3571, %v3578
      %v3587 = vmul.f32 %v3579, 1.442695
      %v3588 = vpow.pop %v3587
      %v3589 = vmul.f32 %v3580, 1.442695
      %v3590 = vpow.pop %v3589
      %v3591 = vmul.f32 %v3581, 1.442695
      %v3592 = vpow.pop %v3591
      %v3593 = vmul.f32 %v3582, 1.442695
      %v3594 = vpow.pop %v3593
      %v3595 = vmul.f32 %v3583, 1.442695
      %v3596 = vpow.pop %v3595
      %v3597 = vmul.f32 %v3584, 1.442695
      %v3598 = vpow.pop %v3597
      %v3599 = vmul.f32 %v3585, 1.442695
      %v3600 = vpow.pop %v3599
      %v3601 = vmul.f32 %v3586, 1.442695
      %v3602 = vpow.pop %v3601
      %v3603 = vld [vmem:[#allocation6] sm:$0xff]
      %v3604 = vld [vmem:[#allocation6 + $0x8] sm:$0xff]
      %v3605 = vld [vmem:[#allocation6 + $0x10] sm:$0xff]
      %v3606 = vld [vmem:[#allocation6 + $0x18] sm:$0xff]
      %v3607 = vld [vmem:[#allocation6 + $0x20] sm:$0xff]
      %v3608 = vld [vmem:[#allocation6 + $0x28] sm:$0xff]
      %v3609 = vld [vmem:[#allocation6 + $0x30] sm:$0xff]
      %v3610 = vld [vmem:[#allocation6 + $0x38] sm:$0xff]
      %3612 = vset.pattern.permute.xlu0 0
      %3613 = vperm.xlu0 %3612, %v3588
      %v3614 = vpop.permute.xlu0 %3613
      %3617 = vset.pattern.permute.xlu0 0
      %3618 = vperm.xlu0 %3617, %v3590
      %v3619 = vpop.permute.xlu0 %3618
      %3622 = vset.pattern.permute.xlu0 0
      %3623 = vperm.xlu0 %3622, %v3592
      %v3624 = vpop.permute.xlu0 %3623
      %3627 = vset.pattern.permute.xlu0 0
      %3628 = vperm.xlu0 %3627, %v3594
      %v3629 = vpop.permute.xlu0 %3628
      %3632 = vset.pattern.permute.xlu0 0
      %3633 = vperm.xlu0 %3632, %v3596
      %v3634 = vpop.permute.xlu0 %3633
      %3637 = vset.pattern.permute.xlu0 0
      %3638 = vperm.xlu0 %3637, %v3598
      %v3639 = vpop.permute.xlu0 %3638
      %3642 = vset.pattern.permute.xlu0 0
      %3643 = vperm.xlu0 %3642, %v3600
      %v3644 = vpop.permute.xlu0 %3643
      %3647 = vset.pattern.permute.xlu0 0
      %3648 = vperm.xlu0 %3647, %v3602
      %v3649 = vpop.permute.xlu0 %3648
      %v3651 = vmul.f32 %v3614, %v3603
      %v3652 = vmul.f32 %v3619, %v3604
      %v3653 = vmul.f32 %v3624, %v3605
      %v3654 = vmul.f32 %v3629, %v3606
      %v3655 = vmul.f32 %v3634, %v3607
      %v3656 = vmul.f32 %v3639, %v3608
      %v3657 = vmul.f32 %v3644, %v3609
      %v3658 = vmul.f32 %v3649, %v3610
      %v3659 = vadd.f32 %v3651, %v3652
      %v3660 = vadd.f32 %v3588, %v3590
      %v3661 = vadd.f32 %v3659, %v3653
      %v3662 = vadd.f32 %v3660, %v3592
      %v3663 = vadd.f32 %v3661, %v3654
      %v3664 = vadd.f32 %v3662, %v3594
      %v3665 = vadd.f32 %v3663, %v3655
      %v3666 = vadd.f32 %v3664, %v3596
      %v3667 = vadd.f32 %v3665, %v3656
      %v3668 = vadd.f32 %v3666, %v3598
      %v3669 = vadd.f32 %v3667, %v3657
      %v3670 = vadd.f32 %v3668, %v3600
      %v3671 = vadd.f32 %v3669, %v3658
      %v3672 = vadd.f32 %v3670, %v3602
      %v3673 = vrcp.pop %v3672
      %3675 = vset.pattern.permute.xlu0 0
      %3676 = vperm.xlu0 %3675, %v3673
      %v3677 = vpop.permute.xlu0 %3676
      %v3679 = vmul.f32 %v3671, %v3677
      %3681 = vrot.lane.b32.xlu0 %v3467, 96
      %v3682 = vpop.permute.xlu0 %3681
      %3684 = vst.msk [vmem:[#allocation7 + $0x10] sm:$0xff] %vm811, %v3682
      %3686 = vrot.lane.b32.xlu0 %v3679, 32
      %v3687 = vpop.permute.xlu0 %3686
      %3689 = vst.msk [vmem:[#allocation7 + $0x10] sm:$0xff] %vm3046, %v3687
      %v3690 = vld [vmem:[#allocation3 + $0x18] sm:$0xff]
      %v3691 = vsel %vm811, %v3682, 0
      %3693 = vmatprep.subr.mxu0 0.0
      %3694 = vmatpush1.msra.mxu0 0.0
      %3695 = vmatprep.subr.mxu0 0.0
      %3696 = vmatpush1.msra.mxu0 0.0
      %3697 = vmatprep.subr.mxu0 0.0
      %3698 = vmatpush1.msra.mxu0 0.0
      %3699 = vmatprep.subr.mxu0 0.0
      %3700 = vmatpush1.msra.mxu0 0.0
      %3701 = vmatprep.subr.mxu0 0.0
      %3702 = vmatpush1.msra.mxu0 0.0
      %3703 = vmatprep.subr.mxu0 0.0
      %3704 = vmatpush1.msra.mxu0 0.0
      %3705 = vmatprep.subr.mxu0 0.0
      %3706 = vmatpush1.msra.mxu0 0.0
      %3707 = vmatprep.subr.mxu0 0.0
      %3708 = vmatpush1.msra.mxu0 0.0
      %3709 = vmatprep.subr.mxu0 0.0
      %3710 = vmatpush1.msra.mxu0 0.0
      %3711 = vmatprep.subr.mxu0 0.0
      %3712 = vmatpush1.msra.mxu0 0.0
      %3713 = vmatprep.subr.mxu0 0.0
      %3714 = vmatpush1.msra.mxu0 0.0
      %3715 = vmatprep.subr.mxu0 0.0
      %3716 = vmatpush1.msra.mxu0 0.0
      %3717 = vmatprep.subr.mxu0 0.0
      %3718 = vmatpush1.msra.mxu0 %v1093
      %3719 = vmatprep.subr.mxu0 0.0
      %3720 = vmatpush1.msra.mxu0 %v1092
      %3721 = vmatprep.subr.mxu0 0.0
      %3722 = vmatpush1.msra.mxu0 %v1091
      %3723 = vmatprep.subr.mxu0 0.0
      %3724 = vmatpush1.msra.mxu0 %v1090
      %3725 = vmatprep.subr.mxu0 0.0
      %3726 = vmatpush2.msra.mxu0 0.0
      %3727 = vmatprep.subr.mxu0 0.0
      %3728 = vmatpush2.msra.mxu0 0.0
      %3729 = vmatprep.subr.mxu0 0.0
      %3730 = vmatpush2.msra.mxu0 0.0
      %3731 = vmatprep.subr.mxu0 0.0
      %3732 = vmatpush2.msra.mxu0 0.0
      %3733 = vmatprep.subr.mxu0 0.0
      %3734 = vmatpush2.msra.mxu0 0.0
      %3735 = vmatprep.subr.mxu0 0.0
      %3736 = vmatpush2.msra.mxu0 0.0
      %3737 = vmatprep.subr.mxu0 0.0
      %3738 = vmatpush2.msra.mxu0 0.0
      %3739 = vmatprep.subr.mxu0 0.0
      %3740 = vmatpush2.msra.mxu0 0.0
      %3741 = vmatprep.subr.mxu0 0.0
      %3742 = vmatpush2.msra.mxu0 0.0
      %3743 = vmatprep.subr.mxu0 0.0
      %3744 = vmatpush2.msra.mxu0 0.0
      %3745 = vmatprep.subr.mxu0 0.0
      %3746 = vmatpush2.msra.mxu0 0.0
      %3747 = vmatprep.subr.mxu0 0.0
      %3748 = vmatpush2.msra.mxu0 0.0
      %3749 = vmatprep.subr.mxu0 0.0
      %3750 = vmatpush2.msra.mxu0 0.0
      %3751 = vmatprep.subr.mxu0 0.0
      %3752 = vmatpush2.msra.mxu0 0.0
      %3753 = vmatprep.subr.mxu0 0.0
      %3754 = vmatpush2.msra.mxu0 0.0
      %3755 = vmatprep.subr.mxu0 0.0
      %3756 = vmatpush2.msra.mxu0 0.0
      %3757 = vmatprep.mubr.f32.mxu0 0.0
      %3758 = vmatmul.mubr.f32.gmra.mxu0 %v3691
      %v3759 = vpop.f32.mrf.mxu0
      %v3760 = vadd.f32 %v2721, %v3759
      %v3761 = vpop.f32.mrf.mxu0
      %3762 = vdwg.mxu0
      %v3763 = vadd.f32 %v3690, %v3760
      %v3764 = vxor.u32 %v3763, 2147483648
      %v3765 = vmul.f32 %v3764, 1.442695
      %v3766 = vpow.pop %v3765
      %v3767 = vadd.f32 %v3766, 1.0
      %v3768 = vrcp.pop %v3767
      %v3769 = vmul.f32 1.0, %v3768
      %3771 = vrot.lane.b32.xlu0 %v3760, 64
      %v3772 = vpop.permute.xlu0 %3771
      %v3774 = vmul.f32 %v3769, %v3772
      %3776 = vrot.lane.b32.xlu0 %v3774, 64
      %v3777 = vpop.permute.xlu0 %3776
      %v3779 = vadd.f32 %v3690, %v3777
      %v3780 = vtanh.pop %v3779
      %v3781 = vsub.f32 1.0, %v3769
      %3783 = vrot.lane.b32.xlu0 %v3780, 96
      %v3784 = vpop.permute.xlu0 %3783
      %v3786 = vmul.f32 %v3781, %v3784
      %v3787 = vmul.f32 %v3769, %v3467
      %v3788 = vadd.f32 %v3786, %v3787
      %v3789 = vld [vmem:[#allocation5] sm:$0xff]
      %v3790 = vld [vmem:[#allocation5 + $0x8] sm:$0xff]
      %v3791 = vld [vmem:[#allocation5 + $0x10] sm:$0xff]
      %v3792 = vld [vmem:[#allocation5 + $0x18] sm:$0xff]
      %v3793 = vld [vmem:[#allocation5 + $0x20] sm:$0xff]
      %v3794 = vld [vmem:[#allocation5 + $0x28] sm:$0xff]
      %v3795 = vld [vmem:[#allocation5 + $0x30] sm:$0xff]
      %v3796 = vld [vmem:[#allocation5 + $0x38] sm:$0xff]
      %3805 = vrot.lane.b32.xlu0 %v3789, 32
      %v3806 = vpop.permute.xlu0 %3805
      %3807 = vrot.lane.b32.xlu0 %v3790, 32
      %v3808 = vpop.permute.xlu0 %3807
      %3809 = vrot.lane.b32.xlu0 %v3791, 32
      %v3810 = vpop.permute.xlu0 %3809
      %3811 = vrot.lane.b32.xlu0 %v3792, 32
      %v3812 = vpop.permute.xlu0 %3811
      %3813 = vrot.lane.b32.xlu0 %v3793, 32
      %v3814 = vpop.permute.xlu0 %3813
      %3815 = vrot.lane.b32.xlu0 %v3794, 32
      %v3816 = vpop.permute.xlu0 %3815
      %3817 = vrot.lane.b32.xlu0 %v3795, 32
      %v3818 = vpop.permute.xlu0 %3817
      %3819 = vrot.lane.b32.xlu0 %v3796, 32
      %v3820 = vpop.permute.xlu0 %3819
      %v3829 = vmul.f32 %v3788, %v3806
      %v3830 = vmul.f32 %v3788, %v3808
      %v3831 = vmul.f32 %v3788, %v3810
      %v3832 = vmul.f32 %v3788, %v3812
      %v3833 = vmul.f32 %v3788, %v3814
      %v3834 = vmul.f32 %v3788, %v3816
      %v3835 = vmul.f32 %v3788, %v3818
      %v3836 = vmul.f32 %v3788, %v3820
      %3845 = vrot.lane.b32.xlu0 %v3829, 96
      %v3846 = vpop.permute.xlu0 %3845
      %3847 = vrot.lane.b32.xlu0 %v3830, 96
      %v3848 = vpop.permute.xlu0 %3847
      %3849 = vrot.lane.b32.xlu0 %v3831, 96
      %v3850 = vpop.permute.xlu0 %3849
      %3851 = vrot.lane.b32.xlu0 %v3832, 96
      %v3852 = vpop.permute.xlu0 %3851
      %3853 = vrot.lane.b32.xlu0 %v3833, 96
      %v3854 = vpop.permute.xlu0 %3853
      %3855 = vrot.lane.b32.xlu0 %v3834, 96
      %v3856 = vpop.permute.xlu0 %3855
      %3857 = vrot.lane.b32.xlu0 %v3835, 96
      %v3858 = vpop.permute.xlu0 %3857
      %3859 = vrot.lane.b32.xlu0 %v3836, 96
      %v3860 = vpop.permute.xlu0 %3859
      %v3869 = vsel %vm811, %v3846, 0.0
      %3870 = vadd.xlane.f32.xlu0 %v3869
      %v3871 = vpop.xlane.xlu0 %3870
      %v3872 = vsel %vm811, %v3848, 0.0
      %3873 = vadd.xlane.f32.xlu0 %v3872
      %v3874 = vpop.xlane.xlu0 %3873
      %v3875 = vsel %vm811, %v3850, 0.0
      %3876 = vadd.xlane.f32.xlu0 %v3875
      %v3877 = vpop.xlane.xlu0 %3876
      %v3878 = vsel %vm811, %v3852, 0.0
      %3879 = vadd.xlane.f32.xlu0 %v3878
      %v3880 = vpop.xlane.xlu0 %3879
      %v3881 = vsel %vm811, %v3854, 0.0
      %3882 = vadd.xlane.f32.xlu0 %v3881
      %v3883 = vpop.xlane.xlu0 %3882
      %v3884 = vsel %vm811, %v3856, 0.0
      %3885 = vadd.xlane.f32.xlu0 %v3884
      %v3886 = vpop.xlane.xlu0 %3885
      %v3887 = vsel %vm811, %v3858, 0.0
      %3888 = vadd.xlane.f32.xlu0 %v3887
      %v3889 = vpop.xlane.xlu0 %3888
      %v3890 = vsel %vm811, %v3860, 0.0
      %3891 = vadd.xlane.f32.xlu0 %v3890
      %v3892 = vpop.xlane.xlu0 %3891
      %v3893 = vmax.f32 %v3871, %v3874
      %v3894 = vmax.f32 %v3893, %v3877
      %v3895 = vmax.f32 %v3894, %v3880
      %v3896 = vmax.f32 %v3895, %v3883
      %v3897 = vmax.f32 %v3896, %v3886
      %v3898 = vmax.f32 %v3897, %v3889
      %v3899 = vmax.f32 %v3898, %v3892
      %v3900 = vsub.f32 %v3871, %v3899
      %v3901 = vsub.f32 %v3874, %v3899
      %v3902 = vsub.f32 %v3877, %v3899
      %v3903 = vsub.f32 %v3880, %v3899
      %v3904 = vsub.f32 %v3883, %v3899
      %v3905 = vsub.f32 %v3886, %v3899
      %v3906 = vsub.f32 %v3889, %v3899
      %v3907 = vsub.f32 %v3892, %v3899
      %v3908 = vmul.f32 %v3900, 1.442695
      %v3909 = vpow.pop %v3908
      %v3910 = vmul.f32 %v3901, 1.442695
      %v3911 = vpow.pop %v3910
      %v3912 = vmul.f32 %v3902, 1.442695
      %v3913 = vpow.pop %v3912
      %v3914 = vmul.f32 %v3903, 1.442695
      %v3915 = vpow.pop %v3914
      %v3916 = vmul.f32 %v3904, 1.442695
      %v3917 = vpow.pop %v3916
      %v3918 = vmul.f32 %v3905, 1.442695
      %v3919 = vpow.pop %v3918
      %v3920 = vmul.f32 %v3906, 1.442695
      %v3921 = vpow.pop %v3920
      %v3922 = vmul.f32 %v3907, 1.442695
      %v3923 = vpow.pop %v3922
      %v3924 = vld [vmem:[#allocation6] sm:$0xff]
      %v3925 = vld [vmem:[#allocation6 + $0x8] sm:$0xff]
      %v3926 = vld [vmem:[#allocation6 + $0x10] sm:$0xff]
      %v3927 = vld [vmem:[#allocation6 + $0x18] sm:$0xff]
      %v3928 = vld [vmem:[#allocation6 + $0x20] sm:$0xff]
      %v3929 = vld [vmem:[#allocation6 + $0x28] sm:$0xff]
      %v3930 = vld [vmem:[#allocation6 + $0x30] sm:$0xff]
      %v3931 = vld [vmem:[#allocation6 + $0x38] sm:$0xff]
      %3933 = vset.pattern.permute.xlu0 0
      %3934 = vperm.xlu0 %3933, %v3909
      %v3935 = vpop.permute.xlu0 %3934
      %3938 = vset.pattern.permute.xlu0 0
      %3939 = vperm.xlu0 %3938, %v3911
      %v3940 = vpop.permute.xlu0 %3939
      %3943 = vset.pattern.permute.xlu0 0
      %3944 = vperm.xlu0 %3943, %v3913
      %v3945 = vpop.permute.xlu0 %3944
      %3948 = vset.pattern.permute.xlu0 0
      %3949 = vperm.xlu0 %3948, %v3915
      %v3950 = vpop.permute.xlu0 %3949
      %3953 = vset.pattern.permute.xlu0 0
      %3954 = vperm.xlu0 %3953, %v3917
      %v3955 = vpop.permute.xlu0 %3954
      %3958 = vset.pattern.permute.xlu0 0
      %3959 = vperm.xlu0 %3958, %v3919
      %v3960 = vpop.permute.xlu0 %3959
      %3963 = vset.pattern.permute.xlu0 0
      %3964 = vperm.xlu0 %3963, %v3921
      %v3965 = vpop.permute.xlu0 %3964
      %3968 = vset.pattern.permute.xlu0 0
      %3969 = vperm.xlu0 %3968, %v3923
      %v3970 = vpop.permute.xlu0 %3969
      %v3972 = vmul.f32 %v3935, %v3924
      %v3973 = vmul.f32 %v3940, %v3925
      %v3974 = vmul.f32 %v3945, %v3926
      %v3975 = vmul.f32 %v3950, %v3927
      %v3976 = vmul.f32 %v3955, %v3928
      %v3977 = vmul.f32 %v3960, %v3929
      %v3978 = vmul.f32 %v3965, %v3930
      %v3979 = vmul.f32 %v3970, %v3931
      %v3980 = vadd.f32 %v3972, %v3973
      %v3981 = vadd.f32 %v3909, %v3911
      %v3982 = vadd.f32 %v3980, %v3974
      %v3983 = vadd.f32 %v3981, %v3913
      %v3984 = vadd.f32 %v3982, %v3975
      %v3985 = vadd.f32 %v3983, %v3915
      %v3986 = vadd.f32 %v3984, %v3976
      %v3987 = vadd.f32 %v3985, %v3917
      %v3988 = vadd.f32 %v3986, %v3977
      %v3989 = vadd.f32 %v3987, %v3919
      %v3990 = vadd.f32 %v3988, %v3978
      %v3991 = vadd.f32 %v3989, %v3921
      %v3992 = vadd.f32 %v3990, %v3979
      %v3993 = vadd.f32 %v3991, %v3923
      %v3994 = vrcp.pop %v3993
      %3996 = vset.pattern.permute.xlu0 0
      %3997 = vperm.xlu0 %3996, %v3994
      %v3998 = vpop.permute.xlu0 %3997
      %v4000 = vmul.f32 %v3992, %v3998
      %4002 = vrot.lane.b32.xlu0 %v3788, 96
      %v4003 = vpop.permute.xlu0 %4002
      %4005 = vst.msk [vmem:[#allocation7 + $0x18] sm:$0xff] %vm811, %v4003
      %4007 = vrot.lane.b32.xlu0 %v4000, 32
      %v4008 = vpop.permute.xlu0 %4007
      %4010 = vst.msk [vmem:[#allocation7 + $0x18] sm:$0xff] %vm3046, %v4008
      %v4011 = vld [vmem:[#allocation3 + $0x20] sm:$0xff]
      %v4012 = vsel %vm811, %v4003, 0
      %4014 = vmatprep.subr.mxu0 0.0
      %4015 = vmatpush1.msra.mxu0 0.0
      %4016 = vmatprep.subr.mxu0 0.0
      %4017 = vmatpush1.msra.mxu0 0.0
      %4018 = vmatprep.subr.mxu0 0.0
      %4019 = vmatpush1.msra.mxu0 0.0
      %4020 = vmatprep.subr.mxu0 0.0
      %4021 = vmatpush1.msra.mxu0 0.0
      %4022 = vmatprep.subr.mxu0 0.0
      %4023 = vmatpush1.msra.mxu0 0.0
      %4024 = vmatprep.subr.mxu0 0.0
      %4025 = vmatpush1.msra.mxu0 0.0
      %4026 = vmatprep.subr.mxu0 0.0
      %4027 = vmatpush1.msra.mxu0 0.0
      %4028 = vmatprep.subr.mxu0 0.0
      %4029 = vmatpush1.msra.mxu0 0.0
      %4030 = vmatprep.subr.mxu0 0.0
      %4031 = vmatpush1.msra.mxu0 0.0
      %4032 = vmatprep.subr.mxu0 0.0
      %4033 = vmatpush1.msra.mxu0 0.0
      %4034 = vmatprep.subr.mxu0 0.0
      %4035 = vmatpush1.msra.mxu0 0.0
      %4036 = vmatprep.subr.mxu0 0.0
      %4037 = vmatpush1.msra.mxu0 0.0
      %4038 = vmatprep.subr.mxu0 0.0
      %4039 = vmatpush1.msra.mxu0 %v1093
      %4040 = vmatprep.subr.mxu0 0.0
      %4041 = vmatpush1.msra.mxu0 %v1092
      %4042 = vmatprep.subr.mxu0 0.0
      %4043 = vmatpush1.msra.mxu0 %v1091
      %4044 = vmatprep.subr.mxu0 0.0
      %4045 = vmatpush1.msra.mxu0 %v1090
      %4046 = vmatprep.subr.mxu0 0.0
      %4047 = vmatpush2.msra.mxu0 0.0
      %4048 = vmatprep.subr.mxu0 0.0
      %4049 = vmatpush2.msra.mxu0 0.0
      %4050 = vmatprep.subr.mxu0 0.0
      %4051 = vmatpush2.msra.mxu0 0.0
      %4052 = vmatprep.subr.mxu0 0.0
      %4053 = vmatpush2.msra.mxu0 0.0
      %4054 = vmatprep.subr.mxu0 0.0
      %4055 = vmatpush2.msra.mxu0 0.0
      %4056 = vmatprep.subr.mxu0 0.0
      %4057 = vmatpush2.msra.mxu0 0.0
      %4058 = vmatprep.subr.mxu0 0.0
      %4059 = vmatpush2.msra.mxu0 0.0
      %4060 = vmatprep.subr.mxu0 0.0
      %4061 = vmatpush2.msra.mxu0 0.0
      %4062 = vmatprep.subr.mxu0 0.0
      %4063 = vmatpush2.msra.mxu0 0.0
      %4064 = vmatprep.subr.mxu0 0.0
      %4065 = vmatpush2.msra.mxu0 0.0
      %4066 = vmatprep.subr.mxu0 0.0
      %4067 = vmatpush2.msra.mxu0 0.0
      %4068 = vmatprep.subr.mxu0 0.0
      %4069 = vmatpush2.msra.mxu0 0.0
      %4070 = vmatprep.subr.mxu0 0.0
      %4071 = vmatpush2.msra.mxu0 0.0
      %4072 = vmatprep.subr.mxu0 0.0
      %4073 = vmatpush2.msra.mxu0 0.0
      %4074 = vmatprep.subr.mxu0 0.0
      %4075 = vmatpush2.msra.mxu0 0.0
      %4076 = vmatprep.subr.mxu0 0.0
      %4077 = vmatpush2.msra.mxu0 0.0
      %4078 = vmatprep.mubr.f32.mxu0 0.0
      %4079 = vmatmul.mubr.f32.gmra.mxu0 %v4012
      %v4080 = vpop.f32.mrf.mxu0
      %v4081 = vadd.f32 %v2721, %v4080
      %v4082 = vpop.f32.mrf.mxu0
      %4083 = vdwg.mxu0
      %v4084 = vadd.f32 %v4011, %v4081
      %v4085 = vxor.u32 %v4084, 2147483648
      %v4086 = vmul.f32 %v4085, 1.442695
      %v4087 = vpow.pop %v4086
      %v4088 = vadd.f32 %v4087, 1.0
      %v4089 = vrcp.pop %v4088
      %v4090 = vmul.f32 1.0, %v4089
      %4092 = vrot.lane.b32.xlu0 %v4081, 64
      %v4093 = vpop.permute.xlu0 %4092
      %v4095 = vmul.f32 %v4090, %v4093
      %4097 = vrot.lane.b32.xlu0 %v4095, 64
      %v4098 = vpop.permute.xlu0 %4097
      %v4100 = vadd.f32 %v4011, %v4098
      %v4101 = vtanh.pop %v4100
      %v4102 = vsub.f32 1.0, %v4090
      %4104 = vrot.lane.b32.xlu0 %v4101, 96
      %v4105 = vpop.permute.xlu0 %4104
      %v4107 = vmul.f32 %v4102, %v4105
      %v4108 = vmul.f32 %v4090, %v3788
      %v4109 = vadd.f32 %v4107, %v4108
      %v4110 = vld [vmem:[#allocation5] sm:$0xff]
      %v4111 = vld [vmem:[#allocation5 + $0x8] sm:$0xff]
      %v4112 = vld [vmem:[#allocation5 + $0x10] sm:$0xff]
      %v4113 = vld [vmem:[#allocation5 + $0x18] sm:$0xff]
      %v4114 = vld [vmem:[#allocation5 + $0x20] sm:$0xff]
      %v4115 = vld [vmem:[#allocation5 + $0x28] sm:$0xff]
      %v4116 = vld [vmem:[#allocation5 + $0x30] sm:$0xff]
      %v4117 = vld [vmem:[#allocation5 + $0x38] sm:$0xff]
      %4126 = vrot.lane.b32.xlu0 %v4110, 32
      %v4127 = vpop.permute.xlu0 %4126
      %4128 = vrot.lane.b32.xlu0 %v4111, 32
      %v4129 = vpop.permute.xlu0 %4128
      %4130 = vrot.lane.b32.xlu0 %v4112, 32
      %v4131 = vpop.permute.xlu0 %4130
      %4132 = vrot.lane.b32.xlu0 %v4113, 32
      %v4133 = vpop.permute.xlu0 %4132
      %4134 = vrot.lane.b32.xlu0 %v4114, 32
      %v4135 = vpop.permute.xlu0 %4134
      %4136 = vrot.lane.b32.xlu0 %v4115, 32
      %v4137 = vpop.permute.xlu0 %4136
      %4138 = vrot.lane.b32.xlu0 %v4116, 32
      %v4139 = vpop.permute.xlu0 %4138
      %4140 = vrot.lane.b32.xlu0 %v4117, 32
      %v4141 = vpop.permute.xlu0 %4140
      %v4150 = vmul.f32 %v4109, %v4127
      %v4151 = vmul.f32 %v4109, %v4129
      %v4152 = vmul.f32 %v4109, %v4131
      %v4153 = vmul.f32 %v4109, %v4133
      %v4154 = vmul.f32 %v4109, %v4135
      %v4155 = vmul.f32 %v4109, %v4137
      %v4156 = vmul.f32 %v4109, %v4139
      %v4157 = vmul.f32 %v4109, %v4141
      %4166 = vrot.lane.b32.xlu0 %v4150, 96
      %v4167 = vpop.permute.xlu0 %4166
      %4168 = vrot.lane.b32.xlu0 %v4151, 96
      %v4169 = vpop.permute.xlu0 %4168
      %4170 = vrot.lane.b32.xlu0 %v4152, 96
      %v4171 = vpop.permute.xlu0 %4170
      %4172 = vrot.lane.b32.xlu0 %v4153, 96
      %v4173 = vpop.permute.xlu0 %4172
      %4174 = vrot.lane.b32.xlu0 %v4154, 96
      %v4175 = vpop.permute.xlu0 %4174
      %4176 = vrot.lane.b32.xlu0 %v4155, 96
      %v4177 = vpop.permute.xlu0 %4176
      %4178 = vrot.lane.b32.xlu0 %v4156, 96
      %v4179 = vpop.permute.xlu0 %4178
      %4180 = vrot.lane.b32.xlu0 %v4157, 96
      %v4181 = vpop.permute.xlu0 %4180
      %v4190 = vsel %vm811, %v4167, 0.0
      %4191 = vadd.xlane.f32.xlu0 %v4190
      %v4192 = vpop.xlane.xlu0 %4191
      %v4193 = vsel %vm811, %v4169, 0.0
      %4194 = vadd.xlane.f32.xlu0 %v4193
      %v4195 = vpop.xlane.xlu0 %4194
      %v4196 = vsel %vm811, %v4171, 0.0
      %4197 = vadd.xlane.f32.xlu0 %v4196
      %v4198 = vpop.xlane.xlu0 %4197
      %v4199 = vsel %vm811, %v4173, 0.0
      %4200 = vadd.xlane.f32.xlu0 %v4199
      %v4201 = vpop.xlane.xlu0 %4200
      %v4202 = vsel %vm811, %v4175, 0.0
      %4203 = vadd.xlane.f32.xlu0 %v4202
      %v4204 = vpop.xlane.xlu0 %4203
      %v4205 = vsel %vm811, %v4177, 0.0
      %4206 = vadd.xlane.f32.xlu0 %v4205
      %v4207 = vpop.xlane.xlu0 %4206
      %v4208 = vsel %vm811, %v4179, 0.0
      %4209 = vadd.xlane.f32.xlu0 %v4208
      %v4210 = vpop.xlane.xlu0 %4209
      %v4211 = vsel %vm811, %v4181, 0.0
      %4212 = vadd.xlane.f32.xlu0 %v4211
      %v4213 = vpop.xlane.xlu0 %4212
      %v4214 = vmax.f32 %v4192, %v4195
      %v4215 = vmax.f32 %v4214, %v4198
      %v4216 = vmax.f32 %v4215, %v4201
      %v4217 = vmax.f32 %v4216, %v4204
      %v4218 = vmax.f32 %v4217, %v4207
      %v4219 = vmax.f32 %v4218, %v4210
      %v4220 = vmax.f32 %v4219, %v4213
      %v4221 = vsub.f32 %v4192, %v4220
      %v4222 = vsub.f32 %v4195, %v4220
      %v4223 = vsub.f32 %v4198, %v4220
      %v4224 = vsub.f32 %v4201, %v4220
      %v4225 = vsub.f32 %v4204, %v4220
      %v4226 = vsub.f32 %v4207, %v4220
      %v4227 = vsub.f32 %v4210, %v4220
      %v4228 = vsub.f32 %v4213, %v4220
      %v4229 = vmul.f32 %v4221, 1.442695
      %v4230 = vpow.pop %v4229
      %v4231 = vmul.f32 %v4222, 1.442695
      %v4232 = vpow.pop %v4231
      %v4233 = vmul.f32 %v4223, 1.442695
      %v4234 = vpow.pop %v4233
      %v4235 = vmul.f32 %v4224, 1.442695
      %v4236 = vpow.pop %v4235
      %v4237 = vmul.f32 %v4225, 1.442695
      %v4238 = vpow.pop %v4237
      %v4239 = vmul.f32 %v4226, 1.442695
      %v4240 = vpow.pop %v4239
      %v4241 = vmul.f32 %v4227, 1.442695
      %v4242 = vpow.pop %v4241
      %v4243 = vmul.f32 %v4228, 1.442695
      %v4244 = vpow.pop %v4243
      %v4245 = vld [vmem:[#allocation6] sm:$0xff]
      %v4246 = vld [vmem:[#allocation6 + $0x8] sm:$0xff]
      %v4247 = vld [vmem:[#allocation6 + $0x10] sm:$0xff]
      %v4248 = vld [vmem:[#allocation6 + $0x18] sm:$0xff]
      %v4249 = vld [vmem:[#allocation6 + $0x20] sm:$0xff]
      %v4250 = vld [vmem:[#allocation6 + $0x28] sm:$0xff]
      %v4251 = vld [vmem:[#allocation6 + $0x30] sm:$0xff]
      %v4252 = vld [vmem:[#allocation6 + $0x38] sm:$0xff]
      %4254 = vset.pattern.permute.xlu0 0
      %4255 = vperm.xlu0 %4254, %v4230
      %v4256 = vpop.permute.xlu0 %4255
      %4259 = vset.pattern.permute.xlu0 0
      %4260 = vperm.xlu0 %4259, %v4232
      %v4261 = vpop.permute.xlu0 %4260
      %4264 = vset.pattern.permute.xlu0 0
      %4265 = vperm.xlu0 %4264, %v4234
      %v4266 = vpop.permute.xlu0 %4265
      %4269 = vset.pattern.permute.xlu0 0
      %4270 = vperm.xlu0 %4269, %v4236
      %v4271 = vpop.permute.xlu0 %4270
      %4274 = vset.pattern.permute.xlu0 0
      %4275 = vperm.xlu0 %4274, %v4238
      %v4276 = vpop.permute.xlu0 %4275
      %4279 = vset.pattern.permute.xlu0 0
      %4280 = vperm.xlu0 %4279, %v4240
      %v4281 = vpop.permute.xlu0 %4280
      %4284 = vset.pattern.permute.xlu0 0
      %4285 = vperm.xlu0 %4284, %v4242
      %v4286 = vpop.permute.xlu0 %4285
      %4289 = vset.pattern.permute.xlu0 0
      %4290 = vperm.xlu0 %4289, %v4244
      %v4291 = vpop.permute.xlu0 %4290
      %v4293 = vmul.f32 %v4256, %v4245
      %v4294 = vmul.f32 %v4261, %v4246
      %v4295 = vmul.f32 %v4266, %v4247
      %v4296 = vmul.f32 %v4271, %v4248
      %v4297 = vmul.f32 %v4276, %v4249
      %v4298 = vmul.f32 %v4281, %v4250
      %v4299 = vmul.f32 %v4286, %v4251
      %v4300 = vmul.f32 %v4291, %v4252
      %v4301 = vadd.f32 %v4293, %v4294
      %v4302 = vadd.f32 %v4230, %v4232
      %v4303 = vadd.f32 %v4301, %v4295
      %v4304 = vadd.f32 %v4302, %v4234
      %v4305 = vadd.f32 %v4303, %v4296
      %v4306 = vadd.f32 %v4304, %v4236
      %v4307 = vadd.f32 %v4305, %v4297
      %v4308 = vadd.f32 %v4306, %v4238
      %v4309 = vadd.f32 %v4307, %v4298
      %v4310 = vadd.f32 %v4308, %v4240
      %v4311 = vadd.f32 %v4309, %v4299
      %v4312 = vadd.f32 %v4310, %v4242
      %v4313 = vadd.f32 %v4311, %v4300
      %v4314 = vadd.f32 %v4312, %v4244
      %v4315 = vrcp.pop %v4314
      %4317 = vset.pattern.permute.xlu0 0
      %4318 = vperm.xlu0 %4317, %v4315
      %v4319 = vpop.permute.xlu0 %4318
      %v4321 = vmul.f32 %v4313, %v4319
      %4323 = vrot.lane.b32.xlu0 %v4109, 96
      %v4324 = vpop.permute.xlu0 %4323
      %4326 = vst.msk [vmem:[#allocation7 + $0x20] sm:$0xff] %vm811, %v4324
      %4328 = vrot.lane.b32.xlu0 %v4321, 32
      %v4329 = vpop.permute.xlu0 %4328
      %4331 = vst.msk [vmem:[#allocation7 + $0x20] sm:$0xff] %vm3046, %v4329
      %v4332 = vld [vmem:[#allocation3 + $0x28] sm:$0xff]
      %v4333 = vsel %vm811, %v4324, 0
      %4335 = vmatprep.subr.mxu0 0.0
      %4336 = vmatpush1.msra.mxu0 0.0
      %4337 = vmatprep.subr.mxu0 0.0
      %4338 = vmatpush1.msra.mxu0 0.0
      %4339 = vmatprep.subr.mxu0 0.0
      %4340 = vmatpush1.msra.mxu0 0.0
      %4341 = vmatprep.subr.mxu0 0.0
      %4342 = vmatpush1.msra.mxu0 0.0
      %4343 = vmatprep.subr.mxu0 0.0
      %4344 = vmatpush1.msra.mxu0 0.0
      %4345 = vmatprep.subr.mxu0 0.0
      %4346 = vmatpush1.msra.mxu0 0.0
      %4347 = vmatprep.subr.mxu0 0.0
      %4348 = vmatpush1.msra.mxu0 0.0
      %4349 = vmatprep.subr.mxu0 0.0
      %4350 = vmatpush1.msra.mxu0 0.0
      %4351 = vmatprep.subr.mxu0 0.0
      %4352 = vmatpush1.msra.mxu0 0.0
      %4353 = vmatprep.subr.mxu0 0.0
      %4354 = vmatpush1.msra.mxu0 0.0
      %4355 = vmatprep.subr.mxu0 0.0
      %4356 = vmatpush1.msra.mxu0 0.0
      %4357 = vmatprep.subr.mxu0 0.0
      %4358 = vmatpush1.msra.mxu0 0.0
      %4359 = vmatprep.subr.mxu0 0.0
      %4360 = vmatpush1.msra.mxu0 %v1093
      %4361 = vmatprep.subr.mxu0 0.0
      %4362 = vmatpush1.msra.mxu0 %v1092
      %4363 = vmatprep.subr.mxu0 0.0
      %4364 = vmatpush1.msra.mxu0 %v1091
      %4365 = vmatprep.subr.mxu0 0.0
      %4366 = vmatpush1.msra.mxu0 %v1090
      %4367 = vmatprep.subr.mxu0 0.0
      %4368 = vmatpush2.msra.mxu0 0.0
      %4369 = vmatprep.subr.mxu0 0.0
      %4370 = vmatpush2.msra.mxu0 0.0
      %4371 = vmatprep.subr.mxu0 0.0
      %4372 = vmatpush2.msra.mxu0 0.0
      %4373 = vmatprep.subr.mxu0 0.0
      %4374 = vmatpush2.msra.mxu0 0.0
      %4375 = vmatprep.subr.mxu0 0.0
      %4376 = vmatpush2.msra.mxu0 0.0
      %4377 = vmatprep.subr.mxu0 0.0
      %4378 = vmatpush2.msra.mxu0 0.0
      %4379 = vmatprep.subr.mxu0 0.0
      %4380 = vmatpush2.msra.mxu0 0.0
      %4381 = vmatprep.subr.mxu0 0.0
      %4382 = vmatpush2.msra.mxu0 0.0
      %4383 = vmatprep.subr.mxu0 0.0
      %4384 = vmatpush2.msra.mxu0 0.0
      %4385 = vmatprep.subr.mxu0 0.0
      %4386 = vmatpush2.msra.mxu0 0.0
      %4387 = vmatprep.subr.mxu0 0.0
      %4388 = vmatpush2.msra.mxu0 0.0
      %4389 = vmatprep.subr.mxu0 0.0
      %4390 = vmatpush2.msra.mxu0 0.0
      %4391 = vmatprep.subr.mxu0 0.0
      %4392 = vmatpush2.msra.mxu0 0.0
      %4393 = vmatprep.subr.mxu0 0.0
      %4394 = vmatpush2.msra.mxu0 0.0
      %4395 = vmatprep.subr.mxu0 0.0
      %4396 = vmatpush2.msra.mxu0 0.0
      %4397 = vmatprep.subr.mxu0 0.0
      %4398 = vmatpush2.msra.mxu0 0.0
      %4399 = vmatprep.mubr.f32.mxu0 0.0
      %4400 = vmatmul.mubr.f32.gmra.mxu0 %v4333
      %v4401 = vpop.f32.mrf.mxu0
      %v4402 = vadd.f32 %v2721, %v4401
      %v4403 = vpop.f32.mrf.mxu0
      %4404 = vdwg.mxu0
      %v4405 = vadd.f32 %v4332, %v4402
      %v4406 = vxor.u32 %v4405, 2147483648
      %v4407 = vmul.f32 %v4406, 1.442695
      %v4408 = vpow.pop %v4407
      %v4409 = vadd.f32 %v4408, 1.0
      %v4410 = vrcp.pop %v4409
      %v4411 = vmul.f32 1.0, %v4410
      %4413 = vrot.lane.b32.xlu0 %v4402, 64
      %v4414 = vpop.permute.xlu0 %4413
      %v4416 = vmul.f32 %v4411, %v4414
      %4418 = vrot.lane.b32.xlu0 %v4416, 64
      %v4419 = vpop.permute.xlu0 %4418
      %v4421 = vadd.f32 %v4332, %v4419
      %v4422 = vtanh.pop %v4421
      %v4423 = vsub.f32 1.0, %v4411
      %4425 = vrot.lane.b32.xlu0 %v4422, 96
      %v4426 = vpop.permute.xlu0 %4425
      %v4428 = vmul.f32 %v4423, %v4426
      %v4429 = vmul.f32 %v4411, %v4109
      %v4430 = vadd.f32 %v4428, %v4429
      %v4431 = vld [vmem:[#allocation5] sm:$0xff]
      %v4432 = vld [vmem:[#allocation5 + $0x8] sm:$0xff]
      %v4433 = vld [vmem:[#allocation5 + $0x10] sm:$0xff]
      %v4434 = vld [vmem:[#allocation5 + $0x18] sm:$0xff]
      %v4435 = vld [vmem:[#allocation5 + $0x20] sm:$0xff]
      %v4436 = vld [vmem:[#allocation5 + $0x28] sm:$0xff]
      %v4437 = vld [vmem:[#allocation5 + $0x30] sm:$0xff]
      %v4438 = vld [vmem:[#allocation5 + $0x38] sm:$0xff]
      %4447 = vrot.lane.b32.xlu0 %v4431, 32
      %v4448 = vpop.permute.xlu0 %4447
      %4449 = vrot.lane.b32.xlu0 %v4432, 32
      %v4450 = vpop.permute.xlu0 %4449
      %4451 = vrot.lane.b32.xlu0 %v4433, 32
      %v4452 = vpop.permute.xlu0 %4451
      %4453 = vrot.lane.b32.xlu0 %v4434, 32
      %v4454 = vpop.permute.xlu0 %4453
      %4455 = vrot.lane.b32.xlu0 %v4435, 32
      %v4456 = vpop.permute.xlu0 %4455
      %4457 = vrot.lane.b32.xlu0 %v4436, 32
      %v4458 = vpop.permute.xlu0 %4457
      %4459 = vrot.lane.b32.xlu0 %v4437, 32
      %v4460 = vpop.permute.xlu0 %4459
      %4461 = vrot.lane.b32.xlu0 %v4438, 32
      %v4462 = vpop.permute.xlu0 %4461
      %v4471 = vmul.f32 %v4430, %v4448
      %v4472 = vmul.f32 %v4430, %v4450
      %v4473 = vmul.f32 %v4430, %v4452
      %v4474 = vmul.f32 %v4430, %v4454
      %v4475 = vmul.f32 %v4430, %v4456
      %v4476 = vmul.f32 %v4430, %v4458
      %v4477 = vmul.f32 %v4430, %v4460
      %v4478 = vmul.f32 %v4430, %v4462
      %4487 = vrot.lane.b32.xlu0 %v4471, 96
      %v4488 = vpop.permute.xlu0 %4487
      %4489 = vrot.lane.b32.xlu0 %v4472, 96
      %v4490 = vpop.permute.xlu0 %4489
      %4491 = vrot.lane.b32.xlu0 %v4473, 96
      %v4492 = vpop.permute.xlu0 %4491
      %4493 = vrot.lane.b32.xlu0 %v4474, 96
      %v4494 = vpop.permute.xlu0 %4493
      %4495 = vrot.lane.b32.xlu0 %v4475, 96
      %v4496 = vpop.permute.xlu0 %4495
      %4497 = vrot.lane.b32.xlu0 %v4476, 96
      %v4498 = vpop.permute.xlu0 %4497
      %4499 = vrot.lane.b32.xlu0 %v4477, 96
      %v4500 = vpop.permute.xlu0 %4499
      %4501 = vrot.lane.b32.xlu0 %v4478, 96
      %v4502 = vpop.permute.xlu0 %4501
      %v4511 = vsel %vm811, %v4488, 0.0
      %4512 = vadd.xlane.f32.xlu0 %v4511
      %v4513 = vpop.xlane.xlu0 %4512
      %v4514 = vsel %vm811, %v4490, 0.0
      %4515 = vadd.xlane.f32.xlu0 %v4514
      %v4516 = vpop.xlane.xlu0 %4515
      %v4517 = vsel %vm811, %v4492, 0.0
      %4518 = vadd.xlane.f32.xlu0 %v4517
      %v4519 = vpop.xlane.xlu0 %4518
      %v4520 = vsel %vm811, %v4494, 0.0
      %4521 = vadd.xlane.f32.xlu0 %v4520
      %v4522 = vpop.xlane.xlu0 %4521
      %v4523 = vsel %vm811, %v4496, 0.0
      %4524 = vadd.xlane.f32.xlu0 %v4523
      %v4525 = vpop.xlane.xlu0 %4524
      %v4526 = vsel %vm811, %v4498, 0.0
      %4527 = vadd.xlane.f32.xlu0 %v4526
      %v4528 = vpop.xlane.xlu0 %4527
      %v4529 = vsel %vm811, %v4500, 0.0
      %4530 = vadd.xlane.f32.xlu0 %v4529
      %v4531 = vpop.xlane.xlu0 %4530
      %v4532 = vsel %vm811, %v4502, 0.0
      %4533 = vadd.xlane.f32.xlu0 %v4532
      %v4534 = vpop.xlane.xlu0 %4533
      %v4535 = vmax.f32 %v4513, %v4516
      %v4536 = vmax.f32 %v4535, %v4519
      %v4537 = vmax.f32 %v4536, %v4522
      %v4538 = vmax.f32 %v4537, %v4525
      %v4539 = vmax.f32 %v4538, %v4528
      %v4540 = vmax.f32 %v4539, %v4531
      %v4541 = vmax.f32 %v4540, %v4534
      %v4542 = vsub.f32 %v4513, %v4541
      %v4543 = vsub.f32 %v4516, %v4541
      %v4544 = vsub.f32 %v4519, %v4541
      %v4545 = vsub.f32 %v4522, %v4541
      %v4546 = vsub.f32 %v4525, %v4541
      %v4547 = vsub.f32 %v4528, %v4541
      %v4548 = vsub.f32 %v4531, %v4541
      %v4549 = vsub.f32 %v4534, %v4541
      %v4550 = vmul.f32 %v4542, 1.442695
      %v4551 = vpow.pop %v4550
      %v4552 = vmul.f32 %v4543, 1.442695
      %v4553 = vpow.pop %v4552
      %v4554 = vmul.f32 %v4544, 1.442695
      %v4555 = vpow.pop %v4554
      %v4556 = vmul.f32 %v4545, 1.442695
      %v4557 = vpow.pop %v4556
      %v4558 = vmul.f32 %v4546, 1.442695
      %v4559 = vpow.pop %v4558
      %v4560 = vmul.f32 %v4547, 1.442695
      %v4561 = vpow.pop %v4560
      %v4562 = vmul.f32 %v4548, 1.442695
      %v4563 = vpow.pop %v4562
      %v4564 = vmul.f32 %v4549, 1.442695
      %v4565 = vpow.pop %v4564
      %v4566 = vld [vmem:[#allocation6] sm:$0xff]
      %v4567 = vld [vmem:[#allocation6 + $0x8] sm:$0xff]
      %v4568 = vld [vmem:[#allocation6 + $0x10] sm:$0xff]
      %v4569 = vld [vmem:[#allocation6 + $0x18] sm:$0xff]
      %v4570 = vld [vmem:[#allocation6 + $0x20] sm:$0xff]
      %v4571 = vld [vmem:[#allocation6 + $0x28] sm:$0xff]
      %v4572 = vld [vmem:[#allocation6 + $0x30] sm:$0xff]
      %v4573 = vld [vmem:[#allocation6 + $0x38] sm:$0xff]
      %4575 = vset.pattern.permute.xlu0 0
      %4576 = vperm.xlu0 %4575, %v4551
      %v4577 = vpop.permute.xlu0 %4576
      %4580 = vset.pattern.permute.xlu0 0
      %4581 = vperm.xlu0 %4580, %v4553
      %v4582 = vpop.permute.xlu0 %4581
      %4585 = vset.pattern.permute.xlu0 0
      %4586 = vperm.xlu0 %4585, %v4555
      %v4587 = vpop.permute.xlu0 %4586
      %4590 = vset.pattern.permute.xlu0 0
      %4591 = vperm.xlu0 %4590, %v4557
      %v4592 = vpop.permute.xlu0 %4591
      %4595 = vset.pattern.permute.xlu0 0
      %4596 = vperm.xlu0 %4595, %v4559
      %v4597 = vpop.permute.xlu0 %4596
      %4600 = vset.pattern.permute.xlu0 0
      %4601 = vperm.xlu0 %4600, %v4561
      %v4602 = vpop.permute.xlu0 %4601
      %4605 = vset.pattern.permute.xlu0 0
      %4606 = vperm.xlu0 %4605, %v4563
      %v4607 = vpop.permute.xlu0 %4606
      %4610 = vset.pattern.permute.xlu0 0
      %4611 = vperm.xlu0 %4610, %v4565
      %v4612 = vpop.permute.xlu0 %4611
      %v4614 = vmul.f32 %v4577, %v4566
      %v4615 = vmul.f32 %v4582, %v4567
      %v4616 = vmul.f32 %v4587, %v4568
      %v4617 = vmul.f32 %v4592, %v4569
      %v4618 = vmul.f32 %v4597, %v4570
      %v4619 = vmul.f32 %v4602, %v4571
      %v4620 = vmul.f32 %v4607, %v4572
      %v4621 = vmul.f32 %v4612, %v4573
      %v4622 = vadd.f32 %v4614, %v4615
      %v4623 = vadd.f32 %v4551, %v4553
      %v4624 = vadd.f32 %v4622, %v4616
      %v4625 = vadd.f32 %v4623, %v4555
      %v4626 = vadd.f32 %v4624, %v4617
      %v4627 = vadd.f32 %v4625, %v4557
      %v4628 = vadd.f32 %v4626, %v4618
      %v4629 = vadd.f32 %v4627, %v4559
      %v4630 = vadd.f32 %v4628, %v4619
      %v4631 = vadd.f32 %v4629, %v4561
      %v4632 = vadd.f32 %v4630, %v4620
      %v4633 = vadd.f32 %v4631, %v4563
      %v4634 = vadd.f32 %v4632, %v4621
      %v4635 = vadd.f32 %v4633, %v4565
      %v4636 = vrcp.pop %v4635
      %4638 = vset.pattern.permute.xlu0 0
      %4639 = vperm.xlu0 %4638, %v4636
      %v4640 = vpop.permute.xlu0 %4639
      %v4642 = vmul.f32 %v4634, %v4640
      %4644 = vrot.lane.b32.xlu0 %v4430, 96
      %v4645 = vpop.permute.xlu0 %4644
      %4647 = vst.msk [vmem:[#allocation7 + $0x28] sm:$0xff] %vm811, %v4645
      %4649 = vrot.lane.b32.xlu0 %v4642, 32
      %v4650 = vpop.permute.xlu0 %4649
      %4652 = vst.msk [vmem:[#allocation7 + $0x28] sm:$0xff] %vm3046, %v4650
      %v4653 = vld [vmem:[#allocation7] sm:$0xff]
      %v4654 = vld [vmem:[#allocation7 + $0x8] sm:$0xff]
      %v4655 = vld [vmem:[#allocation7 + $0x10] sm:$0xff]
      %v4656 = vld [vmem:[#allocation7 + $0x18] sm:$0xff]
      %v4657 = vld [vmem:[#allocation7 + $0x20] sm:$0xff]
      %v4658 = vld [vmem:[#allocation7 + $0x28] sm:$0xff]
      %v4659 = vld [vmem:[%s10] sm:$0xff]
      %v4660 = vld [vmem:[%s10 + $0x10] sm:$0xff]
      %v4661 = vld [vmem:[%s10 + $0x20] sm:$0xff]
      %v4662 = vld [vmem:[%s10 + $0x30] sm:$0xff]
      %v4663 = vld [vmem:[%s10 + $0x40] sm:$0xff]
      %v4664 = vld [vmem:[%s10 + $0x50] sm:$0xff]
      %v4665 = vld [vmem:[%s10 + $0x60] sm:$0xff]
      %v4666 = vld [vmem:[%s10 + $0x70] sm:$0xff]
      %v4667 = vld [vmem:[%s11] sm:$0x1]
      %v4669 = vlaneseq
      %v4670 = vshrl.u32 %v4669, 7
      %v4671 = vsub.s32 0, %v4670
      %v4672 = vrot.slane %v4667, %v4671
      %vm4674 = vcmask 523264
      %v4676 = vsel %vm4674, %v4653, 0
      %v4679 = vsel %vm4674, %v4654, 0
      %v4682 = vsel %vm4674, %v4655, 0
      %v4685 = vsel %vm4674, %v4656, 0
      %v4688 = vsel %vm4674, %v4657, 0
      %v4691 = vsel %vm4674, %v4658, 0
      %4693 = vmatprep.subr.mxu0 0.0
      %4694 = vmatpush1.msra.mxu0 0.0
      %4695 = vmatprep.subr.mxu0 0.0
      %4696 = vmatpush1.msra.mxu0 0.0
      %4697 = vmatprep.subr.mxu0 0.0
      %4698 = vmatpush1.msra.mxu0 0.0
      %4699 = vmatprep.subr.mxu0 0.0
      %4700 = vmatpush1.msra.mxu0 0.0
      %4701 = vmatprep.subr.mxu0 0.0
      %4702 = vmatpush1.msra.mxu0 0.0
      %4703 = vmatprep.subr.mxu0 0.0
      %4704 = vmatpush1.msra.mxu0 0.0
      %4705 = vmatprep.subr.mxu0 0.0
      %4706 = vmatpush1.msra.mxu0 0.0
      %4707 = vmatprep.subr.mxu0 0.0
      %4708 = vmatpush1.msra.mxu0 0.0
      %4709 = vmatprep.subr.mxu0 0.0
      %4710 = vmatpush1.msra.mxu0 %v4666
      %4711 = vmatprep.subr.mxu0 0.0
      %4712 = vmatpush1.msra.mxu0 %v4665
      %4713 = vmatprep.subr.mxu0 0.0
      %4714 = vmatpush1.msra.mxu0 %v4664
      %4715 = vmatprep.subr.mxu0 0.0
      %4716 = vmatpush1.msra.mxu0 %v4663
      %4717 = vmatprep.subr.mxu0 0.0
      %4718 = vmatpush1.msra.mxu0 %v4662
      %4719 = vmatprep.subr.mxu0 0.0
      %4720 = vmatpush1.msra.mxu0 %v4661
      %4721 = vmatprep.subr.mxu0 0.0
      %4722 = vmatpush1.msra.mxu0 %v4660
      %4723 = vmatprep.subr.mxu0 0.0
      %4724 = vmatpush1.msra.mxu0 %v4659
      %4725 = vmatprep.subr.mxu0 0.0
      %4726 = vmatpush2.msra.mxu0 0.0
      %4727 = vmatprep.subr.mxu0 0.0
      %4728 = vmatpush2.msra.mxu0 0.0
      %4729 = vmatprep.subr.mxu0 0.0
      %4730 = vmatpush2.msra.mxu0 0.0
      %4731 = vmatprep.subr.mxu0 0.0
      %4732 = vmatpush2.msra.mxu0 0.0
      %4733 = vmatprep.subr.mxu0 0.0
      %4734 = vmatpush2.msra.mxu0 0.0
      %4735 = vmatprep.subr.mxu0 0.0
      %4736 = vmatpush2.msra.mxu0 0.0
      %4737 = vmatprep.subr.mxu0 0.0
      %4738 = vmatpush2.msra.mxu0 0.0
      %4739 = vmatprep.subr.mxu0 0.0
      %4740 = vmatpush2.msra.mxu0 0.0
      %4741 = vmatprep.subr.mxu0 0.0
      %4742 = vmatpush2.msra.mxu0 0.0
      %4743 = vmatprep.subr.mxu0 0.0
      %4744 = vmatpush2.msra.mxu0 0.0
      %4745 = vmatprep.subr.mxu0 0.0
      %4746 = vmatpush2.msra.mxu0 0.0
      %4747 = vmatprep.subr.mxu0 0.0
      %4748 = vmatpush2.msra.mxu0 0.0
      %4749 = vmatprep.subr.mxu0 0.0
      %4750 = vmatpush2.msra.mxu0 0.0
      %4751 = vmatprep.subr.mxu0 0.0
      %4752 = vmatpush2.msra.mxu0 0.0
      %4753 = vmatprep.subr.mxu0 0.0
      %4754 = vmatpush2.msra.mxu0 0.0
      %4755 = vmatprep.subr.mxu0 0.0
      %4756 = vmatpush2.msra.mxu0 0.0
      %4757 = vmatprep.mubr.f32.mxu0 0.0
      %4758 = vmatmul.mubr.f32.gmra.mxu0 %v4676
      %v4759 = vpop.f32.mrf.mxu0
      %v4760 = vadd.f32 %v4672, %v4759
      %v4761 = vpop.f32.mrf.mxu0
      %4762 = vmatprep.mubr.f32.mxu0 0.0
      %4763 = vmatmul.mubr.f32.gmra.mxu0 %v4679
      %v4764 = vpop.f32.mrf.mxu0
      %v4765 = vadd.f32 %v4672, %v4764
      %v4766 = vpop.f32.mrf.mxu0
      %4767 = vmatprep.mubr.f32.mxu0 0.0
      %4768 = vmatmul.mubr.f32.gmra.mxu0 %v4682
      %v4769 = vpop.f32.mrf.mxu0
      %v4770 = vadd.f32 %v4672, %v4769
      %v4771 = vpop.f32.mrf.mxu0
      %4772 = vmatprep.mubr.f32.mxu0 0.0
      %4773 = vmatmul.mubr.f32.gmra.mxu0 %v4685
      %v4774 = vpop.f32.mrf.mxu0
      %v4775 = vadd.f32 %v4672, %v4774
      %v4776 = vpop.f32.mrf.mxu0
      %4777 = vmatprep.mubr.f32.mxu0 0.0
      %4778 = vmatmul.mubr.f32.gmra.mxu0 %v4688
      %v4779 = vpop.f32.mrf.mxu0
      %v4780 = vadd.f32 %v4672, %v4779
      %v4781 = vpop.f32.mrf.mxu0
      %4782 = vmatprep.mubr.f32.mxu0 0.0
      %4783 = vmatmul.mubr.f32.gmra.mxu0 %v4691
      %v4784 = vpop.f32.mrf.mxu0
      %v4785 = vadd.f32 %v4672, %v4784
      %v4786 = vpop.f32.mrf.mxu0
      %4787 = vdwg.mxu0
      %v4788 = vmax.f32 %v4760, 0.0
      %v4789 = vmax.f32 %v4765, 0.0
      %v4790 = vmax.f32 %v4770, 0.0
      %v4791 = vmax.f32 %v4775, 0.0
      %v4792 = vmax.f32 %v4780, 0.0
      %v4793 = vmax.f32 %v4785, 0.0
      %v4794 = vld [vmem:[%s10 + $0x8] sm:$0xff]
      %v4795 = vld [vmem:[%s10 + $0x18] sm:$0xff]
      %v4796 = vld [vmem:[%s10 + $0x28] sm:$0xff]
      %v4797 = vld [vmem:[%s10 + $0x38] sm:$0xff]
      %v4798 = vld [vmem:[%s10 + $0x48] sm:$0xff]
      %v4799 = vld [vmem:[%s10 + $0x58] sm:$0xff]
      %v4800 = vld [vmem:[%s10 + $0x68] sm:$0xff]
      %v4801 = vld [vmem:[%s10 + $0x78] sm:$0xff]
      %v4802 = vld [vmem:[%s11 + $0x1] sm:$0x1]
      %v4804 = vlaneseq
      %v4805 = vshrl.u32 %v4804, 7
      %v4806 = vsub.s32 0, %v4805
      %v4807 = vrot.slane %v4802, %v4806
      %v4810 = vsel %vm4674, %v4788, 0
      %v4813 = vsel %vm4674, %v4789, 0
      %v4816 = vsel %vm4674, %v4790, 0
      %v4819 = vsel %vm4674, %v4791, 0
      %v4822 = vsel %vm4674, %v4792, 0
      %v4825 = vsel %vm4674, %v4793, 0
      %4827 = vmatprep.subr.mxu0 0.0
      %4828 = vmatpush1.msra.mxu0 0.0
      %4829 = vmatprep.subr.mxu0 0.0
      %4830 = vmatpush1.msra.mxu0 0.0
      %4831 = vmatprep.subr.mxu0 0.0
      %4832 = vmatpush1.msra.mxu0 0.0
      %4833 = vmatprep.subr.mxu0 0.0
      %4834 = vmatpush1.msra.mxu0 0.0
      %4835 = vmatprep.subr.mxu0 0.0
      %4836 = vmatpush1.msra.mxu0 0.0
      %4837 = vmatprep.subr.mxu0 0.0
      %4838 = vmatpush1.msra.mxu0 0.0
      %4839 = vmatprep.subr.mxu0 0.0
      %4840 = vmatpush1.msra.mxu0 0.0
      %4841 = vmatprep.subr.mxu0 0.0
      %4842 = vmatpush1.msra.mxu0 0.0
      %4843 = vmatprep.subr.mxu0 0.0
      %4844 = vmatpush1.msra.mxu0 %v4801
      %4845 = vmatprep.subr.mxu0 0.0
      %4846 = vmatpush1.msra.mxu0 %v4800
      %4847 = vmatprep.subr.mxu0 0.0
      %4848 = vmatpush1.msra.mxu0 %v4799
      %4849 = vmatprep.subr.mxu0 0.0
      %4850 = vmatpush1.msra.mxu0 %v4798
      %4851 = vmatprep.subr.mxu0 0.0
      %4852 = vmatpush1.msra.mxu0 %v4797
      %4853 = vmatprep.subr.mxu0 0.0
      %4854 = vmatpush1.msra.mxu0 %v4796
      %4855 = vmatprep.subr.mxu0 0.0
      %4856 = vmatpush1.msra.mxu0 %v4795
      %4857 = vmatprep.subr.mxu0 0.0
      %4858 = vmatpush1.msra.mxu0 %v4794
      %4859 = vmatprep.subr.mxu0 0.0
      %4860 = vmatpush2.msra.mxu0 0.0
      %4861 = vmatprep.subr.mxu0 0.0
      %4862 = vmatpush2.msra.mxu0 0.0
      %4863 = vmatprep.subr.mxu0 0.0
      %4864 = vmatpush2.msra.mxu0 0.0
      %4865 = vmatprep.subr.mxu0 0.0
      %4866 = vmatpush2.msra.mxu0 0.0
      %4867 = vmatprep.subr.mxu0 0.0
      %4868 = vmatpush2.msra.mxu0 0.0
      %4869 = vmatprep.subr.mxu0 0.0
      %4870 = vmatpush2.msra.mxu0 0.0
      %4871 = vmatprep.subr.mxu0 0.0
      %4872 = vmatpush2.msra.mxu0 0.0
      %4873 = vmatprep.subr.mxu0 0.0
      %4874 = vmatpush2.msra.mxu0 0.0
      %4875 = vmatprep.subr.mxu0 0.0
      %4876 = vmatpush2.msra.mxu0 0.0
      %4877 = vmatprep.subr.mxu0 0.0
      %4878 = vmatpush2.msra.mxu0 0.0
      %4879 = vmatprep.subr.mxu0 0.0
      %4880 = vmatpush2.msra.mxu0 0.0
      %4881 = vmatprep.subr.mxu0 0.0
      %4882 = vmatpush2.msra.mxu0 0.0
      %4883 = vmatprep.subr.mxu0 0.0
      %4884 = vmatpush2.msra.mxu0 0.0
      %4885 = vmatprep.subr.mxu0 0.0
      %4886 = vmatpush2.msra.mxu0 0.0
      %4887 = vmatprep.subr.mxu0 0.0
      %4888 = vmatpush2.msra.mxu0 0.0
      %4889 = vmatprep.subr.mxu0 0.0
      %4890 = vmatpush2.msra.mxu0 0.0
      %4891 = vmatprep.mubr.f32.mxu0 0.0
      %4892 = vmatmul.mubr.f32.gmra.mxu0 %v4810
      %v4893 = vpop.f32.mrf.mxu0
      %v4894 = vadd.f32 %v4807, %v4893
      %v4895 = vpop.f32.mrf.mxu0
      %4896 = vmatprep.mubr.f32.mxu0 0.0
      %4897 = vmatmul.mubr.f32.gmra.mxu0 %v4813
      %v4898 = vpop.f32.mrf.mxu0
      %v4899 = vadd.f32 %v4807, %v4898
      %v4900 = vpop.f32.mrf.mxu0
      %4901 = vmatprep.mubr.f32.mxu0 0.0
      %4902 = vmatmul.mubr.f32.gmra.mxu0 %v4816
      %v4903 = vpop.f32.mrf.mxu0
      %v4904 = vadd.f32 %v4807, %v4903
      %v4905 = vpop.f32.mrf.mxu0
      %4906 = vmatprep.mubr.f32.mxu0 0.0
      %4907 = vmatmul.mubr.f32.gmra.mxu0 %v4819
      %v4908 = vpop.f32.mrf.mxu0
      %v4909 = vadd.f32 %v4807, %v4908
      %v4910 = vpop.f32.mrf.mxu0
      %4911 = vmatprep.mubr.f32.mxu0 0.0
      %4912 = vmatmul.mubr.f32.gmra.mxu0 %v4822
      %v4913 = vpop.f32.mrf.mxu0
      %v4914 = vadd.f32 %v4807, %v4913
      %v4915 = vpop.f32.mrf.mxu0
      %4916 = vmatprep.mubr.f32.mxu0 0.0
      %4917 = vmatmul.mubr.f32.gmra.mxu0 %v4825
      %v4918 = vpop.f32.mrf.mxu0
      %v4919 = vadd.f32 %v4807, %v4918
      %v4920 = vpop.f32.mrf.mxu0
      %4921 = vdwg.mxu0
      %4922 = vmax.xlane.f32.xlu0 %v4894
      %v4923 = vpop.xlane.xlu0 %4922
      %4924 = vmax.xlane.f32.xlu0 %v4899
      %v4925 = vpop.xlane.xlu0 %4924
      %4926 = vmax.xlane.f32.xlu0 %v4904
      %v4927 = vpop.xlane.xlu0 %4926
      %4928 = vmax.xlane.f32.xlu0 %v4909
      %v4929 = vpop.xlane.xlu0 %4928
      %4930 = vmax.xlane.f32.xlu0 %v4914
      %v4931 = vpop.xlane.xlu0 %4930
      %4932 = vmax.xlane.f32.xlu0 %v4919
      %v4933 = vpop.xlane.xlu0 %4932
      %v4934 = vsub.f32 %v4894, %v4923
      %v4935 = vsub.f32 %v4899, %v4925
      %v4936 = vsub.f32 %v4904, %v4927
      %v4937 = vsub.f32 %v4909, %v4929
      %v4938 = vsub.f32 %v4914, %v4931
      %v4939 = vsub.f32 %v4919, %v4933
      %v4940 = vmul.f32 %v4934, 1.442695
      %v4941 = vpow.pop %v4940
      %v4942 = vmul.f32 %v4935, 1.442695
      %v4943 = vpow.pop %v4942
      %v4944 = vmul.f32 %v4936, 1.442695
      %v4945 = vpow.pop %v4944
      %v4946 = vmul.f32 %v4937, 1.442695
      %v4947 = vpow.pop %v4946
      %v4948 = vmul.f32 %v4938, 1.442695
      %v4949 = vpow.pop %v4948
      %v4950 = vmul.f32 %v4939, 1.442695
      %v4951 = vpow.pop %v4950
      %4952 = vadd.xlane.f32.xlu0 %v4941
      %v4953 = vpop.xlane.xlu0 %4952
      %4954 = vadd.xlane.f32.xlu0 %v4943
      %v4955 = vpop.xlane.xlu0 %4954
      %4956 = vadd.xlane.f32.xlu0 %v4945
      %v4957 = vpop.xlane.xlu0 %4956
      %4958 = vadd.xlane.f32.xlu0 %v4947
      %v4959 = vpop.xlane.xlu0 %4958
      %4960 = vadd.xlane.f32.xlu0 %v4949
      %v4961 = vpop.xlane.xlu0 %4960
      %4962 = vadd.xlane.f32.xlu0 %v4951
      %v4963 = vpop.xlane.xlu0 %4962
      %v4964 = vlog2.pop %v4953
      %v4965 = vmul.f32 %v4964, 0.6931472
      %v4966 = vlog2.pop %v4955
      %v4967 = vmul.f32 %v4966, 0.6931472
      %v4968 = vlog2.pop %v4957
      %v4969 = vmul.f32 %v4968, 0.6931472
      %v4970 = vlog2.pop %v4959
      %v4971 = vmul.f32 %v4970, 0.6931472
      %v4972 = vlog2.pop %v4961
      %v4973 = vmul.f32 %v4972, 0.6931472
      %v4974 = vlog2.pop %v4963
      %v4975 = vmul.f32 %v4974, 0.6931472
      %v4976 = vsub.f32 %v4934, %v4965
      %v4977 = vsub.f32 %v4935, %v4967
      %v4978 = vsub.f32 %v4936, %v4969
      %v4979 = vsub.f32 %v4937, %v4971
      %v4980 = vsub.f32 %v4938, %v4973
      %v4981 = vsub.f32 %v4939, %v4975
      %v4982 = vld [vmem:[%s476] sm:$0xff]
      %v4983 = vld [vmem:[%s476 + $0x8] sm:$0xff]
      %v4984 = vld [vmem:[%s476 + $0x10] sm:$0xff]
      %v4985 = vld [vmem:[%s476 + $0x18] sm:$0xff]
      %v4986 = vld [vmem:[%s476 + $0x20] sm:$0xff]
      %v4987 = vld [vmem:[%s476 + $0x28] sm:$0xff]
      %4988 = vset.pattern.permute.xlu0 0
      %4989 = vperm.xlu0 %4988, %v4982
      %v4990 = vpop.permute.xlu0 %4989
      %4991 = vset.pattern.permute.xlu0 0
      %4992 = vperm.xlu0 %4991, %v4983
      %v4993 = vpop.permute.xlu0 %4992
      %4994 = vset.pattern.permute.xlu0 0
      %4995 = vperm.xlu0 %4994, %v4984
      %v4996 = vpop.permute.xlu0 %4995
      %4997 = vset.pattern.permute.xlu0 0
      %4998 = vperm.xlu0 %4997, %v4985
      %v4999 = vpop.permute.xlu0 %4998
      %5000 = vset.pattern.permute.xlu0 0
      %5001 = vperm.xlu0 %5000, %v4986
      %v5002 = vpop.permute.xlu0 %5001
      %5003 = vset.pattern.permute.xlu0 0
      %5004 = vperm.xlu0 %5003, %v4987
      %v5005 = vpop.permute.xlu0 %5004
      %vm5006 = vcmp.eq.s32.totalorder %v509, %v4990
      %vm5007 = vcmp.eq.s32.totalorder %v509, %v4993
      %vm5008 = vcmp.eq.s32.totalorder %v509, %v4996
      %vm5009 = vcmp.eq.s32.totalorder %v509, %v4999
      %vm5010 = vcmp.eq.s32.totalorder %v509, %v5002
      %vm5011 = vcmp.eq.s32.totalorder %v509, %v5005
      %v5012 = vsel %vm5006, 1, 0
      %v5013 = vsel %vm5007, 1, 0
      %v5014 = vsel %vm5008, 1, 0
      %v5015 = vsel %vm5009, 1, 0
      %v5016 = vsel %vm5010, 1, 0
      %v5017 = vsel %vm5011, 1, 0
      %v5018 = vcvt.s32.f32 %v5012
      %v5019 = vcvt.s32.f32 %v5013
      %v5020 = vcvt.s32.f32 %v5014
      %v5021 = vcvt.s32.f32 %v5015
      %v5022 = vcvt.s32.f32 %v5016
      %v5023 = vcvt.s32.f32 %v5017
      %v5024 = vmul.f32 %v4976, %v5018
      %v5025 = vmul.f32 %v4977, %v5019
      %v5026 = vmul.f32 %v4978, %v5020
      %v5027 = vmul.f32 %v4979, %v5021
      %v5028 = vmul.f32 %v4980, %v5022
      %v5029 = vmul.f32 %v4981, %v5023
      %5030 = vadd.xlane.f32.xlu0 %v5024
      %v5031 = vpop.xlane.xlu0 %5030
      %5032 = vadd.xlane.f32.xlu0 %v5025
      %v5033 = vpop.xlane.xlu0 %5032
      %5034 = vadd.xlane.f32.xlu0 %v5026
      %v5035 = vpop.xlane.xlu0 %5034
      %5036 = vadd.xlane.f32.xlu0 %v5027
      %v5037 = vpop.xlane.xlu0 %5036
      %5038 = vadd.xlane.f32.xlu0 %v5028
      %v5039 = vpop.xlane.xlu0 %5038
      %5040 = vadd.xlane.f32.xlu0 %v5029
      %v5041 = vpop.xlane.xlu0 %5040
      %v5042 = vsub.f32 0.0, %v5031
      %v5043 = vsub.f32 0.0, %v5033
      %v5044 = vsub.f32 0.0, %v5035
      %v5045 = vsub.f32 0.0, %v5037
      %v5046 = vsub.f32 0.0, %v5039
      %v5047 = vsub.f32 0.0, %v5041
      %vm5048 = vcmp.ne.s32.totalorder %v4982, 0
      %vm5049 = vcmp.ne.s32.totalorder %v4983, 0
      %vm5050 = vcmp.ne.s32.totalorder %v4984, 0
      %vm5051 = vcmp.ne.s32.totalorder %v4985, 0
      %vm5052 = vcmp.ne.s32.totalorder %v4986, 0
      %vm5053 = vcmp.ne.s32.totalorder %v4987, 0
      %v5054 = vsel %vm5048, 1, 0
      %v5055 = vsel %vm5049, 1, 0
      %v5056 = vsel %vm5050, 1, 0
      %v5057 = vsel %vm5051, 1, 0
      %v5058 = vsel %vm5052, 1, 0
      %v5059 = vsel %vm5053, 1, 0
      %v5060 = vcvt.s32.f32 %v5054
      %v5061 = vcvt.s32.f32 %v5055
      %v5062 = vcvt.s32.f32 %v5056
      %v5063 = vcvt.s32.f32 %v5057
      %v5064 = vcvt.s32.f32 %v5058
      %v5065 = vcvt.s32.f32 %v5059
      %vm5066 = vcmask 7168
      %v5067 = vsel %vm5066, %v5060, 0.0
      %5068 = vadd.xlane.f32.xlu0 %v5067
      %v5069 = vpop.xlane.xlu0 %5068
      %v5070 = vrot.slane %v5069, 4
      %v5071 = vadd.f32 %v5069, %v5070
      %v5072 = vrot.slane %v5071, 2
      %v5073 = vadd.f32 %v5071, %v5072
      %v5074 = vrot.slane %v5073, 1
      %v5075 = vadd.f32 %v5073, %v5074
      %s5076 = vtos %v5075
      %v5077 = vstv %s5076
      %v5078 = vmax.f32 %v5077, 1.0
      %v5079 = vmul.f32 %v5042, %v5060
      %v5080 = vsel %vm5066, %v5079, 0.0
      %5081 = vadd.xlane.f32.xlu0 %v5080
      %v5082 = vpop.xlane.xlu0 %5081
      %v5083 = vrot.slane %v5082, 4
      %v5084 = vadd.f32 %v5082, %v5083
      %v5085 = vrot.slane %v5084, 2
      %v5086 = vadd.f32 %v5084, %v5085
      %v5087 = vrot.slane %v5086, 1
      %v5088 = vadd.f32 %v5086, %v5087
      %s5089 = vtos %v5088
      %v5090 = vstv %s5089
      %v5091 = vrcp.pop %v5078
      %v5092 = vmul.f32 %v5090, %v5091
      %v5093 = vadd.f32 %v5092, 0.0
      %v5094 = vsel %vm5066, %v5061, 0.0
      %5095 = vadd.xlane.f32.xlu0 %v5094
      %v5096 = vpop.xlane.xlu0 %5095
      %v5097 = vrot.slane %v5096, 4
      %v5098 = vadd.f32 %v5096, %v5097
      %v5099 = vrot.slane %v5098, 2
      %v5100 = vadd.f32 %v5098, %v5099
      %v5101 = vrot.slane %v5100, 1
      %v5102 = vadd.f32 %v5100, %v5101
      %s5103 = vtos %v5102
      %v5104 = vstv %s5103
      %v5105 = vmax.f32 %v5104, 1.0
      %v5106 = vmul.f32 %v5043, %v5061
      %v5107 = vsel %vm5066, %v5106, 0.0
      %5108 = vadd.xlane.f32.xlu0 %v5107
      %v5109 = vpop.xlane.xlu0 %5108
      %v5110 = vrot.slane %v5109, 4
      %v5111 = vadd.f32 %v5109, %v5110
      %v5112 = vrot.slane %v5111, 2
      %v5113 = vadd.f32 %v5111, %v5112
      %v5114 = vrot.slane %v5113, 1
      %v5115 = vadd.f32 %v5113, %v5114
      %s5116 = vtos %v5115
      %v5117 = vstv %s5116
      %v5118 = vrcp.pop %v5105
      %v5119 = vmul.f32 %v5117, %v5118
      %v5120 = vadd.f32 %v5093, %v5119
      %v5121 = vsel %vm5066, %v5062, 0.0
      %5122 = vadd.xlane.f32.xlu0 %v5121
      %v5123 = vpop.xlane.xlu0 %5122
      %v5124 = vrot.slane %v5123, 4
      %v5125 = vadd.f32 %v5123, %v5124
      %v5126 = vrot.slane %v5125, 2
      %v5127 = vadd.f32 %v5125, %v5126
      %v5128 = vrot.slane %v5127, 1
      %v5129 = vadd.f32 %v5127, %v5128
      %s5130 = vtos %v5129
      %v5131 = vstv %s5130
      %v5132 = vmax.f32 %v5131, 1.0
      %v5133 = vmul.f32 %v5044, %v5062
      %v5134 = vsel %vm5066, %v5133, 0.0
      %5135 = vadd.xlane.f32.xlu0 %v5134
      %v5136 = vpop.xlane.xlu0 %5135
      %v5137 = vrot.slane %v5136, 4
      %v5138 = vadd.f32 %v5136, %v5137
      %v5139 = vrot.slane %v5138, 2
      %v5140 = vadd.f32 %v5138, %v5139
      %v5141 = vrot.slane %v5140, 1
      %v5142 = vadd.f32 %v5140, %v5141
      %s5143 = vtos %v5142
      %v5144 = vstv %s5143
      %v5145 = vrcp.pop %v5132
      %v5146 = vmul.f32 %v5144, %v5145
      %v5147 = vadd.f32 %v5120, %v5146
      %v5148 = vsel %vm5066, %v5063, 0.0
      %5149 = vadd.xlane.f32.xlu0 %v5148
      %v5150 = vpop.xlane.xlu0 %5149
      %v5151 = vrot.slane %v5150, 4
      %v5152 = vadd.f32 %v5150, %v5151
      %v5153 = vrot.slane %v5152, 2
      %v5154 = vadd.f32 %v5152, %v5153
      %v5155 = vrot.slane %v5154, 1
      %v5156 = vadd.f32 %v5154, %v5155
      %s5157 = vtos %v5156
      %v5158 = vstv %s5157
      %v5159 = vmax.f32 %v5158, 1.0
      %v5160 = vmul.f32 %v5045, %v5063
      %v5161 = vsel %vm5066, %v5160, 0.0
      %5162 = vadd.xlane.f32.xlu0 %v5161
      %v5163 = vpop.xlane.xlu0 %5162
      %v5164 = vrot.slane %v5163, 4
      %v5165 = vadd.f32 %v5163, %v5164
      %v5166 = vrot.slane %v5165, 2
      %v5167 = vadd.f32 %v5165, %v5166
      %v5168 = vrot.slane %v5167, 1
      %v5169 = vadd.f32 %v5167, %v5168
      %s5170 = vtos %v5169
      %v5171 = vstv %s5170
      %v5172 = vrcp.pop %v5159
      %v5173 = vmul.f32 %v5171, %v5172
      %v5174 = vadd.f32 %v5147, %v5173
      %v5175 = vsel %vm5066, %v5064, 0.0
      %5176 = vadd.xlane.f32.xlu0 %v5175
      %v5177 = vpop.xlane.xlu0 %5176
      %v5178 = vrot.slane %v5177, 4
      %v5179 = vadd.f32 %v5177, %v5178
      %v5180 = vrot.slane %v5179, 2
      %v5181 = vadd.f32 %v5179, %v5180
      %v5182 = vrot.slane %v5181, 1
      %v5183 = vadd.f32 %v5181, %v5182
      %s5184 = vtos %v5183
      %v5185 = vstv %s5184
      %v5186 = vmax.f32 %v5185, 1.0
      %v5187 = vmul.f32 %v5046, %v5064
      %v5188 = vsel %vm5066, %v5187, 0.0
      %5189 = vadd.xlane.f32.xlu0 %v5188
      %v5190 = vpop.xlane.xlu0 %5189
      %v5191 = vrot.slane %v5190, 4
      %v5192 = vadd.f32 %v5190, %v5191
      %v5193 = vrot.slane %v5192, 2
      %v5194 = vadd.f32 %v5192, %v5193
      %v5195 = vrot.slane %v5194, 1
      %v5196 = vadd.f32 %v5194, %v5195
      %s5197 = vtos %v5196
      %v5198 = vstv %s5197
      %v5199 = vrcp.pop %v5186
      %v5200 = vmul.f32 %v5198, %v5199
      %v5201 = vadd.f32 %v5174, %v5200
      %v5202 = vsel %vm5066, %v5065, 0.0
      %5203 = vadd.xlane.f32.xlu0 %v5202
      %v5204 = vpop.xlane.xlu0 %5203
      %v5205 = vrot.slane %v5204, 4
      %v5206 = vadd.f32 %v5204, %v5205
      %v5207 = vrot.slane %v5206, 2
      %v5208 = vadd.f32 %v5206, %v5207
      %v5209 = vrot.slane %v5208, 1
      %v5210 = vadd.f32 %v5208, %v5209
      %s5211 = vtos %v5210
      %v5212 = vstv %s5211
      %v5213 = vmax.f32 %v5212, 1.0
      %v5214 = vmul.f32 %v5047, %v5065
      %v5215 = vsel %vm5066, %v5214, 0.0
      %5216 = vadd.xlane.f32.xlu0 %v5215
      %v5217 = vpop.xlane.xlu0 %5216
      %v5218 = vrot.slane %v5217, 4
      %v5219 = vadd.f32 %v5217, %v5218
      %v5220 = vrot.slane %v5219, 2
      %v5221 = vadd.f32 %v5219, %v5220
      %v5222 = vrot.slane %v5221, 1
      %v5223 = vadd.f32 %v5221, %v5222
      %s5224 = vtos %v5223
      %v5225 = vstv %s5224
      %v5226 = vrcp.pop %v5213
      %v5227 = vmul.f32 %v5225, %v5226
      %v5228 = vadd.f32 %v5201, %v5227
      %v5229 = vmul.f32 %v5228, 0.25
      %vm5230 = vcmask 0
      %5231 = vst.msk [vmem:[%s483] sm:$0x1] %vm5230, %v5229
      %p5232 = scmp.lt.s32.totalorder %s23, 7
      %s5233 = scalar_select %p5232, %s23, 7
      %s5234 = scalar_lea.vmem %s12, %s5233
      // Predicated region
      $region69: #{forward.1} parent=67 // pred_check
        %p5235 = pneg %p318
      $region70: #{forward.1} parent=67 // pred_check_branch
        %5237 = sbr.rel (%p5235) target = $region72
      $region71: #{forward.1} parent=67 // pred_region
        _
      $region72: #{forward.1} parent=67 // pred_fallthru
        _
    $region68: #{forward.1} parent=5 // pred_fallthru
      _
    %p5238 = scmp.le.s32.totalorder 2, %s18
    // Predicated region
    $region73: #{forward.1} parent=5 // pred_check
      %p5239 = pneg %p5238
    $region74: #{forward.1} parent=5 // pred_check_branch
      %5241 = sbr.rel (%p5239) target = $region76
    $region75: #{forward.1} parent=5 // pred_region
      %s5242 = ssub.s32 %s18, 2
      // Predicated region
      $region77: #{forward.1} parent=75 // pred_check
        %p5243 = pneg %p324
      $region78: #{forward.1} parent=75 // pred_check_branch
        %5245 = sbr.rel (%p5243) target = $region80
      $region79: #{forward.1} parent=75 // pred_region
        %p5246 = scmp.lt.s32.totalorder %s24, 7
        %s5247 = scalar_select %p5246, %s24, 7
        %s5248 = scalar_lea.vmem %s12, %s5247
      $region80: #{forward.1} parent=75 // pred_fallthru
        _
    $region76: #{forward.1} parent=5 // pred_fallthru
      _
  $region6: #{forward.1} parent=0 // loop_footer
    %s22 = sadd.s32 1, %s18
  $region7: #{forward.1} parent=0 // loop_footer_branch
    %17 = sbr.rel target = $region3
  $region8: #{forward.1} parent=0 // loop_exit
    _

</llo_original>
